<compile_context>
chip_gen: v7x
topology: tpu7x:2x2x1
jax: 0.10.0
libtpu: 0.0.40
codegen_flags: <defaults>
</compile_context>

<pallas_src>
import math

import numpy as np
import jax
import jax.numpy as jnp
from jax.experimental import pallas as pl
from jax.experimental.pallas import tpu as pltpu

# ----------------------------- model constants ------------------------------
FEATS = 4                        # n_feats
WIN = 10                         # n_window
D_MODEL = 2 * FEATS              # d_model
NHEAD = FEATS                    # nhead
HEAD_DIM = D_MODEL // NHEAD      # 2
DFF = 16                         # dim_feedforward
ATTN_SCALE = 1.0 / math.sqrt(HEAD_DIM)
SQRT_F = math.sqrt(FEATS)
LEAKY_SLOPE = 1.0                # nn.LeakyReLU(True) -> slope 1.0
N_PARAMS = 8 + 12 + 12 + 2


# ===================== pure-JAX reference (per element) =====================
def _mm(a, b):
    return jax.lax.dot_general(a, b, (((1,), (0,)), ((), ())),
                               preferred_element_type=jnp.float32)


def _mm_t(a, b):
    return jax.lax.dot_general(a, b, (((1,), (1,)), ((), ())),
                               preferred_element_type=jnp.float32)


def _leaky(x):
    return jnp.where(x >= 0.0, x, LEAKY_SLOPE * x)


def _mha(q_in, k_in, v_in, w_qkv, b_qkv, w_o, b_o):
    d = D_MODEL
    q = _mm_t(q_in, w_qkv[0:d, :]) + b_qkv[:, 0:d]
    k = _mm_t(k_in, w_qkv[d:2 * d, :]) + b_qkv[:, d:2 * d]
    v = _mm_t(v_in, w_qkv[2 * d:3 * d, :]) + b_qkv[:, 2 * d:3 * d]
    out = jnp.zeros((q_in.shape[0], d), jnp.float32) + b_o
    for h in range(NHEAD):
        sl = slice(h * HEAD_DIM, (h + 1) * HEAD_DIM)
        s = _mm_t(q[:, sl] * ATTN_SCALE, k[:, sl])
        s = s - jnp.max(s, axis=-1, keepdims=True)
        e = jnp.exp(s)
        attn = e / jnp.sum(e, axis=-1, keepdims=True)
        out = out + _mm_t(_mm(attn, v[:, sl]), w_o[:, sl])
    return out


def _encoder_layer(x, p):
    w_qkv, b_qkv, w_o, b_o, w1, b1, w2, b2 = p
    x = x + _mha(x, x, x, w_qkv, b_qkv, w_o, b_o)
    h = _leaky(_mm_t(x, w1) + b1)
    return x + _mm_t(h, w2) + b2


def _decoder_layer(t, mem, p):
    (sw, sb, swo, sbo, cw, cb, cwo, cbo, w1, b1, w2, b2) = p
    t = t + _mha(t, t, t, sw, sb, swo, sbo)
    t = t + _mha(t, mem, mem, cw, cb, cwo, cbo)
    h = _leaky(_mm_t(t, w1) + b1)
    return t + _mm_t(h, w2) + b2


def forward_single(src, tgt, pe, p1, p2, params):
    """Faithful TranAD.forward for one batch element. src: (W,F), tgt: (1,F)."""
    enc_p, dec1_p, dec2_p = params[0:8], params[8:20], params[20:32]
    w_f, b_f = params[32], params[33]
    tgt2 = _mm(tgt, p1 + p2)

    def branch(c, dec_p):
        x = (_mm(src, p1) + _mm(c, p2)) * SQRT_F + pe
        memory = _encoder_layer(x, enc_p)
        t = _decoder_layer(tgt2, memory, dec_p)
        return 1.0 / (1.0 + jnp.exp(-(_mm_t(t, w_f) + b_f)))

    x1 = branch(jnp.zeros_like(src), dec1_p)
    x2 = branch((x1 - src) ** 2, dec2_p)
    return x1, x2


# ---------------------------- shared constants -------------------------------
def make_pos_encoding():
    pos = jnp.arange(WIN, dtype=jnp.float32)[:, None]
    div = jnp.exp(jnp.arange(D_MODEL, dtype=jnp.float32)
                  * (-math.log(10000.0) / D_MODEL))
    return jnp.sin(pos * div) + jnp.cos(pos * div)          # (W, D)


def make_concat_projectors():
    eye = jnp.eye(FEATS, dtype=jnp.float32)
    zer = jnp.zeros((FEATS, FEATS), jnp.float32)
    return (jnp.concatenate([eye, zer], axis=1),
            jnp.concatenate([zer, eye], axis=1))


def init_params(key):
    d, f, dff = D_MODEL, FEATS, DFF
    keys = iter(jax.random.split(key, N_PARAMS))

    def w(shape, scale=0.3):
        return jax.random.uniform(next(keys), shape, jnp.float32, -scale, scale)

    def attn():
        return [w((3 * d, d)), w((1, 3 * d)), w((d, d)), w((1, d))]

    def ffn():
        return [w((dff, d)), w((1, dff)), w((d, dff)), w((1, d))]

    params = attn() + ffn()
    params += attn() + attn() + ffn()
    params += attn() + attn() + ffn()
    params += [w((f, d)), w((1, f))]
    return params


# ========================= constant / weight packing =========================
def _bd(w, reps):
    """Block-diagonal repeat of an (in, out) matrix."""
    w = np.asarray(w, np.float32)
    r, c = w.shape
    out = np.zeros((reps * r, reps * c), np.float32)
    for k in range(reps):
        out[k * r:(k + 1) * r, k * c:(k + 1) * c] = w
    return out


def _enc_attn_structs():
    """Lane-layout helpers for full (W x W) self-attention, all heads at once."""
    L = WIN * NHEAD * WIN                                    # 400
    A = np.zeros((HEAD_DIM, WIN * D_MODEL, L), np.float32)   # Q expansion (scaled)
    B = np.zeros((HEAD_DIM, WIN * D_MODEL, L), np.float32)   # K / V expansion
    Dm = np.zeros((HEAD_DIM, L, WIN * D_MODEL), np.float32)  # sum_j + head placement
    G1 = np.zeros((L, WIN * NHEAD), np.float32)              # group (softmax) sums
    G2 = np.zeros((WIN * NHEAD, L), np.float32)              # broadcast back
    for i in range(WIN):
        for h in range(NHEAD):
            g = i * NHEAD + h
            for j in range(WIN):
                s = g * WIN + j
                for dd in range(HEAD_DIM):
                    A[dd, i * D_MODEL + h * HEAD_DIM + dd, s] = ATTN_SCALE
                    B[dd, j * D_MODEL + h * HEAD_DIM + dd, s] = 1.0
                    Dm[dd, s, i * D_MODEL + h * HEAD_DIM + dd] = 1.0
                G1[s, g] = 1.0
                G2[g, s] = 1.0
    return A[0], A[1], B[0], B[1], Dm[0], Dm[1], G1, G2


def _dec_attn_structs():
    """Same helpers for cross-attention with a length-1 query."""
    L = NHEAD * WIN                                          # 40
    A = np.zeros((HEAD_DIM, D_MODEL, L), np.float32)
    B = np.zeros((HEAD_DIM, WIN * D_MODEL, L), np.float32)
    Dm = np.zeros((HEAD_DIM, L, D_MODEL), np.float32)
    G1 = np.zeros((L, NHEAD), np.float32)
    G2 = np.zeros((NHEAD, L), np.float32)
    for h in range(NHEAD):
        for j in range(WIN):
            s = h * WIN + j
            for dd in range(HEAD_DIM):
                A[dd, h * HEAD_DIM + dd, s] = ATTN_SCALE
                B[dd, j * D_MODEL + h * HEAD_DIM + dd, s] = 1.0
                Dm[dd, s, h * HEAD_DIM + dd] = 1.0
            G1[s, h] = 1.0
            G2[h, s] = 1.0
    return A[0], A[1], B[0], B[1], Dm[0], Dm[1], G1, G2


class _Packer:
    """Packs many small constants into one (rows, width) slab; rows 8-aligned."""

    def __init__(self, width):
        self.width = width
        self.rows = 0
        self.chunks = []
        self.index = {}

    def add(self, name, arr):
        arr = np.asarray(arr, np.float32)
        if arr.ndim == 1:
            arr = arr[None, :]
        r, c = arr.shape
        rp = -(-r // 8) * 8
        buf = np.zeros((rp, self.width), np.float32)
        buf[:r, :c] = arr
        self.index[name] = (self.rows, r, c)
        self.chunks.append(buf)
        self.rows += rp

    def finalize(self):
        return np.concatenate(self.chunks, axis=0)


def pack_tranad_params(params):
    ps = [np.asarray(p, np.float32) for p in params]
    enc, dec1, dec2 = ps[0:8], ps[8:20], ps[20:32]
    w_f, b_f = ps[32], ps[33]
    pe = np.asarray(make_pos_encoding(), np.float32)
    p1, p2 = (np.asarray(a, np.float32) for a in make_concat_projectors())
    d = D_MODEL

    pk = {400: _Packer(400), 160: _Packer(160), 80: _Packer(80), 40: _Packer(40)}

    A0, A1, B0, B1, D0, D1, G1e, G2e = _enc_attn_structs()
    for n, a in (('A0', A0), ('A1', A1), ('B0', B0), ('B1', B1), ('G2e', G2e)):
        pk[400].add(n, a)
    pk[80].add('D0', D0)
    pk[80].add('D1', D1)
    pk[40].add('G1e', G1e)

    Ac0, Ac1, Bc0, Bc1, Dc0, Dc1, G1c, G2c = _dec_attn_structs()
    for n, a in (('Ac0', Ac0), ('Ac1', Ac1), ('Bc0', Bc0), ('Bc1', Bc1),
                 ('Dc0', Dc0), ('Dc1', Dc1), ('G1c', G1c), ('G2c', G2c)):
        pk[40].add(n, a)
    pk[40].add('tile_w', np.tile(np.eye(FEATS, dtype=np.float32), (1, WIN)))

    # embedding: cat(src, c) * sqrt(n_feats) + pe (sqrt folded into projectors)
    pk[80].add('bd_p1', _bd(p1 * SQRT_F, WIN))
    pk[80].add('bd_p2', _bd(p2 * SQRT_F, WIN))
    pk[80].add('pe', pe.reshape(-1))

    # encoder weights (shared by both branches)
    wqkv, bqkv, wo, bo, w1, b1, w2, b2 = enc
    pk[80].add('enc_q_w', _bd(wqkv[0:d].T, WIN))
    pk[80].add('enc_q_b', np.tile(bqkv[0, 0:d], WIN))
    pk[80].add('enc_k_w', _bd(wqkv[d:2 * d].T, WIN))
    pk[80].add('enc_k_b', np.tile(bqkv[0, d:2 * d], WIN))
    pk[80].add('enc_v_w', _bd(wqkv[2 * d:3 * d].T, WIN))
    pk[80].add('enc_v_b', np.tile(bqkv[0, 2 * d:3 * d], WIN))
    pk[80].add('enc_o_w', _bd(wo.T, WIN))
    pk[80].add('enc_o_b', np.tile(bo[0], WIN))
    pk[160].add('enc_ff1_w', _bd(w1.T, WIN))
    pk[160].add('enc_ff1_b', np.tile(b1[0], WIN))
    pk[80].add('enc_ff2_w', _bd(w2.T, WIN))
    pk[80].add('enc_ff2_b', np.tile(b2[0], WIN))

    for tag, dec in (('d1', dec1), ('d2', dec2)):
        (sw, sb, swo, sbo, cw, cb, cwo, cbo, w1, b1, w2, b2) = dec
        pk[40].add(tag + '_sa_v_w', sw[2 * d:3 * d].T)
        pk[40].add(tag + '_sa_v_b', sb[0, 2 * d:3 * d])
        pk[40].add(tag + '_sa_o_w', swo.T)
        pk[40].add(tag + '_sa_o_b', sbo[0])
        pk[40].add(tag + '_ca_q_w', cw[0:d].T)
        pk[40].add(tag + '_ca_q_b', cb[0, 0:d])
        pk[80].add(tag + '_ca_k_w', _bd(cw[d:2 * d].T, WIN))
        pk[80].add(tag + '_ca_k_b', np.tile(cb[0, d:2 * d], WIN))
        pk[80].add(tag + '_ca_v_w', _bd(cw[2 * d:3 * d].T, WIN))
        pk[80].add(tag + '_ca_v_b', np.tile(cb[0, 2 * d:3 * d], WIN))
        pk[40].add(tag + '_ca_o_w', cwo.T)
        pk[40].add(tag + '_ca_o_b', cbo[0])
        pk[40].add(tag + '_ff1_w', w1.T)
        pk[40].add(tag + '_ff1_b', b1[0])
        pk[40].add(tag + '_ff2_w', w2.T)
        pk[40].add(tag + '_ff2_b', b2[0])

    pk[40].add('fcn_w', w_f.T)
    pk[40].add('fcn_b', b_f[0])

    slabs = tuple(jnp.asarray(pk[k].finalize()) for k in (400, 160, 80, 40))
    idx = tuple(pk[k].index for k in (400, 160, 80, 40))
    return slabs, idx


# ================================ kernel =====================================
def _read(ref, entry):
    r0, nr, nc = entry
    return ref[r0:r0 + nr, 0:nc]


def _make_kernel(idx400, idx160, idx80, idx40):
    def kernel(src_ref, tgt_ref, c400_ref, c160_ref, c80_ref, c40_ref, out_ref):
        def mm(a, b):
            return jnp.dot(a, b, preferred_element_type=jnp.float32)

        def r4h(n): return _read(c400_ref, idx400[n])
        def r16(n): return _read(c160_ref, idx160[n])
        def r8(n):  return _read(c80_ref, idx80[n])
        def r4(n):  return _read(c40_ref, idx40[n])

        src = src_ref[...]                      # (B, W*F)
        tgt2 = tgt_ref[...]                     # (B, 2*F)  == tgt.repeat(1,1,2)

        def softmax_groups(s, g1, g2):
            # per-row shift is constant within every softmax group -> invariant
            s = s - jnp.max(s, axis=-1, keepdims=True)
            e = jnp.exp(s)
            den = mm(mm(e, g1), g2)
            return e * pl.reciprocal(den, approx=True)

        def encoder(x):                         # x: (B, W*D)
            q = mm(x, r8('enc_q_w')) + r8('enc_q_b')
            k = mm(x, r8('enc_k_w')) + r8('enc_k_b')
            v = mm(x, r8('enc_v_w')) + r8('enc_v_b')
            s = (mm(q, r4h('A0')) * mm(k, r4h('B0'))
                 + mm(q, r4h('A1')) * mm(k, r4h('B1')))          # (B, W*H*W)
            wt = softmax_groups(s, r4('G1e'), r4h('G2e'))
            o = (mm(wt * mm(v, r4h('B0')), r8('D0'))
                 + mm(wt * mm(v, r4h('B1')), r8('D1')))          # (B, W*D)
            x = x + mm(o, r8('enc_o_w')) + r8('enc_o_b')
            # FFN; LeakyReLU(True) -> slope 1.0 == identity
            h = mm(x, r16('enc_ff1_w')) + r16('enc_ff1_b')
            return x + mm(h, r8('enc_ff2_w')) + r8('enc_ff2_b')

        def decoder(t, mem, p):                 # t: (B, D), mem: (B, W*D)
            # self-attention over a length-1 sequence: softmax == 1
            v_sa = mm(t, r4(p + '_sa_v_w')) + r4(p + '_sa_v_b')
            t = t + mm(v_sa, r4(p + '_sa_o_w')) + r4(p + '_sa_o_b')
            # cross-attention
            q = mm(t, r4(p + '_ca_q_w')) + r4(p + '_ca_q_b')
            k = mm(mem, r8(p + '_ca_k_w')) + r8(p + '_ca_k_b')
            v = mm(mem, r8(p + '_ca_v_w')) + r8(p + '_ca_v_b')
            s = (mm(q, r4('Ac0')) * mm(k, r4('Bc0'))
                 + mm(q, r4('Ac1')) * mm(k, r4('Bc1')))          # (B, H*W)
            wt = softmax_groups(s, r4('G1c'), r4('G2c'))
            o = (mm(wt * mm(v, r4('Bc0')), r4('Dc0'))
                 + mm(wt * mm(v, r4('Bc1')), r4('Dc1')))         # (B, D)
            t = t + mm(o, r4(p + '_ca_o_w')) + r4(p + '_ca_o_b')
            h = mm(t, r4(p + '_ff1_w')) + r4(p + '_ff1_b')
            return t + mm(h, r4(p + '_ff2_w')) + r4(p + '_ff2_b')

        def fcn(t):
            z = mm(t, r4('fcn_w')) + r4('fcn_b')
            return pl.reciprocal(1.0 + jnp.exp(-z), approx=True)  # sigmoid

        pe = r8('pe')
        src_emb = mm(src, r8('bd_p1'))          # shared left half of cat(src, c)*sqrt(F)

        # branch 1: c = 0  (its contribution is identically zero -> dropped)
        x1 = fcn(decoder(tgt2, encoder(src_emb + pe), 'd1'))

        # branch 2: c = (x1 - src)**2 (x1 broadcast over the window)
        c = mm(x1, r4('tile_w')) - src
        x = src_emb + mm(c * c, r8('bd_p2')) + pe
        x2 = fcn(decoder(tgt2, encoder(x), 'd2'))

        nf = x1.shape[-1]
        out_ref[:, 0:nf] = x1
        out_ref[:, nf:2 * nf] = x2

    return kernel


# ================================ wrapper ====================================
def make_tranad_forward(params, b_blk=32):
    """Returns jitted (src, tgt) -> (x1, x2); src: (W,B,F), tgt: (1,B,F)."""
    slabs, idx = pack_tranad_params(params)
    kernel = _make_kernel(*idx)

    def forward(src, tgt):
        w, b, f = src.shape
        d2 = 2 * f
        # batch-major, (window, feature) flattened into lanes: (B, W*F)
        src_l = jnp.transpose(src, (1, 0, 2)).reshape(b, w * f)
        # tgt.repeat(1, 1, 2) hoisted to the wrapper
        tgt2 = jnp.concatenate([tgt[0], tgt[0]], axis=-1)        # (B, 2*F)
        b_pad = pl.cdiv(b, b_blk) * b_blk
        if b_pad != b:
            src_l = jnp.pad(src_l, ((0, b_pad - b), (0, 0)))
            tgt2 = jnp.pad(tgt2, ((0, b_pad - b), (0, 0)))

        in_specs = [pl.BlockSpec((b_blk, w * f), lambda i: (i, 0)),
                    pl.BlockSpec((b_blk, d2), lambda i: (i, 0))]
        in_specs += [pl.BlockSpec(s.shape, lambda i: (0, 0)) for s in slabs]

        out = pl.pallas_call(
            kernel,
            grid=(b_pad // b_blk,),
            in_specs=in_specs,
            out_specs=pl.BlockSpec((b_blk, d2), lambda i: (i, 0)),
            out_shape=jax.ShapeDtypeStruct((b_pad, d2), jnp.float32),
            compiler_params=pltpu.CompilerParams(
                dimension_semantics=("parallel",)),
        )(src_l, tgt2, *slabs)

        x1 = out[:b, 0:f].reshape(1, b, f)
        x2 = out[:b, f:d2].reshape(1, b, f)
        return x1, x2

    return jax.jit(forward)


# ================================== main =====================================
if __name__ == "__main__":
    key = jax.random.PRNGKey(0)
    k_src, k_tgt, k_par = jax.random.split(key, 3)

    batch = 128                                # TranAD's own batch size
    src = jax.random.normal(k_src, (WIN, batch, FEATS), jnp.float32)   # (10, 128, 4)
    tgt = jax.random.normal(k_tgt, (1, batch, FEATS), jnp.float32)     # (1, 128, 4)
    params = init_params(k_par)

    fwd = make_tranad_forward(params, b_blk=32)
    x1, x2 = fwd(src, tgt)
    jax.block_until_ready((x1, x2))

    # pure-JAX reference (faithful per-element math) to validate the lowering
    pe = make_pos_encoding()
    p1, p2 = make_concat_projectors()
    ref_fn = jax.jit(jax.vmap(forward_single,
                              in_axes=(1, 1, None, None, None, None), out_axes=1))
    r1, r2 = ref_fn(src, tgt, pe, p1, p2, params)
    jax.block_until_ready((r1, r2))

    assert x1.shape == (1, batch, FEATS) and x2.shape == (1, batch, FEATS)
    assert bool(jnp.allclose(x1, r1, atol=2e-2))
    assert bool(jnp.allclose(x2, r2, atol=2e-2))
    print("KERNEL_OK")
</pallas_src>

<mosaic_0001>
module attributes {stable_mosaic.version = 11 : i64} {
  func.func @kernel(%arg0: i32, %arg1: memref<32x40xf32, #tpu.memory_space<vmem>>, %arg2: memref<32x8xf32, #tpu.memory_space<vmem>>, %arg3: memref<360x400xf32, #tpu.memory_space<vmem>>, %arg4: memref<88x160xf32, #tpu.memory_space<vmem>>, %arg5: memref<1760x80xf32, #tpu.memory_space<vmem>>, %arg6: memref<936x40xf32, #tpu.memory_space<vmem>>, %arg7: memref<32x8xf32, #tpu.memory_space<vmem>>) attributes {dimension_semantics = [#tpu.dimension_semantics<parallel>], iteration_bounds = array<i64: 4>, scalar_prefetch = 0 : i64, scratch_operands = 0 : i64, tpu.core_type = #tpu.core_type<tc>, window_params = [{transform_indices = @transform_0, window_bounds = array<i64: 32, 40>}, {transform_indices = @transform_1, window_bounds = array<i64: 32, 8>}, {pipeline_mode = #tpu.pipeline_mode<synchronous>, transform_indices = @transform_2, window_bounds = array<i64: 360, 400>}, {pipeline_mode = #tpu.pipeline_mode<synchronous>, transform_indices = @transform_3, window_bounds = array<i64: 88, 160>}, {pipeline_mode = #tpu.pipeline_mode<synchronous>, transform_indices = @transform_4, window_bounds = array<i64: 1760, 80>}, {pipeline_mode = #tpu.pipeline_mode<synchronous>, transform_indices = @transform_5, window_bounds = array<i64: 936, 40>}, {transform_indices = @transform_6, window_bounds = array<i64: 32, 8>}]} {
    %c0 = arith.constant 0 : index
    %c0_0 = arith.constant 0 : index
    %0 = vector.load %arg1[%c0, %c0_0] : memref<32x40xf32, #tpu.memory_space<vmem>>, vector<32x40xf32>
    %c0_1 = arith.constant 0 : index
    %c0_2 = arith.constant 0 : index
    %1 = vector.load %arg2[%c0_1, %c0_2] : memref<32x8xf32, #tpu.memory_space<vmem>>, vector<32x8xf32>
    %c880 = arith.constant 880 : index
    %c0_3 = arith.constant 0 : index
    %2 = vector.load %arg5[%c880, %c0_3] : memref<1760x80xf32, #tpu.memory_space<vmem>>, vector<1x80xf32>
    %c800 = arith.constant 800 : index
    %c0_4 = arith.constant 0 : index
    %3 = vector.load %arg5[%c800, %c0_4] : memref<1760x80xf32, #tpu.memory_space<vmem>>, vector<40x80xf32>
    %cst = arith.constant dense<0.000000e+00> : vector<32x80xf32>
    %4 = tpu.matmul %0, %3, %cst {dimension_numbers = #tpu.dot_dimension_numbers<[1], [0], [0], [1], [0, 0, 1, 1], [], []>} : vector<32x40xf32>, vector<40x80xf32>, vector<32x80xf32> -> vector<32x80xf32>
    %5 = vector.broadcast %2 : vector<1x80xf32> to vector<32x80xf32>
    %6 = arith.addf %4, %5 : vector<32x80xf32>
    %c888 = arith.constant 888 : index
    %c0_5 = arith.constant 0 : index
    %7 = vector.load %arg5[%c888, %c0_5] : memref<1760x80xf32, #tpu.memory_space<vmem>>, vector<80x80xf32>
    %cst_6 = arith.constant dense<0.000000e+00> : vector<32x80xf32>
    %8 = tpu.matmul %6, %7, %cst_6 {dimension_numbers = #tpu.dot_dimension_numbers<[1], [0], [0], [1], [0, 0, 1, 1], [], []>} : vector<32x80xf32>, vector<80x80xf32>, vector<32x80xf32> -> vector<32x80xf32>
    %c968 = arith.constant 968 : index
    %c0_7 = arith.constant 0 : index
    %9 = vector.load %arg5[%c968, %c0_7] : memref<1760x80xf32, #tpu.memory_space<vmem>>, vector<1x80xf32>
    %10 = vector.broadcast %9 : vector<1x80xf32> to vector<32x80xf32>
    %11 = arith.addf %8, %10 : vector<32x80xf32>
    %c976 = arith.constant 976 : index
    %c0_8 = arith.constant 0 : index
    %12 = vector.load %arg5[%c976, %c0_8] : memref<1760x80xf32, #tpu.memory_space<vmem>>, vector<80x80xf32>
    %cst_9 = arith.constant dense<0.000000e+00> : vector<32x80xf32>
    %13 = tpu.matmul %6, %12, %cst_9 {dimension_numbers = #tpu.dot_dimension_numbers<[1], [0], [0], [1], [0, 0, 1, 1], [], []>} : vector<32x80xf32>, vector<80x80xf32>, vector<32x80xf32> -> vector<32x80xf32>
    %c1056 = arith.constant 1056 : index
    %c0_10 = arith.constant 0 : index
    %14 = vector.load %arg5[%c1056, %c0_10] : memref<1760x80xf32, #tpu.memory_space<vmem>>, vector<1x80xf32>
    %15 = vector.broadcast %14 : vector<1x80xf32> to vector<32x80xf32>
    %16 = arith.addf %13, %15 : vector<32x80xf32>
    %c1064 = arith.constant 1064 : index
    %c0_11 = arith.constant 0 : index
    %17 = vector.load %arg5[%c1064, %c0_11] : memref<1760x80xf32, #tpu.memory_space<vmem>>, vector<80x80xf32>
    %cst_12 = arith.constant dense<0.000000e+00> : vector<32x80xf32>
    %18 = tpu.matmul %6, %17, %cst_12 {dimension_numbers = #tpu.dot_dimension_numbers<[1], [0], [0], [1], [0, 0, 1, 1], [], []>} : vector<32x80xf32>, vector<80x80xf32>, vector<32x80xf32> -> vector<32x80xf32>
    %c1144 = arith.constant 1144 : index
    %c0_13 = arith.constant 0 : index
    %19 = vector.load %arg5[%c1144, %c0_13] : memref<1760x80xf32, #tpu.memory_space<vmem>>, vector<1x80xf32>
    %20 = vector.broadcast %19 : vector<1x80xf32> to vector<32x80xf32>
    %21 = arith.addf %18, %20 : vector<32x80xf32>
    %c0_14 = arith.constant 0 : index
    %c0_15 = arith.constant 0 : index
    %22 = vector.load %arg3[%c0_14, %c0_15] : memref<360x400xf32, #tpu.memory_space<vmem>>, vector<80x400xf32>
    %cst_16 = arith.constant dense<0.000000e+00> : vector<32x400xf32>
    %23 = tpu.matmul %11, %22, %cst_16 {dimension_numbers = #tpu.dot_dimension_numbers<[1], [0], [0], [1], [0, 0, 1, 1], [], []>} : vector<32x80xf32>, vector<80x400xf32>, vector<32x400xf32> -> vector<32x400xf32>
    %c160 = arith.constant 160 : index
    %c0_17 = arith.constant 0 : index
    %24 = vector.load %arg3[%c160, %c0_17] : memref<360x400xf32, #tpu.memory_space<vmem>>, vector<80x400xf32>
    %cst_18 = arith.constant dense<0.000000e+00> : vector<32x400xf32>
    %25 = tpu.matmul %16, %24, %cst_18 {dimension_numbers = #tpu.dot_dimension_numbers<[1], [0], [0], [1], [0, 0, 1, 1], [], []>} : vector<32x80xf32>, vector<80x400xf32>, vector<32x400xf32> -> vector<32x400xf32>
    %26 = arith.mulf %23, %25 : vector<32x400xf32>
    %c80 = arith.constant 80 : index
    %c0_19 = arith.constant 0 : index
    %27 = vector.load %arg3[%c80, %c0_19] : memref<360x400xf32, #tpu.memory_space<vmem>>, vector<80x400xf32>
    %cst_20 = arith.constant dense<0.000000e+00> : vector<32x400xf32>
    %28 = tpu.matmul %11, %27, %cst_20 {dimension_numbers = #tpu.dot_dimension_numbers<[1], [0], [0], [1], [0, 0, 1, 1], [], []>} : vector<32x80xf32>, vector<80x400xf32>, vector<32x400xf32> -> vector<32x400xf32>
    %c240 = arith.constant 240 : index
    %c0_21 = arith.constant 0 : index
    %29 = vector.load %arg3[%c240, %c0_21] : memref<360x400xf32, #tpu.memory_space<vmem>>, vector<80x400xf32>
    %cst_22 = arith.constant dense<0.000000e+00> : vector<32x400xf32>
    %30 = tpu.matmul %16, %29, %cst_22 {dimension_numbers = #tpu.dot_dimension_numbers<[1], [0], [0], [1], [0, 0, 1, 1], [], []>} : vector<32x80xf32>, vector<80x400xf32>, vector<32x400xf32> -> vector<32x400xf32>
    %31 = arith.mulf %28, %30 : vector<32x400xf32>
    %32 = arith.addf %26, %31 : vector<32x400xf32>
    %c0_23 = arith.constant 0 : index
    %c0_24 = arith.constant 0 : index
    %33 = vector.load %arg6[%c0_23, %c0_24] : memref<936x40xf32, #tpu.memory_space<vmem>>, vector<400x40xf32>
    %c320 = arith.constant 320 : index
    %c0_25 = arith.constant 0 : index
    %34 = vector.load %arg3[%c320, %c0_25] : memref<360x400xf32, #tpu.memory_space<vmem>>, vector<40x400xf32>
    %cst_26 = arith.constant dense<0xFF800000> : vector<32xf32>
    %35 = vector.multi_reduction <maximumf>, %32, %cst_26 [1] : vector<32x400xf32> to vector<32xf32>
    %36 = vector.shape_cast %35 : vector<32xf32> to vector<32x1xf32>
    %37 = vector.broadcast %36 : vector<32x1xf32> to vector<32x400xf32>
    %38 = arith.subf %32, %37 : vector<32x400xf32>
    %39 = math.exp %38 : vector<32x400xf32>
    %cst_27 = arith.constant dense<0.000000e+00> : vector<32x40xf32>
    %40 = tpu.matmul %39, %33, %cst_27 {dimension_numbers = #tpu.dot_dimension_numbers<[1], [0], [0], [1], [0, 0, 1, 1], [], []>} : vector<32x400xf32>, vector<400x40xf32>, vector<32x40xf32> -> vector<32x40xf32>
    %cst_28 = arith.constant dense<0.000000e+00> : vector<32x400xf32>
    %41 = tpu.matmul %40, %34, %cst_28 {dimension_numbers = #tpu.dot_dimension_numbers<[1], [0], [0], [1], [0, 0, 1, 1], [], []>} : vector<32x40xf32>, vector<40x400xf32>, vector<32x400xf32> -> vector<32x400xf32>
    %42 = tpu.reciprocal %41 {approx = true} : vector<32x400xf32> -> vector<32x400xf32>
    %43 = arith.mulf %39, %42 : vector<32x400xf32>
    %c160_29 = arith.constant 160 : index
    %c0_30 = arith.constant 0 : index
    %44 = vector.load %arg3[%c160_29, %c0_30] : memref<360x400xf32, #tpu.memory_space<vmem>>, vector<80x400xf32>
    %cst_31 = arith.constant dense<0.000000e+00> : vector<32x400xf32>
    %45 = tpu.matmul %21, %44, %cst_31 {dimension_numbers = #tpu.dot_dimension_numbers<[1], [0], [0], [1], [0, 0, 1, 1], [], []>} : vector<32x80xf32>, vector<80x400xf32>, vector<32x400xf32> -> vector<32x400xf32>
    %46 = arith.mulf %43, %45 : vector<32x400xf32>
    %c0_32 = arith.constant 0 : index
    %c0_33 = arith.constant 0 : index
    %47 = vector.load %arg5[%c0_32, %c0_33] : memref<1760x80xf32, #tpu.memory_space<vmem>>, vector<400x80xf32>
    %cst_34 = arith.constant dense<0.000000e+00> : vector<32x80xf32>
    %48 = tpu.matmul %46, %47, %cst_34 {dimension_numbers = #tpu.dot_dimension_numbers<[1], [0], [0], [1], [0, 0, 1, 1], [], []>} : vector<32x400xf32>, vector<400x80xf32>, vector<32x80xf32> -> vector<32x80xf32>
    %c240_35 = arith.constant 240 : index
    %c0_36 = arith.constant 0 : index
    %49 = vector.load %arg3[%c240_35, %c0_36] : memref<360x400xf32, #tpu.memory_space<vmem>>, vector<80x400xf32>
    %cst_37 = arith.constant dense<0.000000e+00> : vector<32x400xf32>
    %50 = tpu.matmul %21, %49, %cst_37 {dimension_numbers = #tpu.dot_dimension_numbers<[1], [0], [0], [1], [0, 0, 1, 1], [], []>} : vector<32x80xf32>, vector<80x400xf32>, vector<32x400xf32> -> vector<32x400xf32>
    %51 = arith.mulf %43, %50 : vector<32x400xf32>
    %c400 = arith.constant 400 : index
    %c0_38 = arith.constant 0 : index
    %52 = vector.load %arg5[%c400, %c0_38] : memref<1760x80xf32, #tpu.memory_space<vmem>>, vector<400x80xf32>
    %cst_39 = arith.constant dense<0.000000e+00> : vector<32x80xf32>
    %53 = tpu.matmul %51, %52, %cst_39 {dimension_numbers = #tpu.dot_dimension_numbers<[1], [0], [0], [1], [0, 0, 1, 1], [], []>} : vector<32x400xf32>, vector<400x80xf32>, vector<32x80xf32> -> vector<32x80xf32>
    %54 = arith.addf %48, %53 : vector<32x80xf32>
    %c1152 = arith.constant 1152 : index
    %c0_40 = arith.constant 0 : index
    %55 = vector.load %arg5[%c1152, %c0_40] : memref<1760x80xf32, #tpu.memory_space<vmem>>, vector<80x80xf32>
    %cst_41 = arith.constant dense<0.000000e+00> : vector<32x80xf32>
    %56 = tpu.matmul %54, %55, %cst_41 {dimension_numbers = #tpu.dot_dimension_numbers<[1], [0], [0], [1], [0, 0, 1, 1], [], []>} : vector<32x80xf32>, vector<80x80xf32>, vector<32x80xf32> -> vector<32x80xf32>
    %57 = arith.addf %6, %56 : vector<32x80xf32>
    %c1232 = arith.constant 1232 : index
    %c0_42 = arith.constant 0 : index
    %58 = vector.load %arg5[%c1232, %c0_42] : memref<1760x80xf32, #tpu.memory_space<vmem>>, vector<1x80xf32>
    %59 = vector.broadcast %58 : vector<1x80xf32> to vector<32x80xf32>
    %60 = arith.addf %57, %59 : vector<32x80xf32>
    %c0_43 = arith.constant 0 : index
    %c0_44 = arith.constant 0 : index
    %61 = vector.load %arg4[%c0_43, %c0_44] : memref<88x160xf32, #tpu.memory_space<vmem>>, vector<80x160xf32>
    %cst_45 = arith.constant dense<0.000000e+00> : vector<32x160xf32>
    %62 = tpu.matmul %60, %61, %cst_45 {dimension_numbers = #tpu.dot_dimension_numbers<[1], [0], [0], [1], [0, 0, 1, 1], [], []>} : vector<32x80xf32>, vector<80x160xf32>, vector<32x160xf32> -> vector<32x160xf32>
    %c80_46 = arith.constant 80 : index
    %c0_47 = arith.constant 0 : index
    %63 = vector.load %arg4[%c80_46, %c0_47] : memref<88x160xf32, #tpu.memory_space<vmem>>, vector<1x160xf32>
    %64 = vector.broadcast %63 : vector<1x160xf32> to vector<32x160xf32>
    %65 = arith.addf %62, %64 : vector<32x160xf32>
    %c1240 = arith.constant 1240 : index
    %c0_48 = arith.constant 0 : index
    %66 = vector.load %arg5[%c1240, %c0_48] : memref<1760x80xf32, #tpu.memory_space<vmem>>, vector<160x80xf32>
    %cst_49 = arith.constant dense<0.000000e+00> : vector<32x80xf32>
    %67 = tpu.matmul %65, %66, %cst_49 {dimension_numbers = #tpu.dot_dimension_numbers<[1], [0], [0], [1], [0, 0, 1, 1], [], []>} : vector<32x160xf32>, vector<160x80xf32>, vector<32x80xf32> -> vector<32x80xf32>
    %68 = arith.addf %60, %67 : vector<32x80xf32>
    %c1400 = arith.constant 1400 : index
    %c0_50 = arith.constant 0 : index
    %69 = vector.load %arg5[%c1400, %c0_50] : memref<1760x80xf32, #tpu.memory_space<vmem>>, vector<1x80xf32>
    %70 = vector.broadcast %69 : vector<1x80xf32> to vector<32x80xf32>
    %71 = arith.addf %68, %70 : vector<32x80xf32>
    %c712 = arith.constant 712 : index
    %c0_51 = arith.constant 0 : index
    %72 = vector.load %arg6[%c712, %c0_51] : memref<936x40xf32, #tpu.memory_space<vmem>>, vector<8x8xf32>
    %cst_52 = arith.constant dense<0.000000e+00> : vector<32x8xf32>
    %73 = tpu.matmul %1, %72, %cst_52 {dimension_numbers = #tpu.dot_dimension_numbers<[1], [0], [0], [1], [0, 0, 1, 1], [], []>} : vector<32x8xf32>, vector<8x8xf32>, vector<32x8xf32> -> vector<32x8xf32>
    %c720 = arith.constant 720 : index
    %c0_53 = arith.constant 0 : index
    %74 = vector.load %arg6[%c720, %c0_53] : memref<936x40xf32, #tpu.memory_space<vmem>>, vector<1x8xf32>
    %75 = vector.broadcast %74 : vector<1x8xf32> to vector<32x8xf32>
    %76 = arith.addf %73, %75 : vector<32x8xf32>
    %c728 = arith.constant 728 : index
    %c0_54 = arith.constant 0 : index
    %77 = vector.load %arg6[%c728, %c0_54] : memref<936x40xf32, #tpu.memory_space<vmem>>, vector<8x8xf32>
    %cst_55 = arith.constant dense<0.000000e+00> : vector<32x8xf32>
    %78 = tpu.matmul %76, %77, %cst_55 {dimension_numbers = #tpu.dot_dimension_numbers<[1], [0], [0], [1], [0, 0, 1, 1], [], []>} : vector<32x8xf32>, vector<8x8xf32>, vector<32x8xf32> -> vector<32x8xf32>
    %79 = arith.addf %1, %78 : vector<32x8xf32>
    %c736 = arith.constant 736 : index
    %c0_56 = arith.constant 0 : index
    %80 = vector.load %arg6[%c736, %c0_56] : memref<936x40xf32, #tpu.memory_space<vmem>>, vector<1x8xf32>
    %81 = vector.broadcast %80 : vector<1x8xf32> to vector<32x8xf32>
    %82 = arith.addf %79, %81 : vector<32x8xf32>
    %c744 = arith.constant 744 : index
    %c0_57 = arith.constant 0 : index
    %83 = vector.load %arg6[%c744, %c0_57] : memref<936x40xf32, #tpu.memory_space<vmem>>, vector<8x8xf32>
    %cst_58 = arith.constant dense<0.000000e+00> : vector<32x8xf32>
    %84 = tpu.matmul %82, %83, %cst_58 {dimension_numbers = #tpu.dot_dimension_numbers<[1], [0], [0], [1], [0, 0, 1, 1], [], []>} : vector<32x8xf32>, vector<8x8xf32>, vector<32x8xf32> -> vector<32x8xf32>
    %c752 = arith.constant 752 : index
    %c0_59 = arith.constant 0 : index
    %85 = vector.load %arg6[%c752, %c0_59] : memref<936x40xf32, #tpu.memory_space<vmem>>, vector<1x8xf32>
    %86 = vector.broadcast %85 : vector<1x8xf32> to vector<32x8xf32>
    %87 = arith.addf %84, %86 : vector<32x8xf32>
    %c1408 = arith.constant 1408 : index
    %c0_60 = arith.constant 0 : index
    %88 = vector.load %arg5[%c1408, %c0_60] : memref<1760x80xf32, #tpu.memory_space<vmem>>, vector<80x80xf32>
    %cst_61 = arith.constant dense<0.000000e+00> : vector<32x80xf32>
    %89 = tpu.matmul %71, %88, %cst_61 {dimension_numbers = #tpu.dot_dimension_numbers<[1], [0], [0], [1], [0, 0, 1, 1], [], []>} : vector<32x80xf32>, vector<80x80xf32>, vector<32x80xf32> -> vector<32x80xf32>
    %c1488 = arith.constant 1488 : index
    %c0_62 = arith.constant 0 : index
    %90 = vector.load %arg5[%c1488, %c0_62] : memref<1760x80xf32, #tpu.memory_space<vmem>>, vector<1x80xf32>
    %91 = vector.broadcast %90 : vector<1x80xf32> to vector<32x80xf32>
    %92 = arith.addf %89, %91 : vector<32x80xf32>
    %c1496 = arith.constant 1496 : index
    %c0_63 = arith.constant 0 : index
    %93 = vector.load %arg5[%c1496, %c0_63] : memref<1760x80xf32, #tpu.memory_space<vmem>>, vector<80x80xf32>
    %cst_64 = arith.constant dense<0.000000e+00> : vector<32x80xf32>
    %94 = tpu.matmul %71, %93, %cst_64 {dimension_numbers = #tpu.dot_dimension_numbers<[1], [0], [0], [1], [0, 0, 1, 1], [], []>} : vector<32x80xf32>, vector<80x80xf32>, vector<32x80xf32> -> vector<32x80xf32>
    %c1576 = arith.constant 1576 : index
    %c0_65 = arith.constant 0 : index
    %95 = vector.load %arg5[%c1576, %c0_65] : memref<1760x80xf32, #tpu.memory_space<vmem>>, vector<1x80xf32>
    %96 = vector.broadcast %95 : vector<1x80xf32> to vector<32x80xf32>
    %97 = arith.addf %94, %96 : vector<32x80xf32>
    %c400_66 = arith.constant 400 : index
    %c0_67 = arith.constant 0 : index
    %98 = vector.load %arg6[%c400_66, %c0_67] : memref<936x40xf32, #tpu.memory_space<vmem>>, vector<8x40xf32>
    %cst_68 = arith.constant dense<0.000000e+00> : vector<32x40xf32>
    %99 = tpu.matmul %87, %98, %cst_68 {dimension_numbers = #tpu.dot_dimension_numbers<[1], [0], [0], [1], [0, 0, 1, 1], [], []>} : vector<32x8xf32>, vector<8x40xf32>, vector<32x40xf32> -> vector<32x40xf32>
    %c416 = arith.constant 416 : index
    %c0_69 = arith.constant 0 : index
    %100 = vector.load %arg6[%c416, %c0_69] : memref<936x40xf32, #tpu.memory_space<vmem>>, vector<80x40xf32>
    %cst_70 = arith.constant dense<0.000000e+00> : vector<32x40xf32>
    %101 = tpu.matmul %92, %100, %cst_70 {dimension_numbers = #tpu.dot_dimension_numbers<[1], [0], [0], [1], [0, 0, 1, 1], [], []>} : vector<32x80xf32>, vector<80x40xf32>, vector<32x40xf32> -> vector<32x40xf32>
    %102 = arith.mulf %99, %101 : vector<32x40xf32>
    %c408 = arith.constant 408 : index
    %c0_71 = arith.constant 0 : index
    %103 = vector.load %arg6[%c408, %c0_71] : memref<936x40xf32, #tpu.memory_space<vmem>>, vector<8x40xf32>
    %cst_72 = arith.constant dense<0.000000e+00> : vector<32x40xf32>
    %104 = tpu.matmul %87, %103, %cst_72 {dimension_numbers = #tpu.dot_dimension_numbers<[1], [0], [0], [1], [0, 0, 1, 1], [], []>} : vector<32x8xf32>, vector<8x40xf32>, vector<32x40xf32> -> vector<32x40xf32>
    %c496 = arith.constant 496 : index
    %c0_73 = arith.constant 0 : index
    %105 = vector.load %arg6[%c496, %c0_73] : memref<936x40xf32, #tpu.memory_space<vmem>>, vector<80x40xf32>
    %cst_74 = arith.constant dense<0.000000e+00> : vector<32x40xf32>
    %106 = tpu.matmul %92, %105, %cst_74 {dimension_numbers = #tpu.dot_dimension_numbers<[1], [0], [0], [1], [0, 0, 1, 1], [], []>} : vector<32x80xf32>, vector<80x40xf32>, vector<32x40xf32> -> vector<32x40xf32>
    %107 = arith.mulf %104, %106 : vector<32x40xf32>
    %108 = arith.addf %102, %107 : vector<32x40xf32>
    %c656 = arith.constant 656 : index
    %c0_75 = arith.constant 0 : index
    %109 = vector.load %arg6[%c656, %c0_75] : memref<936x40xf32, #tpu.memory_space<vmem>>, vector<40x4xf32>
    %c696 = arith.constant 696 : index
    %c0_76 = arith.constant 0 : index
    %110 = vector.load %arg6[%c696, %c0_76] : memref<936x40xf32, #tpu.memory_space<vmem>>, vector<4x40xf32>
    %cst_77 = arith.constant dense<0xFF800000> : vector<32xf32>
    %111 = vector.multi_reduction <maximumf>, %108, %cst_77 [1] : vector<32x40xf32> to vector<32xf32>
    %112 = vector.shape_cast %111 : vector<32xf32> to vector<32x1xf32>
    %113 = vector.broadcast %112 : vector<32x1xf32> to vector<32x40xf32>
    %114 = arith.subf %108, %113 : vector<32x40xf32>
    %115 = math.exp %114 : vector<32x40xf32>
    %cst_78 = arith.constant dense<0.000000e+00> : vector<32x4xf32>
    %116 = tpu.matmul %115, %109, %cst_78 {dimension_numbers = #tpu.dot_dimension_numbers<[1], [0], [0], [1], [0, 0, 1, 1], [], []>} : vector<32x40xf32>, vector<40x4xf32>, vector<32x4xf32> -> vector<32x4xf32>
    %cst_79 = arith.constant dense<0.000000e+00> : vector<32x40xf32>
    %117 = tpu.matmul %116, %110, %cst_79 {dimension_numbers = #tpu.dot_dimension_numbers<[1], [0], [0], [1], [0, 0, 1, 1], [], []>} : vector<32x4xf32>, vector<4x40xf32>, vector<32x40xf32> -> vector<32x40xf32>
    %118 = tpu.reciprocal %117 {approx = true} : vector<32x40xf32> -> vector<32x40xf32>
    %119 = arith.mulf %115, %118 : vector<32x40xf32>
    %c416_80 = arith.constant 416 : index
    %c0_81 = arith.constant 0 : index
    %120 = vector.load %arg6[%c416_80, %c0_81] : memref<936x40xf32, #tpu.memory_space<vmem>>, vector<80x40xf32>
    %cst_82 = arith.constant dense<0.000000e+00> : vector<32x40xf32>
    %121 = tpu.matmul %97, %120, %cst_82 {dimension_numbers = #tpu.dot_dimension_numbers<[1], [0], [0], [1], [0, 0, 1, 1], [], []>} : vector<32x80xf32>, vector<80x40xf32>, vector<32x40xf32> -> vector<32x40xf32>
    %122 = arith.mulf %119, %121 : vector<32x40xf32>
    %c576 = arith.constant 576 : index
    %c0_83 = arith.constant 0 : index
    %123 = vector.load %arg6[%c576, %c0_83] : memref<936x40xf32, #tpu.memory_space<vmem>>, vector<40x8xf32>
    %cst_84 = arith.constant dense<0.000000e+00> : vector<32x8xf32>
    %124 = tpu.matmul %122, %123, %cst_84 {dimension_numbers = #tpu.dot_dimension_numbers<[1], [0], [0], [1], [0, 0, 1, 1], [], []>} : vector<32x40xf32>, vector<40x8xf32>, vector<32x8xf32> -> vector<32x8xf32>
    %c496_85 = arith.constant 496 : index
    %c0_86 = arith.constant 0 : index
    %125 = vector.load %arg6[%c496_85, %c0_86] : memref<936x40xf32, #tpu.memory_space<vmem>>, vector<80x40xf32>
    %cst_87 = arith.constant dense<0.000000e+00> : vector<32x40xf32>
    %126 = tpu.matmul %97, %125, %cst_87 {dimension_numbers = #tpu.dot_dimension_numbers<[1], [0], [0], [1], [0, 0, 1, 1], [], []>} : vector<32x80xf32>, vector<80x40xf32>, vector<32x40xf32> -> vector<32x40xf32>
    %127 = arith.mulf %119, %126 : vector<32x40xf32>
    %c616 = arith.constant 616 : index
    %c0_88 = arith.constant 0 : index
    %128 = vector.load %arg6[%c616, %c0_88] : memref<936x40xf32, #tpu.memory_space<vmem>>, vector<40x8xf32>
    %cst_89 = arith.constant dense<0.000000e+00> : vector<32x8xf32>
    %129 = tpu.matmul %127, %128, %cst_89 {dimension_numbers = #tpu.dot_dimension_numbers<[1], [0], [0], [1], [0, 0, 1, 1], [], []>} : vector<32x40xf32>, vector<40x8xf32>, vector<32x8xf32> -> vector<32x8xf32>
    %130 = arith.addf %124, %129 : vector<32x8xf32>
    %c760 = arith.constant 760 : index
    %c0_90 = arith.constant 0 : index
    %131 = vector.load %arg6[%c760, %c0_90] : memref<936x40xf32, #tpu.memory_space<vmem>>, vector<8x8xf32>
    %cst_91 = arith.constant dense<0.000000e+00> : vector<32x8xf32>
    %132 = tpu.matmul %130, %131, %cst_91 {dimension_numbers = #tpu.dot_dimension_numbers<[1], [0], [0], [1], [0, 0, 1, 1], [], []>} : vector<32x8xf32>, vector<8x8xf32>, vector<32x8xf32> -> vector<32x8xf32>
    %133 = arith.addf %82, %132 : vector<32x8xf32>
    %c768 = arith.constant 768 : index
    %c0_92 = arith.constant 0 : index
    %134 = vector.load %arg6[%c768, %c0_92] : memref<936x40xf32, #tpu.memory_space<vmem>>, vector<1x8xf32>
    %135 = vector.broadcast %134 : vector<1x8xf32> to vector<32x8xf32>
    %136 = arith.addf %133, %135 : vector<32x8xf32>
    %c776 = arith.constant 776 : index
    %c0_93 = arith.constant 0 : index
    %137 = vector.load %arg6[%c776, %c0_93] : memref<936x40xf32, #tpu.memory_space<vmem>>, vector<8x16xf32>
    %cst_94 = arith.constant dense<0.000000e+00> : vector<32x16xf32>
    %138 = tpu.matmul %136, %137, %cst_94 {dimension_numbers = #tpu.dot_dimension_numbers<[1], [0], [0], [1], [0, 0, 1, 1], [], []>} : vector<32x8xf32>, vector<8x16xf32>, vector<32x16xf32> -> vector<32x16xf32>
    %c784 = arith.constant 784 : index
    %c0_95 = arith.constant 0 : index
    %139 = vector.load %arg6[%c784, %c0_95] : memref<936x40xf32, #tpu.memory_space<vmem>>, vector<1x16xf32>
    %140 = vector.broadcast %139 : vector<1x16xf32> to vector<32x16xf32>
    %141 = arith.addf %138, %140 : vector<32x16xf32>
    %c792 = arith.constant 792 : index
    %c0_96 = arith.constant 0 : index
    %142 = vector.load %arg6[%c792, %c0_96] : memref<936x40xf32, #tpu.memory_space<vmem>>, vector<16x8xf32>
    %cst_97 = arith.constant dense<0.000000e+00> : vector<32x8xf32>
    %143 = tpu.matmul %141, %142, %cst_97 {dimension_numbers = #tpu.dot_dimension_numbers<[1], [0], [0], [1], [0, 0, 1, 1], [], []>} : vector<32x16xf32>, vector<16x8xf32>, vector<32x8xf32> -> vector<32x8xf32>
    %144 = arith.addf %136, %143 : vector<32x8xf32>
    %c808 = arith.constant 808 : index
    %c0_98 = arith.constant 0 : index
    %145 = vector.load %arg6[%c808, %c0_98] : memref<936x40xf32, #tpu.memory_space<vmem>>, vector<1x8xf32>
    %146 = vector.broadcast %145 : vector<1x8xf32> to vector<32x8xf32>
    %147 = arith.addf %144, %146 : vector<32x8xf32>
    %c920 = arith.constant 920 : index
    %c0_99 = arith.constant 0 : index
    %148 = vector.load %arg6[%c920, %c0_99] : memref<936x40xf32, #tpu.memory_space<vmem>>, vector<8x4xf32>
    %cst_100 = arith.constant dense<0.000000e+00> : vector<32x4xf32>
    %149 = tpu.matmul %147, %148, %cst_100 {dimension_numbers = #tpu.dot_dimension_numbers<[1], [0], [0], [1], [0, 0, 1, 1], [], []>} : vector<32x8xf32>, vector<8x4xf32>, vector<32x4xf32> -> vector<32x4xf32>
    %c928 = arith.constant 928 : index
    %c0_101 = arith.constant 0 : index
    %150 = vector.load %arg6[%c928, %c0_101] : memref<936x40xf32, #tpu.memory_space<vmem>>, vector<1x4xf32>
    %151 = vector.broadcast %150 : vector<1x4xf32> to vector<32x4xf32>
    %152 = arith.addf %149, %151 : vector<32x4xf32>
    %cst_102 = arith.constant 0.000000e+00 : f32
    %153 = vector.broadcast %cst_102 : f32 to vector<32x4xf32>
    %154 = arith.subf %153, %152 : vector<32x4xf32>
    %155 = math.exp %154 : vector<32x4xf32>
    %cst_103 = arith.constant 1.000000e+00 : f32
    %156 = vector.broadcast %cst_103 : f32 to vector<32x4xf32>
    %157 = arith.addf %156, %155 : vector<32x4xf32>
    %158 = tpu.reciprocal %157 {approx = true} : vector<32x4xf32> -> vector<32x4xf32>
    %c704 = arith.constant 704 : index
    %c0_104 = arith.constant 0 : index
    %159 = vector.load %arg6[%c704, %c0_104] : memref<936x40xf32, #tpu.memory_space<vmem>>, vector<4x40xf32>
    %cst_105 = arith.constant dense<0.000000e+00> : vector<32x40xf32>
    %160 = tpu.matmul %158, %159, %cst_105 {dimension_numbers = #tpu.dot_dimension_numbers<[1], [0], [0], [1], [0, 0, 1, 1], [], []>} : vector<32x4xf32>, vector<4x40xf32>, vector<32x40xf32> -> vector<32x40xf32>
    %161 = arith.subf %160, %0 : vector<32x40xf32>
    %162 = arith.mulf %161, %161 : vector<32x40xf32>
    %c840 = arith.constant 840 : index
    %c0_106 = arith.constant 0 : index
    %163 = vector.load %arg5[%c840, %c0_106] : memref<1760x80xf32, #tpu.memory_space<vmem>>, vector<40x80xf32>
    %cst_107 = arith.constant dense<0.000000e+00> : vector<32x80xf32>
    %164 = tpu.matmul %162, %163, %cst_107 {dimension_numbers = #tpu.dot_dimension_numbers<[1], [0], [0], [1], [0, 0, 1, 1], [], []>} : vector<32x40xf32>, vector<40x80xf32>, vector<32x80xf32> -> vector<32x80xf32>
    %165 = arith.addf %4, %164 : vector<32x80xf32>
    %166 = vector.broadcast %2 : vector<1x80xf32> to vector<32x80xf32>
    %167 = arith.addf %165, %166 : vector<32x80xf32>
    %c888_108 = arith.constant 888 : index
    %c0_109 = arith.constant 0 : index
    %168 = vector.load %arg5[%c888_108, %c0_109] : memref<1760x80xf32, #tpu.memory_space<vmem>>, vector<80x80xf32>
    %cst_110 = arith.constant dense<0.000000e+00> : vector<32x80xf32>
    %169 = tpu.matmul %167, %168, %cst_110 {dimension_numbers = #tpu.dot_dimension_numbers<[1], [0], [0], [1], [0, 0, 1, 1], [], []>} : vector<32x80xf32>, vector<80x80xf32>, vector<32x80xf32> -> vector<32x80xf32>
    %c968_111 = arith.constant 968 : index
    %c0_112 = arith.constant 0 : index
    %170 = vector.load %arg5[%c968_111, %c0_112] : memref<1760x80xf32, #tpu.memory_space<vmem>>, vector<1x80xf32>
    %171 = vector.broadcast %170 : vector<1x80xf32> to vector<32x80xf32>
    %172 = arith.addf %169, %171 : vector<32x80xf32>
    %c976_113 = arith.constant 976 : index
    %c0_114 = arith.constant 0 : index
    %173 = vector.load %arg5[%c976_113, %c0_114] : memref<1760x80xf32, #tpu.memory_space<vmem>>, vector<80x80xf32>
    %cst_115 = arith.constant dense<0.000000e+00> : vector<32x80xf32>
    %174 = tpu.matmul %167, %173, %cst_115 {dimension_numbers = #tpu.dot_dimension_numbers<[1], [0], [0], [1], [0, 0, 1, 1], [], []>} : vector<32x80xf32>, vector<80x80xf32>, vector<32x80xf32> -> vector<32x80xf32>
    %c1056_116 = arith.constant 1056 : index
    %c0_117 = arith.constant 0 : index
    %175 = vector.load %arg5[%c1056_116, %c0_117] : memref<1760x80xf32, #tpu.memory_space<vmem>>, vector<1x80xf32>
    %176 = vector.broadcast %175 : vector<1x80xf32> to vector<32x80xf32>
    %177 = arith.addf %174, %176 : vector<32x80xf32>
    %c1064_118 = arith.constant 1064 : index
    %c0_119 = arith.constant 0 : index
    %178 = vector.load %arg5[%c1064_118, %c0_119] : memref<1760x80xf32, #tpu.memory_space<vmem>>, vector<80x80xf32>
    %cst_120 = arith.constant dense<0.000000e+00> : vector<32x80xf32>
    %179 = tpu.matmul %167, %178, %cst_120 {dimension_numbers = #tpu.dot_dimension_numbers<[1], [0], [0], [1], [0, 0, 1, 1], [], []>} : vector<32x80xf32>, vector<80x80xf32>, vector<32x80xf32> -> vector<32x80xf32>
    %c1144_121 = arith.constant 1144 : index
    %c0_122 = arith.constant 0 : index
    %180 = vector.load %arg5[%c1144_121, %c0_122] : memref<1760x80xf32, #tpu.memory_space<vmem>>, vector<1x80xf32>
    %181 = vector.broadcast %180 : vector<1x80xf32> to vector<32x80xf32>
    %182 = arith.addf %179, %181 : vector<32x80xf32>
    %c0_123 = arith.constant 0 : index
    %c0_124 = arith.constant 0 : index
    %183 = vector.load %arg3[%c0_123, %c0_124] : memref<360x400xf32, #tpu.memory_space<vmem>>, vector<80x400xf32>
    %cst_125 = arith.constant dense<0.000000e+00> : vector<32x400xf32>
    %184 = tpu.matmul %172, %183, %cst_125 {dimension_numbers = #tpu.dot_dimension_numbers<[1], [0], [0], [1], [0, 0, 1, 1], [], []>} : vector<32x80xf32>, vector<80x400xf32>, vector<32x400xf32> -> vector<32x400xf32>
    %c160_126 = arith.constant 160 : index
    %c0_127 = arith.constant 0 : index
    %185 = vector.load %arg3[%c160_126, %c0_127] : memref<360x400xf32, #tpu.memory_space<vmem>>, vector<80x400xf32>
    %cst_128 = arith.constant dense<0.000000e+00> : vector<32x400xf32>
    %186 = tpu.matmul %177, %185, %cst_128 {dimension_numbers = #tpu.dot_dimension_numbers<[1], [0], [0], [1], [0, 0, 1, 1], [], []>} : vector<32x80xf32>, vector<80x400xf32>, vector<32x400xf32> -> vector<32x400xf32>
    %187 = arith.mulf %184, %186 : vector<32x400xf32>
    %c80_129 = arith.constant 80 : index
    %c0_130 = arith.constant 0 : index
    %188 = vector.load %arg3[%c80_129, %c0_130] : memref<360x400xf32, #tpu.memory_space<vmem>>, vector<80x400xf32>
    %cst_131 = arith.constant dense<0.000000e+00> : vector<32x400xf32>
    %189 = tpu.matmul %172, %188, %cst_131 {dimension_numbers = #tpu.dot_dimension_numbers<[1], [0], [0], [1], [0, 0, 1, 1], [], []>} : vector<32x80xf32>, vector<80x400xf32>, vector<32x400xf32> -> vector<32x400xf32>
    %c240_132 = arith.constant 240 : index
    %c0_133 = arith.constant 0 : index
    %190 = vector.load %arg3[%c240_132, %c0_133] : memref<360x400xf32, #tpu.memory_space<vmem>>, vector<80x400xf32>
    %cst_134 = arith.constant dense<0.000000e+00> : vector<32x400xf32>
    %191 = tpu.matmul %177, %190, %cst_134 {dimension_numbers = #tpu.dot_dimension_numbers<[1], [0], [0], [1], [0, 0, 1, 1], [], []>} : vector<32x80xf32>, vector<80x400xf32>, vector<32x400xf32> -> vector<32x400xf32>
    %192 = arith.mulf %189, %191 : vector<32x400xf32>
    %193 = arith.addf %187, %192 : vector<32x400xf32>
    %c0_135 = arith.constant 0 : index
    %c0_136 = arith.constant 0 : index
    %194 = vector.load %arg6[%c0_135, %c0_136] : memref<936x40xf32, #tpu.memory_space<vmem>>, vector<400x40xf32>
    %c320_137 = arith.constant 320 : index
    %c0_138 = arith.constant 0 : index
    %195 = vector.load %arg3[%c320_137, %c0_138] : memref<360x400xf32, #tpu.memory_space<vmem>>, vector<40x400xf32>
    %cst_139 = arith.constant dense<0xFF800000> : vector<32xf32>
    %196 = vector.multi_reduction <maximumf>, %193, %cst_139 [1] : vector<32x400xf32> to vector<32xf32>
    %197 = vector.shape_cast %196 : vector<32xf32> to vector<32x1xf32>
    %198 = vector.broadcast %197 : vector<32x1xf32> to vector<32x400xf32>
    %199 = arith.subf %193, %198 : vector<32x400xf32>
    %200 = math.exp %199 : vector<32x400xf32>
    %cst_140 = arith.constant dense<0.000000e+00> : vector<32x40xf32>
    %201 = tpu.matmul %200, %194, %cst_140 {dimension_numbers = #tpu.dot_dimension_numbers<[1], [0], [0], [1], [0, 0, 1, 1], [], []>} : vector<32x400xf32>, vector<400x40xf32>, vector<32x40xf32> -> vector<32x40xf32>
    %cst_141 = arith.constant dense<0.000000e+00> : vector<32x400xf32>
    %202 = tpu.matmul %201, %195, %cst_141 {dimension_numbers = #tpu.dot_dimension_numbers<[1], [0], [0], [1], [0, 0, 1, 1], [], []>} : vector<32x40xf32>, vector<40x400xf32>, vector<32x400xf32> -> vector<32x400xf32>
    %203 = tpu.reciprocal %202 {approx = true} : vector<32x400xf32> -> vector<32x400xf32>
    %204 = arith.mulf %200, %203 : vector<32x400xf32>
    %c160_142 = arith.constant 160 : index
    %c0_143 = arith.constant 0 : index
    %205 = vector.load %arg3[%c160_142, %c0_143] : memref<360x400xf32, #tpu.memory_space<vmem>>, vector<80x400xf32>
    %cst_144 = arith.constant dense<0.000000e+00> : vector<32x400xf32>
    %206 = tpu.matmul %182, %205, %cst_144 {dimension_numbers = #tpu.dot_dimension_numbers<[1], [0], [0], [1], [0, 0, 1, 1], [], []>} : vector<32x80xf32>, vector<80x400xf32>, vector<32x400xf32> -> vector<32x400xf32>
    %207 = arith.mulf %204, %206 : vector<32x400xf32>
    %c0_145 = arith.constant 0 : index
    %c0_146 = arith.constant 0 : index
    %208 = vector.load %arg5[%c0_145, %c0_146] : memref<1760x80xf32, #tpu.memory_space<vmem>>, vector<400x80xf32>
    %cst_147 = arith.constant dense<0.000000e+00> : vector<32x80xf32>
    %209 = tpu.matmul %207, %208, %cst_147 {dimension_numbers = #tpu.dot_dimension_numbers<[1], [0], [0], [1], [0, 0, 1, 1], [], []>} : vector<32x400xf32>, vector<400x80xf32>, vector<32x80xf32> -> vector<32x80xf32>
    %c240_148 = arith.constant 240 : index
    %c0_149 = arith.constant 0 : index
    %210 = vector.load %arg3[%c240_148, %c0_149] : memref<360x400xf32, #tpu.memory_space<vmem>>, vector<80x400xf32>
    %cst_150 = arith.constant dense<0.000000e+00> : vector<32x400xf32>
    %211 = tpu.matmul %182, %210, %cst_150 {dimension_numbers = #tpu.dot_dimension_numbers<[1], [0], [0], [1], [0, 0, 1, 1], [], []>} : vector<32x80xf32>, vector<80x400xf32>, vector<32x400xf32> -> vector<32x400xf32>
    %212 = arith.mulf %204, %211 : vector<32x400xf32>
    %c400_151 = arith.constant 400 : index
    %c0_152 = arith.constant 0 : index
    %213 = vector.load %arg5[%c400_151, %c0_152] : memref<1760x80xf32, #tpu.memory_space<vmem>>, vector<400x80xf32>
    %cst_153 = arith.constant dense<0.000000e+00> : vector<32x80xf32>
    %214 = tpu.matmul %212, %213, %cst_153 {dimension_numbers = #tpu.dot_dimension_numbers<[1], [0], [0], [1], [0, 0, 1, 1], [], []>} : vector<32x400xf32>, vector<400x80xf32>, vector<32x80xf32> -> vector<32x80xf32>
    %215 = arith.addf %209, %214 : vector<32x80xf32>
    %c1152_154 = arith.constant 1152 : index
    %c0_155 = arith.constant 0 : index
    %216 = vector.load %arg5[%c1152_154, %c0_155] : memref<1760x80xf32, #tpu.memory_space<vmem>>, vector<80x80xf32>
    %cst_156 = arith.constant dense<0.000000e+00> : vector<32x80xf32>
    %217 = tpu.matmul %215, %216, %cst_156 {dimension_numbers = #tpu.dot_dimension_numbers<[1], [0], [0], [1], [0, 0, 1, 1], [], []>} : vector<32x80xf32>, vector<80x80xf32>, vector<32x80xf32> -> vector<32x80xf32>
    %218 = arith.addf %167, %217 : vector<32x80xf32>
    %c1232_157 = arith.constant 1232 : index
    %c0_158 = arith.constant 0 : index
    %219 = vector.load %arg5[%c1232_157, %c0_158] : memref<1760x80xf32, #tpu.memory_space<vmem>>, vector<1x80xf32>
    %220 = vector.broadcast %219 : vector<1x80xf32> to vector<32x80xf32>
    %221 = arith.addf %218, %220 : vector<32x80xf32>
    %c0_159 = arith.constant 0 : index
    %c0_160 = arith.constant 0 : index
    %222 = vector.load %arg4[%c0_159, %c0_160] : memref<88x160xf32, #tpu.memory_space<vmem>>, vector<80x160xf32>
    %cst_161 = arith.constant dense<0.000000e+00> : vector<32x160xf32>
    %223 = tpu.matmul %221, %222, %cst_161 {dimension_numbers = #tpu.dot_dimension_numbers<[1], [0], [0], [1], [0, 0, 1, 1], [], []>} : vector<32x80xf32>, vector<80x160xf32>, vector<32x160xf32> -> vector<32x160xf32>
    %c80_162 = arith.constant 80 : index
    %c0_163 = arith.constant 0 : index
    %224 = vector.load %arg4[%c80_162, %c0_163] : memref<88x160xf32, #tpu.memory_space<vmem>>, vector<1x160xf32>
    %225 = vector.broadcast %224 : vector<1x160xf32> to vector<32x160xf32>
    %226 = arith.addf %223, %225 : vector<32x160xf32>
    %c1240_164 = arith.constant 1240 : index
    %c0_165 = arith.constant 0 : index
    %227 = vector.load %arg5[%c1240_164, %c0_165] : memref<1760x80xf32, #tpu.memory_space<vmem>>, vector<160x80xf32>
    %cst_166 = arith.constant dense<0.000000e+00> : vector<32x80xf32>
    %228 = tpu.matmul %226, %227, %cst_166 {dimension_numbers = #tpu.dot_dimension_numbers<[1], [0], [0], [1], [0, 0, 1, 1], [], []>} : vector<32x160xf32>, vector<160x80xf32>, vector<32x80xf32> -> vector<32x80xf32>
    %229 = arith.addf %221, %228 : vector<32x80xf32>
    %c1400_167 = arith.constant 1400 : index
    %c0_168 = arith.constant 0 : index
    %230 = vector.load %arg5[%c1400_167, %c0_168] : memref<1760x80xf32, #tpu.memory_space<vmem>>, vector<1x80xf32>
    %231 = vector.broadcast %230 : vector<1x80xf32> to vector<32x80xf32>
    %232 = arith.addf %229, %231 : vector<32x80xf32>
    %c816 = arith.constant 816 : index
    %c0_169 = arith.constant 0 : index
    %233 = vector.load %arg6[%c816, %c0_169] : memref<936x40xf32, #tpu.memory_space<vmem>>, vector<8x8xf32>
    %cst_170 = arith.constant dense<0.000000e+00> : vector<32x8xf32>
    %234 = tpu.matmul %1, %233, %cst_170 {dimension_numbers = #tpu.dot_dimension_numbers<[1], [0], [0], [1], [0, 0, 1, 1], [], []>} : vector<32x8xf32>, vector<8x8xf32>, vector<32x8xf32> -> vector<32x8xf32>
    %c824 = arith.constant 824 : index
    %c0_171 = arith.constant 0 : index
    %235 = vector.load %arg6[%c824, %c0_171] : memref<936x40xf32, #tpu.memory_space<vmem>>, vector<1x8xf32>
    %236 = vector.broadcast %235 : vector<1x8xf32> to vector<32x8xf32>
    %237 = arith.addf %234, %236 : vector<32x8xf32>
    %c832 = arith.constant 832 : index
    %c0_172 = arith.constant 0 : index
    %238 = vector.load %arg6[%c832, %c0_172] : memref<936x40xf32, #tpu.memory_space<vmem>>, vector<8x8xf32>
    %cst_173 = arith.constant dense<0.000000e+00> : vector<32x8xf32>
    %239 = tpu.matmul %237, %238, %cst_173 {dimension_numbers = #tpu.dot_dimension_numbers<[1], [0], [0], [1], [0, 0, 1, 1], [], []>} : vector<32x8xf32>, vector<8x8xf32>, vector<32x8xf32> -> vector<32x8xf32>
    %240 = arith.addf %1, %239 : vector<32x8xf32>
    %c840_174 = arith.constant 840 : index
    %c0_175 = arith.constant 0 : index
    %241 = vector.load %arg6[%c840_174, %c0_175] : memref<936x40xf32, #tpu.memory_space<vmem>>, vector<1x8xf32>
    %242 = vector.broadcast %241 : vector<1x8xf32> to vector<32x8xf32>
    %243 = arith.addf %240, %242 : vector<32x8xf32>
    %c848 = arith.constant 848 : index
    %c0_176 = arith.constant 0 : index
    %244 = vector.load %arg6[%c848, %c0_176] : memref<936x40xf32, #tpu.memory_space<vmem>>, vector<8x8xf32>
    %cst_177 = arith.constant dense<0.000000e+00> : vector<32x8xf32>
    %245 = tpu.matmul %243, %244, %cst_177 {dimension_numbers = #tpu.dot_dimension_numbers<[1], [0], [0], [1], [0, 0, 1, 1], [], []>} : vector<32x8xf32>, vector<8x8xf32>, vector<32x8xf32> -> vector<32x8xf32>
    %c856 = arith.constant 856 : index
    %c0_178 = arith.constant 0 : index
    %246 = vector.load %arg6[%c856, %c0_178] : memref<936x40xf32, #tpu.memory_space<vmem>>, vector<1x8xf32>
    %247 = vector.broadcast %246 : vector<1x8xf32> to vector<32x8xf32>
    %248 = arith.addf %245, %247 : vector<32x8xf32>
    %c1584 = arith.constant 1584 : index
    %c0_179 = arith.constant 0 : index
    %249 = vector.load %arg5[%c1584, %c0_179] : memref<1760x80xf32, #tpu.memory_space<vmem>>, vector<80x80xf32>
    %cst_180 = arith.constant dense<0.000000e+00> : vector<32x80xf32>
    %250 = tpu.matmul %232, %249, %cst_180 {dimension_numbers = #tpu.dot_dimension_numbers<[1], [0], [0], [1], [0, 0, 1, 1], [], []>} : vector<32x80xf32>, vector<80x80xf32>, vector<32x80xf32> -> vector<32x80xf32>
    %c1664 = arith.constant 1664 : index
    %c0_181 = arith.constant 0 : index
    %251 = vector.load %arg5[%c1664, %c0_181] : memref<1760x80xf32, #tpu.memory_space<vmem>>, vector<1x80xf32>
    %252 = vector.broadcast %251 : vector<1x80xf32> to vector<32x80xf32>
    %253 = arith.addf %250, %252 : vector<32x80xf32>
    %c1672 = arith.constant 1672 : index
    %c0_182 = arith.constant 0 : index
    %254 = vector.load %arg5[%c1672, %c0_182] : memref<1760x80xf32, #tpu.memory_space<vmem>>, vector<80x80xf32>
    %cst_183 = arith.constant dense<0.000000e+00> : vector<32x80xf32>
    %255 = tpu.matmul %232, %254, %cst_183 {dimension_numbers = #tpu.dot_dimension_numbers<[1], [0], [0], [1], [0, 0, 1, 1], [], []>} : vector<32x80xf32>, vector<80x80xf32>, vector<32x80xf32> -> vector<32x80xf32>
    %c1752 = arith.constant 1752 : index
    %c0_184 = arith.constant 0 : index
    %256 = vector.load %arg5[%c1752, %c0_184] : memref<1760x80xf32, #tpu.memory_space<vmem>>, vector<1x80xf32>
    %257 = vector.broadcast %256 : vector<1x80xf32> to vector<32x80xf32>
    %258 = arith.addf %255, %257 : vector<32x80xf32>
    %c400_185 = arith.constant 400 : index
    %c0_186 = arith.constant 0 : index
    %259 = vector.load %arg6[%c400_185, %c0_186] : memref<936x40xf32, #tpu.memory_space<vmem>>, vector<8x40xf32>
    %cst_187 = arith.constant dense<0.000000e+00> : vector<32x40xf32>
    %260 = tpu.matmul %248, %259, %cst_187 {dimension_numbers = #tpu.dot_dimension_numbers<[1], [0], [0], [1], [0, 0, 1, 1], [], []>} : vector<32x8xf32>, vector<8x40xf32>, vector<32x40xf32> -> vector<32x40xf32>
    %c416_188 = arith.constant 416 : index
    %c0_189 = arith.constant 0 : index
    %261 = vector.load %arg6[%c416_188, %c0_189] : memref<936x40xf32, #tpu.memory_space<vmem>>, vector<80x40xf32>
    %cst_190 = arith.constant dense<0.000000e+00> : vector<32x40xf32>
    %262 = tpu.matmul %253, %261, %cst_190 {dimension_numbers = #tpu.dot_dimension_numbers<[1], [0], [0], [1], [0, 0, 1, 1], [], []>} : vector<32x80xf32>, vector<80x40xf32>, vector<32x40xf32> -> vector<32x40xf32>
    %263 = arith.mulf %260, %262 : vector<32x40xf32>
    %c408_191 = arith.constant 408 : index
    %c0_192 = arith.constant 0 : index
    %264 = vector.load %arg6[%c408_191, %c0_192] : memref<936x40xf32, #tpu.memory_space<vmem>>, vector<8x40xf32>
    %cst_193 = arith.constant dense<0.000000e+00> : vector<32x40xf32>
    %265 = tpu.matmul %248, %264, %cst_193 {dimension_numbers = #tpu.dot_dimension_numbers<[1], [0], [0], [1], [0, 0, 1, 1], [], []>} : vector<32x8xf32>, vector<8x40xf32>, vector<32x40xf32> -> vector<32x40xf32>
    %c496_194 = arith.constant 496 : index
    %c0_195 = arith.constant 0 : index
    %266 = vector.load %arg6[%c496_194, %c0_195] : memref<936x40xf32, #tpu.memory_space<vmem>>, vector<80x40xf32>
    %cst_196 = arith.constant dense<0.000000e+00> : vector<32x40xf32>
    %267 = tpu.matmul %253, %266, %cst_196 {dimension_numbers = #tpu.dot_dimension_numbers<[1], [0], [0], [1], [0, 0, 1, 1], [], []>} : vector<32x80xf32>, vector<80x40xf32>, vector<32x40xf32> -> vector<32x40xf32>
    %268 = arith.mulf %265, %267 : vector<32x40xf32>
    %269 = arith.addf %263, %268 : vector<32x40xf32>
    %c656_197 = arith.constant 656 : index
    %c0_198 = arith.constant 0 : index
    %270 = vector.load %arg6[%c656_197, %c0_198] : memref<936x40xf32, #tpu.memory_space<vmem>>, vector<40x4xf32>
    %c696_199 = arith.constant 696 : index
    %c0_200 = arith.constant 0 : index
    %271 = vector.load %arg6[%c696_199, %c0_200] : memref<936x40xf32, #tpu.memory_space<vmem>>, vector<4x40xf32>
    %cst_201 = arith.constant dense<0xFF800000> : vector<32xf32>
    %272 = vector.multi_reduction <maximumf>, %269, %cst_201 [1] : vector<32x40xf32> to vector<32xf32>
    %273 = vector.shape_cast %272 : vector<32xf32> to vector<32x1xf32>
    %274 = vector.broadcast %273 : vector<32x1xf32> to vector<32x40xf32>
    %275 = arith.subf %269, %274 : vector<32x40xf32>
    %276 = math.exp %275 : vector<32x40xf32>
    %cst_202 = arith.constant dense<0.000000e+00> : vector<32x4xf32>
    %277 = tpu.matmul %276, %270, %cst_202 {dimension_numbers = #tpu.dot_dimension_numbers<[1], [0], [0], [1], [0, 0, 1, 1], [], []>} : vector<32x40xf32>, vector<40x4xf32>, vector<32x4xf32> -> vector<32x4xf32>
    %cst_203 = arith.constant dense<0.000000e+00> : vector<32x40xf32>
    %278 = tpu.matmul %277, %271, %cst_203 {dimension_numbers = #tpu.dot_dimension_numbers<[1], [0], [0], [1], [0, 0, 1, 1], [], []>} : vector<32x4xf32>, vector<4x40xf32>, vector<32x40xf32> -> vector<32x40xf32>
    %279 = tpu.reciprocal %278 {approx = true} : vector<32x40xf32> -> vector<32x40xf32>
    %280 = arith.mulf %276, %279 : vector<32x40xf32>
    %c416_204 = arith.constant 416 : index
    %c0_205 = arith.constant 0 : index
    %281 = vector.load %arg6[%c416_204, %c0_205] : memref<936x40xf32, #tpu.memory_space<vmem>>, vector<80x40xf32>
    %cst_206 = arith.constant dense<0.000000e+00> : vector<32x40xf32>
    %282 = tpu.matmul %258, %281, %cst_206 {dimension_numbers = #tpu.dot_dimension_numbers<[1], [0], [0], [1], [0, 0, 1, 1], [], []>} : vector<32x80xf32>, vector<80x40xf32>, vector<32x40xf32> -> vector<32x40xf32>
    %283 = arith.mulf %280, %282 : vector<32x40xf32>
    %c576_207 = arith.constant 576 : index
    %c0_208 = arith.constant 0 : index
    %284 = vector.load %arg6[%c576_207, %c0_208] : memref<936x40xf32, #tpu.memory_space<vmem>>, vector<40x8xf32>
    %cst_209 = arith.constant dense<0.000000e+00> : vector<32x8xf32>
    %285 = tpu.matmul %283, %284, %cst_209 {dimension_numbers = #tpu.dot_dimension_numbers<[1], [0], [0], [1], [0, 0, 1, 1], [], []>} : vector<32x40xf32>, vector<40x8xf32>, vector<32x8xf32> -> vector<32x8xf32>
    %c496_210 = arith.constant 496 : index
    %c0_211 = arith.constant 0 : index
    %286 = vector.load %arg6[%c496_210, %c0_211] : memref<936x40xf32, #tpu.memory_space<vmem>>, vector<80x40xf32>
    %cst_212 = arith.constant dense<0.000000e+00> : vector<32x40xf32>
    %287 = tpu.matmul %258, %286, %cst_212 {dimension_numbers = #tpu.dot_dimension_numbers<[1], [0], [0], [1], [0, 0, 1, 1], [], []>} : vector<32x80xf32>, vector<80x40xf32>, vector<32x40xf32> -> vector<32x40xf32>
    %288 = arith.mulf %280, %287 : vector<32x40xf32>
    %c616_213 = arith.constant 616 : index
    %c0_214 = arith.constant 0 : index
    %289 = vector.load %arg6[%c616_213, %c0_214] : memref<936x40xf32, #tpu.memory_space<vmem>>, vector<40x8xf32>
    %cst_215 = arith.constant dense<0.000000e+00> : vector<32x8xf32>
    %290 = tpu.matmul %288, %289, %cst_215 {dimension_numbers = #tpu.dot_dimension_numbers<[1], [0], [0], [1], [0, 0, 1, 1], [], []>} : vector<32x40xf32>, vector<40x8xf32>, vector<32x8xf32> -> vector<32x8xf32>
    %291 = arith.addf %285, %290 : vector<32x8xf32>
    %c864 = arith.constant 864 : index
    %c0_216 = arith.constant 0 : index
    %292 = vector.load %arg6[%c864, %c0_216] : memref<936x40xf32, #tpu.memory_space<vmem>>, vector<8x8xf32>
    %cst_217 = arith.constant dense<0.000000e+00> : vector<32x8xf32>
    %293 = tpu.matmul %291, %292, %cst_217 {dimension_numbers = #tpu.dot_dimension_numbers<[1], [0], [0], [1], [0, 0, 1, 1], [], []>} : vector<32x8xf32>, vector<8x8xf32>, vector<32x8xf32> -> vector<32x8xf32>
    %294 = arith.addf %243, %293 : vector<32x8xf32>
    %c872 = arith.constant 872 : index
    %c0_218 = arith.constant 0 : index
    %295 = vector.load %arg6[%c872, %c0_218] : memref<936x40xf32, #tpu.memory_space<vmem>>, vector<1x8xf32>
    %296 = vector.broadcast %295 : vector<1x8xf32> to vector<32x8xf32>
    %297 = arith.addf %294, %296 : vector<32x8xf32>
    %c880_219 = arith.constant 880 : index
    %c0_220 = arith.constant 0 : index
    %298 = vector.load %arg6[%c880_219, %c0_220] : memref<936x40xf32, #tpu.memory_space<vmem>>, vector<8x16xf32>
    %cst_221 = arith.constant dense<0.000000e+00> : vector<32x16xf32>
    %299 = tpu.matmul %297, %298, %cst_221 {dimension_numbers = #tpu.dot_dimension_numbers<[1], [0], [0], [1], [0, 0, 1, 1], [], []>} : vector<32x8xf32>, vector<8x16xf32>, vector<32x16xf32> -> vector<32x16xf32>
    %c888_222 = arith.constant 888 : index
    %c0_223 = arith.constant 0 : index
    %300 = vector.load %arg6[%c888_222, %c0_223] : memref<936x40xf32, #tpu.memory_space<vmem>>, vector<1x16xf32>
    %301 = vector.broadcast %300 : vector<1x16xf32> to vector<32x16xf32>
    %302 = arith.addf %299, %301 : vector<32x16xf32>
    %c896 = arith.constant 896 : index
    %c0_224 = arith.constant 0 : index
    %303 = vector.load %arg6[%c896, %c0_224] : memref<936x40xf32, #tpu.memory_space<vmem>>, vector<16x8xf32>
    %cst_225 = arith.constant dense<0.000000e+00> : vector<32x8xf32>
    %304 = tpu.matmul %302, %303, %cst_225 {dimension_numbers = #tpu.dot_dimension_numbers<[1], [0], [0], [1], [0, 0, 1, 1], [], []>} : vector<32x16xf32>, vector<16x8xf32>, vector<32x8xf32> -> vector<32x8xf32>
    %305 = arith.addf %297, %304 : vector<32x8xf32>
    %c912 = arith.constant 912 : index
    %c0_226 = arith.constant 0 : index
    %306 = vector.load %arg6[%c912, %c0_226] : memref<936x40xf32, #tpu.memory_space<vmem>>, vector<1x8xf32>
    %307 = vector.broadcast %306 : vector<1x8xf32> to vector<32x8xf32>
    %308 = arith.addf %305, %307 : vector<32x8xf32>
    %c920_227 = arith.constant 920 : index
    %c0_228 = arith.constant 0 : index
    %309 = vector.load %arg6[%c920_227, %c0_228] : memref<936x40xf32, #tpu.memory_space<vmem>>, vector<8x4xf32>
    %cst_229 = arith.constant dense<0.000000e+00> : vector<32x4xf32>
    %310 = tpu.matmul %308, %309, %cst_229 {dimension_numbers = #tpu.dot_dimension_numbers<[1], [0], [0], [1], [0, 0, 1, 1], [], []>} : vector<32x8xf32>, vector<8x4xf32>, vector<32x4xf32> -> vector<32x4xf32>
    %c928_230 = arith.constant 928 : index
    %c0_231 = arith.constant 0 : index
    %311 = vector.load %arg6[%c928_230, %c0_231] : memref<936x40xf32, #tpu.memory_space<vmem>>, vector<1x4xf32>
    %312 = vector.broadcast %311 : vector<1x4xf32> to vector<32x4xf32>
    %313 = arith.addf %310, %312 : vector<32x4xf32>
    %cst_232 = arith.constant 0.000000e+00 : f32
    %314 = vector.broadcast %cst_232 : f32 to vector<32x4xf32>
    %315 = arith.subf %314, %313 : vector<32x4xf32>
    %316 = math.exp %315 : vector<32x4xf32>
    %cst_233 = arith.constant 1.000000e+00 : f32
    %317 = vector.broadcast %cst_233 : f32 to vector<32x4xf32>
    %318 = arith.addf %317, %316 : vector<32x4xf32>
    %319 = tpu.reciprocal %318 {approx = true} : vector<32x4xf32> -> vector<32x4xf32>
    %c0_234 = arith.constant 0 : index
    %c0_235 = arith.constant 0 : index
    %320 = vector.load %arg7[%c0_234, %c0_235] : memref<32x8xf32, #tpu.memory_space<vmem>>, vector<32x4xf32>
    tpu.vector_store %arg7[%c0_234, %c0_235], %158 {strides = array<i32>} : memref<32x8xf32, #tpu.memory_space<vmem>>, vector<32x4xf32>,
    %c0_236 = arith.constant 0 : index
    %c4 = arith.constant 4 : index
    %321 = vector.load %arg7[%c0_236, %c4] : memref<32x8xf32, #tpu.memory_space<vmem>>, vector<32x4xf32>
    tpu.vector_store %arg7[%c0_236, %c4], %319 {strides = array<i32>} : memref<32x8xf32, #tpu.memory_space<vmem>>, vector<32x4xf32>,
    return
  }
  func.func @transform_0(%arg0: i32) -> (i32, i32) {
    %c0_i32 = arith.constant 0 : i32
    %c0_i32_0 = arith.constant 0 : i32
    return %arg0, %c0_i32 : i32, i32
  }
  func.func @transform_1(%arg0: i32) -> (i32, i32) {
    %c0_i32 = arith.constant 0 : i32
    %c0_i32_0 = arith.constant 0 : i32
    return %arg0, %c0_i32 : i32, i32
  }
  func.func @transform_2(%arg0: i32) -> (i32, i32) {
    %c0_i32 = arith.constant 0 : i32
    %c0_i32_0 = arith.constant 0 : i32
    %c0_i32_1 = arith.constant 0 : i32
    return %c0_i32, %c0_i32_0 : i32, i32
  }
  func.func @transform_3(%arg0: i32) -> (i32, i32) {
    %c0_i32 = arith.constant 0 : i32
    %c0_i32_0 = arith.constant 0 : i32
    %c0_i32_1 = arith.constant 0 : i32
    return %c0_i32, %c0_i32_0 : i32, i32
  }
  func.func @transform_4(%arg0: i32) -> (i32, i32) {
    %c0_i32 = arith.constant 0 : i32
    %c0_i32_0 = arith.constant 0 : i32
    %c0_i32_1 = arith.constant 0 : i32
    return %c0_i32, %c0_i32_0 : i32, i32
  }
  func.func @transform_5(%arg0: i32) -> (i32, i32) {
    %c0_i32 = arith.constant 0 : i32
    %c0_i32_0 = arith.constant 0 : i32
    %c0_i32_1 = arith.constant 0 : i32
    return %c0_i32, %c0_i32_0 : i32, i32
  }
  func.func @transform_6(%arg0: i32) -> (i32, i32) {
    %c0_i32 = arith.constant 0 : i32
    %c0_i32_0 = arith.constant 0 : i32
    return %arg0, %c0_i32 : i32, i32
  }
}

</mosaic_0001>

<llo_original>
// kernel: forward.1
$region0: #{forward.1}
  #allocation0 [shape = 'u32[]', space=smem, size = 0x4, offset = 0x4, fixed_abs, tag = 'smem constant byte address 0x4 - core index']
  #allocation1 [shape = 'u32[144,128]{1,0:T(1,128)}', space=vmem, size = 0x12000, scoped, tag = 'internal scratch']
  %s0 = inlined_call_operand.vmem [shape: f32[128,40], index: 0, kind: input, shape index: {}]
  %s1 = inlined_call_operand.vmem [shape: f32[128,8], index: 1, kind: input, shape index: {}]
  %s2 = inlined_call_operand.hbm [shape: f32[360,400], index: 2, kind: input, shape index: {}]
  %s3 = inlined_call_operand.vmem [shape: f32[88,160], index: 3, kind: input, shape index: {}]
  %s4 = inlined_call_operand.hbm [shape: f32[1760,80], index: 4, kind: input, shape index: {}]
  %s5 = inlined_call_operand.hbm [shape: f32[936,40], index: 5, kind: input, shape index: {}]
  %s6 = inlined_call_operand.vmem [shape: f32[128,8], index: 6, kind: output, shape index: {}]
  %s7 = sld [smem:[#allocation0]]
  $region69: #{forward.1} parent=0
    _
  %s9 = ssub.s32 1, %s7
  %s10 = scalar_select 0, %s9, %s7
  $region1: #{forward.1} parent=0
    #allocation2 [shape = 'u8[737280]{0}', space=vmem, size = 0xb4000, scoped, tag = 'input window, operand 2, single buffered']
    #allocation3 [shape = 's32[2]{0}', space=sflag, size = 0x8, scoped, tag = 'scoped memory for forward.1']
    #allocation4 [shape = 'u8[901120]{0}', space=vmem, size = 0xdc000, scoped, tag = 'input window, operand 4, single buffered']
    #allocation5 [shape = 's32[1]{0}', space=sflag, size = 0x4, scoped, tag = 'scoped memory for forward.1']
    #allocation6 [shape = 'u8[479232]{0}', space=vmem, size = 0x75000, scoped, tag = 'input window, operand 5, single buffered']
    %11 = vsyncpa [#allocation3], 0
    %12 = vsyncpa [#allocation5], 0
    loop: start=0, step=1, limit=6
    $region2: #{forward.1} parent=1 // loop_pre_header
      _
    $region3: #{forward.1} parent=1 // loop_header
      %s14 = sphi 0, %s18
      %p15 = scmp.ge.s32.totalorder %s14, 6
      %s24 = sphi 0, %s26
      %s27 = sphi 0, %s24
      %s28 = sphi 0, %s27
      %s44 = sphi 0, %s28
      %s50 = sphi 0, %s52
      %s53 = sphi 0, %s50
      %s54 = sphi 0, %s53
      %s70 = sphi 0, %s54
      %s74 = sphi 0, %s74
      %s76 = sphi 0, %s74
      %s77 = sphi 0, %s76
      %s91 = sphi 0, %s77
      %s95 = sphi 0, %s95
      %s97 = sphi 0, %s95
      %s98 = sphi 0, %s97
      %s112 = sphi 0, %s98
      %s116 = sphi 0, %s116
      %s118 = sphi 0, %s116
      %s119 = sphi 0, %s118
      %s133 = sphi 0, %s119
      %s137 = sphi 0, %s137
      %s139 = sphi 0, %s137
      %s140 = sphi 0, %s139
      %s154 = sphi 0, %s140
      %s160 = sphi 0, %s162
      %s163 = sphi 0, %s160
      %s164 = sphi 0, %s163
      %s180 = sphi 0, %s164
    $region4: #{forward.1} parent=1 // loop_header_branch
      %17 = sbr.rel (%p15) target = $region8
    $region5: #{forward.1} parent=1 // loop_body
      %s19 = ssub.s32 %s14, 1
      %s20 = ssub.s32 %s14, 2
      %s21 = sadd.s32 %s14, 1
      %s22 = ssub.s32 %s14, %s21
      %p23 = scmp.eq.s32.totalorder %s22, 0
      %s25 = sadd.s32 %s24, 1
      %s26 = scalar_select %p23, %s24, %s25
      %p29 = pneg %p23
      %p30 = scmp.eq.s32.totalorder %s14, 3
      %p31 = por %p29, %p30
      %p32 = scmp.ne.s32.totalorder %s24, %s27
      %p33 = scmp.eq.s32.totalorder %s14, 0
      %p34 = por %p32, %p33
      %p35 = scmp.ne.s32.totalorder %s24, %s27
      %p36 = scmp.eq.s32.totalorder %s19, 3
      %p37 = por %p35, %p36
      %p38 = scmp.ne.s32.totalorder %s27, %s28
      %p39 = scmp.eq.s32.totalorder %s19, 0
      %p40 = por %p38, %p39
      %p41 = scmp.ne.s32.totalorder %s27, %s28
      %p42 = scmp.eq.s32.totalorder %s20, 3
      %p43 = por %p41, %p42
      %p45 = scmp.ne.s32.totalorder %s28, %s44
      %p46 = scmp.eq.s32.totalorder %s20, 0
      %p47 = por %p45, %p46
      %s48 = ssub.s32 %s14, %s21
      %p49 = scmp.eq.s32.totalorder %s48, 0
      %s51 = sadd.s32 %s50, 1
      %s52 = scalar_select %p49, %s50, %s51
      %p55 = pneg %p49
      %p56 = scmp.eq.s32.totalorder %s14, 3
      %p57 = por %p55, %p56
      %p58 = scmp.ne.s32.totalorder %s50, %s53
      %p59 = scmp.eq.s32.totalorder %s14, 0
      %p60 = por %p58, %p59
      %p61 = scmp.ne.s32.totalorder %s50, %s53
      %p62 = scmp.eq.s32.totalorder %s19, 3
      %p63 = por %p61, %p62
      %p64 = scmp.ne.s32.totalorder %s53, %s54
      %p65 = scmp.eq.s32.totalorder %s19, 0
      %p66 = por %p64, %p65
      %p67 = scmp.ne.s32.totalorder %s53, %s54
      %p68 = scmp.eq.s32.totalorder %s20, 3
      %p69 = por %p67, %p68
      %p71 = scmp.ne.s32.totalorder %s54, %s70
      %p72 = scmp.eq.s32.totalorder %s20, 0
      %p73 = por %p71, %p72
      %s75 = sadd.s32 %s74, 1
      %p78 = scmp.eq.s32.totalorder %s14, 3
      %p79 = scmp.ne.s32.totalorder %s74, %s76
      %p80 = scmp.eq.s32.totalorder %s14, 0
      %p81 = por %p79, %p80
      %p82 = scmp.ne.s32.totalorder %s74, %s76
      %p83 = scmp.eq.s32.totalorder %s19, 3
      %p84 = por %p82, %p83
      %p85 = scmp.ne.s32.totalorder %s76, %s77
      %p86 = scmp.eq.s32.totalorder %s19, 0
      %p87 = por %p85, %p86
      %p88 = scmp.ne.s32.totalorder %s76, %s77
      %p89 = scmp.eq.s32.totalorder %s20, 3
      %p90 = por %p88, %p89
      %p92 = scmp.ne.s32.totalorder %s77, %s91
      %p93 = scmp.eq.s32.totalorder %s20, 0
      %p94 = por %p92, %p93
      %s96 = sadd.s32 %s95, 1
      %p99 = scmp.eq.s32.totalorder %s14, 3
      %p100 = scmp.ne.s32.totalorder %s95, %s97
      %p101 = scmp.eq.s32.totalorder %s14, 0
      %p102 = por %p100, %p101
      %p103 = scmp.ne.s32.totalorder %s95, %s97
      %p104 = scmp.eq.s32.totalorder %s19, 3
      %p105 = por %p103, %p104
      %p106 = scmp.ne.s32.totalorder %s97, %s98
      %p107 = scmp.eq.s32.totalorder %s19, 0
      %p108 = por %p106, %p107
      %p109 = scmp.ne.s32.totalorder %s97, %s98
      %p110 = scmp.eq.s32.totalorder %s20, 3
      %p111 = por %p109, %p110
      %p113 = scmp.ne.s32.totalorder %s98, %s112
      %p114 = scmp.eq.s32.totalorder %s20, 0
      %p115 = por %p113, %p114
      %s117 = sadd.s32 %s116, 1
      %p120 = scmp.eq.s32.totalorder %s14, 3
      %p121 = scmp.ne.s32.totalorder %s116, %s118
      %p122 = scmp.eq.s32.totalorder %s14, 0
      %p123 = por %p121, %p122
      %p124 = scmp.ne.s32.totalorder %s116, %s118
      %p125 = scmp.eq.s32.totalorder %s19, 3
      %p126 = por %p124, %p125
      %p127 = scmp.ne.s32.totalorder %s118, %s119
      %p128 = scmp.eq.s32.totalorder %s19, 0
      %p129 = por %p127, %p128
      %p130 = scmp.ne.s32.totalorder %s118, %s119
      %p131 = scmp.eq.s32.totalorder %s20, 3
      %p132 = por %p130, %p131
      %p134 = scmp.ne.s32.totalorder %s119, %s133
      %p135 = scmp.eq.s32.totalorder %s20, 0
      %p136 = por %p134, %p135
      %s138 = sadd.s32 %s137, 1
      %p141 = scmp.eq.s32.totalorder %s14, 3
      %p142 = scmp.ne.s32.totalorder %s137, %s139
      %p143 = scmp.eq.s32.totalorder %s14, 0
      %p144 = por %p142, %p143
      %p145 = scmp.ne.s32.totalorder %s137, %s139
      %p146 = scmp.eq.s32.totalorder %s19, 3
      %p147 = por %p145, %p146
      %p148 = scmp.ne.s32.totalorder %s139, %s140
      %p149 = scmp.eq.s32.totalorder %s19, 0
      %p150 = por %p148, %p149
      %p151 = scmp.ne.s32.totalorder %s139, %s140
      %p152 = scmp.eq.s32.totalorder %s20, 3
      %p153 = por %p151, %p152
      %p155 = scmp.ne.s32.totalorder %s140, %s154
      %p156 = scmp.eq.s32.totalorder %s20, 0
      %p157 = por %p155, %p156
      %s158 = ssub.s32 %s14, %s21
      %p159 = scmp.eq.s32.totalorder %s158, 0
      %s161 = sadd.s32 %s160, 1
      %s162 = scalar_select %p159, %s160, %s161
      %p165 = pneg %p159
      %p166 = scmp.eq.s32.totalorder %s14, 3
      %p167 = por %p165, %p166
      %p168 = scmp.ne.s32.totalorder %s160, %s163
      %p169 = scmp.eq.s32.totalorder %s14, 0
      %p170 = por %p168, %p169
      %p171 = scmp.ne.s32.totalorder %s160, %s163
      %p172 = scmp.eq.s32.totalorder %s19, 3
      %p173 = por %p171, %p172
      %p174 = scmp.ne.s32.totalorder %s163, %s164
      %p175 = scmp.eq.s32.totalorder %s19, 0
      %p176 = por %p174, %p175
      %p177 = scmp.ne.s32.totalorder %s163, %s164
      %p178 = scmp.eq.s32.totalorder %s20, 3
      %p179 = por %p177, %p178
      %p181 = scmp.ne.s32.totalorder %s164, %s180
      %p182 = scmp.eq.s32.totalorder %s20, 0
      %p183 = por %p181, %p182
      %p184 = scmp.le.s32.totalorder 1, %s14
      %p185 = scmp.lt.s32.totalorder %s14, 5
      %p186 = pnand %p184, %p185
      %p187 = pneg %p186
      // Predicated region
      $region9: #{forward.1} parent=5 // pred_check
        _
      $region10: #{forward.1} parent=5 // pred_check_branch
        %189 = sbr.rel (%p186) target = $region12
      $region11: #{forward.1} parent=5 // pred_region
        %s190 = ssub.s32 %s14, 1
        // Predicated region
        $region13: #{forward.1} parent=11 // pred_check
          %p191 = pneg %p87
        $region14: #{forward.1} parent=11 // pred_check_branch
          %193 = sbr.rel (%p191) target = $region16
        $region15: #{forward.1} parent=11 // pred_region
          %s195 = ssub.s32 23040, 23040
          %196 = vsyncadd [#allocation3], %s195
          %s197 = sshll.u32 [#allocation2], 4
          %s198 = int_to_ptr.vmem [resolvable:$true] %s197
          %203 = dma.hbm_to_vmem [thread:$0]  %s2, 23040, %s198, [#allocation3], 512, 512, 32
        $region16: #{forward.1} parent=11 // pred_fallthru
          _
        // Predicated region
        $region17: #{forward.1} parent=11 // pred_check
          %p204 = pneg %p108
        $region18: #{forward.1} parent=11 // pred_check_branch
          %206 = sbr.rel (%p204) target = $region20
        $region19: #{forward.1} parent=11 // pred_region
          _
        $region20: #{forward.1} parent=11 // pred_fallthru
          _
        // Predicated region
        $region21: #{forward.1} parent=11 // pred_check
          %p207 = pneg %p129
        $region22: #{forward.1} parent=11 // pred_check_branch
          %209 = sbr.rel (%p207) target = $region24
        $region23: #{forward.1} parent=11 // pred_region
          %s211 = ssub.s32 28160, 28160
          %212 = vsyncadd [#allocation5], %s211
          %s213 = sshll.u32 [#allocation4], 4
          %s214 = int_to_ptr.vmem [resolvable:$true] %s213
          %219 = dma.hbm_to_vmem [thread:$0]  %s4, 28160, %s214, [#allocation5], 128, 128, 8
        $region24: #{forward.1} parent=11 // pred_fallthru
          _
        // Predicated region
        $region25: #{forward.1} parent=11 // pred_check
          %p220 = pneg %p150
        $region26: #{forward.1} parent=11 // pred_check_branch
          %222 = sbr.rel (%p220) target = $region28
        $region27: #{forward.1} parent=11 // pred_region
          %s224 = ssub.s32 14976, 14976
          %225 = vsyncadd [#allocation5], %s224
          %s226 = sshll.u32 [#allocation6], 4
          %s227 = int_to_ptr.vmem [resolvable:$true] %s226
          %232 = dma.hbm_to_vmem [thread:$0]  %s5, 14976, %s227, [#allocation5], 128, 128, 8
        $region28: #{forward.1} parent=11 // pred_fallthru
          _
      $region12: #{forward.1} parent=5 // pred_fallthru
        _
      %p233 = scmp.lt.s32.totalorder %s14, 4
      // Predicated region
      $region29: #{forward.1} parent=5 // pred_check
        %p234 = pneg %p233
      $region30: #{forward.1} parent=5 // pred_check_branch
        %236 = sbr.rel (%p234) target = $region32
      $region31: #{forward.1} parent=5 // pred_region
        // Predicated region
        $region33: #{forward.1} parent=31 // pred_check
          %p237 = pneg %p34
        $region34: #{forward.1} parent=31 // pred_check_branch
          %239 = sbr.rel (%p237) target = $region36
        $region35: #{forward.1} parent=31 // pred_region
          %s240 = smul.u32 4, %s14
          %p241 = scmp.lt.s32.totalorder %s240, 15
          %s242 = scalar_select %p241, %s240, 15
          %s243 = smul.addr %s242, 8
          %s244 = scalar_lea.vmem %s0, %s243
          %s245 = smul.u32 4, %s14
        $region36: #{forward.1} parent=31 // pred_fallthru
          _
        // Predicated region
        $region37: #{forward.1} parent=31 // pred_check
          %p246 = pneg %p60
        $region38: #{forward.1} parent=31 // pred_check_branch
          %248 = sbr.rel (%p246) target = $region40
        $region39: #{forward.1} parent=31 // pred_region
          %s249 = smul.u32 4, %s14
          %p250 = scmp.lt.s32.totalorder %s249, 15
          %s251 = scalar_select %p250, %s249, 15
          %s252 = smul.addr %s251, 8
          %s253 = scalar_lea.vmem %s1, %s252
          %s254 = smul.u32 4, %s14
        $region40: #{forward.1} parent=31 // pred_fallthru
          _
      $region32: #{forward.1} parent=5 // pred_fallthru
        _
      %p255 = scmp.le.s32.totalorder 1, %s14
      %p256 = scmp.lt.s32.totalorder %s14, 5
      %p257 = pnand %p255, %p256
      %p258 = pneg %p257
      // Predicated region
      $region41: #{forward.1} parent=5 // pred_check
        _
      $region42: #{forward.1} parent=5 // pred_check_branch
        %260 = sbr.rel (%p257) target = $region44
      $region43: #{forward.1} parent=5 // pred_region
        %s261 = ssub.s32 %s14, 1
        // Predicated region
        $region45: #{forward.1} parent=43 // pred_check
          %p262 = pneg %p87
        $region46: #{forward.1} parent=43 // pred_check_branch
          %264 = sbr.rel (%p262) target = $region48
        $region47: #{forward.1} parent=43 // pred_region
          %265 = dma.done [#allocation3], 23040
        $region48: #{forward.1} parent=43 // pred_fallthru
          _
        // Predicated region
        $region49: #{forward.1} parent=43 // pred_check
          %p266 = pneg %p129
        $region50: #{forward.1} parent=43 // pred_check_branch
          %268 = sbr.rel (%p266) target = $region52
        $region51: #{forward.1} parent=43 // pred_region
          %269 = dma.done [#allocation5], 28160
        $region52: #{forward.1} parent=43 // pred_fallthru
          _
        // Predicated region
        $region53: #{forward.1} parent=43 // pred_check
          %p270 = pneg %p150
        $region54: #{forward.1} parent=43 // pred_check_branch
          %272 = sbr.rel (%p270) target = $region56
        $region55: #{forward.1} parent=43 // pred_region
          %273 = dma.done [#allocation5], 14976
        $region56: #{forward.1} parent=43 // pred_fallthru
          _
        %s274 = smul.u32 4, %s19
        %p275 = scmp.lt.s32.totalorder %s274, 15
        %s276 = scalar_select %p275, %s274, 15
        %s277 = smul.addr %s276, 8
        %s278 = scalar_lea.vmem %s0, %s277
        %p279 = pneg %p40
        %p280 = pneg %p37
        %s281 = smul.u32 4, %s19
        %p282 = scmp.lt.s32.totalorder %s281, 15
        %s283 = scalar_select %p282, %s281, 15
        %s284 = smul.addr %s283, 8
        %s285 = scalar_lea.vmem %s1, %s284
        %p286 = pneg %p66
        %p287 = pneg %p63
        %p288 = pneg %p87
        %p289 = pneg %p84
        %p290 = pneg %p108
        %p291 = pneg %p105
        %p292 = pneg %p129
        %p293 = pneg %p126
        %p294 = pneg %p150
        %p295 = pneg %p147
        %p296 = pneg %p176
        %p297 = pneg %p173
        %s298 = smul.u32 4, %s19
        %p299 = scmp.lt.s32.totalorder %s298, 15
        %s300 = scalar_select %p299, %s298, 15
        %s301 = smul.addr %s300, 8
        %s302 = scalar_lea.vmem %s6, %s301
        %s303 = smul.u32 4, %s19
        %p304 = scmp.lt.s32.totalorder %s303, 15
        %s305 = scalar_select %p304, %s303, 15
        %s306 = smul.addr %s305, 8
        %s307 = scalar_lea.vmem %s0, %s306
        %s308 = smul.u32 4, %s19
        %s309 = smul.u32 4, %s19
        %p310 = scmp.lt.s32.totalorder %s309, 15
        %s311 = scalar_select %p310, %s309, 15
        %s312 = smul.addr %s311, 8
        %s313 = scalar_lea.vmem %s1, %s312
        %s314 = smul.u32 4, %s19
        %s315 = smul.u32 4, %s19
        %p316 = scmp.lt.s32.totalorder %s315, 15
        %s317 = scalar_select %p316, %s315, 15
        %s318 = smul.addr %s317, 8
        %s319 = scalar_lea.vmem %s6, %s318
        %s320 = smul.u32 4, %s19
        %v321 = vld [vmem:[%s307] sm:$0xff]
        %v322 = vld [vmem:[%s307 + $0x8] sm:$0xff]
        %v323 = vld [vmem:[%s307 + $0x10] sm:$0xff]
        %v324 = vld [vmem:[%s307 + $0x18] sm:$0xff]
        %v325 = vld [vmem:[%s313] sm:$0xff]
        %v326 = vld [vmem:[%s313 + $0x8] sm:$0xff]
        %v327 = vld [vmem:[%s313 + $0x10] sm:$0xff]
        %v328 = vld [vmem:[%s313 + $0x18] sm:$0xff]
        %v329 = vld [vmem:[#allocation4 + $0x370] sm:$0x1]
        %v330 = vld [vmem:[#allocation4 + $0x320] sm:$0xff]
        %v331 = vld [vmem:[#allocation4 + $0x328] sm:$0xff]
        %v332 = vld [vmem:[#allocation4 + $0x330] sm:$0xff]
        %v333 = vld [vmem:[#allocation4 + $0x338] sm:$0xff]
        %v334 = vld [vmem:[#allocation4 + $0x340] sm:$0xff]
        %vm335 = vcmask 326656
        %v337 = vsel %vm335, %v321, 0
        %v340 = vsel %vm335, %v322, 0
        %v343 = vsel %vm335, %v323, 0
        %v346 = vsel %vm335, %v324, 0
        %348 = vmatprep.subr.mxu0 0.0
        %349 = vmatpush1.msra.mxu0 %v330
        %350 = vmatprep.subr.mxu0 0.0
        %351 = vmatpush1.msra.mxu0 %v331
        %352 = vmatprep.subr.mxu0 0.0
        %353 = vmatpush1.msra.mxu0 %v332
        %354 = vmatprep.subr.mxu0 0.0
        %355 = vmatpush1.msra.mxu0 %v333
        %356 = vmatprep.subr.mxu0 0.0
        %357 = vmatpush1.msra.mxu0 %v334
        %358 = vmatprep.subr.mxu0 0.0
        %359 = vmatpush1.msra.mxu0 0.0
        %360 = vmatprep.subr.mxu0 0.0
        %361 = vmatpush1.msra.mxu0 0.0
        %362 = vmatprep.subr.mxu0 0.0
        %363 = vmatpush1.msra.mxu0 0.0
        %364 = vmatprep.subr.mxu0 0.0
        %365 = vmatpush1.msra.mxu0 0.0
        %366 = vmatprep.subr.mxu0 0.0
        %367 = vmatpush1.msra.mxu0 0.0
        %368 = vmatprep.subr.mxu0 0.0
        %369 = vmatpush1.msra.mxu0 0.0
        %370 = vmatprep.subr.mxu0 0.0
        %371 = vmatpush1.msra.mxu0 0.0
        %372 = vmatprep.subr.mxu0 0.0
        %373 = vmatpush1.msra.mxu0 0.0
        %374 = vmatprep.subr.mxu0 0.0
        %375 = vmatpush1.msra.mxu0 0.0
        %376 = vmatprep.subr.mxu0 0.0
        %377 = vmatpush1.msra.mxu0 0.0
        %378 = vmatprep.subr.mxu0 0.0
        %379 = vmatpush1.msra.mxu0 0.0
        %380 = vmatprep.subr.mxu0 0.0
        %381 = vmatpush1.msra.mxu0 0.0
        %382 = vmatprep.subr.mxu0 0.0
        %383 = vmatpush1.msra.mxu0 0.0
        %384 = vmatprep.subr.mxu0 0.0
        %385 = vmatpush1.msra.mxu0 0.0
        %386 = vmatprep.subr.mxu0 0.0
        %387 = vmatpush1.msra.mxu0 0.0
        %388 = vmatprep.subr.mxu0 0.0
        %389 = vmatpush1.msra.mxu0 0.0
        %390 = vmatprep.subr.mxu0 0.0
        %391 = vmatpush1.msra.mxu0 0.0
        %392 = vmatprep.subr.mxu0 0.0
        %393 = vmatpush1.msra.mxu0 0.0
        %394 = vmatprep.subr.mxu0 0.0
        %395 = vmatpush1.msra.mxu0 0.0
        %396 = vmatprep.subr.mxu0 0.0
        %397 = vmatpush1.msra.mxu0 0.0
        %398 = vmatprep.subr.mxu0 0.0
        %399 = vmatpush1.msra.mxu0 0.0
        %400 = vmatprep.subr.mxu0 0.0
        %401 = vmatpush1.msra.mxu0 0.0
        %402 = vmatprep.subr.mxu0 0.0
        %403 = vmatpush1.msra.mxu0 0.0
        %404 = vmatprep.subr.mxu0 0.0
        %405 = vmatpush1.msra.mxu0 0.0
        %406 = vmatprep.subr.mxu0 0.0
        %407 = vmatpush1.msra.mxu0 0.0
        %408 = vmatprep.subr.mxu0 0.0
        %409 = vmatpush1.msra.mxu0 0.0
        %410 = vmatprep.subr.mxu0 0.0
        %411 = vmatpush1.msra.mxu0 0.0
        %412 = vmatprep.mubr.f32.mxu0 0.0
        %413 = vmatmul.mubr.f32.gmra.mrb[0].mxu0 %v337
        %v414 = vpop.f32.mrb[0].mxu0
        %v415 = vadd.f32 0.0, %v414
        %v416 = vpop.f32.mrb[0].mxu0
        %417 = vmatprep.mubr.f32.mxu0 0.0
        %418 = vmatmul.mubr.f32.gmra.mrb[0].mxu0 %v340
        %v419 = vpop.f32.mrb[0].mxu0
        %v420 = vadd.f32 0.0, %v419
        %v421 = vpop.f32.mrb[0].mxu0
        %422 = vmatprep.mubr.f32.mxu0 0.0
        %423 = vmatmul.mubr.f32.gmra.mrb[0].mxu0 %v343
        %v424 = vpop.f32.mrb[0].mxu0
        %v425 = vadd.f32 0.0, %v424
        %v426 = vpop.f32.mrb[0].mxu0
        %427 = vmatprep.mubr.f32.mxu0 0.0
        %428 = vmatmul.mubr.f32.gmra.mrb[0].mxu0 %v346
        %v429 = vpop.f32.mrb[0].mxu0
        %v430 = vadd.f32 0.0, %v429
        %v431 = vpop.f32.mrb[0].mxu0
        %432 = vdwg.mxu0
        %v433 = vlaneseq
        %v434 = vshrl.u32 %v433, 7
        %v435 = vsub.s32 0, %v434
        %v436 = vrot.slane %v329, %v435
        %v437 = vadd.f32 %v415, %v436
        %v438 = vadd.f32 %v420, %v436
        %v439 = vadd.f32 %v425, %v436
        %v440 = vadd.f32 %v430, %v436
        %v441 = vld [vmem:[#allocation4 + $0x378] sm:$0xff]
        %v442 = vld [vmem:[#allocation4 + $0x380] sm:$0xff]
        %v443 = vld [vmem:[#allocation4 + $0x388] sm:$0xff]
        %v444 = vld [vmem:[#allocation4 + $0x390] sm:$0xff]
        %v445 = vld [vmem:[#allocation4 + $0x398] sm:$0xff]
        %v446 = vld [vmem:[#allocation4 + $0x3a0] sm:$0xff]
        %v447 = vld [vmem:[#allocation4 + $0x3a8] sm:$0xff]
        %v448 = vld [vmem:[#allocation4 + $0x3b0] sm:$0xff]
        %v449 = vld [vmem:[#allocation4 + $0x3b8] sm:$0xff]
        %v450 = vld [vmem:[#allocation4 + $0x3c0] sm:$0xff]
        %v451 = vld [vmem:[#allocation4 + $0x3c8] sm:$0x1]
        %v452 = vlaneseq
        %v453 = vshrl.u32 %v452, 7
        %v454 = vsub.s32 0, %v453
        %v455 = vrot.slane %v451, %v454
        %vm456 = vcmask 654336
        %v458 = vsel %vm456, %v437, 0
        %v461 = vsel %vm456, %v438, 0
        %v464 = vsel %vm456, %v439, 0
        %v467 = vsel %vm456, %v440, 0
        %469 = vmatprep.subr.mxu0 0.0
        %470 = vmatpush1.msra.mxu0 %v441
        %471 = vmatprep.subr.mxu0 0.0
        %472 = vmatpush1.msra.mxu0 %v442
        %473 = vmatprep.subr.mxu0 0.0
        %474 = vmatpush1.msra.mxu0 %v443
        %475 = vmatprep.subr.mxu0 0.0
        %476 = vmatpush1.msra.mxu0 %v444
        %477 = vmatprep.subr.mxu0 0.0
        %478 = vmatpush1.msra.mxu0 %v445
        %479 = vmatprep.subr.mxu0 0.0
        %480 = vmatpush1.msra.mxu0 %v446
        %481 = vmatprep.subr.mxu0 0.0
        %482 = vmatpush1.msra.mxu0 %v447
        %483 = vmatprep.subr.mxu0 0.0
        %484 = vmatpush1.msra.mxu0 %v448
        %485 = vmatprep.subr.mxu0 0.0
        %486 = vmatpush1.msra.mxu0 %v449
        %487 = vmatprep.subr.mxu0 0.0
        %488 = vmatpush1.msra.mxu0 %v450
        %489 = vmatprep.subr.mxu0 0.0
        %490 = vmatpush1.msra.mxu0 0.0
        %491 = vmatprep.subr.mxu0 0.0
        %492 = vmatpush1.msra.mxu0 0.0
        %493 = vmatprep.subr.mxu0 0.0
        %494 = vmatpush1.msra.mxu0 0.0
        %495 = vmatprep.subr.mxu0 0.0
        %496 = vmatpush1.msra.mxu0 0.0
        %497 = vmatprep.subr.mxu0 0.0
        %498 = vmatpush1.msra.mxu0 0.0
        %499 = vmatprep.subr.mxu0 0.0
        %500 = vmatpush1.msra.mxu0 0.0
        %501 = vmatprep.subr.mxu0 0.0
        %502 = vmatpush1.msra.mxu0 0.0
        %503 = vmatprep.subr.mxu0 0.0
        %504 = vmatpush1.msra.mxu0 0.0
        %505 = vmatprep.subr.mxu0 0.0
        %506 = vmatpush1.msra.mxu0 0.0
        %507 = vmatprep.subr.mxu0 0.0
        %508 = vmatpush1.msra.mxu0 0.0
        %509 = vmatprep.subr.mxu0 0.0
        %510 = vmatpush1.msra.mxu0 0.0
        %511 = vmatprep.subr.mxu0 0.0
        %512 = vmatpush1.msra.mxu0 0.0
        %513 = vmatprep.subr.mxu0 0.0
        %514 = vmatpush1.msra.mxu0 0.0
        %515 = vmatprep.subr.mxu0 0.0
        %516 = vmatpush1.msra.mxu0 0.0
        %517 = vmatprep.subr.mxu0 0.0
        %518 = vmatpush1.msra.mxu0 0.0
        %519 = vmatprep.subr.mxu0 0.0
        %520 = vmatpush1.msra.mxu0 0.0
        %521 = vmatprep.subr.mxu0 0.0
        %522 = vmatpush1.msra.mxu0 0.0
        %523 = vmatprep.subr.mxu0 0.0
        %524 = vmatpush1.msra.mxu0 0.0
        %525 = vmatprep.subr.mxu0 0.0
        %526 = vmatpush1.msra.mxu0 0.0
        %527 = vmatprep.subr.mxu0 0.0
        %528 = vmatpush1.msra.mxu0 0.0
        %529 = vmatprep.subr.mxu0 0.0
        %530 = vmatpush1.msra.mxu0 0.0
        %531 = vmatprep.subr.mxu0 0.0
        %532 = vmatpush1.msra.mxu0 0.0
        %533 = vmatprep.mubr.f32.mxu0 0.0
        %534 = vmatmul.mubr.f32.gmra.mrb[0].mxu0 %v458
        %v535 = vpop.f32.mrb[0].mxu0
        %v536 = vadd.f32 %v455, %v535
        %v537 = vpop.f32.mrb[0].mxu0
        %538 = vmatprep.mubr.f32.mxu0 0.0
        %539 = vmatmul.mubr.f32.gmra.mrb[0].mxu0 %v461
        %v540 = vpop.f32.mrb[0].mxu0
        %v541 = vadd.f32 %v455, %v540
        %v542 = vpop.f32.mrb[0].mxu0
        %543 = vmatprep.mubr.f32.mxu0 0.0
        %544 = vmatmul.mubr.f32.gmra.mrb[0].mxu0 %v464
        %v545 = vpop.f32.mrb[0].mxu0
        %v546 = vadd.f32 %v455, %v545
        %v547 = vpop.f32.mrb[0].mxu0
        %548 = vmatprep.mubr.f32.mxu0 0.0
        %549 = vmatmul.mubr.f32.gmra.mrb[0].mxu0 %v467
        %v550 = vpop.f32.mrb[0].mxu0
        %v551 = vadd.f32 %v455, %v550
        %v552 = vpop.f32.mrb[0].mxu0
        %553 = vdwg.mxu0
        %v554 = vld [vmem:[#allocation4 + $0x3d0] sm:$0xff]
        %v555 = vld [vmem:[#allocation4 + $0x3d8] sm:$0xff]
        %v556 = vld [vmem:[#allocation4 + $0x3e0] sm:$0xff]
        %v557 = vld [vmem:[#allocation4 + $0x3e8] sm:$0xff]
        %v558 = vld [vmem:[#allocation4 + $0x3f0] sm:$0xff]
        %v559 = vld [vmem:[#allocation4 + $0x3f8] sm:$0xff]
        %v560 = vld [vmem:[#allocation4 + $0x400] sm:$0xff]
        %v561 = vld [vmem:[#allocation4 + $0x408] sm:$0xff]
        %v562 = vld [vmem:[#allocation4 + $0x410] sm:$0xff]
        %v563 = vld [vmem:[#allocation4 + $0x418] sm:$0xff]
        %v564 = vld [vmem:[#allocation4 + $0x420] sm:$0x1]
        %v565 = vlaneseq
        %v566 = vshrl.u32 %v565, 7
        %v567 = vsub.s32 0, %v566
        %v568 = vrot.slane %v564, %v567
        %569 = vmatprep.subr.mxu0 0.0
        %570 = vmatpush1.msra.mxu0 %v554
        %571 = vmatprep.subr.mxu0 0.0
        %572 = vmatpush1.msra.mxu0 %v555
        %573 = vmatprep.subr.mxu0 0.0
        %574 = vmatpush1.msra.mxu0 %v556
        %575 = vmatprep.subr.mxu0 0.0
        %576 = vmatpush1.msra.mxu0 %v557
        %577 = vmatprep.subr.mxu0 0.0
        %578 = vmatpush1.msra.mxu0 %v558
        %579 = vmatprep.subr.mxu0 0.0
        %580 = vmatpush1.msra.mxu0 %v559
        %581 = vmatprep.subr.mxu0 0.0
        %582 = vmatpush1.msra.mxu0 %v560
        %583 = vmatprep.subr.mxu0 0.0
        %584 = vmatpush1.msra.mxu0 %v561
        %585 = vmatprep.subr.mxu0 0.0
        %586 = vmatpush1.msra.mxu0 %v562
        %587 = vmatprep.subr.mxu0 0.0
        %588 = vmatpush1.msra.mxu0 %v563
        %589 = vmatprep.subr.mxu0 0.0
        %590 = vmatpush1.msra.mxu0 0.0
        %591 = vmatprep.subr.mxu0 0.0
        %592 = vmatpush1.msra.mxu0 0.0
        %593 = vmatprep.subr.mxu0 0.0
        %594 = vmatpush1.msra.mxu0 0.0
        %595 = vmatprep.subr.mxu0 0.0
        %596 = vmatpush1.msra.mxu0 0.0
        %597 = vmatprep.subr.mxu0 0.0
        %598 = vmatpush1.msra.mxu0 0.0
        %599 = vmatprep.subr.mxu0 0.0
        %600 = vmatpush1.msra.mxu0 0.0
        %601 = vmatprep.subr.mxu0 0.0
        %602 = vmatpush1.msra.mxu0 0.0
        %603 = vmatprep.subr.mxu0 0.0
        %604 = vmatpush1.msra.mxu0 0.0
        %605 = vmatprep.subr.mxu0 0.0
        %606 = vmatpush1.msra.mxu0 0.0
        %607 = vmatprep.subr.mxu0 0.0
        %608 = vmatpush1.msra.mxu0 0.0
        %609 = vmatprep.subr.mxu0 0.0
        %610 = vmatpush1.msra.mxu0 0.0
        %611 = vmatprep.subr.mxu0 0.0
        %612 = vmatpush1.msra.mxu0 0.0
        %613 = vmatprep.subr.mxu0 0.0
        %614 = vmatpush1.msra.mxu0 0.0
        %615 = vmatprep.subr.mxu0 0.0
        %616 = vmatpush1.msra.mxu0 0.0
        %617 = vmatprep.subr.mxu0 0.0
        %618 = vmatpush1.msra.mxu0 0.0
        %619 = vmatprep.subr.mxu0 0.0
        %620 = vmatpush1.msra.mxu0 0.0
        %621 = vmatprep.subr.mxu0 0.0
        %622 = vmatpush1.msra.mxu0 0.0
        %623 = vmatprep.subr.mxu0 0.0
        %624 = vmatpush1.msra.mxu0 0.0
        %625 = vmatprep.subr.mxu0 0.0
        %626 = vmatpush1.msra.mxu0 0.0
        %627 = vmatprep.subr.mxu0 0.0
        %628 = vmatpush1.msra.mxu0 0.0
        %629 = vmatprep.subr.mxu0 0.0
        %630 = vmatpush1.msra.mxu0 0.0
        %631 = vmatprep.subr.mxu0 0.0
        %632 = vmatpush1.msra.mxu0 0.0
        %633 = vmatprep.mubr.f32.mxu0 0.0
        %634 = vmatmul.mubr.f32.gmra.mrb[0].mxu0 %v458
        %v635 = vpop.f32.mrb[0].mxu0
        %v636 = vadd.f32 %v568, %v635
        %v637 = vpop.f32.mrb[0].mxu0
        %638 = vmatprep.mubr.f32.mxu0 0.0
        %639 = vmatmul.mubr.f32.gmra.mrb[0].mxu0 %v461
        %v640 = vpop.f32.mrb[0].mxu0
        %v641 = vadd.f32 %v568, %v640
        %v642 = vpop.f32.mrb[0].mxu0
        %643 = vmatprep.mubr.f32.mxu0 0.0
        %644 = vmatmul.mubr.f32.gmra.mrb[0].mxu0 %v464
        %v645 = vpop.f32.mrb[0].mxu0
        %v646 = vadd.f32 %v568, %v645
        %v647 = vpop.f32.mrb[0].mxu0
        %648 = vmatprep.mubr.f32.mxu0 0.0
        %649 = vmatmul.mubr.f32.gmra.mrb[0].mxu0 %v467
        %v650 = vpop.f32.mrb[0].mxu0
        %v651 = vadd.f32 %v568, %v650
        %v652 = vpop.f32.mrb[0].mxu0
        %653 = vdwg.mxu0
        %v654 = vld [vmem:[#allocation4 + $0x428] sm:$0xff]
        %v655 = vld [vmem:[#allocation4 + $0x430] sm:$0xff]
        %v656 = vld [vmem:[#allocation4 + $0x438] sm:$0xff]
        %v657 = vld [vmem:[#allocation4 + $0x440] sm:$0xff]
        %v658 = vld [vmem:[#allocation4 + $0x448] sm:$0xff]
        %v659 = vld [vmem:[#allocation4 + $0x450] sm:$0xff]
        %v660 = vld [vmem:[#allocation4 + $0x458] sm:$0xff]
        %v661 = vld [vmem:[#allocation4 + $0x460] sm:$0xff]
        %v662 = vld [vmem:[#allocation4 + $0x468] sm:$0xff]
        %v663 = vld [vmem:[#allocation4 + $0x470] sm:$0xff]
        %v664 = vld [vmem:[#allocation4 + $0x478] sm:$0x1]
        %v665 = vlaneseq
        %v666 = vshrl.u32 %v665, 7
        %v667 = vsub.s32 0, %v666
        %v668 = vrot.slane %v664, %v667
        %669 = vmatprep.subr.mxu0 0.0
        %670 = vmatpush1.msra.mxu0 %v654
        %671 = vmatprep.subr.mxu0 0.0
        %672 = vmatpush1.msra.mxu0 %v655
        %673 = vmatprep.subr.mxu0 0.0
        %674 = vmatpush1.msra.mxu0 %v656
        %675 = vmatprep.subr.mxu0 0.0
        %676 = vmatpush1.msra.mxu0 %v657
        %677 = vmatprep.subr.mxu0 0.0
        %678 = vmatpush1.msra.mxu0 %v658
        %679 = vmatprep.subr.mxu0 0.0
        %680 = vmatpush1.msra.mxu0 %v659
        %681 = vmatprep.subr.mxu0 0.0
        %682 = vmatpush1.msra.mxu0 %v660
        %683 = vmatprep.subr.mxu0 0.0
        %684 = vmatpush1.msra.mxu0 %v661
        %685 = vmatprep.subr.mxu0 0.0
        %686 = vmatpush1.msra.mxu0 %v662
        %687 = vmatprep.subr.mxu0 0.0
        %688 = vmatpush1.msra.mxu0 %v663
        %689 = vmatprep.subr.mxu0 0.0
        %690 = vmatpush1.msra.mxu0 0.0
        %691 = vmatprep.subr.mxu0 0.0
        %692 = vmatpush1.msra.mxu0 0.0
        %693 = vmatprep.subr.mxu0 0.0
        %694 = vmatpush1.msra.mxu0 0.0
        %695 = vmatprep.subr.mxu0 0.0
        %696 = vmatpush1.msra.mxu0 0.0
        %697 = vmatprep.subr.mxu0 0.0
        %698 = vmatpush1.msra.mxu0 0.0
        %699 = vmatprep.subr.mxu0 0.0
        %700 = vmatpush1.msra.mxu0 0.0
        %701 = vmatprep.subr.mxu0 0.0
        %702 = vmatpush1.msra.mxu0 0.0
        %703 = vmatprep.subr.mxu0 0.0
        %704 = vmatpush1.msra.mxu0 0.0
        %705 = vmatprep.subr.mxu0 0.0
        %706 = vmatpush1.msra.mxu0 0.0
        %707 = vmatprep.subr.mxu0 0.0
        %708 = vmatpush1.msra.mxu0 0.0
        %709 = vmatprep.subr.mxu0 0.0
        %710 = vmatpush1.msra.mxu0 0.0
        %711 = vmatprep.subr.mxu0 0.0
        %712 = vmatpush1.msra.mxu0 0.0
        %713 = vmatprep.subr.mxu0 0.0
        %714 = vmatpush1.msra.mxu0 0.0
        %715 = vmatprep.subr.mxu0 0.0
        %716 = vmatpush1.msra.mxu0 0.0
        %717 = vmatprep.subr.mxu0 0.0
        %718 = vmatpush1.msra.mxu0 0.0
        %719 = vmatprep.subr.mxu0 0.0
        %720 = vmatpush1.msra.mxu0 0.0
        %721 = vmatprep.subr.mxu0 0.0
        %722 = vmatpush1.msra.mxu0 0.0
        %723 = vmatprep.subr.mxu0 0.0
        %724 = vmatpush1.msra.mxu0 0.0
        %725 = vmatprep.subr.mxu0 0.0
        %726 = vmatpush1.msra.mxu0 0.0
        %727 = vmatprep.subr.mxu0 0.0
        %728 = vmatpush1.msra.mxu0 0.0
        %729 = vmatprep.subr.mxu0 0.0
        %730 = vmatpush1.msra.mxu0 0.0
        %731 = vmatprep.subr.mxu0 0.0
        %732 = vmatpush1.msra.mxu0 0.0
        %733 = vmatprep.mubr.f32.mxu0 0.0
        %734 = vmatmul.mubr.f32.gmra.mrb[0].mxu0 %v458
        %v735 = vpop.f32.mrb[0].mxu0
        %v736 = vadd.f32 %v668, %v735
        %v737 = vpop.f32.mrb[0].mxu0
        %738 = vmatprep.mubr.f32.mxu0 0.0
        %739 = vmatmul.mubr.f32.gmra.mrb[0].mxu0 %v461
        %v740 = vpop.f32.mrb[0].mxu0
        %v741 = vadd.f32 %v668, %v740
        %v742 = vpop.f32.mrb[0].mxu0
        %743 = vmatprep.mubr.f32.mxu0 0.0
        %744 = vmatmul.mubr.f32.gmra.mrb[0].mxu0 %v464
        %v745 = vpop.f32.mrb[0].mxu0
        %v746 = vadd.f32 %v668, %v745
        %v747 = vpop.f32.mrb[0].mxu0
        %748 = vmatprep.mubr.f32.mxu0 0.0
        %749 = vmatmul.mubr.f32.gmra.mrb[0].mxu0 %v467
        %v750 = vpop.f32.mrb[0].mxu0
        %v751 = vadd.f32 %v668, %v750
        %v752 = vpop.f32.mrb[0].mxu0
        %753 = vdwg.mxu0
        %v754 = vld [vmem:[#allocation2] sm:$0xff]
        %v755 = vld [vmem:[#allocation2 + $0x8] sm:$0xff]
        %v756 = vld [vmem:[#allocation2 + $0x10] sm:$0xff]
        %v757 = vld [vmem:[#allocation2 + $0x18] sm:$0xff]
        %v758 = vld [vmem:[#allocation2 + $0x20] sm:$0xff]
        %v759 = vld [vmem:[#allocation2 + $0x28] sm:$0xff]
        %v760 = vld [vmem:[#allocation2 + $0x30] sm:$0xff]
        %v761 = vld [vmem:[#allocation2 + $0x38] sm:$0xff]
        %v762 = vld [vmem:[#allocation2 + $0x40] sm:$0xff]
        %v763 = vld [vmem:[#allocation2 + $0x48] sm:$0xff]
        %v764 = vld [vmem:[#allocation2 + $0x50] sm:$0xff]
        %v765 = vld [vmem:[#allocation2 + $0x58] sm:$0xff]
        %v766 = vld [vmem:[#allocation2 + $0x60] sm:$0xff]
        %v767 = vld [vmem:[#allocation2 + $0x68] sm:$0xff]
        %v768 = vld [vmem:[#allocation2 + $0x70] sm:$0xff]
        %v769 = vld [vmem:[#allocation2 + $0x78] sm:$0xff]
        %v770 = vld [vmem:[#allocation2 + $0x80] sm:$0xff]
        %v771 = vld [vmem:[#allocation2 + $0x88] sm:$0xff]
        %v772 = vld [vmem:[#allocation2 + $0x90] sm:$0xff]
        %v773 = vld [vmem:[#allocation2 + $0x98] sm:$0xff]
        %v774 = vld [vmem:[#allocation2 + $0xa0] sm:$0xff]
        %v775 = vld [vmem:[#allocation2 + $0xa8] sm:$0xff]
        %v776 = vld [vmem:[#allocation2 + $0xb0] sm:$0xff]
        %v777 = vld [vmem:[#allocation2 + $0xb8] sm:$0xff]
        %v778 = vld [vmem:[#allocation2 + $0xc0] sm:$0xff]
        %v779 = vld [vmem:[#allocation2 + $0xc8] sm:$0xff]
        %v780 = vld [vmem:[#allocation2 + $0xd0] sm:$0xff]
        %v781 = vld [vmem:[#allocation2 + $0xd8] sm:$0xff]
        %v782 = vld [vmem:[#allocation2 + $0xe0] sm:$0xff]
        %v783 = vld [vmem:[#allocation2 + $0xe8] sm:$0xff]
        %v784 = vld [vmem:[#allocation2 + $0xf0] sm:$0xff]
        %v785 = vld [vmem:[#allocation2 + $0xf8] sm:$0xff]
        %v786 = vld [vmem:[#allocation2 + $0x100] sm:$0xff]
        %v787 = vld [vmem:[#allocation2 + $0x108] sm:$0xff]
        %v788 = vld [vmem:[#allocation2 + $0x110] sm:$0xff]
        %v789 = vld [vmem:[#allocation2 + $0x118] sm:$0xff]
        %v790 = vld [vmem:[#allocation2 + $0x120] sm:$0xff]
        %v791 = vld [vmem:[#allocation2 + $0x128] sm:$0xff]
        %v792 = vld [vmem:[#allocation2 + $0x130] sm:$0xff]
        %v793 = vld [vmem:[#allocation2 + $0x138] sm:$0xff]
        %v795 = vsel %vm456, %v536, 0
        %v798 = vsel %vm456, %v541, 0
        %v801 = vsel %vm456, %v546, 0
        %v804 = vsel %vm456, %v551, 0
        %806 = vmatprep.subr.mxu0 %v755
        %807 = vmatpush1.msra.mxu0 %v754
        %808 = vmatprep.subr.mxu0 %v759
        %809 = vmatpush1.msra.mxu0 %v758
        %810 = vmatprep.subr.mxu0 %v763
        %811 = vmatpush1.msra.mxu0 %v762
        %812 = vmatprep.subr.mxu0 %v767
        %813 = vmatpush1.msra.mxu0 %v766
        %814 = vmatprep.subr.mxu0 %v771
        %815 = vmatpush1.msra.mxu0 %v770
        %816 = vmatprep.subr.mxu0 %v775
        %817 = vmatpush1.msra.mxu0 %v774
        %818 = vmatprep.subr.mxu0 %v779
        %819 = vmatpush1.msra.mxu0 %v778
        %820 = vmatprep.subr.mxu0 %v783
        %821 = vmatpush1.msra.mxu0 %v782
        %822 = vmatprep.subr.mxu0 %v787
        %823 = vmatpush1.msra.mxu0 %v786
        %824 = vmatprep.subr.mxu0 %v791
        %825 = vmatpush1.msra.mxu0 %v790
        %826 = vmatprep.subr.mxu0 0.0
        %827 = vmatpush1.msra.mxu0 0.0
        %828 = vmatprep.subr.mxu0 0.0
        %829 = vmatpush1.msra.mxu0 0.0
        %830 = vmatprep.subr.mxu0 0.0
        %831 = vmatpush1.msra.mxu0 0.0
        %832 = vmatprep.subr.mxu0 0.0
        %833 = vmatpush1.msra.mxu0 0.0
        %834 = vmatprep.subr.mxu0 0.0
        %835 = vmatpush1.msra.mxu0 0.0
        %836 = vmatprep.subr.mxu0 0.0
        %837 = vmatpush1.msra.mxu0 0.0
        %838 = vmatprep.subr.mxu0 0.0
        %839 = vmatpush1.msra.mxu0 0.0
        %840 = vmatprep.subr.mxu0 0.0
        %841 = vmatpush1.msra.mxu0 0.0
        %842 = vmatprep.subr.mxu0 0.0
        %843 = vmatpush1.msra.mxu0 0.0
        %844 = vmatprep.subr.mxu0 0.0
        %845 = vmatpush1.msra.mxu0 0.0
        %846 = vmatprep.subr.mxu0 0.0
        %847 = vmatpush1.msra.mxu0 0.0
        %848 = vmatprep.subr.mxu0 0.0
        %849 = vmatpush1.msra.mxu0 0.0
        %850 = vmatprep.subr.mxu0 0.0
        %851 = vmatpush1.msra.mxu0 0.0
        %852 = vmatprep.subr.mxu0 0.0
        %853 = vmatpush1.msra.mxu0 0.0
        %854 = vmatprep.subr.mxu0 0.0
        %855 = vmatpush1.msra.mxu0 0.0
        %856 = vmatprep.subr.mxu0 0.0
        %857 = vmatpush1.msra.mxu0 0.0
        %858 = vmatprep.subr.mxu0 0.0
        %859 = vmatpush1.msra.mxu0 0.0
        %860 = vmatprep.subr.mxu0 0.0
        %861 = vmatpush1.msra.mxu0 0.0
        %862 = vmatprep.subr.mxu0 0.0
        %863 = vmatpush1.msra.mxu0 0.0
        %864 = vmatprep.subr.mxu0 0.0
        %865 = vmatpush1.msra.mxu0 0.0
        %866 = vmatprep.subr.mxu0 0.0
        %867 = vmatpush1.msra.mxu0 0.0
        %868 = vmatprep.subr.mxu0 0.0
        %869 = vmatpush1.msra.mxu0 0.0
        %870 = vmatprep.mubr.f32.mxu0 0.0
        %871 = vmatmul.mubr.f32.gmra.mrb[0].mxu0 %v795
        %v872 = vpop.f32.mrb[0].mxu0
        %v873 = vadd.f32 0.0, %v872
        %v874 = vpop.f32.mrb[0].mxu0
        %v875 = vadd.f32 0.0, %v874
        %876 = vmatprep.mubr.f32.mxu0 0.0
        %877 = vmatmul.mubr.f32.gmra.mrb[0].mxu0 %v798
        %v878 = vpop.f32.mrb[0].mxu0
        %v879 = vadd.f32 0.0, %v878
        %v880 = vpop.f32.mrb[0].mxu0
        %v881 = vadd.f32 0.0, %v880
        %882 = vmatprep.mubr.f32.mxu0 0.0
        %883 = vmatmul.mubr.f32.gmra.mrb[0].mxu0 %v801
        %v884 = vpop.f32.mrb[0].mxu0
        %v885 = vadd.f32 0.0, %v884
        %v886 = vpop.f32.mrb[0].mxu0
        %v887 = vadd.f32 0.0, %v886
        %888 = vmatprep.mubr.f32.mxu0 0.0
        %889 = vmatmul.mubr.f32.gmra.mrb[0].mxu0 %v804
        %v890 = vpop.f32.mrb[0].mxu0
        %v891 = vadd.f32 0.0, %v890
        %v892 = vpop.f32.mrb[0].mxu0
        %v893 = vadd.f32 0.0, %v892
        %894 = vdwg.mxu0
        %895 = vmatprep.subr.mxu0 %v757
        %896 = vmatpush1.msra.mxu0 %v756
        %897 = vmatprep.subr.mxu0 %v761
        %898 = vmatpush1.msra.mxu0 %v760
        %899 = vmatprep.subr.mxu0 %v765
        %900 = vmatpush1.msra.mxu0 %v764
        %901 = vmatprep.subr.mxu0 %v769
        %902 = vmatpush1.msra.mxu0 %v768
        %903 = vmatprep.subr.mxu0 %v773
        %904 = vmatpush1.msra.mxu0 %v772
        %905 = vmatprep.subr.mxu0 %v777
        %906 = vmatpush1.msra.mxu0 %v776
        %907 = vmatprep.subr.mxu0 %v781
        %908 = vmatpush1.msra.mxu0 %v780
        %909 = vmatprep.subr.mxu0 %v785
        %910 = vmatpush1.msra.mxu0 %v784
        %911 = vmatprep.subr.mxu0 %v789
        %912 = vmatpush1.msra.mxu0 %v788
        %913 = vmatprep.subr.mxu0 %v793
        %914 = vmatpush1.msra.mxu0 %v792
        %915 = vmatprep.subr.mxu0 0.0
        %916 = vmatpush1.msra.mxu0 0.0
        %917 = vmatprep.subr.mxu0 0.0
        %918 = vmatpush1.msra.mxu0 0.0
        %919 = vmatprep.subr.mxu0 0.0
        %920 = vmatpush1.msra.mxu0 0.0
        %921 = vmatprep.subr.mxu0 0.0
        %922 = vmatpush1.msra.mxu0 0.0
        %923 = vmatprep.subr.mxu0 0.0
        %924 = vmatpush1.msra.mxu0 0.0
        %925 = vmatprep.subr.mxu0 0.0
        %926 = vmatpush1.msra.mxu0 0.0
        %927 = vmatprep.subr.mxu0 0.0
        %928 = vmatpush1.msra.mxu0 0.0
        %929 = vmatprep.subr.mxu0 0.0
        %930 = vmatpush1.msra.mxu0 0.0
        %931 = vmatprep.subr.mxu0 0.0
        %932 = vmatpush1.msra.mxu0 0.0
        %933 = vmatprep.subr.mxu0 0.0
        %934 = vmatpush1.msra.mxu0 0.0
        %935 = vmatprep.subr.mxu0 0.0
        %936 = vmatpush1.msra.mxu0 0.0
        %937 = vmatprep.subr.mxu0 0.0
        %938 = vmatpush1.msra.mxu0 0.0
        %939 = vmatprep.subr.mxu0 0.0
        %940 = vmatpush1.msra.mxu0 0.0
        %941 = vmatprep.subr.mxu0 0.0
        %942 = vmatpush1.msra.mxu0 0.0
        %943 = vmatprep.subr.mxu0 0.0
        %944 = vmatpush1.msra.mxu0 0.0
        %945 = vmatprep.subr.mxu0 0.0
        %946 = vmatpush1.msra.mxu0 0.0
        %947 = vmatprep.subr.mxu0 0.0
        %948 = vmatpush1.msra.mxu0 0.0
        %949 = vmatprep.subr.mxu0 0.0
        %950 = vmatpush1.msra.mxu0 0.0
        %951 = vmatprep.subr.mxu0 0.0
        %952 = vmatpush1.msra.mxu0 0.0
        %953 = vmatprep.subr.mxu0 0.0
        %954 = vmatpush1.msra.mxu0 0.0
        %955 = vmatprep.subr.mxu0 0.0
        %956 = vmatpush1.msra.mxu0 0.0
        %957 = vmatprep.subr.mxu0 0.0
        %958 = vmatpush1.msra.mxu0 0.0
        %959 = vmatprep.mubr.f32.mxu0 0.0
        %960 = vmatmul.mubr.f32.gmra.mrb[0].mxu0 %v795
        %v961 = vpop.f32.mrb[0].mxu0
        %v962 = vadd.f32 0.0, %v961
        %v963 = vpop.f32.mrb[0].mxu0
        %v964 = vadd.f32 0.0, %v963
        %965 = vmatprep.mubr.f32.mxu0 0.0
        %966 = vmatmul.mubr.f32.gmra.mrb[0].mxu0 %v798
        %v967 = vpop.f32.mrb[0].mxu0
        %v968 = vadd.f32 0.0, %v967
        %v969 = vpop.f32.mrb[0].mxu0
        %v970 = vadd.f32 0.0, %v969
        %971 = vmatprep.mubr.f32.mxu0 0.0
        %972 = vmatmul.mubr.f32.gmra.mrb[0].mxu0 %v801
        %v973 = vpop.f32.mrb[0].mxu0
        %v974 = vadd.f32 0.0, %v973
        %v975 = vpop.f32.mrb[0].mxu0
        %v976 = vadd.f32 0.0, %v975
        %977 = vmatprep.mubr.f32.mxu0 0.0
        %978 = vmatmul.mubr.f32.gmra.mrb[0].mxu0 %v804
        %v979 = vpop.f32.mrb[0].mxu0
        %v980 = vadd.f32 0.0, %v979
        %v981 = vpop.f32.mrb[0].mxu0
        %v982 = vadd.f32 0.0, %v981
        %983 = vdwg.mxu0
        %v984 = vld [vmem:[#allocation2 + $0x280] sm:$0xff]
        %v985 = vld [vmem:[#allocation2 + $0x288] sm:$0xff]
        %v986 = vld [vmem:[#allocation2 + $0x290] sm:$0xff]
        %v987 = vld [vmem:[#allocation2 + $0x298] sm:$0xff]
        %v988 = vld [vmem:[#allocation2 + $0x2a0] sm:$0xff]
        %v989 = vld [vmem:[#allocation2 + $0x2a8] sm:$0xff]
        %v990 = vld [vmem:[#allocation2 + $0x2b0] sm:$0xff]
        %v991 = vld [vmem:[#allocation2 + $0x2b8] sm:$0xff]
        %v992 = vld [vmem:[#allocation2 + $0x2c0] sm:$0xff]
        %v993 = vld [vmem:[#allocation2 + $0x2c8] sm:$0xff]
        %v994 = vld [vmem:[#allocation2 + $0x2d0] sm:$0xff]
        %v995 = vld [vmem:[#allocation2 + $0x2d8] sm:$0xff]
        %v996 = vld [vmem:[#allocation2 + $0x2e0] sm:$0xff]
        %v997 = vld [vmem:[#allocation2 + $0x2e8] sm:$0xff]
        %v998 = vld [vmem:[#allocation2 + $0x2f0] sm:$0xff]
        %v999 = vld [vmem:[#allocation2 + $0x2f8] sm:$0xff]
        %v1000 = vld [vmem:[#allocation2 + $0x300] sm:$0xff]
        %v1001 = vld [vmem:[#allocation2 + $0x308] sm:$0xff]
        %v1002 = vld [vmem:[#allocation2 + $0x310] sm:$0xff]
        %v1003 = vld [vmem:[#allocation2 + $0x318] sm:$0xff]
        %v1004 = vld [vmem:[#allocation2 + $0x320] sm:$0xff]
        %v1005 = vld [vmem:[#allocation2 + $0x328] sm:$0xff]
        %v1006 = vld [vmem:[#allocation2 + $0x330] sm:$0xff]
        %v1007 = vld [vmem:[#allocation2 + $0x338] sm:$0xff]
        %v1008 = vld [vmem:[#allocation2 + $0x340] sm:$0xff]
        %v1009 = vld [vmem:[#allocation2 + $0x348] sm:$0xff]
        %v1010 = vld [vmem:[#allocation2 + $0x350] sm:$0xff]
        %v1011 = vld [vmem:[#allocation2 + $0x358] sm:$0xff]
        %v1012 = vld [vmem:[#allocation2 + $0x360] sm:$0xff]
        %v1013 = vld [vmem:[#allocation2 + $0x368] sm:$0xff]
        %v1014 = vld [vmem:[#allocation2 + $0x370] sm:$0xff]
        %v1015 = vld [vmem:[#allocation2 + $0x378] sm:$0xff]
        %v1016 = vld [vmem:[#allocation2 + $0x380] sm:$0xff]
        %v1017 = vld [vmem:[#allocation2 + $0x388] sm:$0xff]
        %v1018 = vld [vmem:[#allocation2 + $0x390] sm:$0xff]
        %v1019 = vld [vmem:[#allocation2 + $0x398] sm:$0xff]
        %v1020 = vld [vmem:[#allocation2 + $0x3a0] sm:$0xff]
        %v1021 = vld [vmem:[#allocation2 + $0x3a8] sm:$0xff]
        %v1022 = vld [vmem:[#allocation2 + $0x3b0] sm:$0xff]
        %v1023 = vld [vmem:[#allocation2 + $0x3b8] sm:$0xff]
        %v1025 = vsel %vm456, %v636, 0
        %v1028 = vsel %vm456, %v641, 0
        %v1031 = vsel %vm456, %v646, 0
        %v1034 = vsel %vm456, %v651, 0
        %1036 = vmatprep.subr.mxu0 %v985
        %1037 = vmatpush1.msra.mxu0 %v984
        %1038 = vmatprep.subr.mxu0 %v989
        %1039 = vmatpush1.msra.mxu0 %v988
        %1040 = vmatprep.subr.mxu0 %v993
        %1041 = vmatpush1.msra.mxu0 %v992
        %1042 = vmatprep.subr.mxu0 %v997
        %1043 = vmatpush1.msra.mxu0 %v996
        %1044 = vmatprep.subr.mxu0 %v1001
        %1045 = vmatpush1.msra.mxu0 %v1000
        %1046 = vmatprep.subr.mxu0 %v1005
        %1047 = vmatpush1.msra.mxu0 %v1004
        %1048 = vmatprep.subr.mxu0 %v1009
        %1049 = vmatpush1.msra.mxu0 %v1008
        %1050 = vmatprep.subr.mxu0 %v1013
        %1051 = vmatpush1.msra.mxu0 %v1012
        %1052 = vmatprep.subr.mxu0 %v1017
        %1053 = vmatpush1.msra.mxu0 %v1016
        %1054 = vmatprep.subr.mxu0 %v1021
        %1055 = vmatpush1.msra.mxu0 %v1020
        %1056 = vmatprep.subr.mxu0 0.0
        %1057 = vmatpush1.msra.mxu0 0.0
        %1058 = vmatprep.subr.mxu0 0.0
        %1059 = vmatpush1.msra.mxu0 0.0
        %1060 = vmatprep.subr.mxu0 0.0
        %1061 = vmatpush1.msra.mxu0 0.0
        %1062 = vmatprep.subr.mxu0 0.0
        %1063 = vmatpush1.msra.mxu0 0.0
        %1064 = vmatprep.subr.mxu0 0.0
        %1065 = vmatpush1.msra.mxu0 0.0
        %1066 = vmatprep.subr.mxu0 0.0
        %1067 = vmatpush1.msra.mxu0 0.0
        %1068 = vmatprep.subr.mxu0 0.0
        %1069 = vmatpush1.msra.mxu0 0.0
        %1070 = vmatprep.subr.mxu0 0.0
        %1071 = vmatpush1.msra.mxu0 0.0
        %1072 = vmatprep.subr.mxu0 0.0
        %1073 = vmatpush1.msra.mxu0 0.0
        %1074 = vmatprep.subr.mxu0 0.0
        %1075 = vmatpush1.msra.mxu0 0.0
        %1076 = vmatprep.subr.mxu0 0.0
        %1077 = vmatpush1.msra.mxu0 0.0
        %1078 = vmatprep.subr.mxu0 0.0
        %1079 = vmatpush1.msra.mxu0 0.0
        %1080 = vmatprep.subr.mxu0 0.0
        %1081 = vmatpush1.msra.mxu0 0.0
        %1082 = vmatprep.subr.mxu0 0.0
        %1083 = vmatpush1.msra.mxu0 0.0
        %1084 = vmatprep.subr.mxu0 0.0
        %1085 = vmatpush1.msra.mxu0 0.0
        %1086 = vmatprep.subr.mxu0 0.0
        %1087 = vmatpush1.msra.mxu0 0.0
        %1088 = vmatprep.subr.mxu0 0.0
        %1089 = vmatpush1.msra.mxu0 0.0
        %1090 = vmatprep.subr.mxu0 0.0
        %1091 = vmatpush1.msra.mxu0 0.0
        %1092 = vmatprep.subr.mxu0 0.0
        %1093 = vmatpush1.msra.mxu0 0.0
        %1094 = vmatprep.subr.mxu0 0.0
        %1095 = vmatpush1.msra.mxu0 0.0
        %1096 = vmatprep.subr.mxu0 0.0
        %1097 = vmatpush1.msra.mxu0 0.0
        %1098 = vmatprep.subr.mxu0 0.0
        %1099 = vmatpush1.msra.mxu0 0.0
        %1100 = vmatprep.mubr.f32.mxu0 0.0
        %1101 = vmatmul.mubr.f32.gmra.mrb[0].mxu0 %v1025
        %v1102 = vpop.f32.mrb[0].mxu0
        %v1103 = vadd.f32 0.0, %v1102
        %v1104 = vpop.f32.mrb[0].mxu0
        %v1105 = vadd.f32 0.0, %v1104
        %1106 = vmatprep.mubr.f32.mxu0 0.0
        %1107 = vmatmul.mubr.f32.gmra.mrb[0].mxu0 %v1028
        %v1108 = vpop.f32.mrb[0].mxu0
        %v1109 = vadd.f32 0.0, %v1108
        %v1110 = vpop.f32.mrb[0].mxu0
        %v1111 = vadd.f32 0.0, %v1110
        %1112 = vmatprep.mubr.f32.mxu0 0.0
        %1113 = vmatmul.mubr.f32.gmra.mrb[0].mxu0 %v1031
        %v1114 = vpop.f32.mrb[0].mxu0
        %v1115 = vadd.f32 0.0, %v1114
        %v1116 = vpop.f32.mrb[0].mxu0
        %v1117 = vadd.f32 0.0, %v1116
        %1118 = vmatprep.mubr.f32.mxu0 0.0
        %1119 = vmatmul.mubr.f32.gmra.mrb[0].mxu0 %v1034
        %v1120 = vpop.f32.mrb[0].mxu0
        %v1121 = vadd.f32 0.0, %v1120
        %v1122 = vpop.f32.mrb[0].mxu0
        %v1123 = vadd.f32 0.0, %v1122
        %1124 = vdwg.mxu0
        %1125 = vmatprep.subr.mxu0 %v987
        %1126 = vmatpush1.msra.mxu0 %v986
        %1127 = vmatprep.subr.mxu0 %v991
        %1128 = vmatpush1.msra.mxu0 %v990
        %1129 = vmatprep.subr.mxu0 %v995
        %1130 = vmatpush1.msra.mxu0 %v994
        %1131 = vmatprep.subr.mxu0 %v999
        %1132 = vmatpush1.msra.mxu0 %v998
        %1133 = vmatprep.subr.mxu0 %v1003
        %1134 = vmatpush1.msra.mxu0 %v1002
        %1135 = vmatprep.subr.mxu0 %v1007
        %1136 = vmatpush1.msra.mxu0 %v1006
        %1137 = vmatprep.subr.mxu0 %v1011
        %1138 = vmatpush1.msra.mxu0 %v1010
        %1139 = vmatprep.subr.mxu0 %v1015
        %1140 = vmatpush1.msra.mxu0 %v1014
        %1141 = vmatprep.subr.mxu0 %v1019
        %1142 = vmatpush1.msra.mxu0 %v1018
        %1143 = vmatprep.subr.mxu0 %v1023
        %1144 = vmatpush1.msra.mxu0 %v1022
        %1145 = vmatprep.subr.mxu0 0.0
        %1146 = vmatpush1.msra.mxu0 0.0
        %1147 = vmatprep.subr.mxu0 0.0
        %1148 = vmatpush1.msra.mxu0 0.0
        %1149 = vmatprep.subr.mxu0 0.0
        %1150 = vmatpush1.msra.mxu0 0.0
        %1151 = vmatprep.subr.mxu0 0.0
        %1152 = vmatpush1.msra.mxu0 0.0
        %1153 = vmatprep.subr.mxu0 0.0
        %1154 = vmatpush1.msra.mxu0 0.0
        %1155 = vmatprep.subr.mxu0 0.0
        %1156 = vmatpush1.msra.mxu0 0.0
        %1157 = vmatprep.subr.mxu0 0.0
        %1158 = vmatpush1.msra.mxu0 0.0
        %1159 = vmatprep.subr.mxu0 0.0
        %1160 = vmatpush1.msra.mxu0 0.0
        %1161 = vmatprep.subr.mxu0 0.0
        %1162 = vmatpush1.msra.mxu0 0.0
        %1163 = vmatprep.subr.mxu0 0.0
        %1164 = vmatpush1.msra.mxu0 0.0
        %1165 = vmatprep.subr.mxu0 0.0
        %1166 = vmatpush1.msra.mxu0 0.0
        %1167 = vmatprep.subr.mxu0 0.0
        %1168 = vmatpush1.msra.mxu0 0.0
        %1169 = vmatprep.subr.mxu0 0.0
        %1170 = vmatpush1.msra.mxu0 0.0
        %1171 = vmatprep.subr.mxu0 0.0
        %1172 = vmatpush1.msra.mxu0 0.0
        %1173 = vmatprep.subr.mxu0 0.0
        %1174 = vmatpush1.msra.mxu0 0.0
        %1175 = vmatprep.subr.mxu0 0.0
        %1176 = vmatpush1.msra.mxu0 0.0
        %1177 = vmatprep.subr.mxu0 0.0
        %1178 = vmatpush1.msra.mxu0 0.0
        %1179 = vmatprep.subr.mxu0 0.0
        %1180 = vmatpush1.msra.mxu0 0.0
        %1181 = vmatprep.subr.mxu0 0.0
        %1182 = vmatpush1.msra.mxu0 0.0
        %1183 = vmatprep.subr.mxu0 0.0
        %1184 = vmatpush1.msra.mxu0 0.0
        %1185 = vmatprep.subr.mxu0 0.0
        %1186 = vmatpush1.msra.mxu0 0.0
        %1187 = vmatprep.subr.mxu0 0.0
        %1188 = vmatpush1.msra.mxu0 0.0
        %1189 = vmatprep.mubr.f32.mxu0 0.0
        %1190 = vmatmul.mubr.f32.gmra.mrb[0].mxu0 %v1025
        %v1191 = vpop.f32.mrb[0].mxu0
        %v1192 = vadd.f32 0.0, %v1191
        %v1193 = vpop.f32.mrb[0].mxu0
        %v1194 = vadd.f32 0.0, %v1193
        %1195 = vmatprep.mubr.f32.mxu0 0.0
        %1196 = vmatmul.mubr.f32.gmra.mrb[0].mxu0 %v1028
        %v1197 = vpop.f32.mrb[0].mxu0
        %v1198 = vadd.f32 0.0, %v1197
        %v1199 = vpop.f32.mrb[0].mxu0
        %v1200 = vadd.f32 0.0, %v1199
        %1201 = vmatprep.mubr.f32.mxu0 0.0
        %1202 = vmatmul.mubr.f32.gmra.mrb[0].mxu0 %v1031
        %v1203 = vpop.f32.mrb[0].mxu0
        %v1204 = vadd.f32 0.0, %v1203
        %v1205 = vpop.f32.mrb[0].mxu0
        %v1206 = vadd.f32 0.0, %v1205
        %1207 = vmatprep.mubr.f32.mxu0 0.0
        %1208 = vmatmul.mubr.f32.gmra.mrb[0].mxu0 %v1034
        %v1209 = vpop.f32.mrb[0].mxu0
        %v1210 = vadd.f32 0.0, %v1209
        %v1211 = vpop.f32.mrb[0].mxu0
        %v1212 = vadd.f32 0.0, %v1211
        %1213 = vdwg.mxu0
        %v1214 = vmul.f32 %v873, %v1103
        %v1215 = vmul.f32 %v875, %v1105
        %v1216 = vmul.f32 %v962, %v1192
        %v1217 = vmul.f32 %v964, %v1194
        %v1218 = vmul.f32 %v879, %v1109
        %v1219 = vmul.f32 %v881, %v1111
        %v1220 = vmul.f32 %v968, %v1198
        %v1221 = vmul.f32 %v970, %v1200
        %v1222 = vmul.f32 %v885, %v1115
        %v1223 = vmul.f32 %v887, %v1117
        %v1224 = vmul.f32 %v974, %v1204
        %v1225 = vmul.f32 %v976, %v1206
        %v1226 = vmul.f32 %v891, %v1121
        %v1227 = vmul.f32 %v893, %v1123
        %v1228 = vmul.f32 %v980, %v1210
        %v1229 = vmul.f32 %v982, %v1212
        %v1230 = vld [vmem:[#allocation2 + $0x140] sm:$0xff]
        %v1231 = vld [vmem:[#allocation2 + $0x148] sm:$0xff]
        %v1232 = vld [vmem:[#allocation2 + $0x150] sm:$0xff]
        %v1233 = vld [vmem:[#allocation2 + $0x158] sm:$0xff]
        %v1234 = vld [vmem:[#allocation2 + $0x160] sm:$0xff]
        %v1235 = vld [vmem:[#allocation2 + $0x168] sm:$0xff]
        %v1236 = vld [vmem:[#allocation2 + $0x170] sm:$0xff]
        %v1237 = vld [vmem:[#allocation2 + $0x178] sm:$0xff]
        %v1238 = vld [vmem:[#allocation2 + $0x180] sm:$0xff]
        %v1239 = vld [vmem:[#allocation2 + $0x188] sm:$0xff]
        %v1240 = vld [vmem:[#allocation2 + $0x190] sm:$0xff]
        %v1241 = vld [vmem:[#allocation2 + $0x198] sm:$0xff]
        %v1242 = vld [vmem:[#allocation2 + $0x1a0] sm:$0xff]
        %v1243 = vld [vmem:[#allocation2 + $0x1a8] sm:$0xff]
        %v1244 = vld [vmem:[#allocation2 + $0x1b0] sm:$0xff]
        %v1245 = vld [vmem:[#allocation2 + $0x1b8] sm:$0xff]
        %v1246 = vld [vmem:[#allocation2 + $0x1c0] sm:$0xff]
        %v1247 = vld [vmem:[#allocation2 + $0x1c8] sm:$0xff]
        %v1248 = vld [vmem:[#allocation2 + $0x1d0] sm:$0xff]
        %v1249 = vld [vmem:[#allocation2 + $0x1d8] sm:$0xff]
        %v1250 = vld [vmem:[#allocation2 + $0x1e0] sm:$0xff]
        %v1251 = vld [vmem:[#allocation2 + $0x1e8] sm:$0xff]
        %v1252 = vld [vmem:[#allocation2 + $0x1f0] sm:$0xff]
        %v1253 = vld [vmem:[#allocation2 + $0x1f8] sm:$0xff]
        %v1254 = vld [vmem:[#allocation2 + $0x200] sm:$0xff]
        %v1255 = vld [vmem:[#allocation2 + $0x208] sm:$0xff]
        %v1256 = vld [vmem:[#allocation2 + $0x210] sm:$0xff]
        %v1257 = vld [vmem:[#allocation2 + $0x218] sm:$0xff]
        %v1258 = vld [vmem:[#allocation2 + $0x220] sm:$0xff]
        %v1259 = vld [vmem:[#allocation2 + $0x228] sm:$0xff]
        %v1260 = vld [vmem:[#allocation2 + $0x230] sm:$0xff]
        %v1261 = vld [vmem:[#allocation2 + $0x238] sm:$0xff]
        %v1262 = vld [vmem:[#allocation2 + $0x240] sm:$0xff]
        %v1263 = vld [vmem:[#allocation2 + $0x248] sm:$0xff]
        %v1264 = vld [vmem:[#allocation2 + $0x250] sm:$0xff]
        %v1265 = vld [vmem:[#allocation2 + $0x258] sm:$0xff]
        %v1266 = vld [vmem:[#allocation2 + $0x260] sm:$0xff]
        %v1267 = vld [vmem:[#allocation2 + $0x268] sm:$0xff]
        %v1268 = vld [vmem:[#allocation2 + $0x270] sm:$0xff]
        %v1269 = vld [vmem:[#allocation2 + $0x278] sm:$0xff]
        %1270 = vmatprep.subr.mxu0 %v1231
        %1271 = vmatpush1.msra.mxu0 %v1230
        %1272 = vmatprep.subr.mxu0 %v1235
        %1273 = vmatpush1.msra.mxu0 %v1234
        %1274 = vmatprep.subr.mxu0 %v1239
        %1275 = vmatpush1.msra.mxu0 %v1238
        %1276 = vmatprep.subr.mxu0 %v1243
        %1277 = vmatpush1.msra.mxu0 %v1242
        %1278 = vmatprep.subr.mxu0 %v1247
        %1279 = vmatpush1.msra.mxu0 %v1246
        %1280 = vmatprep.subr.mxu0 %v1251
        %1281 = vmatpush1.msra.mxu0 %v1250
        %1282 = vmatprep.subr.mxu0 %v1255
        %1283 = vmatpush1.msra.mxu0 %v1254
        %1284 = vmatprep.subr.mxu0 %v1259
        %1285 = vmatpush1.msra.mxu0 %v1258
        %1286 = vmatprep.subr.mxu0 %v1263
        %1287 = vmatpush1.msra.mxu0 %v1262
        %1288 = vmatprep.subr.mxu0 %v1267
        %1289 = vmatpush1.msra.mxu0 %v1266
        %1290 = vmatprep.subr.mxu0 0.0
        %1291 = vmatpush1.msra.mxu0 0.0
        %1292 = vmatprep.subr.mxu0 0.0
        %1293 = vmatpush1.msra.mxu0 0.0
        %1294 = vmatprep.subr.mxu0 0.0
        %1295 = vmatpush1.msra.mxu0 0.0
        %1296 = vmatprep.subr.mxu0 0.0
        %1297 = vmatpush1.msra.mxu0 0.0
        %1298 = vmatprep.subr.mxu0 0.0
        %1299 = vmatpush1.msra.mxu0 0.0
        %1300 = vmatprep.subr.mxu0 0.0
        %1301 = vmatpush1.msra.mxu0 0.0
        %1302 = vmatprep.subr.mxu0 0.0
        %1303 = vmatpush1.msra.mxu0 0.0
        %1304 = vmatprep.subr.mxu0 0.0
        %1305 = vmatpush1.msra.mxu0 0.0
        %1306 = vmatprep.subr.mxu0 0.0
        %1307 = vmatpush1.msra.mxu0 0.0
        %1308 = vmatprep.subr.mxu0 0.0
        %1309 = vmatpush1.msra.mxu0 0.0
        %1310 = vmatprep.subr.mxu0 0.0
        %1311 = vmatpush1.msra.mxu0 0.0
        %1312 = vmatprep.subr.mxu0 0.0
        %1313 = vmatpush1.msra.mxu0 0.0
        %1314 = vmatprep.subr.mxu0 0.0
        %1315 = vmatpush1.msra.mxu0 0.0
        %1316 = vmatprep.subr.mxu0 0.0
        %1317 = vmatpush1.msra.mxu0 0.0
        %1318 = vmatprep.subr.mxu0 0.0
        %1319 = vmatpush1.msra.mxu0 0.0
        %1320 = vmatprep.subr.mxu0 0.0
        %1321 = vmatpush1.msra.mxu0 0.0
        %1322 = vmatprep.subr.mxu0 0.0
        %1323 = vmatpush1.msra.mxu0 0.0
        %1324 = vmatprep.subr.mxu0 0.0
        %1325 = vmatpush1.msra.mxu0 0.0
        %1326 = vmatprep.subr.mxu0 0.0
        %1327 = vmatpush1.msra.mxu0 0.0
        %1328 = vmatprep.subr.mxu0 0.0
        %1329 = vmatpush1.msra.mxu0 0.0
        %1330 = vmatprep.subr.mxu0 0.0
        %1331 = vmatpush1.msra.mxu0 0.0
        %1332 = vmatprep.subr.mxu0 0.0
        %1333 = vmatpush1.msra.mxu0 0.0
        %1334 = vmatprep.mubr.f32.mxu0 0.0
        %1335 = vmatmul.mubr.f32.gmra.mrb[0].mxu0 %v795
        %v1336 = vpop.f32.mrb[0].mxu0
        %v1337 = vadd.f32 0.0, %v1336
        %v1338 = vpop.f32.mrb[0].mxu0
        %v1339 = vadd.f32 0.0, %v1338
        %1340 = vmatprep.mubr.f32.mxu0 0.0
        %1341 = vmatmul.mubr.f32.gmra.mrb[0].mxu0 %v798
        %v1342 = vpop.f32.mrb[0].mxu0
        %v1343 = vadd.f32 0.0, %v1342
        %v1344 = vpop.f32.mrb[0].mxu0
        %v1345 = vadd.f32 0.0, %v1344
        %1346 = vmatprep.mubr.f32.mxu0 0.0
        %1347 = vmatmul.mubr.f32.gmra.mrb[0].mxu0 %v801
        %v1348 = vpop.f32.mrb[0].mxu0
        %v1349 = vadd.f32 0.0, %v1348
        %v1350 = vpop.f32.mrb[0].mxu0
        %v1351 = vadd.f32 0.0, %v1350
        %1352 = vmatprep.mubr.f32.mxu0 0.0
        %1353 = vmatmul.mubr.f32.gmra.mrb[0].mxu0 %v804
        %v1354 = vpop.f32.mrb[0].mxu0
        %v1355 = vadd.f32 0.0, %v1354
        %v1356 = vpop.f32.mrb[0].mxu0
        %v1357 = vadd.f32 0.0, %v1356
        %1358 = vdwg.mxu0
        %1359 = vmatprep.subr.mxu0 %v1233
        %1360 = vmatpush1.msra.mxu0 %v1232
        %1361 = vmatprep.subr.mxu0 %v1237
        %1362 = vmatpush1.msra.mxu0 %v1236
        %1363 = vmatprep.subr.mxu0 %v1241
        %1364 = vmatpush1.msra.mxu0 %v1240
        %1365 = vmatprep.subr.mxu0 %v1245
        %1366 = vmatpush1.msra.mxu0 %v1244
        %1367 = vmatprep.subr.mxu0 %v1249
        %1368 = vmatpush1.msra.mxu0 %v1248
        %1369 = vmatprep.subr.mxu0 %v1253
        %1370 = vmatpush1.msra.mxu0 %v1252
        %1371 = vmatprep.subr.mxu0 %v1257
        %1372 = vmatpush1.msra.mxu0 %v1256
        %1373 = vmatprep.subr.mxu0 %v1261
        %1374 = vmatpush1.msra.mxu0 %v1260
        %1375 = vmatprep.subr.mxu0 %v1265
        %1376 = vmatpush1.msra.mxu0 %v1264
        %1377 = vmatprep.subr.mxu0 %v1269
        %1378 = vmatpush1.msra.mxu0 %v1268
        %1379 = vmatprep.subr.mxu0 0.0
        %1380 = vmatpush1.msra.mxu0 0.0
        %1381 = vmatprep.subr.mxu0 0.0
        %1382 = vmatpush1.msra.mxu0 0.0
        %1383 = vmatprep.subr.mxu0 0.0
        %1384 = vmatpush1.msra.mxu0 0.0
        %1385 = vmatprep.subr.mxu0 0.0
        %1386 = vmatpush1.msra.mxu0 0.0
        %1387 = vmatprep.subr.mxu0 0.0
        %1388 = vmatpush1.msra.mxu0 0.0
        %1389 = vmatprep.subr.mxu0 0.0
        %1390 = vmatpush1.msra.mxu0 0.0
        %1391 = vmatprep.subr.mxu0 0.0
        %1392 = vmatpush1.msra.mxu0 0.0
        %1393 = vmatprep.subr.mxu0 0.0
        %1394 = vmatpush1.msra.mxu0 0.0
        %1395 = vmatprep.subr.mxu0 0.0
        %1396 = vmatpush1.msra.mxu0 0.0
        %1397 = vmatprep.subr.mxu0 0.0
        %1398 = vmatpush1.msra.mxu0 0.0
        %1399 = vmatprep.subr.mxu0 0.0
        %1400 = vmatpush1.msra.mxu0 0.0
        %1401 = vmatprep.subr.mxu0 0.0
        %1402 = vmatpush1.msra.mxu0 0.0
        %1403 = vmatprep.subr.mxu0 0.0
        %1404 = vmatpush1.msra.mxu0 0.0
        %1405 = vmatprep.subr.mxu0 0.0
        %1406 = vmatpush1.msra.mxu0 0.0
        %1407 = vmatprep.subr.mxu0 0.0
        %1408 = vmatpush1.msra.mxu0 0.0
        %1409 = vmatprep.subr.mxu0 0.0
        %1410 = vmatpush1.msra.mxu0 0.0
        %1411 = vmatprep.subr.mxu0 0.0
        %1412 = vmatpush1.msra.mxu0 0.0
        %1413 = vmatprep.subr.mxu0 0.0
        %1414 = vmatpush1.msra.mxu0 0.0
        %1415 = vmatprep.subr.mxu0 0.0
        %1416 = vmatpush1.msra.mxu0 0.0
        %1417 = vmatprep.subr.mxu0 0.0
        %1418 = vmatpush1.msra.mxu0 0.0
        %1419 = vmatprep.subr.mxu0 0.0
        %1420 = vmatpush1.msra.mxu0 0.0
        %1421 = vmatprep.subr.mxu0 0.0
        %1422 = vmatpush1.msra.mxu0 0.0
        %1423 = vmatprep.mubr.f32.mxu0 0.0
        %1424 = vmatmul.mubr.f32.gmra.mrb[0].mxu0 %v795
        %v1425 = vpop.f32.mrb[0].mxu0
        %v1426 = vadd.f32 0.0, %v1425
        %v1427 = vpop.f32.mrb[0].mxu0
        %v1428 = vadd.f32 0.0, %v1427
        %1429 = vmatprep.mubr.f32.mxu0 0.0
        %1430 = vmatmul.mubr.f32.gmra.mrb[0].mxu0 %v798
        %v1431 = vpop.f32.mrb[0].mxu0
        %v1432 = vadd.f32 0.0, %v1431
        %v1433 = vpop.f32.mrb[0].mxu0
        %v1434 = vadd.f32 0.0, %v1433
        %1435 = vmatprep.mubr.f32.mxu0 0.0
        %1436 = vmatmul.mubr.f32.gmra.mrb[0].mxu0 %v801
        %v1437 = vpop.f32.mrb[0].mxu0
        %v1438 = vadd.f32 0.0, %v1437
        %v1439 = vpop.f32.mrb[0].mxu0
        %v1440 = vadd.f32 0.0, %v1439
        %1441 = vmatprep.mubr.f32.mxu0 0.0
        %1442 = vmatmul.mubr.f32.gmra.mrb[0].mxu0 %v804
        %v1443 = vpop.f32.mrb[0].mxu0
        %v1444 = vadd.f32 0.0, %v1443
        %v1445 = vpop.f32.mrb[0].mxu0
        %v1446 = vadd.f32 0.0, %v1445
        %1447 = vdwg.mxu0
        %v1448 = vld [vmem:[#allocation2 + $0x3c0] sm:$0xff]
        %v1449 = vld [vmem:[#allocation2 + $0x3c8] sm:$0xff]
        %v1450 = vld [vmem:[#allocation2 + $0x3d0] sm:$0xff]
        %v1451 = vld [vmem:[#allocation2 + $0x3d8] sm:$0xff]
        %v1452 = vld [vmem:[#allocation2 + $0x3e0] sm:$0xff]
        %v1453 = vld [vmem:[#allocation2 + $0x3e8] sm:$0xff]
        %v1454 = vld [vmem:[#allocation2 + $0x3f0] sm:$0xff]
        %v1455 = vld [vmem:[#allocation2 + $0x3f8] sm:$0xff]
        %v1456 = vld [vmem:[#allocation2 + $0x400] sm:$0xff]
        %v1457 = vld [vmem:[#allocation2 + $0x408] sm:$0xff]
        %v1458 = vld [vmem:[#allocation2 + $0x410] sm:$0xff]
        %v1459 = vld [vmem:[#allocation2 + $0x418] sm:$0xff]
        %v1460 = vld [vmem:[#allocation2 + $0x420] sm:$0xff]
        %v1461 = vld [vmem:[#allocation2 + $0x428] sm:$0xff]
        %v1462 = vld [vmem:[#allocation2 + $0x430] sm:$0xff]
        %v1463 = vld [vmem:[#allocation2 + $0x438] sm:$0xff]
        %v1464 = vld [vmem:[#allocation2 + $0x440] sm:$0xff]
        %v1465 = vld [vmem:[#allocation2 + $0x448] sm:$0xff]
        %v1466 = vld [vmem:[#allocation2 + $0x450] sm:$0xff]
        %v1467 = vld [vmem:[#allocation2 + $0x458] sm:$0xff]
        %v1468 = vld [vmem:[#allocation2 + $0x460] sm:$0xff]
        %v1469 = vld [vmem:[#allocation2 + $0x468] sm:$0xff]
        %v1470 = vld [vmem:[#allocation2 + $0x470] sm:$0xff]
        %v1471 = vld [vmem:[#allocation2 + $0x478] sm:$0xff]
        %v1472 = vld [vmem:[#allocation2 + $0x480] sm:$0xff]
        %v1473 = vld [vmem:[#allocation2 + $0x488] sm:$0xff]
        %v1474 = vld [vmem:[#allocation2 + $0x490] sm:$0xff]
        %v1475 = vld [vmem:[#allocation2 + $0x498] sm:$0xff]
        %v1476 = vld [vmem:[#allocation2 + $0x4a0] sm:$0xff]
        %v1477 = vld [vmem:[#allocation2 + $0x4a8] sm:$0xff]
        %v1478 = vld [vmem:[#allocation2 + $0x4b0] sm:$0xff]
        %v1479 = vld [vmem:[#allocation2 + $0x4b8] sm:$0xff]
        %v1480 = vld [vmem:[#allocation2 + $0x4c0] sm:$0xff]
        %v1481 = vld [vmem:[#allocation2 + $0x4c8] sm:$0xff]
        %v1482 = vld [vmem:[#allocation2 + $0x4d0] sm:$0xff]
        %v1483 = vld [vmem:[#allocation2 + $0x4d8] sm:$0xff]
        %v1484 = vld [vmem:[#allocation2 + $0x4e0] sm:$0xff]
        %v1485 = vld [vmem:[#allocation2 + $0x4e8] sm:$0xff]
        %v1486 = vld [vmem:[#allocation2 + $0x4f0] sm:$0xff]
        %v1487 = vld [vmem:[#allocation2 + $0x4f8] sm:$0xff]
        %1488 = vmatprep.subr.mxu0 %v1449
        %1489 = vmatpush1.msra.mxu0 %v1448
        %1490 = vmatprep.subr.mxu0 %v1453
        %1491 = vmatpush1.msra.mxu0 %v1452
        %1492 = vmatprep.subr.mxu0 %v1457
        %1493 = vmatpush1.msra.mxu0 %v1456
        %1494 = vmatprep.subr.mxu0 %v1461
        %1495 = vmatpush1.msra.mxu0 %v1460
        %1496 = vmatprep.subr.mxu0 %v1465
        %1497 = vmatpush1.msra.mxu0 %v1464
        %1498 = vmatprep.subr.mxu0 %v1469
        %1499 = vmatpush1.msra.mxu0 %v1468
        %1500 = vmatprep.subr.mxu0 %v1473
        %1501 = vmatpush1.msra.mxu0 %v1472
        %1502 = vmatprep.subr.mxu0 %v1477
        %1503 = vmatpush1.msra.mxu0 %v1476
        %1504 = vmatprep.subr.mxu0 %v1481
        %1505 = vmatpush1.msra.mxu0 %v1480
        %1506 = vmatprep.subr.mxu0 %v1485
        %1507 = vmatpush1.msra.mxu0 %v1484
        %1508 = vmatprep.subr.mxu0 0.0
        %1509 = vmatpush1.msra.mxu0 0.0
        %1510 = vmatprep.subr.mxu0 0.0
        %1511 = vmatpush1.msra.mxu0 0.0
        %1512 = vmatprep.subr.mxu0 0.0
        %1513 = vmatpush1.msra.mxu0 0.0
        %1514 = vmatprep.subr.mxu0 0.0
        %1515 = vmatpush1.msra.mxu0 0.0
        %1516 = vmatprep.subr.mxu0 0.0
        %1517 = vmatpush1.msra.mxu0 0.0
        %1518 = vmatprep.subr.mxu0 0.0
        %1519 = vmatpush1.msra.mxu0 0.0
        %1520 = vmatprep.subr.mxu0 0.0
        %1521 = vmatpush1.msra.mxu0 0.0
        %1522 = vmatprep.subr.mxu0 0.0
        %1523 = vmatpush1.msra.mxu0 0.0
        %1524 = vmatprep.subr.mxu0 0.0
        %1525 = vmatpush1.msra.mxu0 0.0
        %1526 = vmatprep.subr.mxu0 0.0
        %1527 = vmatpush1.msra.mxu0 0.0
        %1528 = vmatprep.subr.mxu0 0.0
        %1529 = vmatpush1.msra.mxu0 0.0
        %1530 = vmatprep.subr.mxu0 0.0
        %1531 = vmatpush1.msra.mxu0 0.0
        %1532 = vmatprep.subr.mxu0 0.0
        %1533 = vmatpush1.msra.mxu0 0.0
        %1534 = vmatprep.subr.mxu0 0.0
        %1535 = vmatpush1.msra.mxu0 0.0
        %1536 = vmatprep.subr.mxu0 0.0
        %1537 = vmatpush1.msra.mxu0 0.0
        %1538 = vmatprep.subr.mxu0 0.0
        %1539 = vmatpush1.msra.mxu0 0.0
        %1540 = vmatprep.subr.mxu0 0.0
        %1541 = vmatpush1.msra.mxu0 0.0
        %1542 = vmatprep.subr.mxu0 0.0
        %1543 = vmatpush1.msra.mxu0 0.0
        %1544 = vmatprep.subr.mxu0 0.0
        %1545 = vmatpush1.msra.mxu0 0.0
        %1546 = vmatprep.subr.mxu0 0.0
        %1547 = vmatpush1.msra.mxu0 0.0
        %1548 = vmatprep.subr.mxu0 0.0
        %1549 = vmatpush1.msra.mxu0 0.0
        %1550 = vmatprep.subr.mxu0 0.0
        %1551 = vmatpush1.msra.mxu0 0.0
        %1552 = vmatprep.mubr.f32.mxu0 0.0
        %1553 = vmatmul.mubr.f32.gmra.mrb[0].mxu0 %v1025
        %v1554 = vpop.f32.mrb[0].mxu0
        %v1555 = vadd.f32 0.0, %v1554
        %v1556 = vpop.f32.mrb[0].mxu0
        %v1557 = vadd.f32 0.0, %v1556
        %1558 = vmatprep.mubr.f32.mxu0 0.0
        %1559 = vmatmul.mubr.f32.gmra.mrb[0].mxu0 %v1028
        %v1560 = vpop.f32.mrb[0].mxu0
        %v1561 = vadd.f32 0.0, %v1560
        %v1562 = vpop.f32.mrb[0].mxu0
        %v1563 = vadd.f32 0.0, %v1562
        %1564 = vmatprep.mubr.f32.mxu0 0.0
        %1565 = vmatmul.mubr.f32.gmra.mrb[0].mxu0 %v1031
        %v1566 = vpop.f32.mrb[0].mxu0
        %v1567 = vadd.f32 0.0, %v1566
        %v1568 = vpop.f32.mrb[0].mxu0
        %v1569 = vadd.f32 0.0, %v1568
        %1570 = vmatprep.mubr.f32.mxu0 0.0
        %1571 = vmatmul.mubr.f32.gmra.mrb[0].mxu0 %v1034
        %v1572 = vpop.f32.mrb[0].mxu0
        %v1573 = vadd.f32 0.0, %v1572
        %v1574 = vpop.f32.mrb[0].mxu0
        %v1575 = vadd.f32 0.0, %v1574
        %1576 = vdwg.mxu0
        %1577 = vmatprep.subr.mxu0 %v1451
        %1578 = vmatpush1.msra.mxu0 %v1450
        %1579 = vmatprep.subr.mxu0 %v1455
        %1580 = vmatpush1.msra.mxu0 %v1454
        %1581 = vmatprep.subr.mxu0 %v1459
        %1582 = vmatpush1.msra.mxu0 %v1458
        %1583 = vmatprep.subr.mxu0 %v1463
        %1584 = vmatpush1.msra.mxu0 %v1462
        %1585 = vmatprep.subr.mxu0 %v1467
        %1586 = vmatpush1.msra.mxu0 %v1466
        %1587 = vmatprep.subr.mxu0 %v1471
        %1588 = vmatpush1.msra.mxu0 %v1470
        %1589 = vmatprep.subr.mxu0 %v1475
        %1590 = vmatpush1.msra.mxu0 %v1474
        %1591 = vmatprep.subr.mxu0 %v1479
        %1592 = vmatpush1.msra.mxu0 %v1478
        %1593 = vmatprep.subr.mxu0 %v1483
        %1594 = vmatpush1.msra.mxu0 %v1482
        %1595 = vmatprep.subr.mxu0 %v1487
        %1596 = vmatpush1.msra.mxu0 %v1486
        %1597 = vmatprep.subr.mxu0 0.0
        %1598 = vmatpush1.msra.mxu0 0.0
        %1599 = vmatprep.subr.mxu0 0.0
        %1600 = vmatpush1.msra.mxu0 0.0
        %1601 = vmatprep.subr.mxu0 0.0
        %1602 = vmatpush1.msra.mxu0 0.0
        %1603 = vmatprep.subr.mxu0 0.0
        %1604 = vmatpush1.msra.mxu0 0.0
        %1605 = vmatprep.subr.mxu0 0.0
        %1606 = vmatpush1.msra.mxu0 0.0
        %1607 = vmatprep.subr.mxu0 0.0
        %1608 = vmatpush1.msra.mxu0 0.0
        %1609 = vmatprep.subr.mxu0 0.0
        %1610 = vmatpush1.msra.mxu0 0.0
        %1611 = vmatprep.subr.mxu0 0.0
        %1612 = vmatpush1.msra.mxu0 0.0
        %1613 = vmatprep.subr.mxu0 0.0
        %1614 = vmatpush1.msra.mxu0 0.0
        %1615 = vmatprep.subr.mxu0 0.0
        %1616 = vmatpush1.msra.mxu0 0.0
        %1617 = vmatprep.subr.mxu0 0.0
        %1618 = vmatpush1.msra.mxu0 0.0
        %1619 = vmatprep.subr.mxu0 0.0
        %1620 = vmatpush1.msra.mxu0 0.0
        %1621 = vmatprep.subr.mxu0 0.0
        %1622 = vmatpush1.msra.mxu0 0.0
        %1623 = vmatprep.subr.mxu0 0.0
        %1624 = vmatpush1.msra.mxu0 0.0
        %1625 = vmatprep.subr.mxu0 0.0
        %1626 = vmatpush1.msra.mxu0 0.0
        %1627 = vmatprep.subr.mxu0 0.0
        %1628 = vmatpush1.msra.mxu0 0.0
        %1629 = vmatprep.subr.mxu0 0.0
        %1630 = vmatpush1.msra.mxu0 0.0
        %1631 = vmatprep.subr.mxu0 0.0
        %1632 = vmatpush1.msra.mxu0 0.0
        %1633 = vmatprep.subr.mxu0 0.0
        %1634 = vmatpush1.msra.mxu0 0.0
        %1635 = vmatprep.subr.mxu0 0.0
        %1636 = vmatpush1.msra.mxu0 0.0
        %1637 = vmatprep.subr.mxu0 0.0
        %1638 = vmatpush1.msra.mxu0 0.0
        %1639 = vmatprep.subr.mxu0 0.0
        %1640 = vmatpush1.msra.mxu0 0.0
        %1641 = vmatprep.mubr.f32.mxu0 0.0
        %1642 = vmatmul.mubr.f32.gmra.mrb[0].mxu0 %v1025
        %v1643 = vpop.f32.mrb[0].mxu0
        %v1644 = vadd.f32 0.0, %v1643
        %v1645 = vpop.f32.mrb[0].mxu0
        %v1646 = vadd.f32 0.0, %v1645
        %1647 = vmatprep.mubr.f32.mxu0 0.0
        %1648 = vmatmul.mubr.f32.gmra.mrb[0].mxu0 %v1028
        %v1649 = vpop.f32.mrb[0].mxu0
        %v1650 = vadd.f32 0.0, %v1649
        %v1651 = vpop.f32.mrb[0].mxu0
        %v1652 = vadd.f32 0.0, %v1651
        %1653 = vmatprep.mubr.f32.mxu0 0.0
        %1654 = vmatmul.mubr.f32.gmra.mrb[0].mxu0 %v1031
        %v1655 = vpop.f32.mrb[0].mxu0
        %v1656 = vadd.f32 0.0, %v1655
        %v1657 = vpop.f32.mrb[0].mxu0
        %v1658 = vadd.f32 0.0, %v1657
        %1659 = vmatprep.mubr.f32.mxu0 0.0
        %1660 = vmatmul.mubr.f32.gmra.mrb[0].mxu0 %v1034
        %v1661 = vpop.f32.mrb[0].mxu0
        %v1662 = vadd.f32 0.0, %v1661
        %v1663 = vpop.f32.mrb[0].mxu0
        %v1664 = vadd.f32 0.0, %v1663
        %1665 = vdwg.mxu0
        %v1666 = vmul.f32 %v1337, %v1555
        %v1667 = vmul.f32 %v1339, %v1557
        %v1668 = vmul.f32 %v1426, %v1644
        %v1669 = vmul.f32 %v1428, %v1646
        %v1670 = vmul.f32 %v1343, %v1561
        %v1671 = vmul.f32 %v1345, %v1563
        %v1672 = vmul.f32 %v1432, %v1650
        %v1673 = vmul.f32 %v1434, %v1652
        %v1674 = vmul.f32 %v1349, %v1567
        %v1675 = vmul.f32 %v1351, %v1569
        %v1676 = vmul.f32 %v1438, %v1656
        %v1677 = vmul.f32 %v1440, %v1658
        %v1678 = vmul.f32 %v1355, %v1573
        %v1679 = vmul.f32 %v1357, %v1575
        %v1680 = vmul.f32 %v1444, %v1662
        %v1681 = vmul.f32 %v1446, %v1664
        %v1682 = vadd.f32 %v1214, %v1666
        %v1683 = vadd.f32 %v1215, %v1667
        %v1684 = vadd.f32 %v1216, %v1668
        %v1685 = vadd.f32 %v1217, %v1669
        %v1686 = vadd.f32 %v1218, %v1670
        %v1687 = vadd.f32 %v1219, %v1671
        %v1688 = vadd.f32 %v1220, %v1672
        %v1689 = vadd.f32 %v1221, %v1673
        %v1690 = vadd.f32 %v1222, %v1674
        %v1691 = vadd.f32 %v1223, %v1675
        %v1692 = vadd.f32 %v1224, %v1676
        %v1693 = vadd.f32 %v1225, %v1677
        %v1694 = vadd.f32 %v1226, %v1678
        %v1695 = vadd.f32 %v1227, %v1679
        %v1696 = vadd.f32 %v1228, %v1680
        %v1697 = vadd.f32 %v1229, %v1681
        %v1698 = vld [vmem:[#allocation6] sm:$0xff]
        %v1699 = vld [vmem:[#allocation6 + $0x8] sm:$0xff]
        %v1700 = vld [vmem:[#allocation6 + $0x10] sm:$0xff]
        %v1701 = vld [vmem:[#allocation6 + $0x18] sm:$0xff]
        %v1702 = vld [vmem:[#allocation6 + $0x20] sm:$0xff]
        %v1703 = vld [vmem:[#allocation6 + $0x28] sm:$0xff]
        %v1704 = vld [vmem:[#allocation6 + $0x30] sm:$0xff]
        %v1705 = vld [vmem:[#allocation6 + $0x38] sm:$0xff]
        %v1706 = vld [vmem:[#allocation6 + $0x40] sm:$0xff]
        %v1707 = vld [vmem:[#allocation6 + $0x48] sm:$0xff]
        %v1708 = vld [vmem:[#allocation6 + $0x50] sm:$0xff]
        %v1709 = vld [vmem:[#allocation6 + $0x58] sm:$0xff]
        %v1710 = vld [vmem:[#allocation6 + $0x60] sm:$0xff]
        %v1711 = vld [vmem:[#allocation6 + $0x68] sm:$0xff]
        %v1712 = vld [vmem:[#allocation6 + $0x70] sm:$0xff]
        %v1713 = vld [vmem:[#allocation6 + $0x78] sm:$0xff]
        %v1714 = vld [vmem:[#allocation6 + $0x80] sm:$0xff]
        %v1715 = vld [vmem:[#allocation6 + $0x88] sm:$0xff]
        %v1716 = vld [vmem:[#allocation6 + $0x90] sm:$0xff]
        %v1717 = vld [vmem:[#allocation6 + $0x98] sm:$0xff]
        %v1718 = vld [vmem:[#allocation6 + $0xa0] sm:$0xff]
        %v1719 = vld [vmem:[#allocation6 + $0xa8] sm:$0xff]
        %v1720 = vld [vmem:[#allocation6 + $0xb0] sm:$0xff]
        %v1721 = vld [vmem:[#allocation6 + $0xb8] sm:$0xff]
        %v1722 = vld [vmem:[#allocation6 + $0xc0] sm:$0xff]
        %v1723 = vld [vmem:[#allocation6 + $0xc8] sm:$0xff]
        %v1724 = vld [vmem:[#allocation6 + $0xd0] sm:$0xff]
        %v1725 = vld [vmem:[#allocation6 + $0xd8] sm:$0xff]
        %v1726 = vld [vmem:[#allocation6 + $0xe0] sm:$0xff]
        %v1727 = vld [vmem:[#allocation6 + $0xe8] sm:$0xff]
        %v1728 = vld [vmem:[#allocation6 + $0xf0] sm:$0xff]
        %v1729 = vld [vmem:[#allocation6 + $0xf8] sm:$0xff]
        %v1730 = vld [vmem:[#allocation6 + $0x100] sm:$0xff]
        %v1731 = vld [vmem:[#allocation6 + $0x108] sm:$0xff]
        %v1732 = vld [vmem:[#allocation6 + $0x110] sm:$0xff]
        %v1733 = vld [vmem:[#allocation6 + $0x118] sm:$0xff]
        %v1734 = vld [vmem:[#allocation6 + $0x120] sm:$0xff]
        %v1735 = vld [vmem:[#allocation6 + $0x128] sm:$0xff]
        %v1736 = vld [vmem:[#allocation6 + $0x130] sm:$0xff]
        %v1737 = vld [vmem:[#allocation6 + $0x138] sm:$0xff]
        %v1738 = vld [vmem:[#allocation6 + $0x140] sm:$0xff]
        %v1739 = vld [vmem:[#allocation6 + $0x148] sm:$0xff]
        %v1740 = vld [vmem:[#allocation6 + $0x150] sm:$0xff]
        %v1741 = vld [vmem:[#allocation6 + $0x158] sm:$0xff]
        %v1742 = vld [vmem:[#allocation6 + $0x160] sm:$0xff]
        %v1743 = vld [vmem:[#allocation6 + $0x168] sm:$0xff]
        %v1744 = vld [vmem:[#allocation6 + $0x170] sm:$0xff]
        %v1745 = vld [vmem:[#allocation6 + $0x178] sm:$0xff]
        %v1746 = vld [vmem:[#allocation6 + $0x180] sm:$0xff]
        %v1747 = vld [vmem:[#allocation6 + $0x188] sm:$0xff]
        %v1748 = vld [vmem:[#allocation2 + $0x500] sm:$0xff]
        %v1749 = vld [vmem:[#allocation2 + $0x508] sm:$0xff]
        %v1750 = vld [vmem:[#allocation2 + $0x510] sm:$0xff]
        %v1751 = vld [vmem:[#allocation2 + $0x518] sm:$0xff]
        %v1752 = vld [vmem:[#allocation2 + $0x520] sm:$0xff]
        %v1753 = vld [vmem:[#allocation2 + $0x528] sm:$0xff]
        %v1754 = vld [vmem:[#allocation2 + $0x530] sm:$0xff]
        %v1755 = vld [vmem:[#allocation2 + $0x538] sm:$0xff]
        %v1756 = vld [vmem:[#allocation2 + $0x540] sm:$0xff]
        %v1757 = vld [vmem:[#allocation2 + $0x548] sm:$0xff]
        %v1758 = vld [vmem:[#allocation2 + $0x550] sm:$0xff]
        %v1759 = vld [vmem:[#allocation2 + $0x558] sm:$0xff]
        %v1760 = vld [vmem:[#allocation2 + $0x560] sm:$0xff]
        %v1761 = vld [vmem:[#allocation2 + $0x568] sm:$0xff]
        %v1762 = vld [vmem:[#allocation2 + $0x570] sm:$0xff]
        %v1763 = vld [vmem:[#allocation2 + $0x578] sm:$0xff]
        %v1764 = vld [vmem:[#allocation2 + $0x580] sm:$0xff]
        %v1765 = vld [vmem:[#allocation2 + $0x588] sm:$0xff]
        %v1766 = vld [vmem:[#allocation2 + $0x590] sm:$0xff]
        %v1767 = vld [vmem:[#allocation2 + $0x598] sm:$0xff]
        %v1768 = vmax.f32 %v1682, %v1683
        %v1769 = vmax.f32 %v1768, %v1684
        %vm1770 = vcmask 130048
        %v1771 = vsel %vm1770, %v1685, -inf
        %v1772 = vmax.f32 %v1769, %v1771
        %1773 = vmax.xlane.f32.xlu0 %v1772
        %v1774 = vpop.xlane.xlu0 %1773
        %v1775 = vmax.f32 %v1686, %v1687
        %v1776 = vmax.f32 %v1775, %v1688
        %v1777 = vsel %vm1770, %v1689, -inf
        %v1778 = vmax.f32 %v1776, %v1777
        %1779 = vmax.xlane.f32.xlu0 %v1778
        %v1780 = vpop.xlane.xlu0 %1779
        %v1781 = vmax.f32 %v1690, %v1691
        %v1782 = vmax.f32 %v1781, %v1692
        %v1783 = vsel %vm1770, %v1693, -inf
        %v1784 = vmax.f32 %v1782, %v1783
        %1785 = vmax.xlane.f32.xlu0 %v1784
        %v1786 = vpop.xlane.xlu0 %1785
        %v1787 = vmax.f32 %v1694, %v1695
        %v1788 = vmax.f32 %v1787, %v1696
        %v1789 = vsel %vm1770, %v1697, -inf
        %v1790 = vmax.f32 %v1788, %v1789
        %1791 = vmax.xlane.f32.xlu0 %v1790
        %v1792 = vpop.xlane.xlu0 %1791
        %v1793 = vsub.f32 %v1682, %v1774
        %v1794 = vsub.f32 %v1683, %v1774
        %v1795 = vsub.f32 %v1684, %v1774
        %v1796 = vsub.f32 %v1685, %v1774
        %v1797 = vsub.f32 %v1686, %v1780
        %v1798 = vsub.f32 %v1687, %v1780
        %v1799 = vsub.f32 %v1688, %v1780
        %v1800 = vsub.f32 %v1689, %v1780
        %v1801 = vsub.f32 %v1690, %v1786
        %v1802 = vsub.f32 %v1691, %v1786
        %v1803 = vsub.f32 %v1692, %v1786
        %v1804 = vsub.f32 %v1693, %v1786
        %v1805 = vsub.f32 %v1694, %v1792
        %v1806 = vsub.f32 %v1695, %v1792
        %v1807 = vsub.f32 %v1696, %v1792
        %v1808 = vsub.f32 %v1697, %v1792
        %v1809 = vmul.f32 %v1793, 1.442695
        %v1810 = vpow.pop %v1809
        %v1811 = vmul.f32 %v1794, 1.442695
        %v1812 = vpow.pop %v1811
        %v1813 = vmul.f32 %v1795, 1.442695
        %v1814 = vpow.pop %v1813
        %v1815 = vmul.f32 %v1796, 1.442695
        %v1816 = vpow.pop %v1815
        %v1817 = vmul.f32 %v1797, 1.442695
        %v1818 = vpow.pop %v1817
        %v1819 = vmul.f32 %v1798, 1.442695
        %v1820 = vpow.pop %v1819
        %v1821 = vmul.f32 %v1799, 1.442695
        %v1822 = vpow.pop %v1821
        %v1823 = vmul.f32 %v1800, 1.442695
        %v1824 = vpow.pop %v1823
        %v1825 = vmul.f32 %v1801, 1.442695
        %v1826 = vpow.pop %v1825
        %v1827 = vmul.f32 %v1802, 1.442695
        %v1828 = vpow.pop %v1827
        %v1829 = vmul.f32 %v1803, 1.442695
        %v1830 = vpow.pop %v1829
        %v1831 = vmul.f32 %v1804, 1.442695
        %v1832 = vpow.pop %v1831
        %v1833 = vmul.f32 %v1805, 1.442695
        %v1834 = vpow.pop %v1833
        %v1835 = vmul.f32 %v1806, 1.442695
        %v1836 = vpow.pop %v1835
        %v1837 = vmul.f32 %v1807, 1.442695
        %v1838 = vpow.pop %v1837
        %v1839 = vmul.f32 %v1808, 1.442695
        %v1840 = vpow.pop %v1839
        %v1842 = vsel %vm1770, %v1816, 0
        %v1845 = vsel %vm1770, %v1824, 0
        %v1848 = vsel %vm1770, %v1832, 0
        %v1851 = vsel %vm1770, %v1840, 0
        %1853 = vmatprep.subr.mxu0 0.0
        %1854 = vmatpush1.msra.mxu0 %v1698
        %1855 = vmatprep.subr.mxu0 0.0
        %1856 = vmatpush1.msra.mxu0 %v1699
        %1857 = vmatprep.subr.mxu0 0.0
        %1858 = vmatpush1.msra.mxu0 %v1700
        %1859 = vmatprep.subr.mxu0 0.0
        %1860 = vmatpush1.msra.mxu0 %v1701
        %1861 = vmatprep.subr.mxu0 0.0
        %1862 = vmatpush1.msra.mxu0 %v1702
        %1863 = vmatprep.subr.mxu0 0.0
        %1864 = vmatpush1.msra.mxu0 %v1703
        %1865 = vmatprep.subr.mxu0 0.0
        %1866 = vmatpush1.msra.mxu0 %v1704
        %1867 = vmatprep.subr.mxu0 0.0
        %1868 = vmatpush1.msra.mxu0 %v1705
        %1869 = vmatprep.subr.mxu0 0.0
        %1870 = vmatpush1.msra.mxu0 %v1706
        %1871 = vmatprep.subr.mxu0 0.0
        %1872 = vmatpush1.msra.mxu0 %v1707
        %1873 = vmatprep.subr.mxu0 0.0
        %1874 = vmatpush1.msra.mxu0 %v1708
        %1875 = vmatprep.subr.mxu0 0.0
        %1876 = vmatpush1.msra.mxu0 %v1709
        %1877 = vmatprep.subr.mxu0 0.0
        %1878 = vmatpush1.msra.mxu0 %v1710
        %1879 = vmatprep.subr.mxu0 0.0
        %1880 = vmatpush1.msra.mxu0 %v1711
        %1881 = vmatprep.subr.mxu0 0.0
        %1882 = vmatpush1.msra.mxu0 %v1712
        %1883 = vmatprep.subr.mxu0 0.0
        %1884 = vmatpush1.msra.mxu0 %v1713
        %1885 = vmatprep.subr.mxu0 0.0
        %1886 = vmatpush1.msra.mxu0 %v1714
        %1887 = vmatprep.subr.mxu0 0.0
        %1888 = vmatpush1.msra.mxu0 %v1715
        %1889 = vmatprep.subr.mxu0 0.0
        %1890 = vmatpush1.msra.mxu0 %v1716
        %1891 = vmatprep.subr.mxu0 0.0
        %1892 = vmatpush1.msra.mxu0 %v1717
        %1893 = vmatprep.subr.mxu0 0.0
        %1894 = vmatpush1.msra.mxu0 %v1718
        %1895 = vmatprep.subr.mxu0 0.0
        %1896 = vmatpush1.msra.mxu0 %v1719
        %1897 = vmatprep.subr.mxu0 0.0
        %1898 = vmatpush1.msra.mxu0 %v1720
        %1899 = vmatprep.subr.mxu0 0.0
        %1900 = vmatpush1.msra.mxu0 %v1721
        %1901 = vmatprep.subr.mxu0 0.0
        %1902 = vmatpush1.msra.mxu0 %v1722
        %1903 = vmatprep.subr.mxu0 0.0
        %1904 = vmatpush1.msra.mxu0 %v1723
        %1905 = vmatprep.subr.mxu0 0.0
        %1906 = vmatpush1.msra.mxu0 %v1724
        %1907 = vmatprep.subr.mxu0 0.0
        %1908 = vmatpush1.msra.mxu0 %v1725
        %1909 = vmatprep.subr.mxu0 0.0
        %1910 = vmatpush1.msra.mxu0 %v1726
        %1911 = vmatprep.subr.mxu0 0.0
        %1912 = vmatpush1.msra.mxu0 %v1727
        %1913 = vmatprep.subr.mxu0 0.0
        %1914 = vmatpush1.msra.mxu0 %v1728
        %1915 = vmatprep.subr.mxu0 0.0
        %1916 = vmatpush1.msra.mxu0 %v1729
        %1917 = vmatprep.mubr.f32.mxu0 %v1812
        %1918 = vmatmul.mubr.f32.gmra.mrb[0].mxu0 %v1810
        %v1919 = vpop.f32.mrb[0].mxu0
        %v1920 = vadd.f32 0.0, %v1919
        %v1921 = vpop.f32.mrb[0].mxu0
        %1922 = vmatprep.mubr.f32.mxu0 %v1820
        %1923 = vmatmul.mubr.f32.gmra.mrb[0].mxu0 %v1818
        %v1924 = vpop.f32.mrb[0].mxu0
        %v1925 = vadd.f32 0.0, %v1924
        %v1926 = vpop.f32.mrb[0].mxu0
        %1927 = vmatprep.mubr.f32.mxu0 %v1828
        %1928 = vmatmul.mubr.f32.gmra.mrb[0].mxu0 %v1826
        %v1929 = vpop.f32.mrb[0].mxu0
        %v1930 = vadd.f32 0.0, %v1929
        %v1931 = vpop.f32.mrb[0].mxu0
        %1932 = vmatprep.mubr.f32.mxu0 %v1836
        %1933 = vmatmul.mubr.f32.gmra.mrb[0].mxu0 %v1834
        %v1934 = vpop.f32.mrb[0].mxu0
        %v1935 = vadd.f32 0.0, %v1934
        %v1936 = vpop.f32.mrb[0].mxu0
        %1937 = vdwg.mxu0
        %1938 = vmatprep.subr.mxu0 0.0
        %1939 = vmatpush1.msra.mxu0 %v1730
        %1940 = vmatprep.subr.mxu0 0.0
        %1941 = vmatpush1.msra.mxu0 %v1731
        %1942 = vmatprep.subr.mxu0 0.0
        %1943 = vmatpush1.msra.mxu0 %v1732
        %1944 = vmatprep.subr.mxu0 0.0
        %1945 = vmatpush1.msra.mxu0 %v1733
        %1946 = vmatprep.subr.mxu0 0.0
        %1947 = vmatpush1.msra.mxu0 %v1734
        %1948 = vmatprep.subr.mxu0 0.0
        %1949 = vmatpush1.msra.mxu0 %v1735
        %1950 = vmatprep.subr.mxu0 0.0
        %1951 = vmatpush1.msra.mxu0 %v1736
        %1952 = vmatprep.subr.mxu0 0.0
        %1953 = vmatpush1.msra.mxu0 %v1737
        %1954 = vmatprep.subr.mxu0 0.0
        %1955 = vmatpush1.msra.mxu0 %v1738
        %1956 = vmatprep.subr.mxu0 0.0
        %1957 = vmatpush1.msra.mxu0 %v1739
        %1958 = vmatprep.subr.mxu0 0.0
        %1959 = vmatpush1.msra.mxu0 %v1740
        %1960 = vmatprep.subr.mxu0 0.0
        %1961 = vmatpush1.msra.mxu0 %v1741
        %1962 = vmatprep.subr.mxu0 0.0
        %1963 = vmatpush1.msra.mxu0 %v1742
        %1964 = vmatprep.subr.mxu0 0.0
        %1965 = vmatpush1.msra.mxu0 %v1743
        %1966 = vmatprep.subr.mxu0 0.0
        %1967 = vmatpush1.msra.mxu0 %v1744
        %1968 = vmatprep.subr.mxu0 0.0
        %1969 = vmatpush1.msra.mxu0 %v1745
        %1970 = vmatprep.subr.mxu0 0.0
        %1971 = vmatpush1.msra.mxu0 %v1746
        %1972 = vmatprep.subr.mxu0 0.0
        %1973 = vmatpush1.msra.mxu0 %v1747
        %1974 = vmatprep.subr.mxu0 0.0
        %1975 = vmatpush1.msra.mxu0 0.0
        %1976 = vmatprep.subr.mxu0 0.0
        %1977 = vmatpush1.msra.mxu0 0.0
        %1978 = vmatprep.subr.mxu0 0.0
        %1979 = vmatpush1.msra.mxu0 0.0
        %1980 = vmatprep.subr.mxu0 0.0
        %1981 = vmatpush1.msra.mxu0 0.0
        %1982 = vmatprep.subr.mxu0 0.0
        %1983 = vmatpush1.msra.mxu0 0.0
        %1984 = vmatprep.subr.mxu0 0.0
        %1985 = vmatpush1.msra.mxu0 0.0
        %1986 = vmatprep.subr.mxu0 0.0
        %1987 = vmatpush1.msra.mxu0 0.0
        %1988 = vmatprep.subr.mxu0 0.0
        %1989 = vmatpush1.msra.mxu0 0.0
        %1990 = vmatprep.subr.mxu0 0.0
        %1991 = vmatpush1.msra.mxu0 0.0
        %1992 = vmatprep.subr.mxu0 0.0
        %1993 = vmatpush1.msra.mxu0 0.0
        %1994 = vmatprep.subr.mxu0 0.0
        %1995 = vmatpush1.msra.mxu0 0.0
        %1996 = vmatprep.subr.mxu0 0.0
        %1997 = vmatpush1.msra.mxu0 0.0
        %1998 = vmatprep.subr.mxu0 0.0
        %1999 = vmatpush1.msra.mxu0 0.0
        %2000 = vmatprep.subr.mxu0 0.0
        %2001 = vmatpush1.msra.mxu0 0.0
        %2002 = vmatprep.mubr.f32.mxu0 %v1842
        %2003 = vmatmul.mubr.f32.gmra.mrb[0].mxu0 %v1814
        %v2004 = vpop.f32.mrb[0].mxu0
        %v2005 = vadd.f32 %v1920, %v2004
        %v2006 = vpop.f32.mrb[0].mxu0
        %2007 = vmatprep.mubr.f32.mxu0 %v1845
        %2008 = vmatmul.mubr.f32.gmra.mrb[0].mxu0 %v1822
        %v2009 = vpop.f32.mrb[0].mxu0
        %v2010 = vadd.f32 %v1925, %v2009
        %v2011 = vpop.f32.mrb[0].mxu0
        %2012 = vmatprep.mubr.f32.mxu0 %v1848
        %2013 = vmatmul.mubr.f32.gmra.mrb[0].mxu0 %v1830
        %v2014 = vpop.f32.mrb[0].mxu0
        %v2015 = vadd.f32 %v1930, %v2014
        %v2016 = vpop.f32.mrb[0].mxu0
        %2017 = vmatprep.mubr.f32.mxu0 %v1851
        %2018 = vmatmul.mubr.f32.gmra.mrb[0].mxu0 %v1838
        %v2019 = vpop.f32.mrb[0].mxu0
        %v2020 = vadd.f32 %v1935, %v2019
        %v2021 = vpop.f32.mrb[0].mxu0
        %2022 = vdwg.mxu0
        %v2024 = vsel %vm335, %v2005, 0
        %v2027 = vsel %vm335, %v2010, 0
        %v2030 = vsel %vm335, %v2015, 0
        %v2033 = vsel %vm335, %v2020, 0
        %2035 = vmatprep.subr.mxu0 %v1749
        %2036 = vmatpush1.msra.mxu0 %v1748
        %2037 = vmatprep.subr.mxu0 %v1753
        %2038 = vmatpush1.msra.mxu0 %v1752
        %2039 = vmatprep.subr.mxu0 %v1757
        %2040 = vmatpush1.msra.mxu0 %v1756
        %2041 = vmatprep.subr.mxu0 %v1761
        %2042 = vmatpush1.msra.mxu0 %v1760
        %2043 = vmatprep.subr.mxu0 %v1765
        %2044 = vmatpush1.msra.mxu0 %v1764
        %2045 = vmatprep.subr.mxu0 0.0
        %2046 = vmatpush1.msra.mxu0 0.0
        %2047 = vmatprep.subr.mxu0 0.0
        %2048 = vmatpush1.msra.mxu0 0.0
        %2049 = vmatprep.subr.mxu0 0.0
        %2050 = vmatpush1.msra.mxu0 0.0
        %2051 = vmatprep.subr.mxu0 0.0
        %2052 = vmatpush1.msra.mxu0 0.0
        %2053 = vmatprep.subr.mxu0 0.0
        %2054 = vmatpush1.msra.mxu0 0.0
        %2055 = vmatprep.subr.mxu0 0.0
        %2056 = vmatpush1.msra.mxu0 0.0
        %2057 = vmatprep.subr.mxu0 0.0
        %2058 = vmatpush1.msra.mxu0 0.0
        %2059 = vmatprep.subr.mxu0 0.0
        %2060 = vmatpush1.msra.mxu0 0.0
        %2061 = vmatprep.subr.mxu0 0.0
        %2062 = vmatpush1.msra.mxu0 0.0
        %2063 = vmatprep.subr.mxu0 0.0
        %2064 = vmatpush1.msra.mxu0 0.0
        %2065 = vmatprep.subr.mxu0 0.0
        %2066 = vmatpush1.msra.mxu0 0.0
        %2067 = vmatprep.subr.mxu0 0.0
        %2068 = vmatpush1.msra.mxu0 0.0
        %2069 = vmatprep.subr.mxu0 0.0
        %2070 = vmatpush1.msra.mxu0 0.0
        %2071 = vmatprep.subr.mxu0 0.0
        %2072 = vmatpush1.msra.mxu0 0.0
        %2073 = vmatprep.subr.mxu0 0.0
        %2074 = vmatpush1.msra.mxu0 0.0
        %2075 = vmatprep.subr.mxu0 0.0
        %2076 = vmatpush1.msra.mxu0 0.0
        %2077 = vmatprep.subr.mxu0 0.0
        %2078 = vmatpush1.msra.mxu0 0.0
        %2079 = vmatprep.subr.mxu0 0.0
        %2080 = vmatpush1.msra.mxu0 0.0
        %2081 = vmatprep.subr.mxu0 0.0
        %2082 = vmatpush1.msra.mxu0 0.0
        %2083 = vmatprep.subr.mxu0 0.0
        %2084 = vmatpush1.msra.mxu0 0.0
        %2085 = vmatprep.subr.mxu0 0.0
        %2086 = vmatpush1.msra.mxu0 0.0
        %2087 = vmatprep.subr.mxu0 0.0
        %2088 = vmatpush1.msra.mxu0 0.0
        %2089 = vmatprep.subr.mxu0 0.0
        %2090 = vmatpush1.msra.mxu0 0.0
        %2091 = vmatprep.subr.mxu0 0.0
        %2092 = vmatpush1.msra.mxu0 0.0
        %2093 = vmatprep.subr.mxu0 0.0
        %2094 = vmatpush1.msra.mxu0 0.0
        %2095 = vmatprep.subr.mxu0 0.0
        %2096 = vmatpush1.msra.mxu0 0.0
        %2097 = vmatprep.subr.mxu0 0.0
        %2098 = vmatpush1.msra.mxu0 0.0
        %2099 = vmatprep.mubr.f32.mxu0 0.0
        %2100 = vmatmul.mubr.f32.gmra.mrb[0].mxu0 %v2024
        %v2101 = vpop.f32.mrb[0].mxu0
        %v2102 = vadd.f32 0.0, %v2101
        %v2103 = vpop.f32.mrb[0].mxu0
        %v2104 = vadd.f32 0.0, %v2103
        %2105 = vmatprep.mubr.f32.mxu0 0.0
        %2106 = vmatmul.mubr.f32.gmra.mrb[0].mxu0 %v2027
        %v2107 = vpop.f32.mrb[0].mxu0
        %v2108 = vadd.f32 0.0, %v2107
        %v2109 = vpop.f32.mrb[0].mxu0
        %v2110 = vadd.f32 0.0, %v2109
        %2111 = vmatprep.mubr.f32.mxu0 0.0
        %2112 = vmatmul.mubr.f32.gmra.mrb[0].mxu0 %v2030
        %v2113 = vpop.f32.mrb[0].mxu0
        %v2114 = vadd.f32 0.0, %v2113
        %v2115 = vpop.f32.mrb[0].mxu0
        %v2116 = vadd.f32 0.0, %v2115
        %2117 = vmatprep.mubr.f32.mxu0 0.0
        %2118 = vmatmul.mubr.f32.gmra.mrb[0].mxu0 %v2033
        %v2119 = vpop.f32.mrb[0].mxu0
        %v2120 = vadd.f32 0.0, %v2119
        %v2121 = vpop.f32.mrb[0].mxu0
        %v2122 = vadd.f32 0.0, %v2121
        %2123 = vdwg.mxu0
        %2124 = vmatprep.subr.mxu0 %v1751
        %2125 = vmatpush1.msra.mxu0 %v1750
        %2126 = vmatprep.subr.mxu0 %v1755
        %2127 = vmatpush1.msra.mxu0 %v1754
        %2128 = vmatprep.subr.mxu0 %v1759
        %2129 = vmatpush1.msra.mxu0 %v1758
        %2130 = vmatprep.subr.mxu0 %v1763
        %2131 = vmatpush1.msra.mxu0 %v1762
        %2132 = vmatprep.subr.mxu0 %v1767
        %2133 = vmatpush1.msra.mxu0 %v1766
        %2134 = vmatprep.subr.mxu0 0.0
        %2135 = vmatpush1.msra.mxu0 0.0
        %2136 = vmatprep.subr.mxu0 0.0
        %2137 = vmatpush1.msra.mxu0 0.0
        %2138 = vmatprep.subr.mxu0 0.0
        %2139 = vmatpush1.msra.mxu0 0.0
        %2140 = vmatprep.subr.mxu0 0.0
        %2141 = vmatpush1.msra.mxu0 0.0
        %2142 = vmatprep.subr.mxu0 0.0
        %2143 = vmatpush1.msra.mxu0 0.0
        %2144 = vmatprep.subr.mxu0 0.0
        %2145 = vmatpush1.msra.mxu0 0.0
        %2146 = vmatprep.subr.mxu0 0.0
        %2147 = vmatpush1.msra.mxu0 0.0
        %2148 = vmatprep.subr.mxu0 0.0
        %2149 = vmatpush1.msra.mxu0 0.0
        %2150 = vmatprep.subr.mxu0 0.0
        %2151 = vmatpush1.msra.mxu0 0.0
        %2152 = vmatprep.subr.mxu0 0.0
        %2153 = vmatpush1.msra.mxu0 0.0
        %2154 = vmatprep.subr.mxu0 0.0
        %2155 = vmatpush1.msra.mxu0 0.0
        %2156 = vmatprep.subr.mxu0 0.0
        %2157 = vmatpush1.msra.mxu0 0.0
        %2158 = vmatprep.subr.mxu0 0.0
        %2159 = vmatpush1.msra.mxu0 0.0
        %2160 = vmatprep.subr.mxu0 0.0
        %2161 = vmatpush1.msra.mxu0 0.0
        %2162 = vmatprep.subr.mxu0 0.0
        %2163 = vmatpush1.msra.mxu0 0.0
        %2164 = vmatprep.subr.mxu0 0.0
        %2165 = vmatpush1.msra.mxu0 0.0
        %2166 = vmatprep.subr.mxu0 0.0
        %2167 = vmatpush1.msra.mxu0 0.0
        %2168 = vmatprep.subr.mxu0 0.0
        %2169 = vmatpush1.msra.mxu0 0.0
        %2170 = vmatprep.subr.mxu0 0.0
        %2171 = vmatpush1.msra.mxu0 0.0
        %2172 = vmatprep.subr.mxu0 0.0
        %2173 = vmatpush1.msra.mxu0 0.0
        %2174 = vmatprep.subr.mxu0 0.0
        %2175 = vmatpush1.msra.mxu0 0.0
        %2176 = vmatprep.subr.mxu0 0.0
        %2177 = vmatpush1.msra.mxu0 0.0
        %2178 = vmatprep.subr.mxu0 0.0
        %2179 = vmatpush1.msra.mxu0 0.0
        %2180 = vmatprep.subr.mxu0 0.0
        %2181 = vmatpush1.msra.mxu0 0.0
        %2182 = vmatprep.subr.mxu0 0.0
        %2183 = vmatpush1.msra.mxu0 0.0
        %2184 = vmatprep.subr.mxu0 0.0
        %2185 = vmatpush1.msra.mxu0 0.0
        %2186 = vmatprep.subr.mxu0 0.0
        %2187 = vmatpush1.msra.mxu0 0.0
        %2188 = vmatprep.mubr.f32.mxu0 0.0
        %2189 = vmatmul.mubr.f32.gmra.mrb[0].mxu0 %v2024
        %v2190 = vpop.f32.mrb[0].mxu0
        %v2191 = vadd.f32 0.0, %v2190
        %v2192 = vpop.f32.mrb[0].mxu0
        %v2193 = vadd.f32 0.0, %v2192
        %2194 = vmatprep.mubr.f32.mxu0 0.0
        %2195 = vmatmul.mubr.f32.gmra.mrb[0].mxu0 %v2027
        %v2196 = vpop.f32.mrb[0].mxu0
        %v2197 = vadd.f32 0.0, %v2196
        %v2198 = vpop.f32.mrb[0].mxu0
        %v2199 = vadd.f32 0.0, %v2198
        %2200 = vmatprep.mubr.f32.mxu0 0.0
        %2201 = vmatmul.mubr.f32.gmra.mrb[0].mxu0 %v2030
        %v2202 = vpop.f32.mrb[0].mxu0
        %v2203 = vadd.f32 0.0, %v2202
        %v2204 = vpop.f32.mrb[0].mxu0
        %v2205 = vadd.f32 0.0, %v2204
        %2206 = vmatprep.mubr.f32.mxu0 0.0
        %2207 = vmatmul.mubr.f32.gmra.mrb[0].mxu0 %v2033
        %v2208 = vpop.f32.mrb[0].mxu0
        %v2209 = vadd.f32 0.0, %v2208
        %v2210 = vpop.f32.mrb[0].mxu0
        %v2211 = vadd.f32 0.0, %v2210
        %2212 = vdwg.mxu0
        %v2213 = vrcp.pop %v2102
        %v2214 = vrcp.pop %v2104
        %v2215 = vrcp.pop %v2191
        %v2216 = vrcp.pop %v2193
        %v2217 = vrcp.pop %v2108
        %v2218 = vrcp.pop %v2110
        %v2219 = vrcp.pop %v2197
        %v2220 = vrcp.pop %v2199
        %v2221 = vrcp.pop %v2114
        %v2222 = vrcp.pop %v2116
        %v2223 = vrcp.pop %v2203
        %v2224 = vrcp.pop %v2205
        %v2225 = vrcp.pop %v2120
        %v2226 = vrcp.pop %v2122
        %v2227 = vrcp.pop %v2209
        %v2228 = vrcp.pop %v2211
        %v2229 = vmul.f32 %v1810, %v2213
        %v2230 = vmul.f32 %v1812, %v2214
        %v2231 = vmul.f32 %v1814, %v2215
        %v2232 = vmul.f32 %v1816, %v2216
        %v2233 = vmul.f32 %v1818, %v2217
        %v2234 = vmul.f32 %v1820, %v2218
        %v2235 = vmul.f32 %v1822, %v2219
        %v2236 = vmul.f32 %v1824, %v2220
        %v2237 = vmul.f32 %v1826, %v2221
        %v2238 = vmul.f32 %v1828, %v2222
        %v2239 = vmul.f32 %v1830, %v2223
        %v2240 = vmul.f32 %v1832, %v2224
        %v2241 = vmul.f32 %v1834, %v2225
        %v2242 = vmul.f32 %v1836, %v2226
        %v2243 = vmul.f32 %v1838, %v2227
        %v2244 = vmul.f32 %v1840, %v2228
        %v2246 = vsel %vm456, %v736, 0
        %v2249 = vsel %vm456, %v741, 0
        %v2252 = vsel %vm456, %v746, 0
        %v2255 = vsel %vm456, %v751, 0
        %2257 = vmatprep.subr.mxu0 %v985
        %2258 = vmatpush1.msra.mxu0 %v984
        %2259 = vmatprep.subr.mxu0 %v989
        %2260 = vmatpush1.msra.mxu0 %v988
        %2261 = vmatprep.subr.mxu0 %v993
        %2262 = vmatpush1.msra.mxu0 %v992
        %2263 = vmatprep.subr.mxu0 %v997
        %2264 = vmatpush1.msra.mxu0 %v996
        %2265 = vmatprep.subr.mxu0 %v1001
        %2266 = vmatpush1.msra.mxu0 %v1000
        %2267 = vmatprep.subr.mxu0 %v1005
        %2268 = vmatpush1.msra.mxu0 %v1004
        %2269 = vmatprep.subr.mxu0 %v1009
        %2270 = vmatpush1.msra.mxu0 %v1008
        %2271 = vmatprep.subr.mxu0 %v1013
        %2272 = vmatpush1.msra.mxu0 %v1012
        %2273 = vmatprep.subr.mxu0 %v1017
        %2274 = vmatpush1.msra.mxu0 %v1016
        %2275 = vmatprep.subr.mxu0 %v1021
        %2276 = vmatpush1.msra.mxu0 %v1020
        %2277 = vmatprep.subr.mxu0 0.0
        %2278 = vmatpush1.msra.mxu0 0.0
        %2279 = vmatprep.subr.mxu0 0.0
        %2280 = vmatpush1.msra.mxu0 0.0
        %2281 = vmatprep.subr.mxu0 0.0
        %2282 = vmatpush1.msra.mxu0 0.0
        %2283 = vmatprep.subr.mxu0 0.0
        %2284 = vmatpush1.msra.mxu0 0.0
        %2285 = vmatprep.subr.mxu0 0.0
        %2286 = vmatpush1.msra.mxu0 0.0
        %2287 = vmatprep.subr.mxu0 0.0
        %2288 = vmatpush1.msra.mxu0 0.0
        %2289 = vmatprep.subr.mxu0 0.0
        %2290 = vmatpush1.msra.mxu0 0.0
        %2291 = vmatprep.subr.mxu0 0.0
        %2292 = vmatpush1.msra.mxu0 0.0
        %2293 = vmatprep.subr.mxu0 0.0
        %2294 = vmatpush1.msra.mxu0 0.0
        %2295 = vmatprep.subr.mxu0 0.0
        %2296 = vmatpush1.msra.mxu0 0.0
        %2297 = vmatprep.subr.mxu0 0.0
        %2298 = vmatpush1.msra.mxu0 0.0
        %2299 = vmatprep.subr.mxu0 0.0
        %2300 = vmatpush1.msra.mxu0 0.0
        %2301 = vmatprep.subr.mxu0 0.0
        %2302 = vmatpush1.msra.mxu0 0.0
        %2303 = vmatprep.subr.mxu0 0.0
        %2304 = vmatpush1.msra.mxu0 0.0
        %2305 = vmatprep.subr.mxu0 0.0
        %2306 = vmatpush1.msra.mxu0 0.0
        %2307 = vmatprep.subr.mxu0 0.0
        %2308 = vmatpush1.msra.mxu0 0.0
        %2309 = vmatprep.subr.mxu0 0.0
        %2310 = vmatpush1.msra.mxu0 0.0
        %2311 = vmatprep.subr.mxu0 0.0
        %2312 = vmatpush1.msra.mxu0 0.0
        %2313 = vmatprep.subr.mxu0 0.0
        %2314 = vmatpush1.msra.mxu0 0.0
        %2315 = vmatprep.subr.mxu0 0.0
        %2316 = vmatpush1.msra.mxu0 0.0
        %2317 = vmatprep.subr.mxu0 0.0
        %2318 = vmatpush1.msra.mxu0 0.0
        %2319 = vmatprep.subr.mxu0 0.0
        %2320 = vmatpush1.msra.mxu0 0.0
        %2321 = vmatprep.mubr.f32.mxu0 0.0
        %2322 = vmatmul.mubr.f32.gmra.mrb[0].mxu0 %v2246
        %v2323 = vpop.f32.mrb[0].mxu0
        %v2324 = vadd.f32 0.0, %v2323
        %v2325 = vpop.f32.mrb[0].mxu0
        %v2326 = vadd.f32 0.0, %v2325
        %2327 = vmatprep.mubr.f32.mxu0 0.0
        %2328 = vmatmul.mubr.f32.gmra.mrb[0].mxu0 %v2249
        %v2329 = vpop.f32.mrb[0].mxu0
        %v2330 = vadd.f32 0.0, %v2329
        %v2331 = vpop.f32.mrb[0].mxu0
        %v2332 = vadd.f32 0.0, %v2331
        %2333 = vmatprep.mubr.f32.mxu0 0.0
        %2334 = vmatmul.mubr.f32.gmra.mrb[0].mxu0 %v2252
        %v2335 = vpop.f32.mrb[0].mxu0
        %v2336 = vadd.f32 0.0, %v2335
        %v2337 = vpop.f32.mrb[0].mxu0
        %v2338 = vadd.f32 0.0, %v2337
        %2339 = vmatprep.mubr.f32.mxu0 0.0
        %2340 = vmatmul.mubr.f32.gmra.mrb[0].mxu0 %v2255
        %v2341 = vpop.f32.mrb[0].mxu0
        %v2342 = vadd.f32 0.0, %v2341
        %v2343 = vpop.f32.mrb[0].mxu0
        %v2344 = vadd.f32 0.0, %v2343
        %2345 = vdwg.mxu0
        %2346 = vmatprep.subr.mxu0 %v987
        %2347 = vmatpush1.msra.mxu0 %v986
        %2348 = vmatprep.subr.mxu0 %v991
        %2349 = vmatpush1.msra.mxu0 %v990
        %2350 = vmatprep.subr.mxu0 %v995
        %2351 = vmatpush1.msra.mxu0 %v994
        %2352 = vmatprep.subr.mxu0 %v999
        %2353 = vmatpush1.msra.mxu0 %v998
        %2354 = vmatprep.subr.mxu0 %v1003
        %2355 = vmatpush1.msra.mxu0 %v1002
        %2356 = vmatprep.subr.mxu0 %v1007
        %2357 = vmatpush1.msra.mxu0 %v1006
        %2358 = vmatprep.subr.mxu0 %v1011
        %2359 = vmatpush1.msra.mxu0 %v1010
        %2360 = vmatprep.subr.mxu0 %v1015
        %2361 = vmatpush1.msra.mxu0 %v1014
        %2362 = vmatprep.subr.mxu0 %v1019
        %2363 = vmatpush1.msra.mxu0 %v1018
        %2364 = vmatprep.subr.mxu0 %v1023
        %2365 = vmatpush1.msra.mxu0 %v1022
        %2366 = vmatprep.subr.mxu0 0.0
        %2367 = vmatpush1.msra.mxu0 0.0
        %2368 = vmatprep.subr.mxu0 0.0
        %2369 = vmatpush1.msra.mxu0 0.0
        %2370 = vmatprep.subr.mxu0 0.0
        %2371 = vmatpush1.msra.mxu0 0.0
        %2372 = vmatprep.subr.mxu0 0.0
        %2373 = vmatpush1.msra.mxu0 0.0
        %2374 = vmatprep.subr.mxu0 0.0
        %2375 = vmatpush1.msra.mxu0 0.0
        %2376 = vmatprep.subr.mxu0 0.0
        %2377 = vmatpush1.msra.mxu0 0.0
        %2378 = vmatprep.subr.mxu0 0.0
        %2379 = vmatpush1.msra.mxu0 0.0
        %2380 = vmatprep.subr.mxu0 0.0
        %2381 = vmatpush1.msra.mxu0 0.0
        %2382 = vmatprep.subr.mxu0 0.0
        %2383 = vmatpush1.msra.mxu0 0.0
        %2384 = vmatprep.subr.mxu0 0.0
        %2385 = vmatpush1.msra.mxu0 0.0
        %2386 = vmatprep.subr.mxu0 0.0
        %2387 = vmatpush1.msra.mxu0 0.0
        %2388 = vmatprep.subr.mxu0 0.0
        %2389 = vmatpush1.msra.mxu0 0.0
        %2390 = vmatprep.subr.mxu0 0.0
        %2391 = vmatpush1.msra.mxu0 0.0
        %2392 = vmatprep.subr.mxu0 0.0
        %2393 = vmatpush1.msra.mxu0 0.0
        %2394 = vmatprep.subr.mxu0 0.0
        %2395 = vmatpush1.msra.mxu0 0.0
        %2396 = vmatprep.subr.mxu0 0.0
        %2397 = vmatpush1.msra.mxu0 0.0
        %2398 = vmatprep.subr.mxu0 0.0
        %2399 = vmatpush1.msra.mxu0 0.0
        %2400 = vmatprep.subr.mxu0 0.0
        %2401 = vmatpush1.msra.mxu0 0.0
        %2402 = vmatprep.subr.mxu0 0.0
        %2403 = vmatpush1.msra.mxu0 0.0
        %2404 = vmatprep.subr.mxu0 0.0
        %2405 = vmatpush1.msra.mxu0 0.0
        %2406 = vmatprep.subr.mxu0 0.0
        %2407 = vmatpush1.msra.mxu0 0.0
        %2408 = vmatprep.subr.mxu0 0.0
        %2409 = vmatpush1.msra.mxu0 0.0
        %2410 = vmatprep.mubr.f32.mxu0 0.0
        %2411 = vmatmul.mubr.f32.gmra.mrb[0].mxu0 %v2246
        %v2412 = vpop.f32.mrb[0].mxu0
        %v2413 = vadd.f32 0.0, %v2412
        %v2414 = vpop.f32.mrb[0].mxu0
        %v2415 = vadd.f32 0.0, %v2414
        %2416 = vmatprep.mubr.f32.mxu0 0.0
        %2417 = vmatmul.mubr.f32.gmra.mrb[0].mxu0 %v2249
        %v2418 = vpop.f32.mrb[0].mxu0
        %v2419 = vadd.f32 0.0, %v2418
        %v2420 = vpop.f32.mrb[0].mxu0
        %v2421 = vadd.f32 0.0, %v2420
        %2422 = vmatprep.mubr.f32.mxu0 0.0
        %2423 = vmatmul.mubr.f32.gmra.mrb[0].mxu0 %v2252
        %v2424 = vpop.f32.mrb[0].mxu0
        %v2425 = vadd.f32 0.0, %v2424
        %v2426 = vpop.f32.mrb[0].mxu0
        %v2427 = vadd.f32 0.0, %v2426
        %2428 = vmatprep.mubr.f32.mxu0 0.0
        %2429 = vmatmul.mubr.f32.gmra.mrb[0].mxu0 %v2255
        %v2430 = vpop.f32.mrb[0].mxu0
        %v2431 = vadd.f32 0.0, %v2430
        %v2432 = vpop.f32.mrb[0].mxu0
        %v2433 = vadd.f32 0.0, %v2432
        %2434 = vdwg.mxu0
        %v2435 = vmul.f32 %v2229, %v2324
        %v2436 = vmul.f32 %v2230, %v2326
        %v2437 = vmul.f32 %v2231, %v2413
        %v2438 = vmul.f32 %v2232, %v2415
        %v2439 = vmul.f32 %v2233, %v2330
        %v2440 = vmul.f32 %v2234, %v2332
        %v2441 = vmul.f32 %v2235, %v2419
        %v2442 = vmul.f32 %v2236, %v2421
        %v2443 = vmul.f32 %v2237, %v2336
        %v2444 = vmul.f32 %v2238, %v2338
        %v2445 = vmul.f32 %v2239, %v2425
        %v2446 = vmul.f32 %v2240, %v2427
        %v2447 = vmul.f32 %v2241, %v2342
        %v2448 = vmul.f32 %v2242, %v2344
        %v2449 = vmul.f32 %v2243, %v2431
        %v2450 = vmul.f32 %v2244, %v2433
        %v2451 = vld [vmem:[#allocation4] sm:$0xff]
        %v2452 = vld [vmem:[#allocation4 + $0x8] sm:$0xff]
        %v2453 = vld [vmem:[#allocation4 + $0x10] sm:$0xff]
        %v2454 = vld [vmem:[#allocation4 + $0x18] sm:$0xff]
        %v2455 = vld [vmem:[#allocation4 + $0x20] sm:$0xff]
        %v2456 = vld [vmem:[#allocation4 + $0x28] sm:$0xff]
        %v2457 = vld [vmem:[#allocation4 + $0x30] sm:$0xff]
        %v2458 = vld [vmem:[#allocation4 + $0x38] sm:$0xff]
        %v2459 = vld [vmem:[#allocation4 + $0x40] sm:$0xff]
        %v2460 = vld [vmem:[#allocation4 + $0x48] sm:$0xff]
        %v2461 = vld [vmem:[#allocation4 + $0x50] sm:$0xff]
        %v2462 = vld [vmem:[#allocation4 + $0x58] sm:$0xff]
        %v2463 = vld [vmem:[#allocation4 + $0x60] sm:$0xff]
        %v2464 = vld [vmem:[#allocation4 + $0x68] sm:$0xff]
        %v2465 = vld [vmem:[#allocation4 + $0x70] sm:$0xff]
        %v2466 = vld [vmem:[#allocation4 + $0x78] sm:$0xff]
        %v2467 = vld [vmem:[#allocation4 + $0x80] sm:$0xff]
        %v2468 = vld [vmem:[#allocation4 + $0x88] sm:$0xff]
        %v2469 = vld [vmem:[#allocation4 + $0x90] sm:$0xff]
        %v2470 = vld [vmem:[#allocation4 + $0x98] sm:$0xff]
        %v2471 = vld [vmem:[#allocation4 + $0xa0] sm:$0xff]
        %v2472 = vld [vmem:[#allocation4 + $0xa8] sm:$0xff]
        %v2473 = vld [vmem:[#allocation4 + $0xb0] sm:$0xff]
        %v2474 = vld [vmem:[#allocation4 + $0xb8] sm:$0xff]
        %v2475 = vld [vmem:[#allocation4 + $0xc0] sm:$0xff]
        %v2476 = vld [vmem:[#allocation4 + $0xc8] sm:$0xff]
        %v2477 = vld [vmem:[#allocation4 + $0xd0] sm:$0xff]
        %v2478 = vld [vmem:[#allocation4 + $0xd8] sm:$0xff]
        %v2479 = vld [vmem:[#allocation4 + $0xe0] sm:$0xff]
        %v2480 = vld [vmem:[#allocation4 + $0xe8] sm:$0xff]
        %v2481 = vld [vmem:[#allocation4 + $0xf0] sm:$0xff]
        %v2482 = vld [vmem:[#allocation4 + $0xf8] sm:$0xff]
        %v2483 = vld [vmem:[#allocation4 + $0x100] sm:$0xff]
        %v2484 = vld [vmem:[#allocation4 + $0x108] sm:$0xff]
        %v2485 = vld [vmem:[#allocation4 + $0x110] sm:$0xff]
        %v2486 = vld [vmem:[#allocation4 + $0x118] sm:$0xff]
        %v2487 = vld [vmem:[#allocation4 + $0x120] sm:$0xff]
        %v2488 = vld [vmem:[#allocation4 + $0x128] sm:$0xff]
        %v2489 = vld [vmem:[#allocation4 + $0x130] sm:$0xff]
        %v2490 = vld [vmem:[#allocation4 + $0x138] sm:$0xff]
        %v2491 = vld [vmem:[#allocation4 + $0x140] sm:$0xff]
        %v2492 = vld [vmem:[#allocation4 + $0x148] sm:$0xff]
        %v2493 = vld [vmem:[#allocation4 + $0x150] sm:$0xff]
        %v2494 = vld [vmem:[#allocation4 + $0x158] sm:$0xff]
        %v2495 = vld [vmem:[#allocation4 + $0x160] sm:$0xff]
        %v2496 = vld [vmem:[#allocation4 + $0x168] sm:$0xff]
        %v2497 = vld [vmem:[#allocation4 + $0x170] sm:$0xff]
        %v2498 = vld [vmem:[#allocation4 + $0x178] sm:$0xff]
        %v2499 = vld [vmem:[#allocation4 + $0x180] sm:$0xff]
        %v2500 = vld [vmem:[#allocation4 + $0x188] sm:$0xff]
        %2501 = vmatprep.subr.mxu0 %v1449
        %2502 = vmatpush1.msra.mxu0 %v1448
        %2503 = vmatprep.subr.mxu0 %v1453
        %2504 = vmatpush1.msra.mxu0 %v1452
        %2505 = vmatprep.subr.mxu0 %v1457
        %2506 = vmatpush1.msra.mxu0 %v1456
        %2507 = vmatprep.subr.mxu0 %v1461
        %2508 = vmatpush1.msra.mxu0 %v1460
        %2509 = vmatprep.subr.mxu0 %v1465
        %2510 = vmatpush1.msra.mxu0 %v1464
        %2511 = vmatprep.subr.mxu0 %v1469
        %2512 = vmatpush1.msra.mxu0 %v1468
        %2513 = vmatprep.subr.mxu0 %v1473
        %2514 = vmatpush1.msra.mxu0 %v1472
        %2515 = vmatprep.subr.mxu0 %v1477
        %2516 = vmatpush1.msra.mxu0 %v1476
        %2517 = vmatprep.subr.mxu0 %v1481
        %2518 = vmatpush1.msra.mxu0 %v1480
        %2519 = vmatprep.subr.mxu0 %v1485
        %2520 = vmatpush1.msra.mxu0 %v1484
        %2521 = vmatprep.subr.mxu0 0.0
        %2522 = vmatpush1.msra.mxu0 0.0
        %2523 = vmatprep.subr.mxu0 0.0
        %2524 = vmatpush1.msra.mxu0 0.0
        %2525 = vmatprep.subr.mxu0 0.0
        %2526 = vmatpush1.msra.mxu0 0.0
        %2527 = vmatprep.subr.mxu0 0.0
        %2528 = vmatpush1.msra.mxu0 0.0
        %2529 = vmatprep.subr.mxu0 0.0
        %2530 = vmatpush1.msra.mxu0 0.0
        %2531 = vmatprep.subr.mxu0 0.0
        %2532 = vmatpush1.msra.mxu0 0.0
        %2533 = vmatprep.subr.mxu0 0.0
        %2534 = vmatpush1.msra.mxu0 0.0
        %2535 = vmatprep.subr.mxu0 0.0
        %2536 = vmatpush1.msra.mxu0 0.0
        %2537 = vmatprep.subr.mxu0 0.0
        %2538 = vmatpush1.msra.mxu0 0.0
        %2539 = vmatprep.subr.mxu0 0.0
        %2540 = vmatpush1.msra.mxu0 0.0
        %2541 = vmatprep.subr.mxu0 0.0
        %2542 = vmatpush1.msra.mxu0 0.0
        %2543 = vmatprep.subr.mxu0 0.0
        %2544 = vmatpush1.msra.mxu0 0.0
        %2545 = vmatprep.subr.mxu0 0.0
        %2546 = vmatpush1.msra.mxu0 0.0
        %2547 = vmatprep.subr.mxu0 0.0
        %2548 = vmatpush1.msra.mxu0 0.0
        %2549 = vmatprep.subr.mxu0 0.0
        %2550 = vmatpush1.msra.mxu0 0.0
        %2551 = vmatprep.subr.mxu0 0.0
        %2552 = vmatpush1.msra.mxu0 0.0
        %2553 = vmatprep.subr.mxu0 0.0
        %2554 = vmatpush1.msra.mxu0 0.0
        %2555 = vmatprep.subr.mxu0 0.0
        %2556 = vmatpush1.msra.mxu0 0.0
        %2557 = vmatprep.subr.mxu0 0.0
        %2558 = vmatpush1.msra.mxu0 0.0
        %2559 = vmatprep.subr.mxu0 0.0
        %2560 = vmatpush1.msra.mxu0 0.0
        %2561 = vmatprep.subr.mxu0 0.0
        %2562 = vmatpush1.msra.mxu0 0.0
        %2563 = vmatprep.subr.mxu0 0.0
        %2564 = vmatpush1.msra.mxu0 0.0
        %2565 = vmatprep.mubr.f32.mxu0 0.0
        %2566 = vmatmul.mubr.f32.gmra.mrb[0].mxu0 %v2246
        %v2567 = vpop.f32.mrb[0].mxu0
        %v2568 = vadd.f32 0.0, %v2567
        %v2569 = vpop.f32.mrb[0].mxu0
        %v2570 = vadd.f32 0.0, %v2569
        %2571 = vmatprep.mubr.f32.mxu0 0.0
        %2572 = vmatmul.mubr.f32.gmra.mrb[0].mxu0 %v2249
        %v2573 = vpop.f32.mrb[0].mxu0
        %v2574 = vadd.f32 0.0, %v2573
        %v2575 = vpop.f32.mrb[0].mxu0
        %v2576 = vadd.f32 0.0, %v2575
        %2577 = vmatprep.mubr.f32.mxu0 0.0
        %2578 = vmatmul.mubr.f32.gmra.mrb[0].mxu0 %v2252
        %v2579 = vpop.f32.mrb[0].mxu0
        %v2580 = vadd.f32 0.0, %v2579
        %v2581 = vpop.f32.mrb[0].mxu0
        %v2582 = vadd.f32 0.0, %v2581
        %2583 = vmatprep.mubr.f32.mxu0 0.0
        %2584 = vmatmul.mubr.f32.gmra.mrb[0].mxu0 %v2255
        %v2585 = vpop.f32.mrb[0].mxu0
        %v2586 = vadd.f32 0.0, %v2585
        %v2587 = vpop.f32.mrb[0].mxu0
        %v2588 = vadd.f32 0.0, %v2587
        %2589 = vdwg.mxu0
        %2590 = vmatprep.subr.mxu0 %v1451
        %2591 = vmatpush1.msra.mxu0 %v1450
        %2592 = vmatprep.subr.mxu0 %v1455
        %2593 = vmatpush1.msra.mxu0 %v1454
        %2594 = vmatprep.subr.mxu0 %v1459
        %2595 = vmatpush1.msra.mxu0 %v1458
        %2596 = vmatprep.subr.mxu0 %v1463
        %2597 = vmatpush1.msra.mxu0 %v1462
        %2598 = vmatprep.subr.mxu0 %v1467
        %2599 = vmatpush1.msra.mxu0 %v1466
        %2600 = vmatprep.subr.mxu0 %v1471
        %2601 = vmatpush1.msra.mxu0 %v1470
        %2602 = vmatprep.subr.mxu0 %v1475
        %2603 = vmatpush1.msra.mxu0 %v1474
        %2604 = vmatprep.subr.mxu0 %v1479
        %2605 = vmatpush1.msra.mxu0 %v1478
        %2606 = vmatprep.subr.mxu0 %v1483
        %2607 = vmatpush1.msra.mxu0 %v1482
        %2608 = vmatprep.subr.mxu0 %v1487
        %2609 = vmatpush1.msra.mxu0 %v1486
        %2610 = vmatprep.subr.mxu0 0.0
        %2611 = vmatpush1.msra.mxu0 0.0
        %2612 = vmatprep.subr.mxu0 0.0
        %2613 = vmatpush1.msra.mxu0 0.0
        %2614 = vmatprep.subr.mxu0 0.0
        %2615 = vmatpush1.msra.mxu0 0.0
        %2616 = vmatprep.subr.mxu0 0.0
        %2617 = vmatpush1.msra.mxu0 0.0
        %2618 = vmatprep.subr.mxu0 0.0
        %2619 = vmatpush1.msra.mxu0 0.0
        %2620 = vmatprep.subr.mxu0 0.0
        %2621 = vmatpush1.msra.mxu0 0.0
        %2622 = vmatprep.subr.mxu0 0.0
        %2623 = vmatpush1.msra.mxu0 0.0
        %2624 = vmatprep.subr.mxu0 0.0
        %2625 = vmatpush1.msra.mxu0 0.0
        %2626 = vmatprep.subr.mxu0 0.0
        %2627 = vmatpush1.msra.mxu0 0.0
        %2628 = vmatprep.subr.mxu0 0.0
        %2629 = vmatpush1.msra.mxu0 0.0
        %2630 = vmatprep.subr.mxu0 0.0
        %2631 = vmatpush1.msra.mxu0 0.0
        %2632 = vmatprep.subr.mxu0 0.0
        %2633 = vmatpush1.msra.mxu0 0.0
        %2634 = vmatprep.subr.mxu0 0.0
        %2635 = vmatpush1.msra.mxu0 0.0
        %2636 = vmatprep.subr.mxu0 0.0
        %2637 = vmatpush1.msra.mxu0 0.0
        %2638 = vmatprep.subr.mxu0 0.0
        %2639 = vmatpush1.msra.mxu0 0.0
        %2640 = vmatprep.subr.mxu0 0.0
        %2641 = vmatpush1.msra.mxu0 0.0
        %2642 = vmatprep.subr.mxu0 0.0
        %2643 = vmatpush1.msra.mxu0 0.0
        %2644 = vmatprep.subr.mxu0 0.0
        %2645 = vmatpush1.msra.mxu0 0.0
        %2646 = vmatprep.subr.mxu0 0.0
        %2647 = vmatpush1.msra.mxu0 0.0
        %2648 = vmatprep.subr.mxu0 0.0
        %2649 = vmatpush1.msra.mxu0 0.0
        %2650 = vmatprep.subr.mxu0 0.0
        %2651 = vmatpush1.msra.mxu0 0.0
        %2652 = vmatprep.subr.mxu0 0.0
        %2653 = vmatpush1.msra.mxu0 0.0
        %2654 = vmatprep.mubr.f32.mxu0 0.0
        %2655 = vmatmul.mubr.f32.gmra.mrb[0].mxu0 %v2246
        %v2656 = vpop.f32.mrb[0].mxu0
        %v2657 = vadd.f32 0.0, %v2656
        %v2658 = vpop.f32.mrb[0].mxu0
        %v2659 = vadd.f32 0.0, %v2658
        %2660 = vmatprep.mubr.f32.mxu0 0.0
        %2661 = vmatmul.mubr.f32.gmra.mrb[0].mxu0 %v2249
        %v2662 = vpop.f32.mrb[0].mxu0
        %v2663 = vadd.f32 0.0, %v2662
        %v2664 = vpop.f32.mrb[0].mxu0
        %v2665 = vadd.f32 0.0, %v2664
        %2666 = vmatprep.mubr.f32.mxu0 0.0
        %2667 = vmatmul.mubr.f32.gmra.mrb[0].mxu0 %v2252
        %v2668 = vpop.f32.mrb[0].mxu0
        %v2669 = vadd.f32 0.0, %v2668
        %v2670 = vpop.f32.mrb[0].mxu0
        %v2671 = vadd.f32 0.0, %v2670
        %2672 = vmatprep.mubr.f32.mxu0 0.0
        %2673 = vmatmul.mubr.f32.gmra.mrb[0].mxu0 %v2255
        %v2674 = vpop.f32.mrb[0].mxu0
        %v2675 = vadd.f32 0.0, %v2674
        %v2676 = vpop.f32.mrb[0].mxu0
        %v2677 = vadd.f32 0.0, %v2676
        %2678 = vdwg.mxu0
        %v2679 = vmul.f32 %v2229, %v2568
        %v2680 = vmul.f32 %v2230, %v2570
        %v2681 = vmul.f32 %v2231, %v2657
        %v2682 = vmul.f32 %v2232, %v2659
        %v2683 = vmul.f32 %v2233, %v2574
        %v2684 = vmul.f32 %v2234, %v2576
        %v2685 = vmul.f32 %v2235, %v2663
        %v2686 = vmul.f32 %v2236, %v2665
        %v2687 = vmul.f32 %v2237, %v2580
        %v2688 = vmul.f32 %v2238, %v2582
        %v2689 = vmul.f32 %v2239, %v2669
        %v2690 = vmul.f32 %v2240, %v2671
        %v2691 = vmul.f32 %v2241, %v2586
        %v2692 = vmul.f32 %v2242, %v2588
        %v2693 = vmul.f32 %v2243, %v2675
        %v2694 = vmul.f32 %v2244, %v2677
        %v2695 = vld [vmem:[#allocation4 + $0x190] sm:$0xff]
        %v2696 = vld [vmem:[#allocation4 + $0x198] sm:$0xff]
        %v2697 = vld [vmem:[#allocation4 + $0x1a0] sm:$0xff]
        %v2698 = vld [vmem:[#allocation4 + $0x1a8] sm:$0xff]
        %v2699 = vld [vmem:[#allocation4 + $0x1b0] sm:$0xff]
        %v2700 = vld [vmem:[#allocation4 + $0x1b8] sm:$0xff]
        %v2701 = vld [vmem:[#allocation4 + $0x1c0] sm:$0xff]
        %v2702 = vld [vmem:[#allocation4 + $0x1c8] sm:$0xff]
        %v2703 = vld [vmem:[#allocation4 + $0x1d0] sm:$0xff]
        %v2704 = vld [vmem:[#allocation4 + $0x1d8] sm:$0xff]
        %v2705 = vld [vmem:[#allocation4 + $0x1e0] sm:$0xff]
        %v2706 = vld [vmem:[#allocation4 + $0x1e8] sm:$0xff]
        %v2707 = vld [vmem:[#allocation4 + $0x1f0] sm:$0xff]
        %v2708 = vld [vmem:[#allocation4 + $0x1f8] sm:$0xff]
        %v2709 = vld [vmem:[#allocation4 + $0x200] sm:$0xff]
        %v2710 = vld [vmem:[#allocation4 + $0x208] sm:$0xff]
        %v2711 = vld [vmem:[#allocation4 + $0x210] sm:$0xff]
        %v2712 = vld [vmem:[#allocation4 + $0x218] sm:$0xff]
        %v2713 = vld [vmem:[#allocation4 + $0x220] sm:$0xff]
        %v2714 = vld [vmem:[#allocation4 + $0x228] sm:$0xff]
        %v2715 = vld [vmem:[#allocation4 + $0x230] sm:$0xff]
        %v2716 = vld [vmem:[#allocation4 + $0x238] sm:$0xff]
        %v2717 = vld [vmem:[#allocation4 + $0x240] sm:$0xff]
        %v2718 = vld [vmem:[#allocation4 + $0x248] sm:$0xff]
        %v2719 = vld [vmem:[#allocation4 + $0x250] sm:$0xff]
        %v2720 = vld [vmem:[#allocation4 + $0x258] sm:$0xff]
        %v2721 = vld [vmem:[#allocation4 + $0x260] sm:$0xff]
        %v2722 = vld [vmem:[#allocation4 + $0x268] sm:$0xff]
        %v2723 = vld [vmem:[#allocation4 + $0x270] sm:$0xff]
        %v2724 = vld [vmem:[#allocation4 + $0x278] sm:$0xff]
        %v2725 = vld [vmem:[#allocation4 + $0x280] sm:$0xff]
        %v2726 = vld [vmem:[#allocation4 + $0x288] sm:$0xff]
        %v2727 = vld [vmem:[#allocation4 + $0x290] sm:$0xff]
        %v2728 = vld [vmem:[#allocation4 + $0x298] sm:$0xff]
        %v2729 = vld [vmem:[#allocation4 + $0x2a0] sm:$0xff]
        %v2730 = vld [vmem:[#allocation4 + $0x2a8] sm:$0xff]
        %v2731 = vld [vmem:[#allocation4 + $0x2b0] sm:$0xff]
        %v2732 = vld [vmem:[#allocation4 + $0x2b8] sm:$0xff]
        %v2733 = vld [vmem:[#allocation4 + $0x2c0] sm:$0xff]
        %v2734 = vld [vmem:[#allocation4 + $0x2c8] sm:$0xff]
        %v2735 = vld [vmem:[#allocation4 + $0x2d0] sm:$0xff]
        %v2736 = vld [vmem:[#allocation4 + $0x2d8] sm:$0xff]
        %v2737 = vld [vmem:[#allocation4 + $0x2e0] sm:$0xff]
        %v2738 = vld [vmem:[#allocation4 + $0x2e8] sm:$0xff]
        %v2739 = vld [vmem:[#allocation4 + $0x2f0] sm:$0xff]
        %v2740 = vld [vmem:[#allocation4 + $0x2f8] sm:$0xff]
        %v2741 = vld [vmem:[#allocation4 + $0x300] sm:$0xff]
        %v2742 = vld [vmem:[#allocation4 + $0x308] sm:$0xff]
        %v2743 = vld [vmem:[#allocation4 + $0x310] sm:$0xff]
        %v2744 = vld [vmem:[#allocation4 + $0x318] sm:$0xff]
        %v2746 = vsel %vm1770, %v2682, 0
        %v2749 = vsel %vm1770, %v2686, 0
        %v2752 = vsel %vm1770, %v2690, 0
        %v2755 = vsel %vm1770, %v2694, 0
        %2757 = vmatprep.subr.mxu0 0.0
        %2758 = vmatpush1.msra.mxu0 %v2695
        %2759 = vmatprep.subr.mxu0 0.0
        %2760 = vmatpush1.msra.mxu0 %v2696
        %2761 = vmatprep.subr.mxu0 0.0
        %2762 = vmatpush1.msra.mxu0 %v2697
        %2763 = vmatprep.subr.mxu0 0.0
        %2764 = vmatpush1.msra.mxu0 %v2698
        %2765 = vmatprep.subr.mxu0 0.0
        %2766 = vmatpush1.msra.mxu0 %v2699
        %2767 = vmatprep.subr.mxu0 0.0
        %2768 = vmatpush1.msra.mxu0 %v2700
        %2769 = vmatprep.subr.mxu0 0.0
        %2770 = vmatpush1.msra.mxu0 %v2701
        %2771 = vmatprep.subr.mxu0 0.0
        %2772 = vmatpush1.msra.mxu0 %v2702
        %2773 = vmatprep.subr.mxu0 0.0
        %2774 = vmatpush1.msra.mxu0 %v2703
        %2775 = vmatprep.subr.mxu0 0.0
        %2776 = vmatpush1.msra.mxu0 %v2704
        %2777 = vmatprep.subr.mxu0 0.0
        %2778 = vmatpush1.msra.mxu0 %v2705
        %2779 = vmatprep.subr.mxu0 0.0
        %2780 = vmatpush1.msra.mxu0 %v2706
        %2781 = vmatprep.subr.mxu0 0.0
        %2782 = vmatpush1.msra.mxu0 %v2707
        %2783 = vmatprep.subr.mxu0 0.0
        %2784 = vmatpush1.msra.mxu0 %v2708
        %2785 = vmatprep.subr.mxu0 0.0
        %2786 = vmatpush1.msra.mxu0 %v2709
        %2787 = vmatprep.subr.mxu0 0.0
        %2788 = vmatpush1.msra.mxu0 %v2710
        %2789 = vmatprep.subr.mxu0 0.0
        %2790 = vmatpush1.msra.mxu0 %v2711
        %2791 = vmatprep.subr.mxu0 0.0
        %2792 = vmatpush1.msra.mxu0 %v2712
        %2793 = vmatprep.subr.mxu0 0.0
        %2794 = vmatpush1.msra.mxu0 %v2713
        %2795 = vmatprep.subr.mxu0 0.0
        %2796 = vmatpush1.msra.mxu0 %v2714
        %2797 = vmatprep.subr.mxu0 0.0
        %2798 = vmatpush1.msra.mxu0 %v2715
        %2799 = vmatprep.subr.mxu0 0.0
        %2800 = vmatpush1.msra.mxu0 %v2716
        %2801 = vmatprep.subr.mxu0 0.0
        %2802 = vmatpush1.msra.mxu0 %v2717
        %2803 = vmatprep.subr.mxu0 0.0
        %2804 = vmatpush1.msra.mxu0 %v2718
        %2805 = vmatprep.subr.mxu0 0.0
        %2806 = vmatpush1.msra.mxu0 %v2719
        %2807 = vmatprep.subr.mxu0 0.0
        %2808 = vmatpush1.msra.mxu0 %v2720
        %2809 = vmatprep.subr.mxu0 0.0
        %2810 = vmatpush1.msra.mxu0 %v2721
        %2811 = vmatprep.subr.mxu0 0.0
        %2812 = vmatpush1.msra.mxu0 %v2722
        %2813 = vmatprep.subr.mxu0 0.0
        %2814 = vmatpush1.msra.mxu0 %v2723
        %2815 = vmatprep.subr.mxu0 0.0
        %2816 = vmatpush1.msra.mxu0 %v2724
        %2817 = vmatprep.subr.mxu0 0.0
        %2818 = vmatpush1.msra.mxu0 %v2725
        %2819 = vmatprep.subr.mxu0 0.0
        %2820 = vmatpush1.msra.mxu0 %v2726
        %2821 = vmatprep.mubr.f32.mxu0 %v2680
        %2822 = vmatmul.mubr.f32.gmra.mrb[0].mxu0 %v2679
        %v2823 = vpop.f32.mrb[0].mxu0
        %v2824 = vadd.f32 0.0, %v2823
        %v2825 = vpop.f32.mrb[0].mxu0
        %2826 = vmatprep.mubr.f32.mxu0 %v2684
        %2827 = vmatmul.mubr.f32.gmra.mrb[0].mxu0 %v2683
        %v2828 = vpop.f32.mrb[0].mxu0
        %v2829 = vadd.f32 0.0, %v2828
        %v2830 = vpop.f32.mrb[0].mxu0
        %2831 = vmatprep.mubr.f32.mxu0 %v2688
        %2832 = vmatmul.mubr.f32.gmra.mrb[0].mxu0 %v2687
        %v2833 = vpop.f32.mrb[0].mxu0
        %v2834 = vadd.f32 0.0, %v2833
        %v2835 = vpop.f32.mrb[0].mxu0
        %2836 = vmatprep.mubr.f32.mxu0 %v2692
        %2837 = vmatmul.mubr.f32.gmra.mrb[0].mxu0 %v2691
        %v2838 = vpop.f32.mrb[0].mxu0
        %v2839 = vadd.f32 0.0, %v2838
        %v2840 = vpop.f32.mrb[0].mxu0
        %2841 = vdwg.mxu0
        %2842 = vmatprep.subr.mxu0 0.0
        %2843 = vmatpush1.msra.mxu0 %v2727
        %2844 = vmatprep.subr.mxu0 0.0
        %2845 = vmatpush1.msra.mxu0 %v2728
        %2846 = vmatprep.subr.mxu0 0.0
        %2847 = vmatpush1.msra.mxu0 %v2729
        %2848 = vmatprep.subr.mxu0 0.0
        %2849 = vmatpush1.msra.mxu0 %v2730
        %2850 = vmatprep.subr.mxu0 0.0
        %2851 = vmatpush1.msra.mxu0 %v2731
        %2852 = vmatprep.subr.mxu0 0.0
        %2853 = vmatpush1.msra.mxu0 %v2732
        %2854 = vmatprep.subr.mxu0 0.0
        %2855 = vmatpush1.msra.mxu0 %v2733
        %2856 = vmatprep.subr.mxu0 0.0
        %2857 = vmatpush1.msra.mxu0 %v2734
        %2858 = vmatprep.subr.mxu0 0.0
        %2859 = vmatpush1.msra.mxu0 %v2735
        %2860 = vmatprep.subr.mxu0 0.0
        %2861 = vmatpush1.msra.mxu0 %v2736
        %2862 = vmatprep.subr.mxu0 0.0
        %2863 = vmatpush1.msra.mxu0 %v2737
        %2864 = vmatprep.subr.mxu0 0.0
        %2865 = vmatpush1.msra.mxu0 %v2738
        %2866 = vmatprep.subr.mxu0 0.0
        %2867 = vmatpush1.msra.mxu0 %v2739
        %2868 = vmatprep.subr.mxu0 0.0
        %2869 = vmatpush1.msra.mxu0 %v2740
        %2870 = vmatprep.subr.mxu0 0.0
        %2871 = vmatpush1.msra.mxu0 %v2741
        %2872 = vmatprep.subr.mxu0 0.0
        %2873 = vmatpush1.msra.mxu0 %v2742
        %2874 = vmatprep.subr.mxu0 0.0
        %2875 = vmatpush1.msra.mxu0 %v2743
        %2876 = vmatprep.subr.mxu0 0.0
        %2877 = vmatpush1.msra.mxu0 %v2744
        %2878 = vmatprep.subr.mxu0 0.0
        %2879 = vmatpush1.msra.mxu0 0.0
        %2880 = vmatprep.subr.mxu0 0.0
        %2881 = vmatpush1.msra.mxu0 0.0
        %2882 = vmatprep.subr.mxu0 0.0
        %2883 = vmatpush1.msra.mxu0 0.0
        %2884 = vmatprep.subr.mxu0 0.0
        %2885 = vmatpush1.msra.mxu0 0.0
        %2886 = vmatprep.subr.mxu0 0.0
        %2887 = vmatpush1.msra.mxu0 0.0
        %2888 = vmatprep.subr.mxu0 0.0
        %2889 = vmatpush1.msra.mxu0 0.0
        %2890 = vmatprep.subr.mxu0 0.0
        %2891 = vmatpush1.msra.mxu0 0.0
        %2892 = vmatprep.subr.mxu0 0.0
        %2893 = vmatpush1.msra.mxu0 0.0
        %2894 = vmatprep.subr.mxu0 0.0
        %2895 = vmatpush1.msra.mxu0 0.0
        %2896 = vmatprep.subr.mxu0 0.0
        %2897 = vmatpush1.msra.mxu0 0.0
        %2898 = vmatprep.subr.mxu0 0.0
        %2899 = vmatpush1.msra.mxu0 0.0
        %2900 = vmatprep.subr.mxu0 0.0
        %2901 = vmatpush1.msra.mxu0 0.0
        %2902 = vmatprep.subr.mxu0 0.0
        %2903 = vmatpush1.msra.mxu0 0.0
        %2904 = vmatprep.subr.mxu0 0.0
        %2905 = vmatpush1.msra.mxu0 0.0
        %2906 = vmatprep.mubr.f32.mxu0 %v2746
        %2907 = vmatmul.mubr.f32.gmra.mrb[0].mxu0 %v2681
        %v2908 = vpop.f32.mrb[0].mxu0
        %v2909 = vadd.f32 %v2824, %v2908
        %v2910 = vpop.f32.mrb[0].mxu0
        %2911 = vmatprep.mubr.f32.mxu0 %v2749
        %2912 = vmatmul.mubr.f32.gmra.mrb[0].mxu0 %v2685
        %v2913 = vpop.f32.mrb[0].mxu0
        %v2914 = vadd.f32 %v2829, %v2913
        %v2915 = vpop.f32.mrb[0].mxu0
        %2916 = vmatprep.mubr.f32.mxu0 %v2752
        %2917 = vmatmul.mubr.f32.gmra.mrb[0].mxu0 %v2689
        %v2918 = vpop.f32.mrb[0].mxu0
        %v2919 = vadd.f32 %v2834, %v2918
        %v2920 = vpop.f32.mrb[0].mxu0
        %2921 = vmatprep.mubr.f32.mxu0 %v2755
        %2922 = vmatmul.mubr.f32.gmra.mrb[0].mxu0 %v2693
        %v2923 = vpop.f32.mrb[0].mxu0
        %v2924 = vadd.f32 %v2839, %v2923
        %v2925 = vpop.f32.mrb[0].mxu0
        %2926 = vdwg.mxu0
        %v2928 = vsel %vm1770, %v2438, 0
        %v2931 = vsel %vm1770, %v2442, 0
        %v2934 = vsel %vm1770, %v2446, 0
        %v2937 = vsel %vm1770, %v2450, 0
        %2939 = vmatprep.subr.mxu0 0.0
        %2940 = vmatpush1.msra.mxu0 %v2451
        %2941 = vmatprep.subr.mxu0 0.0
        %2942 = vmatpush1.msra.mxu0 %v2452
        %2943 = vmatprep.subr.mxu0 0.0
        %2944 = vmatpush1.msra.mxu0 %v2453
        %2945 = vmatprep.subr.mxu0 0.0
        %2946 = vmatpush1.msra.mxu0 %v2454
        %2947 = vmatprep.subr.mxu0 0.0
        %2948 = vmatpush1.msra.mxu0 %v2455
        %2949 = vmatprep.subr.mxu0 0.0
        %2950 = vmatpush1.msra.mxu0 %v2456
        %2951 = vmatprep.subr.mxu0 0.0
        %2952 = vmatpush1.msra.mxu0 %v2457
        %2953 = vmatprep.subr.mxu0 0.0
        %2954 = vmatpush1.msra.mxu0 %v2458
        %2955 = vmatprep.subr.mxu0 0.0
        %2956 = vmatpush1.msra.mxu0 %v2459
        %2957 = vmatprep.subr.mxu0 0.0
        %2958 = vmatpush1.msra.mxu0 %v2460
        %2959 = vmatprep.subr.mxu0 0.0
        %2960 = vmatpush1.msra.mxu0 %v2461
        %2961 = vmatprep.subr.mxu0 0.0
        %2962 = vmatpush1.msra.mxu0 %v2462
        %2963 = vmatprep.subr.mxu0 0.0
        %2964 = vmatpush1.msra.mxu0 %v2463
        %2965 = vmatprep.subr.mxu0 0.0
        %2966 = vmatpush1.msra.mxu0 %v2464
        %2967 = vmatprep.subr.mxu0 0.0
        %2968 = vmatpush1.msra.mxu0 %v2465
        %2969 = vmatprep.subr.mxu0 0.0
        %2970 = vmatpush1.msra.mxu0 %v2466
        %2971 = vmatprep.subr.mxu0 0.0
        %2972 = vmatpush1.msra.mxu0 %v2467
        %2973 = vmatprep.subr.mxu0 0.0
        %2974 = vmatpush1.msra.mxu0 %v2468
        %2975 = vmatprep.subr.mxu0 0.0
        %2976 = vmatpush1.msra.mxu0 %v2469
        %2977 = vmatprep.subr.mxu0 0.0
        %2978 = vmatpush1.msra.mxu0 %v2470
        %2979 = vmatprep.subr.mxu0 0.0
        %2980 = vmatpush1.msra.mxu0 %v2471
        %2981 = vmatprep.subr.mxu0 0.0
        %2982 = vmatpush1.msra.mxu0 %v2472
        %2983 = vmatprep.subr.mxu0 0.0
        %2984 = vmatpush1.msra.mxu0 %v2473
        %2985 = vmatprep.subr.mxu0 0.0
        %2986 = vmatpush1.msra.mxu0 %v2474
        %2987 = vmatprep.subr.mxu0 0.0
        %2988 = vmatpush1.msra.mxu0 %v2475
        %2989 = vmatprep.subr.mxu0 0.0
        %2990 = vmatpush1.msra.mxu0 %v2476
        %2991 = vmatprep.subr.mxu0 0.0
        %2992 = vmatpush1.msra.mxu0 %v2477
        %2993 = vmatprep.subr.mxu0 0.0
        %2994 = vmatpush1.msra.mxu0 %v2478
        %2995 = vmatprep.subr.mxu0 0.0
        %2996 = vmatpush1.msra.mxu0 %v2479
        %2997 = vmatprep.subr.mxu0 0.0
        %2998 = vmatpush1.msra.mxu0 %v2480
        %2999 = vmatprep.subr.mxu0 0.0
        %3000 = vmatpush1.msra.mxu0 %v2481
        %3001 = vmatprep.subr.mxu0 0.0
        %3002 = vmatpush1.msra.mxu0 %v2482
        %3003 = vmatprep.mubr.f32.mxu0 %v2436
        %3004 = vmatmul.mubr.f32.gmra.mrb[0].mxu0 %v2435
        %v3005 = vpop.f32.mrb[0].mxu0
        %v3006 = vadd.f32 %v2909, %v3005
        %v3007 = vpop.f32.mrb[0].mxu0
        %3008 = vmatprep.mubr.f32.mxu0 %v2440
        %3009 = vmatmul.mubr.f32.gmra.mrb[0].mxu0 %v2439
        %v3010 = vpop.f32.mrb[0].mxu0
        %v3011 = vadd.f32 %v2914, %v3010
        %v3012 = vpop.f32.mrb[0].mxu0
        %3013 = vmatprep.mubr.f32.mxu0 %v2444
        %3014 = vmatmul.mubr.f32.gmra.mrb[0].mxu0 %v2443
        %v3015 = vpop.f32.mrb[0].mxu0
        %v3016 = vadd.f32 %v2919, %v3015
        %v3017 = vpop.f32.mrb[0].mxu0
        %3018 = vmatprep.mubr.f32.mxu0 %v2448
        %3019 = vmatmul.mubr.f32.gmra.mrb[0].mxu0 %v2447
        %v3020 = vpop.f32.mrb[0].mxu0
        %v3021 = vadd.f32 %v2924, %v3020
        %v3022 = vpop.f32.mrb[0].mxu0
        %3023 = vdwg.mxu0
        %3024 = vmatprep.subr.mxu0 0.0
        %3025 = vmatpush1.msra.mxu0 %v2483
        %3026 = vmatprep.subr.mxu0 0.0
        %3027 = vmatpush1.msra.mxu0 %v2484
        %3028 = vmatprep.subr.mxu0 0.0
        %3029 = vmatpush1.msra.mxu0 %v2485
        %3030 = vmatprep.subr.mxu0 0.0
        %3031 = vmatpush1.msra.mxu0 %v2486
        %3032 = vmatprep.subr.mxu0 0.0
        %3033 = vmatpush1.msra.mxu0 %v2487
        %3034 = vmatprep.subr.mxu0 0.0
        %3035 = vmatpush1.msra.mxu0 %v2488
        %3036 = vmatprep.subr.mxu0 0.0
        %3037 = vmatpush1.msra.mxu0 %v2489
        %3038 = vmatprep.subr.mxu0 0.0
        %3039 = vmatpush1.msra.mxu0 %v2490
        %3040 = vmatprep.subr.mxu0 0.0
        %3041 = vmatpush1.msra.mxu0 %v2491
        %3042 = vmatprep.subr.mxu0 0.0
        %3043 = vmatpush1.msra.mxu0 %v2492
        %3044 = vmatprep.subr.mxu0 0.0
        %3045 = vmatpush1.msra.mxu0 %v2493
        %3046 = vmatprep.subr.mxu0 0.0
        %3047 = vmatpush1.msra.mxu0 %v2494
        %3048 = vmatprep.subr.mxu0 0.0
        %3049 = vmatpush1.msra.mxu0 %v2495
        %3050 = vmatprep.subr.mxu0 0.0
        %3051 = vmatpush1.msra.mxu0 %v2496
        %3052 = vmatprep.subr.mxu0 0.0
        %3053 = vmatpush1.msra.mxu0 %v2497
        %3054 = vmatprep.subr.mxu0 0.0
        %3055 = vmatpush1.msra.mxu0 %v2498
        %3056 = vmatprep.subr.mxu0 0.0
        %3057 = vmatpush1.msra.mxu0 %v2499
        %3058 = vmatprep.subr.mxu0 0.0
        %3059 = vmatpush1.msra.mxu0 %v2500
        %3060 = vmatprep.subr.mxu0 0.0
        %3061 = vmatpush1.msra.mxu0 0.0
        %3062 = vmatprep.subr.mxu0 0.0
        %3063 = vmatpush1.msra.mxu0 0.0
        %3064 = vmatprep.subr.mxu0 0.0
        %3065 = vmatpush1.msra.mxu0 0.0
        %3066 = vmatprep.subr.mxu0 0.0
        %3067 = vmatpush1.msra.mxu0 0.0
        %3068 = vmatprep.subr.mxu0 0.0
        %3069 = vmatpush1.msra.mxu0 0.0
        %3070 = vmatprep.subr.mxu0 0.0
        %3071 = vmatpush1.msra.mxu0 0.0
        %3072 = vmatprep.subr.mxu0 0.0
        %3073 = vmatpush1.msra.mxu0 0.0
        %3074 = vmatprep.subr.mxu0 0.0
        %3075 = vmatpush1.msra.mxu0 0.0
        %3076 = vmatprep.subr.mxu0 0.0
        %3077 = vmatpush1.msra.mxu0 0.0
        %3078 = vmatprep.subr.mxu0 0.0
        %3079 = vmatpush1.msra.mxu0 0.0
        %3080 = vmatprep.subr.mxu0 0.0
        %3081 = vmatpush1.msra.mxu0 0.0
        %3082 = vmatprep.subr.mxu0 0.0
        %3083 = vmatpush1.msra.mxu0 0.0
        %3084 = vmatprep.subr.mxu0 0.0
        %3085 = vmatpush1.msra.mxu0 0.0
        %3086 = vmatprep.subr.mxu0 0.0
        %3087 = vmatpush1.msra.mxu0 0.0
        %3088 = vmatprep.mubr.f32.mxu0 %v2928
        %3089 = vmatmul.mubr.f32.gmra.mrb[0].mxu0 %v2437
        %v3090 = vpop.f32.mrb[0].mxu0
        %v3091 = vadd.f32 %v3006, %v3090
        %v3092 = vpop.f32.mrb[0].mxu0
        %3093 = vmatprep.mubr.f32.mxu0 %v2931
        %3094 = vmatmul.mubr.f32.gmra.mrb[0].mxu0 %v2441
        %v3095 = vpop.f32.mrb[0].mxu0
        %v3096 = vadd.f32 %v3011, %v3095
        %v3097 = vpop.f32.mrb[0].mxu0
        %3098 = vmatprep.mubr.f32.mxu0 %v2934
        %3099 = vmatmul.mubr.f32.gmra.mrb[0].mxu0 %v2445
        %v3100 = vpop.f32.mrb[0].mxu0
        %v3101 = vadd.f32 %v3016, %v3100
        %v3102 = vpop.f32.mrb[0].mxu0
        %3103 = vmatprep.mubr.f32.mxu0 %v2937
        %3104 = vmatmul.mubr.f32.gmra.mrb[0].mxu0 %v2449
        %v3105 = vpop.f32.mrb[0].mxu0
        %v3106 = vadd.f32 %v3021, %v3105
        %v3107 = vpop.f32.mrb[0].mxu0
        %3108 = vdwg.mxu0
        %v3109 = vld [vmem:[#allocation4 + $0x480] sm:$0xff]
        %v3110 = vld [vmem:[#allocation4 + $0x488] sm:$0xff]
        %v3111 = vld [vmem:[#allocation4 + $0x490] sm:$0xff]
        %v3112 = vld [vmem:[#allocation4 + $0x498] sm:$0xff]
        %v3113 = vld [vmem:[#allocation4 + $0x4a0] sm:$0xff]
        %v3114 = vld [vmem:[#allocation4 + $0x4a8] sm:$0xff]
        %v3115 = vld [vmem:[#allocation4 + $0x4b0] sm:$0xff]
        %v3116 = vld [vmem:[#allocation4 + $0x4b8] sm:$0xff]
        %v3117 = vld [vmem:[#allocation4 + $0x4c0] sm:$0xff]
        %v3118 = vld [vmem:[#allocation4 + $0x4c8] sm:$0xff]
        %v3120 = vsel %vm456, %v3091, 0
        %v3123 = vsel %vm456, %v3096, 0
        %v3126 = vsel %vm456, %v3101, 0
        %v3129 = vsel %vm456, %v3106, 0
        %3131 = vmatprep.subr.mxu0 0.0
        %3132 = vmatpush1.msra.mxu0 %v3109
        %3133 = vmatprep.subr.mxu0 0.0
        %3134 = vmatpush1.msra.mxu0 %v3110
        %3135 = vmatprep.subr.mxu0 0.0
        %3136 = vmatpush1.msra.mxu0 %v3111
        %3137 = vmatprep.subr.mxu0 0.0
        %3138 = vmatpush1.msra.mxu0 %v3112
        %3139 = vmatprep.subr.mxu0 0.0
        %3140 = vmatpush1.msra.mxu0 %v3113
        %3141 = vmatprep.subr.mxu0 0.0
        %3142 = vmatpush1.msra.mxu0 %v3114
        %3143 = vmatprep.subr.mxu0 0.0
        %3144 = vmatpush1.msra.mxu0 %v3115
        %3145 = vmatprep.subr.mxu0 0.0
        %3146 = vmatpush1.msra.mxu0 %v3116
        %3147 = vmatprep.subr.mxu0 0.0
        %3148 = vmatpush1.msra.mxu0 %v3117
        %3149 = vmatprep.subr.mxu0 0.0
        %3150 = vmatpush1.msra.mxu0 %v3118
        %3151 = vmatprep.subr.mxu0 0.0
        %3152 = vmatpush1.msra.mxu0 0.0
        %3153 = vmatprep.subr.mxu0 0.0
        %3154 = vmatpush1.msra.mxu0 0.0
        %3155 = vmatprep.subr.mxu0 0.0
        %3156 = vmatpush1.msra.mxu0 0.0
        %3157 = vmatprep.subr.mxu0 0.0
        %3158 = vmatpush1.msra.mxu0 0.0
        %3159 = vmatprep.subr.mxu0 0.0
        %3160 = vmatpush1.msra.mxu0 0.0
        %3161 = vmatprep.subr.mxu0 0.0
        %3162 = vmatpush1.msra.mxu0 0.0
        %3163 = vmatprep.subr.mxu0 0.0
        %3164 = vmatpush1.msra.mxu0 0.0
        %3165 = vmatprep.subr.mxu0 0.0
        %3166 = vmatpush1.msra.mxu0 0.0
        %3167 = vmatprep.subr.mxu0 0.0
        %3168 = vmatpush1.msra.mxu0 0.0
        %3169 = vmatprep.subr.mxu0 0.0
        %3170 = vmatpush1.msra.mxu0 0.0
        %3171 = vmatprep.subr.mxu0 0.0
        %3172 = vmatpush1.msra.mxu0 0.0
        %3173 = vmatprep.subr.mxu0 0.0
        %3174 = vmatpush1.msra.mxu0 0.0
        %3175 = vmatprep.subr.mxu0 0.0
        %3176 = vmatpush1.msra.mxu0 0.0
        %3177 = vmatprep.subr.mxu0 0.0
        %3178 = vmatpush1.msra.mxu0 0.0
        %3179 = vmatprep.subr.mxu0 0.0
        %3180 = vmatpush1.msra.mxu0 0.0
        %3181 = vmatprep.subr.mxu0 0.0
        %3182 = vmatpush1.msra.mxu0 0.0
        %3183 = vmatprep.subr.mxu0 0.0
        %3184 = vmatpush1.msra.mxu0 0.0
        %3185 = vmatprep.subr.mxu0 0.0
        %3186 = vmatpush1.msra.mxu0 0.0
        %3187 = vmatprep.subr.mxu0 0.0
        %3188 = vmatpush1.msra.mxu0 0.0
        %3189 = vmatprep.subr.mxu0 0.0
        %3190 = vmatpush1.msra.mxu0 0.0
        %3191 = vmatprep.subr.mxu0 0.0
        %3192 = vmatpush1.msra.mxu0 0.0
        %3193 = vmatprep.subr.mxu0 0.0
        %3194 = vmatpush1.msra.mxu0 0.0
        %3195 = vmatprep.mubr.f32.mxu0 0.0
        %3196 = vmatmul.mubr.f32.gmra.mrb[0].mxu0 %v3120
        %v3197 = vpop.f32.mrb[0].mxu0
        %v3198 = vadd.f32 0.0, %v3197
        %v3199 = vpop.f32.mrb[0].mxu0
        %3200 = vmatprep.mubr.f32.mxu0 0.0
        %3201 = vmatmul.mubr.f32.gmra.mrb[0].mxu0 %v3123
        %v3202 = vpop.f32.mrb[0].mxu0
        %v3203 = vadd.f32 0.0, %v3202
        %v3204 = vpop.f32.mrb[0].mxu0
        %3205 = vmatprep.mubr.f32.mxu0 0.0
        %3206 = vmatmul.mubr.f32.gmra.mrb[0].mxu0 %v3126
        %v3207 = vpop.f32.mrb[0].mxu0
        %v3208 = vadd.f32 0.0, %v3207
        %v3209 = vpop.f32.mrb[0].mxu0
        %3210 = vmatprep.mubr.f32.mxu0 0.0
        %3211 = vmatmul.mubr.f32.gmra.mrb[0].mxu0 %v3129
        %v3212 = vpop.f32.mrb[0].mxu0
        %v3213 = vadd.f32 0.0, %v3212
        %v3214 = vpop.f32.mrb[0].mxu0
        %3215 = vdwg.mxu0
        %v3216 = vadd.f32 %v437, %v3198
        %v3217 = vadd.f32 %v438, %v3203
        %v3218 = vadd.f32 %v439, %v3208
        %v3219 = vadd.f32 %v440, %v3213
        %v3220 = vld [vmem:[#allocation4 + $0x4d0] sm:$0x1]
        %v3221 = vlaneseq
        %v3222 = vshrl.u32 %v3221, 7
        %v3223 = vsub.s32 0, %v3222
        %v3224 = vrot.slane %v3220, %v3223
        %v3225 = vadd.f32 %v3216, %v3224
        %v3226 = vadd.f32 %v3217, %v3224
        %v3227 = vadd.f32 %v3218, %v3224
        %v3228 = vadd.f32 %v3219, %v3224
        %v3229 = vld [vmem:[%s3] sm:$0xff]
        %v3230 = vld [vmem:[%s3 + $0x8] sm:$0xff]
        %v3231 = vld [vmem:[%s3 + $0x10] sm:$0xff]
        %v3232 = vld [vmem:[%s3 + $0x18] sm:$0xff]
        %v3233 = vld [vmem:[%s3 + $0x20] sm:$0xff]
        %v3234 = vld [vmem:[%s3 + $0x28] sm:$0xff]
        %v3235 = vld [vmem:[%s3 + $0x30] sm:$0xff]
        %v3236 = vld [vmem:[%s3 + $0x38] sm:$0xff]
        %v3237 = vld [vmem:[%s3 + $0x40] sm:$0xff]
        %v3238 = vld [vmem:[%s3 + $0x48] sm:$0xff]
        %v3239 = vld [vmem:[%s3 + $0x50] sm:$0xff]
        %v3240 = vld [vmem:[%s3 + $0x58] sm:$0xff]
        %v3241 = vld [vmem:[%s3 + $0x60] sm:$0xff]
        %v3242 = vld [vmem:[%s3 + $0x68] sm:$0xff]
        %v3243 = vld [vmem:[%s3 + $0x70] sm:$0xff]
        %v3244 = vld [vmem:[%s3 + $0x78] sm:$0xff]
        %v3245 = vld [vmem:[%s3 + $0x80] sm:$0xff]
        %v3246 = vld [vmem:[%s3 + $0x88] sm:$0xff]
        %v3247 = vld [vmem:[%s3 + $0x90] sm:$0xff]
        %v3248 = vld [vmem:[%s3 + $0x98] sm:$0xff]
        %s3249 = scalar_lea.vmem %s3, 160
        %v3250 = vld [vmem:[%s3249] ss:$8 sm:$0x3]
        %v3252 = vlaneseq
        %v3253 = vshrl.u32 %v3252, 7
        %v3254 = vsub.s32 0, %v3253
        %v3255 = vrot.slane %v3250, %v3254
        %v3256 = vlaneseq
        %v3257 = vshrl.u32 %v3256, 7
        %v3258 = vsub.s32 1, %v3257
        %v3259 = vrot.slane %v3250, %v3258
        %v3263 = vsel %vm456, %v3225, 0
        %v3266 = vsel %vm456, %v3226, 0
        %v3269 = vsel %vm456, %v3227, 0
        %v3272 = vsel %vm456, %v3228, 0
        %3274 = vmatprep.subr.mxu0 %v3230
        %3275 = vmatpush1.msra.mxu0 %v3229
        %3276 = vmatprep.subr.mxu0 %v3232
        %3277 = vmatpush1.msra.mxu0 %v3231
        %3278 = vmatprep.subr.mxu0 %v3234
        %3279 = vmatpush1.msra.mxu0 %v3233
        %3280 = vmatprep.subr.mxu0 %v3236
        %3281 = vmatpush1.msra.mxu0 %v3235
        %3282 = vmatprep.subr.mxu0 %v3238
        %3283 = vmatpush1.msra.mxu0 %v3237
        %3284 = vmatprep.subr.mxu0 %v3240
        %3285 = vmatpush1.msra.mxu0 %v3239
        %3286 = vmatprep.subr.mxu0 %v3242
        %3287 = vmatpush1.msra.mxu0 %v3241
        %3288 = vmatprep.subr.mxu0 %v3244
        %3289 = vmatpush1.msra.mxu0 %v3243
        %3290 = vmatprep.subr.mxu0 %v3246
        %3291 = vmatpush1.msra.mxu0 %v3245
        %3292 = vmatprep.subr.mxu0 %v3248
        %3293 = vmatpush1.msra.mxu0 %v3247
        %3294 = vmatprep.subr.mxu0 0.0
        %3295 = vmatpush1.msra.mxu0 0.0
        %3296 = vmatprep.subr.mxu0 0.0
        %3297 = vmatpush1.msra.mxu0 0.0
        %3298 = vmatprep.subr.mxu0 0.0
        %3299 = vmatpush1.msra.mxu0 0.0
        %3300 = vmatprep.subr.mxu0 0.0
        %3301 = vmatpush1.msra.mxu0 0.0
        %3302 = vmatprep.subr.mxu0 0.0
        %3303 = vmatpush1.msra.mxu0 0.0
        %3304 = vmatprep.subr.mxu0 0.0
        %3305 = vmatpush1.msra.mxu0 0.0
        %3306 = vmatprep.subr.mxu0 0.0
        %3307 = vmatpush1.msra.mxu0 0.0
        %3308 = vmatprep.subr.mxu0 0.0
        %3309 = vmatpush1.msra.mxu0 0.0
        %3310 = vmatprep.subr.mxu0 0.0
        %3311 = vmatpush1.msra.mxu0 0.0
        %3312 = vmatprep.subr.mxu0 0.0
        %3313 = vmatpush1.msra.mxu0 0.0
        %3314 = vmatprep.subr.mxu0 0.0
        %3315 = vmatpush1.msra.mxu0 0.0
        %3316 = vmatprep.subr.mxu0 0.0
        %3317 = vmatpush1.msra.mxu0 0.0
        %3318 = vmatprep.subr.mxu0 0.0
        %3319 = vmatpush1.msra.mxu0 0.0
        %3320 = vmatprep.subr.mxu0 0.0
        %3321 = vmatpush1.msra.mxu0 0.0
        %3322 = vmatprep.subr.mxu0 0.0
        %3323 = vmatpush1.msra.mxu0 0.0
        %3324 = vmatprep.subr.mxu0 0.0
        %3325 = vmatpush1.msra.mxu0 0.0
        %3326 = vmatprep.subr.mxu0 0.0
        %3327 = vmatpush1.msra.mxu0 0.0
        %3328 = vmatprep.subr.mxu0 0.0
        %3329 = vmatpush1.msra.mxu0 0.0
        %3330 = vmatprep.subr.mxu0 0.0
        %3331 = vmatpush1.msra.mxu0 0.0
        %3332 = vmatprep.subr.mxu0 0.0
        %3333 = vmatpush1.msra.mxu0 0.0
        %3334 = vmatprep.subr.mxu0 0.0
        %3335 = vmatpush1.msra.mxu0 0.0
        %3336 = vmatprep.subr.mxu0 0.0
        %3337 = vmatpush1.msra.mxu0 0.0
        %3338 = vmatprep.mubr.f32.mxu0 0.0
        %3339 = vmatmul.mubr.f32.gmra.mrb[0].mxu0 %v3263
        %v3340 = vpop.f32.mrb[0].mxu0
        %v3341 = vadd.f32 %v3255, %v3340
        %v3342 = vpop.f32.mrb[0].mxu0
        %v3343 = vadd.f32 %v3259, %v3342
        %3344 = vmatprep.mubr.f32.mxu0 0.0
        %3345 = vmatmul.mubr.f32.gmra.mrb[0].mxu0 %v3266
        %v3346 = vpop.f32.mrb[0].mxu0
        %v3347 = vadd.f32 %v3255, %v3346
        %v3348 = vpop.f32.mrb[0].mxu0
        %v3349 = vadd.f32 %v3259, %v3348
        %3350 = vmatprep.mubr.f32.mxu0 0.0
        %3351 = vmatmul.mubr.f32.gmra.mrb[0].mxu0 %v3269
        %v3352 = vpop.f32.mrb[0].mxu0
        %v3353 = vadd.f32 %v3255, %v3352
        %v3354 = vpop.f32.mrb[0].mxu0
        %v3355 = vadd.f32 %v3259, %v3354
        %3356 = vmatprep.mubr.f32.mxu0 0.0
        %3357 = vmatmul.mubr.f32.gmra.mrb[0].mxu0 %v3272
        %v3358 = vpop.f32.mrb[0].mxu0
        %v3359 = vadd.f32 %v3255, %v3358
        %v3360 = vpop.f32.mrb[0].mxu0
        %v3361 = vadd.f32 %v3259, %v3360
        %3362 = vdwg.mxu0
        %v3363 = vld [vmem:[#allocation4 + $0x4d8] sm:$0xff]
        %v3364 = vld [vmem:[#allocation4 + $0x4e0] sm:$0xff]
        %v3365 = vld [vmem:[#allocation4 + $0x4e8] sm:$0xff]
        %v3366 = vld [vmem:[#allocation4 + $0x4f0] sm:$0xff]
        %v3367 = vld [vmem:[#allocation4 + $0x4f8] sm:$0xff]
        %v3368 = vld [vmem:[#allocation4 + $0x500] sm:$0xff]
        %v3369 = vld [vmem:[#allocation4 + $0x508] sm:$0xff]
        %v3370 = vld [vmem:[#allocation4 + $0x510] sm:$0xff]
        %v3371 = vld [vmem:[#allocation4 + $0x518] sm:$0xff]
        %v3372 = vld [vmem:[#allocation4 + $0x520] sm:$0xff]
        %v3373 = vld [vmem:[#allocation4 + $0x528] sm:$0xff]
        %v3374 = vld [vmem:[#allocation4 + $0x530] sm:$0xff]
        %v3375 = vld [vmem:[#allocation4 + $0x538] sm:$0xff]
        %v3376 = vld [vmem:[#allocation4 + $0x540] sm:$0xff]
        %v3377 = vld [vmem:[#allocation4 + $0x548] sm:$0xff]
        %v3378 = vld [vmem:[#allocation4 + $0x550] sm:$0xff]
        %v3379 = vld [vmem:[#allocation4 + $0x558] sm:$0xff]
        %v3380 = vld [vmem:[#allocation4 + $0x560] sm:$0xff]
        %v3381 = vld [vmem:[#allocation4 + $0x568] sm:$0xff]
        %v3382 = vld [vmem:[#allocation4 + $0x570] sm:$0xff]
        %vm3383 = vcmask 261120
        %v3385 = vsel %vm3383, %v3343, 0
        %v3388 = vsel %vm3383, %v3349, 0
        %v3391 = vsel %vm3383, %v3355, 0
        %v3394 = vsel %vm3383, %v3361, 0
        %3396 = vmatprep.subr.mxu0 0.0
        %3397 = vmatpush1.msra.mxu0 %v3363
        %3398 = vmatprep.subr.mxu0 0.0
        %3399 = vmatpush1.msra.mxu0 %v3364
        %3400 = vmatprep.subr.mxu0 0.0
        %3401 = vmatpush1.msra.mxu0 %v3365
        %3402 = vmatprep.subr.mxu0 0.0
        %3403 = vmatpush1.msra.mxu0 %v3366
        %3404 = vmatprep.subr.mxu0 0.0
        %3405 = vmatpush1.msra.mxu0 %v3367
        %3406 = vmatprep.subr.mxu0 0.0
        %3407 = vmatpush1.msra.mxu0 %v3368
        %3408 = vmatprep.subr.mxu0 0.0
        %3409 = vmatpush1.msra.mxu0 %v3369
        %3410 = vmatprep.subr.mxu0 0.0
        %3411 = vmatpush1.msra.mxu0 %v3370
        %3412 = vmatprep.subr.mxu0 0.0
        %3413 = vmatpush1.msra.mxu0 %v3371
        %3414 = vmatprep.subr.mxu0 0.0
        %3415 = vmatpush1.msra.mxu0 %v3372
        %3416 = vmatprep.subr.mxu0 0.0
        %3417 = vmatpush1.msra.mxu0 %v3373
        %3418 = vmatprep.subr.mxu0 0.0
        %3419 = vmatpush1.msra.mxu0 %v3374
        %3420 = vmatprep.subr.mxu0 0.0
        %3421 = vmatpush1.msra.mxu0 %v3375
        %3422 = vmatprep.subr.mxu0 0.0
        %3423 = vmatpush1.msra.mxu0 %v3376
        %3424 = vmatprep.subr.mxu0 0.0
        %3425 = vmatpush1.msra.mxu0 %v3377
        %3426 = vmatprep.subr.mxu0 0.0
        %3427 = vmatpush1.msra.mxu0 %v3378
        %3428 = vmatprep.subr.mxu0 0.0
        %3429 = vmatpush1.msra.mxu0 %v3379
        %3430 = vmatprep.subr.mxu0 0.0
        %3431 = vmatpush1.msra.mxu0 %v3380
        %3432 = vmatprep.subr.mxu0 0.0
        %3433 = vmatpush1.msra.mxu0 %v3381
        %3434 = vmatprep.subr.mxu0 0.0
        %3435 = vmatpush1.msra.mxu0 %v3382
        %3436 = vmatprep.subr.mxu0 0.0
        %3437 = vmatpush1.msra.mxu0 0.0
        %3438 = vmatprep.subr.mxu0 0.0
        %3439 = vmatpush1.msra.mxu0 0.0
        %3440 = vmatprep.subr.mxu0 0.0
        %3441 = vmatpush1.msra.mxu0 0.0
        %3442 = vmatprep.subr.mxu0 0.0
        %3443 = vmatpush1.msra.mxu0 0.0
        %3444 = vmatprep.subr.mxu0 0.0
        %3445 = vmatpush1.msra.mxu0 0.0
        %3446 = vmatprep.subr.mxu0 0.0
        %3447 = vmatpush1.msra.mxu0 0.0
        %3448 = vmatprep.subr.mxu0 0.0
        %3449 = vmatpush1.msra.mxu0 0.0
        %3450 = vmatprep.subr.mxu0 0.0
        %3451 = vmatpush1.msra.mxu0 0.0
        %3452 = vmatprep.subr.mxu0 0.0
        %3453 = vmatpush1.msra.mxu0 0.0
        %3454 = vmatprep.subr.mxu0 0.0
        %3455 = vmatpush1.msra.mxu0 0.0
        %3456 = vmatprep.subr.mxu0 0.0
        %3457 = vmatpush1.msra.mxu0 0.0
        %3458 = vmatprep.subr.mxu0 0.0
        %3459 = vmatpush1.msra.mxu0 0.0
        %3460 = vmatprep.mubr.f32.mxu0 %v3385
        %3461 = vmatmul.mubr.f32.gmra.mrb[0].mxu0 %v3341
        %v3462 = vpop.f32.mrb[0].mxu0
        %v3463 = vadd.f32 0.0, %v3462
        %v3464 = vpop.f32.mrb[0].mxu0
        %3465 = vmatprep.mubr.f32.mxu0 %v3388
        %3466 = vmatmul.mubr.f32.gmra.mrb[0].mxu0 %v3347
        %v3467 = vpop.f32.mrb[0].mxu0
        %v3468 = vadd.f32 0.0, %v3467
        %v3469 = vpop.f32.mrb[0].mxu0
        %3470 = vmatprep.mubr.f32.mxu0 %v3391
        %3471 = vmatmul.mubr.f32.gmra.mrb[0].mxu0 %v3353
        %v3472 = vpop.f32.mrb[0].mxu0
        %v3473 = vadd.f32 0.0, %v3472
        %v3474 = vpop.f32.mrb[0].mxu0
        %3475 = vmatprep.mubr.f32.mxu0 %v3394
        %3476 = vmatmul.mubr.f32.gmra.mrb[0].mxu0 %v3359
        %v3477 = vpop.f32.mrb[0].mxu0
        %v3478 = vadd.f32 0.0, %v3477
        %v3479 = vpop.f32.mrb[0].mxu0
        %3480 = vdwg.mxu0
        %v3481 = vadd.f32 %v3225, %v3463
        %v3482 = vadd.f32 %v3226, %v3468
        %v3483 = vadd.f32 %v3227, %v3473
        %v3484 = vadd.f32 %v3228, %v3478
        %v3485 = vld [vmem:[#allocation4 + $0x578] sm:$0x1]
        %v3486 = vlaneseq
        %v3487 = vshrl.u32 %v3486, 7
        %v3488 = vsub.s32 0, %v3487
        %v3489 = vrot.slane %v3485, %v3488
        %v3490 = vadd.f32 %v3481, %v3489
        %v3491 = vadd.f32 %v3482, %v3489
        %v3492 = vadd.f32 %v3483, %v3489
        %v3493 = vadd.f32 %v3484, %v3489
        %v3494 = vld [vmem:[#allocation6 + $0x2c8] sm:$0xff]
        %v3495 = vld [vmem:[#allocation6 + $0x2d0] sm:$0x1]
        %v3496 = vlaneseq
        %v3497 = vshrl.u32 %v3496, 7
        %v3498 = vsub.s32 0, %v3497
        %v3499 = vrot.slane %v3495, %v3498
        %vm3500 = vcmask 64512
        %v3502 = vsel %vm3500, %v325, 0
        %v3505 = vsel %vm3500, %v326, 0
        %v3508 = vsel %vm3500, %v327, 0
        %v3511 = vsel %vm3500, %v328, 0
        %3513 = vmatprep.subr.mxu0 0.0
        %3514 = vmatpush1.msra.mxu0 %v3494
        %3515 = vmatprep.subr.mxu0 0.0
        %3516 = vmatpush1.msra.mxu0 0.0
        %3517 = vmatprep.subr.mxu0 0.0
        %3518 = vmatpush1.msra.mxu0 0.0
        %3519 = vmatprep.subr.mxu0 0.0
        %3520 = vmatpush1.msra.mxu0 0.0
        %3521 = vmatprep.subr.mxu0 0.0
        %3522 = vmatpush1.msra.mxu0 0.0
        %3523 = vmatprep.subr.mxu0 0.0
        %3524 = vmatpush1.msra.mxu0 0.0
        %3525 = vmatprep.subr.mxu0 0.0
        %3526 = vmatpush1.msra.mxu0 0.0
        %3527 = vmatprep.subr.mxu0 0.0
        %3528 = vmatpush1.msra.mxu0 0.0
        %3529 = vmatprep.subr.mxu0 0.0
        %3530 = vmatpush1.msra.mxu0 0.0
        %3531 = vmatprep.subr.mxu0 0.0
        %3532 = vmatpush1.msra.mxu0 0.0
        %3533 = vmatprep.subr.mxu0 0.0
        %3534 = vmatpush1.msra.mxu0 0.0
        %3535 = vmatprep.subr.mxu0 0.0
        %3536 = vmatpush1.msra.mxu0 0.0
        %3537 = vmatprep.subr.mxu0 0.0
        %3538 = vmatpush1.msra.mxu0 0.0
        %3539 = vmatprep.subr.mxu0 0.0
        %3540 = vmatpush1.msra.mxu0 0.0
        %3541 = vmatprep.subr.mxu0 0.0
        %3542 = vmatpush1.msra.mxu0 0.0
        %3543 = vmatprep.subr.mxu0 0.0
        %3544 = vmatpush1.msra.mxu0 0.0
        %3545 = vmatprep.subr.mxu0 0.0
        %3546 = vmatpush1.msra.mxu0 0.0
        %3547 = vmatprep.subr.mxu0 0.0
        %3548 = vmatpush1.msra.mxu0 0.0
        %3549 = vmatprep.subr.mxu0 0.0
        %3550 = vmatpush1.msra.mxu0 0.0
        %3551 = vmatprep.subr.mxu0 0.0
        %3552 = vmatpush1.msra.mxu0 0.0
        %3553 = vmatprep.subr.mxu0 0.0
        %3554 = vmatpush1.msra.mxu0 0.0
        %3555 = vmatprep.subr.mxu0 0.0
        %3556 = vmatpush1.msra.mxu0 0.0
        %3557 = vmatprep.subr.mxu0 0.0
        %3558 = vmatpush1.msra.mxu0 0.0
        %3559 = vmatprep.subr.mxu0 0.0
        %3560 = vmatpush1.msra.mxu0 0.0
        %3561 = vmatprep.subr.mxu0 0.0
        %3562 = vmatpush1.msra.mxu0 0.0
        %3563 = vmatprep.subr.mxu0 0.0
        %3564 = vmatpush1.msra.mxu0 0.0
        %3565 = vmatprep.subr.mxu0 0.0
        %3566 = vmatpush1.msra.mxu0 0.0
        %3567 = vmatprep.subr.mxu0 0.0
        %3568 = vmatpush1.msra.mxu0 0.0
        %3569 = vmatprep.subr.mxu0 0.0
        %3570 = vmatpush1.msra.mxu0 0.0
        %3571 = vmatprep.subr.mxu0 0.0
        %3572 = vmatpush1.msra.mxu0 0.0
        %3573 = vmatprep.subr.mxu0 0.0
        %3574 = vmatpush1.msra.mxu0 0.0
        %3575 = vmatprep.subr.mxu0 0.0
        %3576 = vmatpush1.msra.mxu0 0.0
        %3577 = vmatprep.mubr.f32.mxu0 0.0
        %3578 = vmatmul.mubr.f32.gmra.mrb[0].mxu0 %v3502
        %v3579 = vpop.f32.mrb[0].mxu0
        %v3580 = vadd.f32 %v3499, %v3579
        %v3581 = vpop.f32.mrb[0].mxu0
        %3582 = vmatprep.mubr.f32.mxu0 0.0
        %3583 = vmatmul.mubr.f32.gmra.mrb[0].mxu0 %v3505
        %v3584 = vpop.f32.mrb[0].mxu0
        %v3585 = vadd.f32 %v3499, %v3584
        %v3586 = vpop.f32.mrb[0].mxu0
        %3587 = vmatprep.mubr.f32.mxu0 0.0
        %3588 = vmatmul.mubr.f32.gmra.mrb[0].mxu0 %v3508
        %v3589 = vpop.f32.mrb[0].mxu0
        %v3590 = vadd.f32 %v3499, %v3589
        %v3591 = vpop.f32.mrb[0].mxu0
        %3592 = vmatprep.mubr.f32.mxu0 0.0
        %3593 = vmatmul.mubr.f32.gmra.mrb[0].mxu0 %v3511
        %v3594 = vpop.f32.mrb[0].mxu0
        %v3595 = vadd.f32 %v3499, %v3594
        %v3596 = vpop.f32.mrb[0].mxu0
        %3597 = vdwg.mxu0
        %v3598 = vld [vmem:[#allocation6 + $0x2d8] sm:$0xff]
        %v3600 = vsel %vm3500, %v3580, 0
        %v3603 = vsel %vm3500, %v3585, 0
        %v3606 = vsel %vm3500, %v3590, 0
        %v3609 = vsel %vm3500, %v3595, 0
        %3611 = vmatprep.subr.mxu0 0.0
        %3612 = vmatpush1.msra.mxu0 %v3598
        %3613 = vmatprep.subr.mxu0 0.0
        %3614 = vmatpush1.msra.mxu0 0.0
        %3615 = vmatprep.subr.mxu0 0.0
        %3616 = vmatpush1.msra.mxu0 0.0
        %3617 = vmatprep.subr.mxu0 0.0
        %3618 = vmatpush1.msra.mxu0 0.0
        %3619 = vmatprep.subr.mxu0 0.0
        %3620 = vmatpush1.msra.mxu0 0.0
        %3621 = vmatprep.subr.mxu0 0.0
        %3622 = vmatpush1.msra.mxu0 0.0
        %3623 = vmatprep.subr.mxu0 0.0
        %3624 = vmatpush1.msra.mxu0 0.0
        %3625 = vmatprep.subr.mxu0 0.0
        %3626 = vmatpush1.msra.mxu0 0.0
        %3627 = vmatprep.subr.mxu0 0.0
        %3628 = vmatpush1.msra.mxu0 0.0
        %3629 = vmatprep.subr.mxu0 0.0
        %3630 = vmatpush1.msra.mxu0 0.0
        %3631 = vmatprep.subr.mxu0 0.0
        %3632 = vmatpush1.msra.mxu0 0.0
        %3633 = vmatprep.subr.mxu0 0.0
        %3634 = vmatpush1.msra.mxu0 0.0
        %3635 = vmatprep.subr.mxu0 0.0
        %3636 = vmatpush1.msra.mxu0 0.0
        %3637 = vmatprep.subr.mxu0 0.0
        %3638 = vmatpush1.msra.mxu0 0.0
        %3639 = vmatprep.subr.mxu0 0.0
        %3640 = vmatpush1.msra.mxu0 0.0
        %3641 = vmatprep.subr.mxu0 0.0
        %3642 = vmatpush1.msra.mxu0 0.0
        %3643 = vmatprep.subr.mxu0 0.0
        %3644 = vmatpush1.msra.mxu0 0.0
        %3645 = vmatprep.subr.mxu0 0.0
        %3646 = vmatpush1.msra.mxu0 0.0
        %3647 = vmatprep.subr.mxu0 0.0
        %3648 = vmatpush1.msra.mxu0 0.0
        %3649 = vmatprep.subr.mxu0 0.0
        %3650 = vmatpush1.msra.mxu0 0.0
        %3651 = vmatprep.subr.mxu0 0.0
        %3652 = vmatpush1.msra.mxu0 0.0
        %3653 = vmatprep.subr.mxu0 0.0
        %3654 = vmatpush1.msra.mxu0 0.0
        %3655 = vmatprep.subr.mxu0 0.0
        %3656 = vmatpush1.msra.mxu0 0.0
        %3657 = vmatprep.subr.mxu0 0.0
        %3658 = vmatpush1.msra.mxu0 0.0
        %3659 = vmatprep.subr.mxu0 0.0
        %3660 = vmatpush1.msra.mxu0 0.0
        %3661 = vmatprep.subr.mxu0 0.0
        %3662 = vmatpush1.msra.mxu0 0.0
        %3663 = vmatprep.subr.mxu0 0.0
        %3664 = vmatpush1.msra.mxu0 0.0
        %3665 = vmatprep.subr.mxu0 0.0
        %3666 = vmatpush1.msra.mxu0 0.0
        %3667 = vmatprep.subr.mxu0 0.0
        %3668 = vmatpush1.msra.mxu0 0.0
        %3669 = vmatprep.subr.mxu0 0.0
        %3670 = vmatpush1.msra.mxu0 0.0
        %3671 = vmatprep.subr.mxu0 0.0
        %3672 = vmatpush1.msra.mxu0 0.0
        %3673 = vmatprep.subr.mxu0 0.0
        %3674 = vmatpush1.msra.mxu0 0.0
        %3675 = vmatprep.mubr.f32.mxu0 0.0
        %3676 = vmatmul.mubr.f32.gmra.mrb[0].mxu0 %v3600
        %v3677 = vpop.f32.mrb[0].mxu0
        %v3678 = vadd.f32 0.0, %v3677
        %v3679 = vpop.f32.mrb[0].mxu0
        %3680 = vmatprep.mubr.f32.mxu0 0.0
        %3681 = vmatmul.mubr.f32.gmra.mrb[0].mxu0 %v3603
        %v3682 = vpop.f32.mrb[0].mxu0
        %v3683 = vadd.f32 0.0, %v3682
        %v3684 = vpop.f32.mrb[0].mxu0
        %3685 = vmatprep.mubr.f32.mxu0 0.0
        %3686 = vmatmul.mubr.f32.gmra.mrb[0].mxu0 %v3606
        %v3687 = vpop.f32.mrb[0].mxu0
        %v3688 = vadd.f32 0.0, %v3687
        %v3689 = vpop.f32.mrb[0].mxu0
        %3690 = vmatprep.mubr.f32.mxu0 0.0
        %3691 = vmatmul.mubr.f32.gmra.mrb[0].mxu0 %v3609
        %v3692 = vpop.f32.mrb[0].mxu0
        %v3693 = vadd.f32 0.0, %v3692
        %v3694 = vpop.f32.mrb[0].mxu0
        %3695 = vdwg.mxu0
        %v3696 = vadd.f32 %v325, %v3678
        %v3697 = vadd.f32 %v326, %v3683
        %v3698 = vadd.f32 %v327, %v3688
        %v3699 = vadd.f32 %v328, %v3693
        %v3700 = vld [vmem:[#allocation6 + $0x2e0] sm:$0x1]
        %v3701 = vlaneseq
        %v3702 = vshrl.u32 %v3701, 7
        %v3703 = vsub.s32 0, %v3702
        %v3704 = vrot.slane %v3700, %v3703
        %v3705 = vadd.f32 %v3696, %v3704
        %v3706 = vadd.f32 %v3697, %v3704
        %v3707 = vadd.f32 %v3698, %v3704
        %v3708 = vadd.f32 %v3699, %v3704
        %v3709 = vld [vmem:[#allocation6 + $0x2e8] sm:$0xff]
        %v3710 = vld [vmem:[#allocation6 + $0x2f0] sm:$0x1]
        %v3711 = vlaneseq
        %v3712 = vshrl.u32 %v3711, 7
        %v3713 = vsub.s32 0, %v3712
        %v3714 = vrot.slane %v3710, %v3713
        %v3716 = vsel %vm3500, %v3705, 0
        %v3719 = vsel %vm3500, %v3706, 0
        %v3722 = vsel %vm3500, %v3707, 0
        %v3725 = vsel %vm3500, %v3708, 0
        %3727 = vmatprep.subr.mxu0 0.0
        %3728 = vmatpush1.msra.mxu0 %v3709
        %3729 = vmatprep.subr.mxu0 0.0
        %3730 = vmatpush1.msra.mxu0 0.0
        %3731 = vmatprep.subr.mxu0 0.0
        %3732 = vmatpush1.msra.mxu0 0.0
        %3733 = vmatprep.subr.mxu0 0.0
        %3734 = vmatpush1.msra.mxu0 0.0
        %3735 = vmatprep.subr.mxu0 0.0
        %3736 = vmatpush1.msra.mxu0 0.0
        %3737 = vmatprep.subr.mxu0 0.0
        %3738 = vmatpush1.msra.mxu0 0.0
        %3739 = vmatprep.subr.mxu0 0.0
        %3740 = vmatpush1.msra.mxu0 0.0
        %3741 = vmatprep.subr.mxu0 0.0
        %3742 = vmatpush1.msra.mxu0 0.0
        %3743 = vmatprep.subr.mxu0 0.0
        %3744 = vmatpush1.msra.mxu0 0.0
        %3745 = vmatprep.subr.mxu0 0.0
        %3746 = vmatpush1.msra.mxu0 0.0
        %3747 = vmatprep.subr.mxu0 0.0
        %3748 = vmatpush1.msra.mxu0 0.0
        %3749 = vmatprep.subr.mxu0 0.0
        %3750 = vmatpush1.msra.mxu0 0.0
        %3751 = vmatprep.subr.mxu0 0.0
        %3752 = vmatpush1.msra.mxu0 0.0
        %3753 = vmatprep.subr.mxu0 0.0
        %3754 = vmatpush1.msra.mxu0 0.0
        %3755 = vmatprep.subr.mxu0 0.0
        %3756 = vmatpush1.msra.mxu0 0.0
        %3757 = vmatprep.subr.mxu0 0.0
        %3758 = vmatpush1.msra.mxu0 0.0
        %3759 = vmatprep.subr.mxu0 0.0
        %3760 = vmatpush1.msra.mxu0 0.0
        %3761 = vmatprep.subr.mxu0 0.0
        %3762 = vmatpush1.msra.mxu0 0.0
        %3763 = vmatprep.subr.mxu0 0.0
        %3764 = vmatpush1.msra.mxu0 0.0
        %3765 = vmatprep.subr.mxu0 0.0
        %3766 = vmatpush1.msra.mxu0 0.0
        %3767 = vmatprep.subr.mxu0 0.0
        %3768 = vmatpush1.msra.mxu0 0.0
        %3769 = vmatprep.subr.mxu0 0.0
        %3770 = vmatpush1.msra.mxu0 0.0
        %3771 = vmatprep.subr.mxu0 0.0
        %3772 = vmatpush1.msra.mxu0 0.0
        %3773 = vmatprep.subr.mxu0 0.0
        %3774 = vmatpush1.msra.mxu0 0.0
        %3775 = vmatprep.subr.mxu0 0.0
        %3776 = vmatpush1.msra.mxu0 0.0
        %3777 = vmatprep.subr.mxu0 0.0
        %3778 = vmatpush1.msra.mxu0 0.0
        %3779 = vmatprep.subr.mxu0 0.0
        %3780 = vmatpush1.msra.mxu0 0.0
        %3781 = vmatprep.subr.mxu0 0.0
        %3782 = vmatpush1.msra.mxu0 0.0
        %3783 = vmatprep.subr.mxu0 0.0
        %3784 = vmatpush1.msra.mxu0 0.0
        %3785 = vmatprep.subr.mxu0 0.0
        %3786 = vmatpush1.msra.mxu0 0.0
        %3787 = vmatprep.subr.mxu0 0.0
        %3788 = vmatpush1.msra.mxu0 0.0
        %3789 = vmatprep.subr.mxu0 0.0
        %3790 = vmatpush1.msra.mxu0 0.0
        %3791 = vmatprep.mubr.f32.mxu0 0.0
        %3792 = vmatmul.mubr.f32.gmra.mrb[0].mxu0 %v3716
        %v3793 = vpop.f32.mrb[0].mxu0
        %v3794 = vadd.f32 %v3714, %v3793
        %v3795 = vpop.f32.mrb[0].mxu0
        %3796 = vmatprep.mubr.f32.mxu0 0.0
        %3797 = vmatmul.mubr.f32.gmra.mrb[0].mxu0 %v3719
        %v3798 = vpop.f32.mrb[0].mxu0
        %v3799 = vadd.f32 %v3714, %v3798
        %v3800 = vpop.f32.mrb[0].mxu0
        %3801 = vmatprep.mubr.f32.mxu0 0.0
        %3802 = vmatmul.mubr.f32.gmra.mrb[0].mxu0 %v3722
        %v3803 = vpop.f32.mrb[0].mxu0
        %v3804 = vadd.f32 %v3714, %v3803
        %v3805 = vpop.f32.mrb[0].mxu0
        %3806 = vmatprep.mubr.f32.mxu0 0.0
        %3807 = vmatmul.mubr.f32.gmra.mrb[0].mxu0 %v3725
        %v3808 = vpop.f32.mrb[0].mxu0
        %v3809 = vadd.f32 %v3714, %v3808
        %v3810 = vpop.f32.mrb[0].mxu0
        %3811 = vdwg.mxu0
        %v3812 = vld [vmem:[#allocation4 + $0x580] sm:$0xff]
        %v3813 = vld [vmem:[#allocation4 + $0x588] sm:$0xff]
        %v3814 = vld [vmem:[#allocation4 + $0x590] sm:$0xff]
        %v3815 = vld [vmem:[#allocation4 + $0x598] sm:$0xff]
        %v3816 = vld [vmem:[#allocation4 + $0x5a0] sm:$0xff]
        %v3817 = vld [vmem:[#allocation4 + $0x5a8] sm:$0xff]
        %v3818 = vld [vmem:[#allocation4 + $0x5b0] sm:$0xff]
        %v3819 = vld [vmem:[#allocation4 + $0x5b8] sm:$0xff]
        %v3820 = vld [vmem:[#allocation4 + $0x5c0] sm:$0xff]
        %v3821 = vld [vmem:[#allocation4 + $0x5c8] sm:$0xff]
        %v3822 = vld [vmem:[#allocation4 + $0x5d0] sm:$0x1]
        %v3823 = vlaneseq
        %v3824 = vshrl.u32 %v3823, 7
        %v3825 = vsub.s32 0, %v3824
        %v3826 = vrot.slane %v3822, %v3825
        %v3828 = vsel %vm456, %v3490, 0
        %v3831 = vsel %vm456, %v3491, 0
        %v3834 = vsel %vm456, %v3492, 0
        %v3837 = vsel %vm456, %v3493, 0
        %3839 = vmatprep.subr.mxu0 0.0
        %3840 = vmatpush1.msra.mxu0 %v3812
        %3841 = vmatprep.subr.mxu0 0.0
        %3842 = vmatpush1.msra.mxu0 %v3813
        %3843 = vmatprep.subr.mxu0 0.0
        %3844 = vmatpush1.msra.mxu0 %v3814
        %3845 = vmatprep.subr.mxu0 0.0
        %3846 = vmatpush1.msra.mxu0 %v3815
        %3847 = vmatprep.subr.mxu0 0.0
        %3848 = vmatpush1.msra.mxu0 %v3816
        %3849 = vmatprep.subr.mxu0 0.0
        %3850 = vmatpush1.msra.mxu0 %v3817
        %3851 = vmatprep.subr.mxu0 0.0
        %3852 = vmatpush1.msra.mxu0 %v3818
        %3853 = vmatprep.subr.mxu0 0.0
        %3854 = vmatpush1.msra.mxu0 %v3819
        %3855 = vmatprep.subr.mxu0 0.0
        %3856 = vmatpush1.msra.mxu0 %v3820
        %3857 = vmatprep.subr.mxu0 0.0
        %3858 = vmatpush1.msra.mxu0 %v3821
        %3859 = vmatprep.subr.mxu0 0.0
        %3860 = vmatpush1.msra.mxu0 0.0
        %3861 = vmatprep.subr.mxu0 0.0
        %3862 = vmatpush1.msra.mxu0 0.0
        %3863 = vmatprep.subr.mxu0 0.0
        %3864 = vmatpush1.msra.mxu0 0.0
        %3865 = vmatprep.subr.mxu0 0.0
        %3866 = vmatpush1.msra.mxu0 0.0
        %3867 = vmatprep.subr.mxu0 0.0
        %3868 = vmatpush1.msra.mxu0 0.0
        %3869 = vmatprep.subr.mxu0 0.0
        %3870 = vmatpush1.msra.mxu0 0.0
        %3871 = vmatprep.subr.mxu0 0.0
        %3872 = vmatpush1.msra.mxu0 0.0
        %3873 = vmatprep.subr.mxu0 0.0
        %3874 = vmatpush1.msra.mxu0 0.0
        %3875 = vmatprep.subr.mxu0 0.0
        %3876 = vmatpush1.msra.mxu0 0.0
        %3877 = vmatprep.subr.mxu0 0.0
        %3878 = vmatpush1.msra.mxu0 0.0
        %3879 = vmatprep.subr.mxu0 0.0
        %3880 = vmatpush1.msra.mxu0 0.0
        %3881 = vmatprep.subr.mxu0 0.0
        %3882 = vmatpush1.msra.mxu0 0.0
        %3883 = vmatprep.subr.mxu0 0.0
        %3884 = vmatpush1.msra.mxu0 0.0
        %3885 = vmatprep.subr.mxu0 0.0
        %3886 = vmatpush1.msra.mxu0 0.0
        %3887 = vmatprep.subr.mxu0 0.0
        %3888 = vmatpush1.msra.mxu0 0.0
        %3889 = vmatprep.subr.mxu0 0.0
        %3890 = vmatpush1.msra.mxu0 0.0
        %3891 = vmatprep.subr.mxu0 0.0
        %3892 = vmatpush1.msra.mxu0 0.0
        %3893 = vmatprep.subr.mxu0 0.0
        %3894 = vmatpush1.msra.mxu0 0.0
        %3895 = vmatprep.subr.mxu0 0.0
        %3896 = vmatpush1.msra.mxu0 0.0
        %3897 = vmatprep.subr.mxu0 0.0
        %3898 = vmatpush1.msra.mxu0 0.0
        %3899 = vmatprep.subr.mxu0 0.0
        %3900 = vmatpush1.msra.mxu0 0.0
        %3901 = vmatprep.subr.mxu0 0.0
        %3902 = vmatpush1.msra.mxu0 0.0
        %3903 = vmatprep.mubr.f32.mxu0 0.0
        %3904 = vmatmul.mubr.f32.gmra.mrb[0].mxu0 %v3828
        %v3905 = vpop.f32.mrb[0].mxu0
        %v3906 = vadd.f32 %v3826, %v3905
        %v3907 = vpop.f32.mrb[0].mxu0
        %3908 = vmatprep.mubr.f32.mxu0 0.0
        %3909 = vmatmul.mubr.f32.gmra.mrb[0].mxu0 %v3831
        %v3910 = vpop.f32.mrb[0].mxu0
        %v3911 = vadd.f32 %v3826, %v3910
        %v3912 = vpop.f32.mrb[0].mxu0
        %3913 = vmatprep.mubr.f32.mxu0 0.0
        %3914 = vmatmul.mubr.f32.gmra.mrb[0].mxu0 %v3834
        %v3915 = vpop.f32.mrb[0].mxu0
        %v3916 = vadd.f32 %v3826, %v3915
        %v3917 = vpop.f32.mrb[0].mxu0
        %3918 = vmatprep.mubr.f32.mxu0 0.0
        %3919 = vmatmul.mubr.f32.gmra.mrb[0].mxu0 %v3837
        %v3920 = vpop.f32.mrb[0].mxu0
        %v3921 = vadd.f32 %v3826, %v3920
        %v3922 = vpop.f32.mrb[0].mxu0
        %3923 = vdwg.mxu0
        %v3924 = vld [vmem:[#allocation4 + $0x5d8] sm:$0xff]
        %v3925 = vld [vmem:[#allocation4 + $0x5e0] sm:$0xff]
        %v3926 = vld [vmem:[#allocation4 + $0x5e8] sm:$0xff]
        %v3927 = vld [vmem:[#allocation4 + $0x5f0] sm:$0xff]
        %v3928 = vld [vmem:[#allocation4 + $0x5f8] sm:$0xff]
        %v3929 = vld [vmem:[#allocation4 + $0x600] sm:$0xff]
        %v3930 = vld [vmem:[#allocation4 + $0x608] sm:$0xff]
        %v3931 = vld [vmem:[#allocation4 + $0x610] sm:$0xff]
        %v3932 = vld [vmem:[#allocation4 + $0x618] sm:$0xff]
        %v3933 = vld [vmem:[#allocation4 + $0x620] sm:$0xff]
        %v3934 = vld [vmem:[#allocation4 + $0x628] sm:$0x1]
        %v3935 = vlaneseq
        %v3936 = vshrl.u32 %v3935, 7
        %v3937 = vsub.s32 0, %v3936
        %v3938 = vrot.slane %v3934, %v3937
        %3939 = vmatprep.subr.mxu0 0.0
        %3940 = vmatpush1.msra.mxu0 %v3924
        %3941 = vmatprep.subr.mxu0 0.0
        %3942 = vmatpush1.msra.mxu0 %v3925
        %3943 = vmatprep.subr.mxu0 0.0
        %3944 = vmatpush1.msra.mxu0 %v3926
        %3945 = vmatprep.subr.mxu0 0.0
        %3946 = vmatpush1.msra.mxu0 %v3927
        %3947 = vmatprep.subr.mxu0 0.0
        %3948 = vmatpush1.msra.mxu0 %v3928
        %3949 = vmatprep.subr.mxu0 0.0
        %3950 = vmatpush1.msra.mxu0 %v3929
        %3951 = vmatprep.subr.mxu0 0.0
        %3952 = vmatpush1.msra.mxu0 %v3930
        %3953 = vmatprep.subr.mxu0 0.0
        %3954 = vmatpush1.msra.mxu0 %v3931
        %3955 = vmatprep.subr.mxu0 0.0
        %3956 = vmatpush1.msra.mxu0 %v3932
        %3957 = vmatprep.subr.mxu0 0.0
        %3958 = vmatpush1.msra.mxu0 %v3933
        %3959 = vmatprep.subr.mxu0 0.0
        %3960 = vmatpush1.msra.mxu0 0.0
        %3961 = vmatprep.subr.mxu0 0.0
        %3962 = vmatpush1.msra.mxu0 0.0
        %3963 = vmatprep.subr.mxu0 0.0
        %3964 = vmatpush1.msra.mxu0 0.0
        %3965 = vmatprep.subr.mxu0 0.0
        %3966 = vmatpush1.msra.mxu0 0.0
        %3967 = vmatprep.subr.mxu0 0.0
        %3968 = vmatpush1.msra.mxu0 0.0
        %3969 = vmatprep.subr.mxu0 0.0
        %3970 = vmatpush1.msra.mxu0 0.0
        %3971 = vmatprep.subr.mxu0 0.0
        %3972 = vmatpush1.msra.mxu0 0.0
        %3973 = vmatprep.subr.mxu0 0.0
        %3974 = vmatpush1.msra.mxu0 0.0
        %3975 = vmatprep.subr.mxu0 0.0
        %3976 = vmatpush1.msra.mxu0 0.0
        %3977 = vmatprep.subr.mxu0 0.0
        %3978 = vmatpush1.msra.mxu0 0.0
        %3979 = vmatprep.subr.mxu0 0.0
        %3980 = vmatpush1.msra.mxu0 0.0
        %3981 = vmatprep.subr.mxu0 0.0
        %3982 = vmatpush1.msra.mxu0 0.0
        %3983 = vmatprep.subr.mxu0 0.0
        %3984 = vmatpush1.msra.mxu0 0.0
        %3985 = vmatprep.subr.mxu0 0.0
        %3986 = vmatpush1.msra.mxu0 0.0
        %3987 = vmatprep.subr.mxu0 0.0
        %3988 = vmatpush1.msra.mxu0 0.0
        %3989 = vmatprep.subr.mxu0 0.0
        %3990 = vmatpush1.msra.mxu0 0.0
        %3991 = vmatprep.subr.mxu0 0.0
        %3992 = vmatpush1.msra.mxu0 0.0
        %3993 = vmatprep.subr.mxu0 0.0
        %3994 = vmatpush1.msra.mxu0 0.0
        %3995 = vmatprep.subr.mxu0 0.0
        %3996 = vmatpush1.msra.mxu0 0.0
        %3997 = vmatprep.subr.mxu0 0.0
        %3998 = vmatpush1.msra.mxu0 0.0
        %3999 = vmatprep.subr.mxu0 0.0
        %4000 = vmatpush1.msra.mxu0 0.0
        %4001 = vmatprep.subr.mxu0 0.0
        %4002 = vmatpush1.msra.mxu0 0.0
        %4003 = vmatprep.mubr.f32.mxu0 0.0
        %4004 = vmatmul.mubr.f32.gmra.mrb[0].mxu0 %v3828
        %v4005 = vpop.f32.mrb[0].mxu0
        %v4006 = vadd.f32 %v3938, %v4005
        %v4007 = vpop.f32.mrb[0].mxu0
        %4008 = vmatprep.mubr.f32.mxu0 0.0
        %4009 = vmatmul.mubr.f32.gmra.mrb[0].mxu0 %v3831
        %v4010 = vpop.f32.mrb[0].mxu0
        %v4011 = vadd.f32 %v3938, %v4010
        %v4012 = vpop.f32.mrb[0].mxu0
        %4013 = vmatprep.mubr.f32.mxu0 0.0
        %4014 = vmatmul.mubr.f32.gmra.mrb[0].mxu0 %v3834
        %v4015 = vpop.f32.mrb[0].mxu0
        %v4016 = vadd.f32 %v3938, %v4015
        %v4017 = vpop.f32.mrb[0].mxu0
        %4018 = vmatprep.mubr.f32.mxu0 0.0
        %4019 = vmatmul.mubr.f32.gmra.mrb[0].mxu0 %v3837
        %v4020 = vpop.f32.mrb[0].mxu0
        %v4021 = vadd.f32 %v3938, %v4020
        %v4022 = vpop.f32.mrb[0].mxu0
        %4023 = vdwg.mxu0
        %v4024 = vld [vmem:[#allocation6 + $0x190] sm:$0xff]
        %v4026 = vsel %vm3500, %v3794, 0
        %v4029 = vsel %vm3500, %v3799, 0
        %v4032 = vsel %vm3500, %v3804, 0
        %v4035 = vsel %vm3500, %v3809, 0
        %4037 = vmatprep.subr.mxu0 0.0
        %4038 = vmatpush1.msra.mxu0 %v4024
        %4039 = vmatprep.subr.mxu0 0.0
        %4040 = vmatpush1.msra.mxu0 0.0
        %4041 = vmatprep.subr.mxu0 0.0
        %4042 = vmatpush1.msra.mxu0 0.0
        %4043 = vmatprep.subr.mxu0 0.0
        %4044 = vmatpush1.msra.mxu0 0.0
        %4045 = vmatprep.subr.mxu0 0.0
        %4046 = vmatpush1.msra.mxu0 0.0
        %4047 = vmatprep.subr.mxu0 0.0
        %4048 = vmatpush1.msra.mxu0 0.0
        %4049 = vmatprep.subr.mxu0 0.0
        %4050 = vmatpush1.msra.mxu0 0.0
        %4051 = vmatprep.subr.mxu0 0.0
        %4052 = vmatpush1.msra.mxu0 0.0
        %4053 = vmatprep.subr.mxu0 0.0
        %4054 = vmatpush1.msra.mxu0 0.0
        %4055 = vmatprep.subr.mxu0 0.0
        %4056 = vmatpush1.msra.mxu0 0.0
        %4057 = vmatprep.subr.mxu0 0.0
        %4058 = vmatpush1.msra.mxu0 0.0
        %4059 = vmatprep.subr.mxu0 0.0
        %4060 = vmatpush1.msra.mxu0 0.0
        %4061 = vmatprep.subr.mxu0 0.0
        %4062 = vmatpush1.msra.mxu0 0.0
        %4063 = vmatprep.subr.mxu0 0.0
        %4064 = vmatpush1.msra.mxu0 0.0
        %4065 = vmatprep.subr.mxu0 0.0
        %4066 = vmatpush1.msra.mxu0 0.0
        %4067 = vmatprep.subr.mxu0 0.0
        %4068 = vmatpush1.msra.mxu0 0.0
        %4069 = vmatprep.subr.mxu0 0.0
        %4070 = vmatpush1.msra.mxu0 0.0
        %4071 = vmatprep.subr.mxu0 0.0
        %4072 = vmatpush1.msra.mxu0 0.0
        %4073 = vmatprep.subr.mxu0 0.0
        %4074 = vmatpush1.msra.mxu0 0.0
        %4075 = vmatprep.subr.mxu0 0.0
        %4076 = vmatpush1.msra.mxu0 0.0
        %4077 = vmatprep.subr.mxu0 0.0
        %4078 = vmatpush1.msra.mxu0 0.0
        %4079 = vmatprep.subr.mxu0 0.0
        %4080 = vmatpush1.msra.mxu0 0.0
        %4081 = vmatprep.subr.mxu0 0.0
        %4082 = vmatpush1.msra.mxu0 0.0
        %4083 = vmatprep.subr.mxu0 0.0
        %4084 = vmatpush1.msra.mxu0 0.0
        %4085 = vmatprep.subr.mxu0 0.0
        %4086 = vmatpush1.msra.mxu0 0.0
        %4087 = vmatprep.subr.mxu0 0.0
        %4088 = vmatpush1.msra.mxu0 0.0
        %4089 = vmatprep.subr.mxu0 0.0
        %4090 = vmatpush1.msra.mxu0 0.0
        %4091 = vmatprep.subr.mxu0 0.0
        %4092 = vmatpush1.msra.mxu0 0.0
        %4093 = vmatprep.subr.mxu0 0.0
        %4094 = vmatpush1.msra.mxu0 0.0
        %4095 = vmatprep.subr.mxu0 0.0
        %4096 = vmatpush1.msra.mxu0 0.0
        %4097 = vmatprep.subr.mxu0 0.0
        %4098 = vmatpush1.msra.mxu0 0.0
        %4099 = vmatprep.subr.mxu0 0.0
        %4100 = vmatpush1.msra.mxu0 0.0
        %4101 = vmatprep.mubr.f32.mxu0 0.0
        %4102 = vmatmul.mubr.f32.gmra.mrb[0].mxu0 %v4026
        %v4103 = vpop.f32.mrb[0].mxu0
        %v4104 = vadd.f32 0.0, %v4103
        %v4105 = vpop.f32.mrb[0].mxu0
        %4106 = vmatprep.mubr.f32.mxu0 0.0
        %4107 = vmatmul.mubr.f32.gmra.mrb[0].mxu0 %v4029
        %v4108 = vpop.f32.mrb[0].mxu0
        %v4109 = vadd.f32 0.0, %v4108
        %v4110 = vpop.f32.mrb[0].mxu0
        %4111 = vmatprep.mubr.f32.mxu0 0.0
        %4112 = vmatmul.mubr.f32.gmra.mrb[0].mxu0 %v4032
        %v4113 = vpop.f32.mrb[0].mxu0
        %v4114 = vadd.f32 0.0, %v4113
        %v4115 = vpop.f32.mrb[0].mxu0
        %4116 = vmatprep.mubr.f32.mxu0 0.0
        %4117 = vmatmul.mubr.f32.gmra.mrb[0].mxu0 %v4035
        %v4118 = vpop.f32.mrb[0].mxu0
        %v4119 = vadd.f32 0.0, %v4118
        %v4120 = vpop.f32.mrb[0].mxu0
        %4121 = vdwg.mxu0
        %v4122 = vld [vmem:[#allocation6 + $0x1a0] sm:$0xff]
        %v4123 = vld [vmem:[#allocation6 + $0x1a8] sm:$0xff]
        %v4124 = vld [vmem:[#allocation6 + $0x1b0] sm:$0xff]
        %v4125 = vld [vmem:[#allocation6 + $0x1b8] sm:$0xff]
        %v4126 = vld [vmem:[#allocation6 + $0x1c0] sm:$0xff]
        %v4127 = vld [vmem:[#allocation6 + $0x1c8] sm:$0xff]
        %v4128 = vld [vmem:[#allocation6 + $0x1d0] sm:$0xff]
        %v4129 = vld [vmem:[#allocation6 + $0x1d8] sm:$0xff]
        %v4130 = vld [vmem:[#allocation6 + $0x1e0] sm:$0xff]
        %v4131 = vld [vmem:[#allocation6 + $0x1e8] sm:$0xff]
        %v4133 = vsel %vm456, %v3906, 0
        %v4136 = vsel %vm456, %v3911, 0
        %v4139 = vsel %vm456, %v3916, 0
        %v4142 = vsel %vm456, %v3921, 0
        %4144 = vmatprep.subr.mxu0 0.0
        %4145 = vmatpush1.msra.mxu0 %v4122
        %4146 = vmatprep.subr.mxu0 0.0
        %4147 = vmatpush1.msra.mxu0 %v4123
        %4148 = vmatprep.subr.mxu0 0.0
        %4149 = vmatpush1.msra.mxu0 %v4124
        %4150 = vmatprep.subr.mxu0 0.0
        %4151 = vmatpush1.msra.mxu0 %v4125
        %4152 = vmatprep.subr.mxu0 0.0
        %4153 = vmatpush1.msra.mxu0 %v4126
        %4154 = vmatprep.subr.mxu0 0.0
        %4155 = vmatpush1.msra.mxu0 %v4127
        %4156 = vmatprep.subr.mxu0 0.0
        %4157 = vmatpush1.msra.mxu0 %v4128
        %4158 = vmatprep.subr.mxu0 0.0
        %4159 = vmatpush1.msra.mxu0 %v4129
        %4160 = vmatprep.subr.mxu0 0.0
        %4161 = vmatpush1.msra.mxu0 %v4130
        %4162 = vmatprep.subr.mxu0 0.0
        %4163 = vmatpush1.msra.mxu0 %v4131
        %4164 = vmatprep.subr.mxu0 0.0
        %4165 = vmatpush1.msra.mxu0 0.0
        %4166 = vmatprep.subr.mxu0 0.0
        %4167 = vmatpush1.msra.mxu0 0.0
        %4168 = vmatprep.subr.mxu0 0.0
        %4169 = vmatpush1.msra.mxu0 0.0
        %4170 = vmatprep.subr.mxu0 0.0
        %4171 = vmatpush1.msra.mxu0 0.0
        %4172 = vmatprep.subr.mxu0 0.0
        %4173 = vmatpush1.msra.mxu0 0.0
        %4174 = vmatprep.subr.mxu0 0.0
        %4175 = vmatpush1.msra.mxu0 0.0
        %4176 = vmatprep.subr.mxu0 0.0
        %4177 = vmatpush1.msra.mxu0 0.0
        %4178 = vmatprep.subr.mxu0 0.0
        %4179 = vmatpush1.msra.mxu0 0.0
        %4180 = vmatprep.subr.mxu0 0.0
        %4181 = vmatpush1.msra.mxu0 0.0
        %4182 = vmatprep.subr.mxu0 0.0
        %4183 = vmatpush1.msra.mxu0 0.0
        %4184 = vmatprep.subr.mxu0 0.0
        %4185 = vmatpush1.msra.mxu0 0.0
        %4186 = vmatprep.subr.mxu0 0.0
        %4187 = vmatpush1.msra.mxu0 0.0
        %4188 = vmatprep.subr.mxu0 0.0
        %4189 = vmatpush1.msra.mxu0 0.0
        %4190 = vmatprep.subr.mxu0 0.0
        %4191 = vmatpush1.msra.mxu0 0.0
        %4192 = vmatprep.subr.mxu0 0.0
        %4193 = vmatpush1.msra.mxu0 0.0
        %4194 = vmatprep.subr.mxu0 0.0
        %4195 = vmatpush1.msra.mxu0 0.0
        %4196 = vmatprep.subr.mxu0 0.0
        %4197 = vmatpush1.msra.mxu0 0.0
        %4198 = vmatprep.subr.mxu0 0.0
        %4199 = vmatpush1.msra.mxu0 0.0
        %4200 = vmatprep.subr.mxu0 0.0
        %4201 = vmatpush1.msra.mxu0 0.0
        %4202 = vmatprep.subr.mxu0 0.0
        %4203 = vmatpush1.msra.mxu0 0.0
        %4204 = vmatprep.subr.mxu0 0.0
        %4205 = vmatpush1.msra.mxu0 0.0
        %4206 = vmatprep.subr.mxu0 0.0
        %4207 = vmatpush1.msra.mxu0 0.0
        %4208 = vmatprep.mubr.f32.mxu0 0.0
        %4209 = vmatmul.mubr.f32.gmra.mrb[0].mxu0 %v4133
        %v4210 = vpop.f32.mrb[0].mxu0
        %v4211 = vadd.f32 0.0, %v4210
        %v4212 = vpop.f32.mrb[0].mxu0
        %4213 = vmatprep.mubr.f32.mxu0 0.0
        %4214 = vmatmul.mubr.f32.gmra.mrb[0].mxu0 %v4136
        %v4215 = vpop.f32.mrb[0].mxu0
        %v4216 = vadd.f32 0.0, %v4215
        %v4217 = vpop.f32.mrb[0].mxu0
        %4218 = vmatprep.mubr.f32.mxu0 0.0
        %4219 = vmatmul.mubr.f32.gmra.mrb[0].mxu0 %v4139
        %v4220 = vpop.f32.mrb[0].mxu0
        %v4221 = vadd.f32 0.0, %v4220
        %v4222 = vpop.f32.mrb[0].mxu0
        %4223 = vmatprep.mubr.f32.mxu0 0.0
        %4224 = vmatmul.mubr.f32.gmra.mrb[0].mxu0 %v4142
        %v4225 = vpop.f32.mrb[0].mxu0
        %v4226 = vadd.f32 0.0, %v4225
        %v4227 = vpop.f32.mrb[0].mxu0
        %4228 = vdwg.mxu0
        %v4229 = vmul.f32 %v4104, %v4211
        %v4230 = vmul.f32 %v4109, %v4216
        %v4231 = vmul.f32 %v4114, %v4221
        %v4232 = vmul.f32 %v4119, %v4226
        %v4233 = vld [vmem:[#allocation6 + $0x198] sm:$0xff]
        %4234 = vmatprep.subr.mxu0 0.0
        %4235 = vmatpush1.msra.mxu0 %v4233
        %4236 = vmatprep.subr.mxu0 0.0
        %4237 = vmatpush1.msra.mxu0 0.0
        %4238 = vmatprep.subr.mxu0 0.0
        %4239 = vmatpush1.msra.mxu0 0.0
        %4240 = vmatprep.subr.mxu0 0.0
        %4241 = vmatpush1.msra.mxu0 0.0
        %4242 = vmatprep.subr.mxu0 0.0
        %4243 = vmatpush1.msra.mxu0 0.0
        %4244 = vmatprep.subr.mxu0 0.0
        %4245 = vmatpush1.msra.mxu0 0.0
        %4246 = vmatprep.subr.mxu0 0.0
        %4247 = vmatpush1.msra.mxu0 0.0
        %4248 = vmatprep.subr.mxu0 0.0
        %4249 = vmatpush1.msra.mxu0 0.0
        %4250 = vmatprep.subr.mxu0 0.0
        %4251 = vmatpush1.msra.mxu0 0.0
        %4252 = vmatprep.subr.mxu0 0.0
        %4253 = vmatpush1.msra.mxu0 0.0
        %4254 = vmatprep.subr.mxu0 0.0
        %4255 = vmatpush1.msra.mxu0 0.0
        %4256 = vmatprep.subr.mxu0 0.0
        %4257 = vmatpush1.msra.mxu0 0.0
        %4258 = vmatprep.subr.mxu0 0.0
        %4259 = vmatpush1.msra.mxu0 0.0
        %4260 = vmatprep.subr.mxu0 0.0
        %4261 = vmatpush1.msra.mxu0 0.0
        %4262 = vmatprep.subr.mxu0 0.0
        %4263 = vmatpush1.msra.mxu0 0.0
        %4264 = vmatprep.subr.mxu0 0.0
        %4265 = vmatpush1.msra.mxu0 0.0
        %4266 = vmatprep.subr.mxu0 0.0
        %4267 = vmatpush1.msra.mxu0 0.0
        %4268 = vmatprep.subr.mxu0 0.0
        %4269 = vmatpush1.msra.mxu0 0.0
        %4270 = vmatprep.subr.mxu0 0.0
        %4271 = vmatpush1.msra.mxu0 0.0
        %4272 = vmatprep.subr.mxu0 0.0
        %4273 = vmatpush1.msra.mxu0 0.0
        %4274 = vmatprep.subr.mxu0 0.0
        %4275 = vmatpush1.msra.mxu0 0.0
        %4276 = vmatprep.subr.mxu0 0.0
        %4277 = vmatpush1.msra.mxu0 0.0
        %4278 = vmatprep.subr.mxu0 0.0
        %4279 = vmatpush1.msra.mxu0 0.0
        %4280 = vmatprep.subr.mxu0 0.0
        %4281 = vmatpush1.msra.mxu0 0.0
        %4282 = vmatprep.subr.mxu0 0.0
        %4283 = vmatpush1.msra.mxu0 0.0
        %4284 = vmatprep.subr.mxu0 0.0
        %4285 = vmatpush1.msra.mxu0 0.0
        %4286 = vmatprep.subr.mxu0 0.0
        %4287 = vmatpush1.msra.mxu0 0.0
        %4288 = vmatprep.subr.mxu0 0.0
        %4289 = vmatpush1.msra.mxu0 0.0
        %4290 = vmatprep.subr.mxu0 0.0
        %4291 = vmatpush1.msra.mxu0 0.0
        %4292 = vmatprep.subr.mxu0 0.0
        %4293 = vmatpush1.msra.mxu0 0.0
        %4294 = vmatprep.subr.mxu0 0.0
        %4295 = vmatpush1.msra.mxu0 0.0
        %4296 = vmatprep.subr.mxu0 0.0
        %4297 = vmatpush1.msra.mxu0 0.0
        %4298 = vmatprep.mubr.f32.mxu0 0.0
        %4299 = vmatmul.mubr.f32.gmra.mrb[0].mxu0 %v4026
        %v4300 = vpop.f32.mrb[0].mxu0
        %v4301 = vadd.f32 0.0, %v4300
        %v4302 = vpop.f32.mrb[0].mxu0
        %4303 = vmatprep.mubr.f32.mxu0 0.0
        %4304 = vmatmul.mubr.f32.gmra.mrb[0].mxu0 %v4029
        %v4305 = vpop.f32.mrb[0].mxu0
        %v4306 = vadd.f32 0.0, %v4305
        %v4307 = vpop.f32.mrb[0].mxu0
        %4308 = vmatprep.mubr.f32.mxu0 0.0
        %4309 = vmatmul.mubr.f32.gmra.mrb[0].mxu0 %v4032
        %v4310 = vpop.f32.mrb[0].mxu0
        %v4311 = vadd.f32 0.0, %v4310
        %v4312 = vpop.f32.mrb[0].mxu0
        %4313 = vmatprep.mubr.f32.mxu0 0.0
        %4314 = vmatmul.mubr.f32.gmra.mrb[0].mxu0 %v4035
        %v4315 = vpop.f32.mrb[0].mxu0
        %v4316 = vadd.f32 0.0, %v4315
        %v4317 = vpop.f32.mrb[0].mxu0
        %4318 = vdwg.mxu0
        %v4319 = vld [vmem:[#allocation6 + $0x1f0] sm:$0xff]
        %v4320 = vld [vmem:[#allocation6 + $0x1f8] sm:$0xff]
        %v4321 = vld [vmem:[#allocation6 + $0x200] sm:$0xff]
        %v4322 = vld [vmem:[#allocation6 + $0x208] sm:$0xff]
        %v4323 = vld [vmem:[#allocation6 + $0x210] sm:$0xff]
        %v4324 = vld [vmem:[#allocation6 + $0x218] sm:$0xff]
        %v4325 = vld [vmem:[#allocation6 + $0x220] sm:$0xff]
        %v4326 = vld [vmem:[#allocation6 + $0x228] sm:$0xff]
        %v4327 = vld [vmem:[#allocation6 + $0x230] sm:$0xff]
        %v4328 = vld [vmem:[#allocation6 + $0x238] sm:$0xff]
        %4329 = vmatprep.subr.mxu0 0.0
        %4330 = vmatpush1.msra.mxu0 %v4319
        %4331 = vmatprep.subr.mxu0 0.0
        %4332 = vmatpush1.msra.mxu0 %v4320
        %4333 = vmatprep.subr.mxu0 0.0
        %4334 = vmatpush1.msra.mxu0 %v4321
        %4335 = vmatprep.subr.mxu0 0.0
        %4336 = vmatpush1.msra.mxu0 %v4322
        %4337 = vmatprep.subr.mxu0 0.0
        %4338 = vmatpush1.msra.mxu0 %v4323
        %4339 = vmatprep.subr.mxu0 0.0
        %4340 = vmatpush1.msra.mxu0 %v4324
        %4341 = vmatprep.subr.mxu0 0.0
        %4342 = vmatpush1.msra.mxu0 %v4325
        %4343 = vmatprep.subr.mxu0 0.0
        %4344 = vmatpush1.msra.mxu0 %v4326
        %4345 = vmatprep.subr.mxu0 0.0
        %4346 = vmatpush1.msra.mxu0 %v4327
        %4347 = vmatprep.subr.mxu0 0.0
        %4348 = vmatpush1.msra.mxu0 %v4328
        %4349 = vmatprep.subr.mxu0 0.0
        %4350 = vmatpush1.msra.mxu0 0.0
        %4351 = vmatprep.subr.mxu0 0.0
        %4352 = vmatpush1.msra.mxu0 0.0
        %4353 = vmatprep.subr.mxu0 0.0
        %4354 = vmatpush1.msra.mxu0 0.0
        %4355 = vmatprep.subr.mxu0 0.0
        %4356 = vmatpush1.msra.mxu0 0.0
        %4357 = vmatprep.subr.mxu0 0.0
        %4358 = vmatpush1.msra.mxu0 0.0
        %4359 = vmatprep.subr.mxu0 0.0
        %4360 = vmatpush1.msra.mxu0 0.0
        %4361 = vmatprep.subr.mxu0 0.0
        %4362 = vmatpush1.msra.mxu0 0.0
        %4363 = vmatprep.subr.mxu0 0.0
        %4364 = vmatpush1.msra.mxu0 0.0
        %4365 = vmatprep.subr.mxu0 0.0
        %4366 = vmatpush1.msra.mxu0 0.0
        %4367 = vmatprep.subr.mxu0 0.0
        %4368 = vmatpush1.msra.mxu0 0.0
        %4369 = vmatprep.subr.mxu0 0.0
        %4370 = vmatpush1.msra.mxu0 0.0
        %4371 = vmatprep.subr.mxu0 0.0
        %4372 = vmatpush1.msra.mxu0 0.0
        %4373 = vmatprep.subr.mxu0 0.0
        %4374 = vmatpush1.msra.mxu0 0.0
        %4375 = vmatprep.subr.mxu0 0.0
        %4376 = vmatpush1.msra.mxu0 0.0
        %4377 = vmatprep.subr.mxu0 0.0
        %4378 = vmatpush1.msra.mxu0 0.0
        %4379 = vmatprep.subr.mxu0 0.0
        %4380 = vmatpush1.msra.mxu0 0.0
        %4381 = vmatprep.subr.mxu0 0.0
        %4382 = vmatpush1.msra.mxu0 0.0
        %4383 = vmatprep.subr.mxu0 0.0
        %4384 = vmatpush1.msra.mxu0 0.0
        %4385 = vmatprep.subr.mxu0 0.0
        %4386 = vmatpush1.msra.mxu0 0.0
        %4387 = vmatprep.subr.mxu0 0.0
        %4388 = vmatpush1.msra.mxu0 0.0
        %4389 = vmatprep.subr.mxu0 0.0
        %4390 = vmatpush1.msra.mxu0 0.0
        %4391 = vmatprep.subr.mxu0 0.0
        %4392 = vmatpush1.msra.mxu0 0.0
        %4393 = vmatprep.mubr.f32.mxu0 0.0
        %4394 = vmatmul.mubr.f32.gmra.mrb[0].mxu0 %v4133
        %v4395 = vpop.f32.mrb[0].mxu0
        %v4396 = vadd.f32 0.0, %v4395
        %v4397 = vpop.f32.mrb[0].mxu0
        %4398 = vmatprep.mubr.f32.mxu0 0.0
        %4399 = vmatmul.mubr.f32.gmra.mrb[0].mxu0 %v4136
        %v4400 = vpop.f32.mrb[0].mxu0
        %v4401 = vadd.f32 0.0, %v4400
        %v4402 = vpop.f32.mrb[0].mxu0
        %4403 = vmatprep.mubr.f32.mxu0 0.0
        %4404 = vmatmul.mubr.f32.gmra.mrb[0].mxu0 %v4139
        %v4405 = vpop.f32.mrb[0].mxu0
        %v4406 = vadd.f32 0.0, %v4405
        %v4407 = vpop.f32.mrb[0].mxu0
        %4408 = vmatprep.mubr.f32.mxu0 0.0
        %4409 = vmatmul.mubr.f32.gmra.mrb[0].mxu0 %v4142
        %v4410 = vpop.f32.mrb[0].mxu0
        %v4411 = vadd.f32 0.0, %v4410
        %v4412 = vpop.f32.mrb[0].mxu0
        %4413 = vdwg.mxu0
        %v4414 = vmul.f32 %v4301, %v4396
        %v4415 = vmul.f32 %v4306, %v4401
        %v4416 = vmul.f32 %v4311, %v4406
        %v4417 = vmul.f32 %v4316, %v4411
        %v4418 = vadd.f32 %v4229, %v4414
        %v4419 = vadd.f32 %v4230, %v4415
        %v4420 = vadd.f32 %v4231, %v4416
        %v4421 = vadd.f32 %v4232, %v4417
        %v4422 = vld [vmem:[#allocation6 + $0x290] sm:$0xff]
        %v4423 = vld [vmem:[#allocation6 + $0x298] sm:$0xff]
        %v4424 = vld [vmem:[#allocation6 + $0x2a0] sm:$0xff]
        %v4425 = vld [vmem:[#allocation6 + $0x2a8] sm:$0xff]
        %v4426 = vld [vmem:[#allocation6 + $0x2b0] sm:$0xff]
        %v4427 = vld [vmem:[#allocation6 + $0x2b8] sm:$0xf]
        %v4428 = vsel %vm335, %v4418, -inf
        %4429 = vmax.xlane.f32.xlu0 %v4428
        %v4430 = vpop.xlane.xlu0 %4429
        %v4431 = vsel %vm335, %v4419, -inf
        %4432 = vmax.xlane.f32.xlu0 %v4431
        %v4433 = vpop.xlane.xlu0 %4432
        %v4434 = vsel %vm335, %v4420, -inf
        %4435 = vmax.xlane.f32.xlu0 %v4434
        %v4436 = vpop.xlane.xlu0 %4435
        %v4437 = vsel %vm335, %v4421, -inf
        %4438 = vmax.xlane.f32.xlu0 %v4437
        %v4439 = vpop.xlane.xlu0 %4438
        %v4440 = vsub.f32 %v4418, %v4430
        %v4441 = vsub.f32 %v4419, %v4433
        %v4442 = vsub.f32 %v4420, %v4436
        %v4443 = vsub.f32 %v4421, %v4439
        %v4444 = vmul.f32 %v4440, 1.442695
        %v4445 = vpow.pop %v4444
        %v4446 = vmul.f32 %v4441, 1.442695
        %v4447 = vpow.pop %v4446
        %v4448 = vmul.f32 %v4442, 1.442695
        %v4449 = vpow.pop %v4448
        %v4450 = vmul.f32 %v4443, 1.442695
        %v4451 = vpow.pop %v4450
        %v4453 = vsel %vm335, %v4445, 0
        %v4456 = vsel %vm335, %v4447, 0
        %v4459 = vsel %vm335, %v4449, 0
        %v4462 = vsel %vm335, %v4451, 0
        %4464 = vmatprep.subr.mxu0 0.0
        %4465 = vmatpush1.msra.mxu0 %v4422
        %4466 = vmatprep.subr.mxu0 0.0
        %4467 = vmatpush1.msra.mxu0 %v4423
        %4468 = vmatprep.subr.mxu0 0.0
        %4469 = vmatpush1.msra.mxu0 %v4424
        %4470 = vmatprep.subr.mxu0 0.0
        %4471 = vmatpush1.msra.mxu0 %v4425
        %4472 = vmatprep.subr.mxu0 0.0
        %4473 = vmatpush1.msra.mxu0 %v4426
        %4474 = vmatprep.subr.mxu0 0.0
        %4475 = vmatpush1.msra.mxu0 0.0
        %4476 = vmatprep.subr.mxu0 0.0
        %4477 = vmatpush1.msra.mxu0 0.0
        %4478 = vmatprep.subr.mxu0 0.0
        %4479 = vmatpush1.msra.mxu0 0.0
        %4480 = vmatprep.subr.mxu0 0.0
        %4481 = vmatpush1.msra.mxu0 0.0
        %4482 = vmatprep.subr.mxu0 0.0
        %4483 = vmatpush1.msra.mxu0 0.0
        %4484 = vmatprep.subr.mxu0 0.0
        %4485 = vmatpush1.msra.mxu0 0.0
        %4486 = vmatprep.subr.mxu0 0.0
        %4487 = vmatpush1.msra.mxu0 0.0
        %4488 = vmatprep.subr.mxu0 0.0
        %4489 = vmatpush1.msra.mxu0 0.0
        %4490 = vmatprep.subr.mxu0 0.0
        %4491 = vmatpush1.msra.mxu0 0.0
        %4492 = vmatprep.subr.mxu0 0.0
        %4493 = vmatpush1.msra.mxu0 0.0
        %4494 = vmatprep.subr.mxu0 0.0
        %4495 = vmatpush1.msra.mxu0 0.0
        %4496 = vmatprep.subr.mxu0 0.0
        %4497 = vmatpush1.msra.mxu0 0.0
        %4498 = vmatprep.subr.mxu0 0.0
        %4499 = vmatpush1.msra.mxu0 0.0
        %4500 = vmatprep.subr.mxu0 0.0
        %4501 = vmatpush1.msra.mxu0 0.0
        %4502 = vmatprep.subr.mxu0 0.0
        %4503 = vmatpush1.msra.mxu0 0.0
        %4504 = vmatprep.subr.mxu0 0.0
        %4505 = vmatpush1.msra.mxu0 0.0
        %4506 = vmatprep.subr.mxu0 0.0
        %4507 = vmatpush1.msra.mxu0 0.0
        %4508 = vmatprep.subr.mxu0 0.0
        %4509 = vmatpush1.msra.mxu0 0.0
        %4510 = vmatprep.subr.mxu0 0.0
        %4511 = vmatpush1.msra.mxu0 0.0
        %4512 = vmatprep.subr.mxu0 0.0
        %4513 = vmatpush1.msra.mxu0 0.0
        %4514 = vmatprep.subr.mxu0 0.0
        %4515 = vmatpush1.msra.mxu0 0.0
        %4516 = vmatprep.subr.mxu0 0.0
        %4517 = vmatpush1.msra.mxu0 0.0
        %4518 = vmatprep.subr.mxu0 0.0
        %4519 = vmatpush1.msra.mxu0 0.0
        %4520 = vmatprep.subr.mxu0 0.0
        %4521 = vmatpush1.msra.mxu0 0.0
        %4522 = vmatprep.subr.mxu0 0.0
        %4523 = vmatpush1.msra.mxu0 0.0
        %4524 = vmatprep.subr.mxu0 0.0
        %4525 = vmatpush1.msra.mxu0 0.0
        %4526 = vmatprep.subr.mxu0 0.0
        %4527 = vmatpush1.msra.mxu0 0.0
        %4528 = vmatprep.mubr.f32.mxu0 0.0
        %4529 = vmatmul.mubr.f32.gmra.mrb[0].mxu0 %v4453
        %v4530 = vpop.f32.mrb[0].mxu0
        %v4531 = vadd.f32 0.0, %v4530
        %v4532 = vpop.f32.mrb[0].mxu0
        %4533 = vmatprep.mubr.f32.mxu0 0.0
        %4534 = vmatmul.mubr.f32.gmra.mrb[0].mxu0 %v4456
        %v4535 = vpop.f32.mrb[0].mxu0
        %v4536 = vadd.f32 0.0, %v4535
        %v4537 = vpop.f32.mrb[0].mxu0
        %4538 = vmatprep.mubr.f32.mxu0 0.0
        %4539 = vmatmul.mubr.f32.gmra.mrb[0].mxu0 %v4459
        %v4540 = vpop.f32.mrb[0].mxu0
        %v4541 = vadd.f32 0.0, %v4540
        %v4542 = vpop.f32.mrb[0].mxu0
        %4543 = vmatprep.mubr.f32.mxu0 0.0
        %4544 = vmatmul.mubr.f32.gmra.mrb[0].mxu0 %v4462
        %v4545 = vpop.f32.mrb[0].mxu0
        %v4546 = vadd.f32 0.0, %v4545
        %v4547 = vpop.f32.mrb[0].mxu0
        %4548 = vdwg.mxu0
        %vm4549 = vcmask 31744
        %v4551 = vsel %vm4549, %v4531, 0
        %v4554 = vsel %vm4549, %v4536, 0
        %v4557 = vsel %vm4549, %v4541, 0
        %v4560 = vsel %vm4549, %v4546, 0
        %vm4562 = vcmask 1043456
        %v4564 = vsel %vm4562, %v4427, 0
        %4566 = vmatprep.subr.mxu0 0.0
        %4567 = vmatpush1.msra.mxu0 %v4564
        %4568 = vmatprep.subr.mxu0 0.0
        %4569 = vmatpush1.msra.mxu0 0.0
        %4570 = vmatprep.subr.mxu0 0.0
        %4571 = vmatpush1.msra.mxu0 0.0
        %4572 = vmatprep.subr.mxu0 0.0
        %4573 = vmatpush1.msra.mxu0 0.0
        %4574 = vmatprep.subr.mxu0 0.0
        %4575 = vmatpush1.msra.mxu0 0.0
        %4576 = vmatprep.subr.mxu0 0.0
        %4577 = vmatpush1.msra.mxu0 0.0
        %4578 = vmatprep.subr.mxu0 0.0
        %4579 = vmatpush1.msra.mxu0 0.0
        %4580 = vmatprep.subr.mxu0 0.0
        %4581 = vmatpush1.msra.mxu0 0.0
        %4582 = vmatprep.subr.mxu0 0.0
        %4583 = vmatpush1.msra.mxu0 0.0
        %4584 = vmatprep.subr.mxu0 0.0
        %4585 = vmatpush1.msra.mxu0 0.0
        %4586 = vmatprep.subr.mxu0 0.0
        %4587 = vmatpush1.msra.mxu0 0.0
        %4588 = vmatprep.subr.mxu0 0.0
        %4589 = vmatpush1.msra.mxu0 0.0
        %4590 = vmatprep.subr.mxu0 0.0
        %4591 = vmatpush1.msra.mxu0 0.0
        %4592 = vmatprep.subr.mxu0 0.0
        %4593 = vmatpush1.msra.mxu0 0.0
        %4594 = vmatprep.subr.mxu0 0.0
        %4595 = vmatpush1.msra.mxu0 0.0
        %4596 = vmatprep.subr.mxu0 0.0
        %4597 = vmatpush1.msra.mxu0 0.0
        %4598 = vmatprep.subr.mxu0 0.0
        %4599 = vmatpush1.msra.mxu0 0.0
        %4600 = vmatprep.subr.mxu0 0.0
        %4601 = vmatpush1.msra.mxu0 0.0
        %4602 = vmatprep.subr.mxu0 0.0
        %4603 = vmatpush1.msra.mxu0 0.0
        %4604 = vmatprep.subr.mxu0 0.0
        %4605 = vmatpush1.msra.mxu0 0.0
        %4606 = vmatprep.subr.mxu0 0.0
        %4607 = vmatpush1.msra.mxu0 0.0
        %4608 = vmatprep.subr.mxu0 0.0
        %4609 = vmatpush1.msra.mxu0 0.0
        %4610 = vmatprep.subr.mxu0 0.0
        %4611 = vmatpush1.msra.mxu0 0.0
        %4612 = vmatprep.subr.mxu0 0.0
        %4613 = vmatpush1.msra.mxu0 0.0
        %4614 = vmatprep.subr.mxu0 0.0
        %4615 = vmatpush1.msra.mxu0 0.0
        %4616 = vmatprep.subr.mxu0 0.0
        %4617 = vmatpush1.msra.mxu0 0.0
        %4618 = vmatprep.subr.mxu0 0.0
        %4619 = vmatpush1.msra.mxu0 0.0
        %4620 = vmatprep.subr.mxu0 0.0
        %4621 = vmatpush1.msra.mxu0 0.0
        %4622 = vmatprep.subr.mxu0 0.0
        %4623 = vmatpush1.msra.mxu0 0.0
        %4624 = vmatprep.subr.mxu0 0.0
        %4625 = vmatpush1.msra.mxu0 0.0
        %4626 = vmatprep.subr.mxu0 0.0
        %4627 = vmatpush1.msra.mxu0 0.0
        %4628 = vmatprep.subr.mxu0 0.0
        %4629 = vmatpush1.msra.mxu0 0.0
        %4630 = vmatprep.mubr.f32.mxu0 0.0
        %4631 = vmatmul.mubr.f32.gmra.mrb[0].mxu0 %v4551
        %v4632 = vpop.f32.mrb[0].mxu0
        %v4633 = vadd.f32 0.0, %v4632
        %v4634 = vpop.f32.mrb[0].mxu0
        %4635 = vmatprep.mubr.f32.mxu0 0.0
        %4636 = vmatmul.mubr.f32.gmra.mrb[0].mxu0 %v4554
        %v4637 = vpop.f32.mrb[0].mxu0
        %v4638 = vadd.f32 0.0, %v4637
        %v4639 = vpop.f32.mrb[0].mxu0
        %4640 = vmatprep.mubr.f32.mxu0 0.0
        %4641 = vmatmul.mubr.f32.gmra.mrb[0].mxu0 %v4557
        %v4642 = vpop.f32.mrb[0].mxu0
        %v4643 = vadd.f32 0.0, %v4642
        %v4644 = vpop.f32.mrb[0].mxu0
        %4645 = vmatprep.mubr.f32.mxu0 0.0
        %4646 = vmatmul.mubr.f32.gmra.mrb[0].mxu0 %v4560
        %v4647 = vpop.f32.mrb[0].mxu0
        %v4648 = vadd.f32 0.0, %v4647
        %v4649 = vpop.f32.mrb[0].mxu0
        %4650 = vdwg.mxu0
        %v4651 = vrcp.pop %v4633
        %v4652 = vrcp.pop %v4638
        %v4653 = vrcp.pop %v4643
        %v4654 = vrcp.pop %v4648
        %v4655 = vmul.f32 %v4445, %v4651
        %v4656 = vmul.f32 %v4447, %v4652
        %v4657 = vmul.f32 %v4449, %v4653
        %v4658 = vmul.f32 %v4451, %v4654
        %v4660 = vsel %vm456, %v4006, 0
        %v4663 = vsel %vm456, %v4011, 0
        %v4666 = vsel %vm456, %v4016, 0
        %v4669 = vsel %vm456, %v4021, 0
        %4671 = vmatprep.subr.mxu0 0.0
        %4672 = vmatpush1.msra.mxu0 %v4122
        %4673 = vmatprep.subr.mxu0 0.0
        %4674 = vmatpush1.msra.mxu0 %v4123
        %4675 = vmatprep.subr.mxu0 0.0
        %4676 = vmatpush1.msra.mxu0 %v4124
        %4677 = vmatprep.subr.mxu0 0.0
        %4678 = vmatpush1.msra.mxu0 %v4125
        %4679 = vmatprep.subr.mxu0 0.0
        %4680 = vmatpush1.msra.mxu0 %v4126
        %4681 = vmatprep.subr.mxu0 0.0
        %4682 = vmatpush1.msra.mxu0 %v4127
        %4683 = vmatprep.subr.mxu0 0.0
        %4684 = vmatpush1.msra.mxu0 %v4128
        %4685 = vmatprep.subr.mxu0 0.0
        %4686 = vmatpush1.msra.mxu0 %v4129
        %4687 = vmatprep.subr.mxu0 0.0
        %4688 = vmatpush1.msra.mxu0 %v4130
        %4689 = vmatprep.subr.mxu0 0.0
        %4690 = vmatpush1.msra.mxu0 %v4131
        %4691 = vmatprep.subr.mxu0 0.0
        %4692 = vmatpush1.msra.mxu0 0.0
        %4693 = vmatprep.subr.mxu0 0.0
        %4694 = vmatpush1.msra.mxu0 0.0
        %4695 = vmatprep.subr.mxu0 0.0
        %4696 = vmatpush1.msra.mxu0 0.0
        %4697 = vmatprep.subr.mxu0 0.0
        %4698 = vmatpush1.msra.mxu0 0.0
        %4699 = vmatprep.subr.mxu0 0.0
        %4700 = vmatpush1.msra.mxu0 0.0
        %4701 = vmatprep.subr.mxu0 0.0
        %4702 = vmatpush1.msra.mxu0 0.0
        %4703 = vmatprep.subr.mxu0 0.0
        %4704 = vmatpush1.msra.mxu0 0.0
        %4705 = vmatprep.subr.mxu0 0.0
        %4706 = vmatpush1.msra.mxu0 0.0
        %4707 = vmatprep.subr.mxu0 0.0
        %4708 = vmatpush1.msra.mxu0 0.0
        %4709 = vmatprep.subr.mxu0 0.0
        %4710 = vmatpush1.msra.mxu0 0.0
        %4711 = vmatprep.subr.mxu0 0.0
        %4712 = vmatpush1.msra.mxu0 0.0
        %4713 = vmatprep.subr.mxu0 0.0
        %4714 = vmatpush1.msra.mxu0 0.0
        %4715 = vmatprep.subr.mxu0 0.0
        %4716 = vmatpush1.msra.mxu0 0.0
        %4717 = vmatprep.subr.mxu0 0.0
        %4718 = vmatpush1.msra.mxu0 0.0
        %4719 = vmatprep.subr.mxu0 0.0
        %4720 = vmatpush1.msra.mxu0 0.0
        %4721 = vmatprep.subr.mxu0 0.0
        %4722 = vmatpush1.msra.mxu0 0.0
        %4723 = vmatprep.subr.mxu0 0.0
        %4724 = vmatpush1.msra.mxu0 0.0
        %4725 = vmatprep.subr.mxu0 0.0
        %4726 = vmatpush1.msra.mxu0 0.0
        %4727 = vmatprep.subr.mxu0 0.0
        %4728 = vmatpush1.msra.mxu0 0.0
        %4729 = vmatprep.subr.mxu0 0.0
        %4730 = vmatpush1.msra.mxu0 0.0
        %4731 = vmatprep.subr.mxu0 0.0
        %4732 = vmatpush1.msra.mxu0 0.0
        %4733 = vmatprep.subr.mxu0 0.0
        %4734 = vmatpush1.msra.mxu0 0.0
        %4735 = vmatprep.mubr.f32.mxu0 0.0
        %4736 = vmatmul.mubr.f32.gmra.mrb[0].mxu0 %v4660
        %v4737 = vpop.f32.mrb[0].mxu0
        %v4738 = vadd.f32 0.0, %v4737
        %v4739 = vpop.f32.mrb[0].mxu0
        %4740 = vmatprep.mubr.f32.mxu0 0.0
        %4741 = vmatmul.mubr.f32.gmra.mrb[0].mxu0 %v4663
        %v4742 = vpop.f32.mrb[0].mxu0
        %v4743 = vadd.f32 0.0, %v4742
        %v4744 = vpop.f32.mrb[0].mxu0
        %4745 = vmatprep.mubr.f32.mxu0 0.0
        %4746 = vmatmul.mubr.f32.gmra.mrb[0].mxu0 %v4666
        %v4747 = vpop.f32.mrb[0].mxu0
        %v4748 = vadd.f32 0.0, %v4747
        %v4749 = vpop.f32.mrb[0].mxu0
        %4750 = vmatprep.mubr.f32.mxu0 0.0
        %4751 = vmatmul.mubr.f32.gmra.mrb[0].mxu0 %v4669
        %v4752 = vpop.f32.mrb[0].mxu0
        %v4753 = vadd.f32 0.0, %v4752
        %v4754 = vpop.f32.mrb[0].mxu0
        %4755 = vdwg.mxu0
        %v4756 = vmul.f32 %v4655, %v4738
        %v4757 = vmul.f32 %v4656, %v4743
        %v4758 = vmul.f32 %v4657, %v4748
        %v4759 = vmul.f32 %v4658, %v4753
        %v4760 = vld [vmem:[#allocation6 + $0x240] sm:$0xff]
        %v4761 = vld [vmem:[#allocation6 + $0x248] sm:$0xff]
        %v4762 = vld [vmem:[#allocation6 + $0x250] sm:$0xff]
        %v4763 = vld [vmem:[#allocation6 + $0x258] sm:$0xff]
        %v4764 = vld [vmem:[#allocation6 + $0x260] sm:$0xff]
        %4765 = vmatprep.subr.mxu0 0.0
        %4766 = vmatpush1.msra.mxu0 %v4319
        %4767 = vmatprep.subr.mxu0 0.0
        %4768 = vmatpush1.msra.mxu0 %v4320
        %4769 = vmatprep.subr.mxu0 0.0
        %4770 = vmatpush1.msra.mxu0 %v4321
        %4771 = vmatprep.subr.mxu0 0.0
        %4772 = vmatpush1.msra.mxu0 %v4322
        %4773 = vmatprep.subr.mxu0 0.0
        %4774 = vmatpush1.msra.mxu0 %v4323
        %4775 = vmatprep.subr.mxu0 0.0
        %4776 = vmatpush1.msra.mxu0 %v4324
        %4777 = vmatprep.subr.mxu0 0.0
        %4778 = vmatpush1.msra.mxu0 %v4325
        %4779 = vmatprep.subr.mxu0 0.0
        %4780 = vmatpush1.msra.mxu0 %v4326
        %4781 = vmatprep.subr.mxu0 0.0
        %4782 = vmatpush1.msra.mxu0 %v4327
        %4783 = vmatprep.subr.mxu0 0.0
        %4784 = vmatpush1.msra.mxu0 %v4328
        %4785 = vmatprep.subr.mxu0 0.0
        %4786 = vmatpush1.msra.mxu0 0.0
        %4787 = vmatprep.subr.mxu0 0.0
        %4788 = vmatpush1.msra.mxu0 0.0
        %4789 = vmatprep.subr.mxu0 0.0
        %4790 = vmatpush1.msra.mxu0 0.0
        %4791 = vmatprep.subr.mxu0 0.0
        %4792 = vmatpush1.msra.mxu0 0.0
        %4793 = vmatprep.subr.mxu0 0.0
        %4794 = vmatpush1.msra.mxu0 0.0
        %4795 = vmatprep.subr.mxu0 0.0
        %4796 = vmatpush1.msra.mxu0 0.0
        %4797 = vmatprep.subr.mxu0 0.0
        %4798 = vmatpush1.msra.mxu0 0.0
        %4799 = vmatprep.subr.mxu0 0.0
        %4800 = vmatpush1.msra.mxu0 0.0
        %4801 = vmatprep.subr.mxu0 0.0
        %4802 = vmatpush1.msra.mxu0 0.0
        %4803 = vmatprep.subr.mxu0 0.0
        %4804 = vmatpush1.msra.mxu0 0.0
        %4805 = vmatprep.subr.mxu0 0.0
        %4806 = vmatpush1.msra.mxu0 0.0
        %4807 = vmatprep.subr.mxu0 0.0
        %4808 = vmatpush1.msra.mxu0 0.0
        %4809 = vmatprep.subr.mxu0 0.0
        %4810 = vmatpush1.msra.mxu0 0.0
        %4811 = vmatprep.subr.mxu0 0.0
        %4812 = vmatpush1.msra.mxu0 0.0
        %4813 = vmatprep.subr.mxu0 0.0
        %4814 = vmatpush1.msra.mxu0 0.0
        %4815 = vmatprep.subr.mxu0 0.0
        %4816 = vmatpush1.msra.mxu0 0.0
        %4817 = vmatprep.subr.mxu0 0.0
        %4818 = vmatpush1.msra.mxu0 0.0
        %4819 = vmatprep.subr.mxu0 0.0
        %4820 = vmatpush1.msra.mxu0 0.0
        %4821 = vmatprep.subr.mxu0 0.0
        %4822 = vmatpush1.msra.mxu0 0.0
        %4823 = vmatprep.subr.mxu0 0.0
        %4824 = vmatpush1.msra.mxu0 0.0
        %4825 = vmatprep.subr.mxu0 0.0
        %4826 = vmatpush1.msra.mxu0 0.0
        %4827 = vmatprep.subr.mxu0 0.0
        %4828 = vmatpush1.msra.mxu0 0.0
        %4829 = vmatprep.mubr.f32.mxu0 0.0
        %4830 = vmatmul.mubr.f32.gmra.mrb[0].mxu0 %v4660
        %v4831 = vpop.f32.mrb[0].mxu0
        %v4832 = vadd.f32 0.0, %v4831
        %v4833 = vpop.f32.mrb[0].mxu0
        %4834 = vmatprep.mubr.f32.mxu0 0.0
        %4835 = vmatmul.mubr.f32.gmra.mrb[0].mxu0 %v4663
        %v4836 = vpop.f32.mrb[0].mxu0
        %v4837 = vadd.f32 0.0, %v4836
        %v4838 = vpop.f32.mrb[0].mxu0
        %4839 = vmatprep.mubr.f32.mxu0 0.0
        %4840 = vmatmul.mubr.f32.gmra.mrb[0].mxu0 %v4666
        %v4841 = vpop.f32.mrb[0].mxu0
        %v4842 = vadd.f32 0.0, %v4841
        %v4843 = vpop.f32.mrb[0].mxu0
        %4844 = vmatprep.mubr.f32.mxu0 0.0
        %4845 = vmatmul.mubr.f32.gmra.mrb[0].mxu0 %v4669
        %v4846 = vpop.f32.mrb[0].mxu0
        %v4847 = vadd.f32 0.0, %v4846
        %v4848 = vpop.f32.mrb[0].mxu0
        %4849 = vdwg.mxu0
        %v4850 = vmul.f32 %v4655, %v4832
        %v4851 = vmul.f32 %v4656, %v4837
        %v4852 = vmul.f32 %v4657, %v4842
        %v4853 = vmul.f32 %v4658, %v4847
        %v4854 = vld [vmem:[#allocation6 + $0x268] sm:$0xff]
        %v4855 = vld [vmem:[#allocation6 + $0x270] sm:$0xff]
        %v4856 = vld [vmem:[#allocation6 + $0x278] sm:$0xff]
        %v4857 = vld [vmem:[#allocation6 + $0x280] sm:$0xff]
        %v4858 = vld [vmem:[#allocation6 + $0x288] sm:$0xff]
        %v4860 = vsel %vm335, %v4850, 0
        %v4863 = vsel %vm335, %v4851, 0
        %v4866 = vsel %vm335, %v4852, 0
        %v4869 = vsel %vm335, %v4853, 0
        %4871 = vmatprep.subr.mxu0 0.0
        %4872 = vmatpush1.msra.mxu0 %v4854
        %4873 = vmatprep.subr.mxu0 0.0
        %4874 = vmatpush1.msra.mxu0 %v4855
        %4875 = vmatprep.subr.mxu0 0.0
        %4876 = vmatpush1.msra.mxu0 %v4856
        %4877 = vmatprep.subr.mxu0 0.0
        %4878 = vmatpush1.msra.mxu0 %v4857
        %4879 = vmatprep.subr.mxu0 0.0
        %4880 = vmatpush1.msra.mxu0 %v4858
        %4881 = vmatprep.subr.mxu0 0.0
        %4882 = vmatpush1.msra.mxu0 0.0
        %4883 = vmatprep.subr.mxu0 0.0
        %4884 = vmatpush1.msra.mxu0 0.0
        %4885 = vmatprep.subr.mxu0 0.0
        %4886 = vmatpush1.msra.mxu0 0.0
        %4887 = vmatprep.subr.mxu0 0.0
        %4888 = vmatpush1.msra.mxu0 0.0
        %4889 = vmatprep.subr.mxu0 0.0
        %4890 = vmatpush1.msra.mxu0 0.0
        %4891 = vmatprep.subr.mxu0 0.0
        %4892 = vmatpush1.msra.mxu0 0.0
        %4893 = vmatprep.subr.mxu0 0.0
        %4894 = vmatpush1.msra.mxu0 0.0
        %4895 = vmatprep.subr.mxu0 0.0
        %4896 = vmatpush1.msra.mxu0 0.0
        %4897 = vmatprep.subr.mxu0 0.0
        %4898 = vmatpush1.msra.mxu0 0.0
        %4899 = vmatprep.subr.mxu0 0.0
        %4900 = vmatpush1.msra.mxu0 0.0
        %4901 = vmatprep.subr.mxu0 0.0
        %4902 = vmatpush1.msra.mxu0 0.0
        %4903 = vmatprep.subr.mxu0 0.0
        %4904 = vmatpush1.msra.mxu0 0.0
        %4905 = vmatprep.subr.mxu0 0.0
        %4906 = vmatpush1.msra.mxu0 0.0
        %4907 = vmatprep.subr.mxu0 0.0
        %4908 = vmatpush1.msra.mxu0 0.0
        %4909 = vmatprep.subr.mxu0 0.0
        %4910 = vmatpush1.msra.mxu0 0.0
        %4911 = vmatprep.subr.mxu0 0.0
        %4912 = vmatpush1.msra.mxu0 0.0
        %4913 = vmatprep.subr.mxu0 0.0
        %4914 = vmatpush1.msra.mxu0 0.0
        %4915 = vmatprep.subr.mxu0 0.0
        %4916 = vmatpush1.msra.mxu0 0.0
        %4917 = vmatprep.subr.mxu0 0.0
        %4918 = vmatpush1.msra.mxu0 0.0
        %4919 = vmatprep.subr.mxu0 0.0
        %4920 = vmatpush1.msra.mxu0 0.0
        %4921 = vmatprep.subr.mxu0 0.0
        %4922 = vmatpush1.msra.mxu0 0.0
        %4923 = vmatprep.subr.mxu0 0.0
        %4924 = vmatpush1.msra.mxu0 0.0
        %4925 = vmatprep.subr.mxu0 0.0
        %4926 = vmatpush1.msra.mxu0 0.0
        %4927 = vmatprep.subr.mxu0 0.0
        %4928 = vmatpush1.msra.mxu0 0.0
        %4929 = vmatprep.subr.mxu0 0.0
        %4930 = vmatpush1.msra.mxu0 0.0
        %4931 = vmatprep.subr.mxu0 0.0
        %4932 = vmatpush1.msra.mxu0 0.0
        %4933 = vmatprep.subr.mxu0 0.0
        %4934 = vmatpush1.msra.mxu0 0.0
        %4935 = vmatprep.mubr.f32.mxu0 0.0
        %4936 = vmatmul.mubr.f32.gmra.mrb[0].mxu0 %v4860
        %v4937 = vpop.f32.mrb[0].mxu0
        %v4938 = vadd.f32 0.0, %v4937
        %v4939 = vpop.f32.mrb[0].mxu0
        %4940 = vmatprep.mubr.f32.mxu0 0.0
        %4941 = vmatmul.mubr.f32.gmra.mrb[0].mxu0 %v4863
        %v4942 = vpop.f32.mrb[0].mxu0
        %v4943 = vadd.f32 0.0, %v4942
        %v4944 = vpop.f32.mrb[0].mxu0
        %4945 = vmatprep.mubr.f32.mxu0 0.0
        %4946 = vmatmul.mubr.f32.gmra.mrb[0].mxu0 %v4866
        %v4947 = vpop.f32.mrb[0].mxu0
        %v4948 = vadd.f32 0.0, %v4947
        %v4949 = vpop.f32.mrb[0].mxu0
        %4950 = vmatprep.mubr.f32.mxu0 0.0
        %4951 = vmatmul.mubr.f32.gmra.mrb[0].mxu0 %v4869
        %v4952 = vpop.f32.mrb[0].mxu0
        %v4953 = vadd.f32 0.0, %v4952
        %v4954 = vpop.f32.mrb[0].mxu0
        %4955 = vdwg.mxu0
        %v4957 = vsel %vm335, %v4756, 0
        %v4960 = vsel %vm335, %v4757, 0
        %v4963 = vsel %vm335, %v4758, 0
        %v4966 = vsel %vm335, %v4759, 0
        %4968 = vmatprep.subr.mxu0 0.0
        %4969 = vmatpush1.msra.mxu0 %v4760
        %4970 = vmatprep.subr.mxu0 0.0
        %4971 = vmatpush1.msra.mxu0 %v4761
        %4972 = vmatprep.subr.mxu0 0.0
        %4973 = vmatpush1.msra.mxu0 %v4762
        %4974 = vmatprep.subr.mxu0 0.0
        %4975 = vmatpush1.msra.mxu0 %v4763
        %4976 = vmatprep.subr.mxu0 0.0
        %4977 = vmatpush1.msra.mxu0 %v4764
        %4978 = vmatprep.subr.mxu0 0.0
        %4979 = vmatpush1.msra.mxu0 0.0
        %4980 = vmatprep.subr.mxu0 0.0
        %4981 = vmatpush1.msra.mxu0 0.0
        %4982 = vmatprep.subr.mxu0 0.0
        %4983 = vmatpush1.msra.mxu0 0.0
        %4984 = vmatprep.subr.mxu0 0.0
        %4985 = vmatpush1.msra.mxu0 0.0
        %4986 = vmatprep.subr.mxu0 0.0
        %4987 = vmatpush1.msra.mxu0 0.0
        %4988 = vmatprep.subr.mxu0 0.0
        %4989 = vmatpush1.msra.mxu0 0.0
        %4990 = vmatprep.subr.mxu0 0.0
        %4991 = vmatpush1.msra.mxu0 0.0
        %4992 = vmatprep.subr.mxu0 0.0
        %4993 = vmatpush1.msra.mxu0 0.0
        %4994 = vmatprep.subr.mxu0 0.0
        %4995 = vmatpush1.msra.mxu0 0.0
        %4996 = vmatprep.subr.mxu0 0.0
        %4997 = vmatpush1.msra.mxu0 0.0
        %4998 = vmatprep.subr.mxu0 0.0
        %4999 = vmatpush1.msra.mxu0 0.0
        %5000 = vmatprep.subr.mxu0 0.0
        %5001 = vmatpush1.msra.mxu0 0.0
        %5002 = vmatprep.subr.mxu0 0.0
        %5003 = vmatpush1.msra.mxu0 0.0
        %5004 = vmatprep.subr.mxu0 0.0
        %5005 = vmatpush1.msra.mxu0 0.0
        %5006 = vmatprep.subr.mxu0 0.0
        %5007 = vmatpush1.msra.mxu0 0.0
        %5008 = vmatprep.subr.mxu0 0.0
        %5009 = vmatpush1.msra.mxu0 0.0
        %5010 = vmatprep.subr.mxu0 0.0
        %5011 = vmatpush1.msra.mxu0 0.0
        %5012 = vmatprep.subr.mxu0 0.0
        %5013 = vmatpush1.msra.mxu0 0.0
        %5014 = vmatprep.subr.mxu0 0.0
        %5015 = vmatpush1.msra.mxu0 0.0
        %5016 = vmatprep.subr.mxu0 0.0
        %5017 = vmatpush1.msra.mxu0 0.0
        %5018 = vmatprep.subr.mxu0 0.0
        %5019 = vmatpush1.msra.mxu0 0.0
        %5020 = vmatprep.subr.mxu0 0.0
        %5021 = vmatpush1.msra.mxu0 0.0
        %5022 = vmatprep.subr.mxu0 0.0
        %5023 = vmatpush1.msra.mxu0 0.0
        %5024 = vmatprep.subr.mxu0 0.0
        %5025 = vmatpush1.msra.mxu0 0.0
        %5026 = vmatprep.subr.mxu0 0.0
        %5027 = vmatpush1.msra.mxu0 0.0
        %5028 = vmatprep.subr.mxu0 0.0
        %5029 = vmatpush1.msra.mxu0 0.0
        %5030 = vmatprep.subr.mxu0 0.0
        %5031 = vmatpush1.msra.mxu0 0.0
        %5032 = vmatprep.mubr.f32.mxu0 0.0
        %5033 = vmatmul.mubr.f32.gmra.mrb[0].mxu0 %v4957
        %v5034 = vpop.f32.mrb[0].mxu0
        %v5035 = vadd.f32 %v4938, %v5034
        %v5036 = vpop.f32.mrb[0].mxu0
        %5037 = vmatprep.mubr.f32.mxu0 0.0
        %5038 = vmatmul.mubr.f32.gmra.mrb[0].mxu0 %v4960
        %v5039 = vpop.f32.mrb[0].mxu0
        %v5040 = vadd.f32 %v4943, %v5039
        %v5041 = vpop.f32.mrb[0].mxu0
        %5042 = vmatprep.mubr.f32.mxu0 0.0
        %5043 = vmatmul.mubr.f32.gmra.mrb[0].mxu0 %v4963
        %v5044 = vpop.f32.mrb[0].mxu0
        %v5045 = vadd.f32 %v4948, %v5044
        %v5046 = vpop.f32.mrb[0].mxu0
        %5047 = vmatprep.mubr.f32.mxu0 0.0
        %5048 = vmatmul.mubr.f32.gmra.mrb[0].mxu0 %v4966
        %v5049 = vpop.f32.mrb[0].mxu0
        %v5050 = vadd.f32 %v4953, %v5049
        %v5051 = vpop.f32.mrb[0].mxu0
        %5052 = vdwg.mxu0
        %v5053 = vld [vmem:[#allocation6 + $0x2f8] sm:$0xff]
        %v5055 = vsel %vm3500, %v5035, 0
        %v5058 = vsel %vm3500, %v5040, 0
        %v5061 = vsel %vm3500, %v5045, 0
        %v5064 = vsel %vm3500, %v5050, 0
        %5066 = vmatprep.subr.mxu0 0.0
        %5067 = vmatpush1.msra.mxu0 %v5053
        %5068 = vmatprep.subr.mxu0 0.0
        %5069 = vmatpush1.msra.mxu0 0.0
        %5070 = vmatprep.subr.mxu0 0.0
        %5071 = vmatpush1.msra.mxu0 0.0
        %5072 = vmatprep.subr.mxu0 0.0
        %5073 = vmatpush1.msra.mxu0 0.0
        %5074 = vmatprep.subr.mxu0 0.0
        %5075 = vmatpush1.msra.mxu0 0.0
        %5076 = vmatprep.subr.mxu0 0.0
        %5077 = vmatpush1.msra.mxu0 0.0
        %5078 = vmatprep.subr.mxu0 0.0
        %5079 = vmatpush1.msra.mxu0 0.0
        %5080 = vmatprep.subr.mxu0 0.0
        %5081 = vmatpush1.msra.mxu0 0.0
        %5082 = vmatprep.subr.mxu0 0.0
        %5083 = vmatpush1.msra.mxu0 0.0
        %5084 = vmatprep.subr.mxu0 0.0
        %5085 = vmatpush1.msra.mxu0 0.0
        %5086 = vmatprep.subr.mxu0 0.0
        %5087 = vmatpush1.msra.mxu0 0.0
        %5088 = vmatprep.subr.mxu0 0.0
        %5089 = vmatpush1.msra.mxu0 0.0
        %5090 = vmatprep.subr.mxu0 0.0
        %5091 = vmatpush1.msra.mxu0 0.0
        %5092 = vmatprep.subr.mxu0 0.0
        %5093 = vmatpush1.msra.mxu0 0.0
        %5094 = vmatprep.subr.mxu0 0.0
        %5095 = vmatpush1.msra.mxu0 0.0
        %5096 = vmatprep.subr.mxu0 0.0
        %5097 = vmatpush1.msra.mxu0 0.0
        %5098 = vmatprep.subr.mxu0 0.0
        %5099 = vmatpush1.msra.mxu0 0.0
        %5100 = vmatprep.subr.mxu0 0.0
        %5101 = vmatpush1.msra.mxu0 0.0
        %5102 = vmatprep.subr.mxu0 0.0
        %5103 = vmatpush1.msra.mxu0 0.0
        %5104 = vmatprep.subr.mxu0 0.0
        %5105 = vmatpush1.msra.mxu0 0.0
        %5106 = vmatprep.subr.mxu0 0.0
        %5107 = vmatpush1.msra.mxu0 0.0
        %5108 = vmatprep.subr.mxu0 0.0
        %5109 = vmatpush1.msra.mxu0 0.0
        %5110 = vmatprep.subr.mxu0 0.0
        %5111 = vmatpush1.msra.mxu0 0.0
        %5112 = vmatprep.subr.mxu0 0.0
        %5113 = vmatpush1.msra.mxu0 0.0
        %5114 = vmatprep.subr.mxu0 0.0
        %5115 = vmatpush1.msra.mxu0 0.0
        %5116 = vmatprep.subr.mxu0 0.0
        %5117 = vmatpush1.msra.mxu0 0.0
        %5118 = vmatprep.subr.mxu0 0.0
        %5119 = vmatpush1.msra.mxu0 0.0
        %5120 = vmatprep.subr.mxu0 0.0
        %5121 = vmatpush1.msra.mxu0 0.0
        %5122 = vmatprep.subr.mxu0 0.0
        %5123 = vmatpush1.msra.mxu0 0.0
        %5124 = vmatprep.subr.mxu0 0.0
        %5125 = vmatpush1.msra.mxu0 0.0
        %5126 = vmatprep.subr.mxu0 0.0
        %5127 = vmatpush1.msra.mxu0 0.0
        %5128 = vmatprep.subr.mxu0 0.0
        %5129 = vmatpush1.msra.mxu0 0.0
        %5130 = vmatprep.mubr.f32.mxu0 0.0
        %5131 = vmatmul.mubr.f32.gmra.mrb[0].mxu0 %v5055
        %v5132 = vpop.f32.mrb[0].mxu0
        %v5133 = vadd.f32 0.0, %v5132
        %v5134 = vpop.f32.mrb[0].mxu0
        %5135 = vmatprep.mubr.f32.mxu0 0.0
        %5136 = vmatmul.mubr.f32.gmra.mrb[0].mxu0 %v5058
        %v5137 = vpop.f32.mrb[0].mxu0
        %v5138 = vadd.f32 0.0, %v5137
        %v5139 = vpop.f32.mrb[0].mxu0
        %5140 = vmatprep.mubr.f32.mxu0 0.0
        %5141 = vmatmul.mubr.f32.gmra.mrb[0].mxu0 %v5061
        %v5142 = vpop.f32.mrb[0].mxu0
        %v5143 = vadd.f32 0.0, %v5142
        %v5144 = vpop.f32.mrb[0].mxu0
        %5145 = vmatprep.mubr.f32.mxu0 0.0
        %5146 = vmatmul.mubr.f32.gmra.mrb[0].mxu0 %v5064
        %v5147 = vpop.f32.mrb[0].mxu0
        %v5148 = vadd.f32 0.0, %v5147
        %v5149 = vpop.f32.mrb[0].mxu0
        %5150 = vdwg.mxu0
        %v5151 = vadd.f32 %v3705, %v5133
        %v5152 = vadd.f32 %v3706, %v5138
        %v5153 = vadd.f32 %v3707, %v5143
        %v5154 = vadd.f32 %v3708, %v5148
        %v5155 = vld [vmem:[#allocation6 + $0x300] sm:$0x1]
        %v5156 = vlaneseq
        %v5157 = vshrl.u32 %v5156, 7
        %v5158 = vsub.s32 0, %v5157
        %v5159 = vrot.slane %v5155, %v5158
        %v5160 = vadd.f32 %v5151, %v5159
        %v5161 = vadd.f32 %v5152, %v5159
        %v5162 = vadd.f32 %v5153, %v5159
        %v5163 = vadd.f32 %v5154, %v5159
        %v5164 = vld [vmem:[#allocation6 + $0x308] sm:$0xff]
        %v5165 = vld [vmem:[#allocation6 + $0x310] sm:$0x1]
        %v5166 = vlaneseq
        %v5167 = vshrl.u32 %v5166, 7
        %v5168 = vsub.s32 0, %v5167
        %v5169 = vrot.slane %v5165, %v5168
        %v5171 = vsel %vm3500, %v5160, 0
        %v5174 = vsel %vm3500, %v5161, 0
        %v5177 = vsel %vm3500, %v5162, 0
        %v5180 = vsel %vm3500, %v5163, 0
        %5182 = vmatprep.subr.mxu0 0.0
        %5183 = vmatpush1.msra.mxu0 %v5164
        %5184 = vmatprep.subr.mxu0 0.0
        %5185 = vmatpush1.msra.mxu0 0.0
        %5186 = vmatprep.subr.mxu0 0.0
        %5187 = vmatpush1.msra.mxu0 0.0
        %5188 = vmatprep.subr.mxu0 0.0
        %5189 = vmatpush1.msra.mxu0 0.0
        %5190 = vmatprep.subr.mxu0 0.0
        %5191 = vmatpush1.msra.mxu0 0.0
        %5192 = vmatprep.subr.mxu0 0.0
        %5193 = vmatpush1.msra.mxu0 0.0
        %5194 = vmatprep.subr.mxu0 0.0
        %5195 = vmatpush1.msra.mxu0 0.0
        %5196 = vmatprep.subr.mxu0 0.0
        %5197 = vmatpush1.msra.mxu0 0.0
        %5198 = vmatprep.subr.mxu0 0.0
        %5199 = vmatpush1.msra.mxu0 0.0
        %5200 = vmatprep.subr.mxu0 0.0
        %5201 = vmatpush1.msra.mxu0 0.0
        %5202 = vmatprep.subr.mxu0 0.0
        %5203 = vmatpush1.msra.mxu0 0.0
        %5204 = vmatprep.subr.mxu0 0.0
        %5205 = vmatpush1.msra.mxu0 0.0
        %5206 = vmatprep.subr.mxu0 0.0
        %5207 = vmatpush1.msra.mxu0 0.0
        %5208 = vmatprep.subr.mxu0 0.0
        %5209 = vmatpush1.msra.mxu0 0.0
        %5210 = vmatprep.subr.mxu0 0.0
        %5211 = vmatpush1.msra.mxu0 0.0
        %5212 = vmatprep.subr.mxu0 0.0
        %5213 = vmatpush1.msra.mxu0 0.0
        %5214 = vmatprep.subr.mxu0 0.0
        %5215 = vmatpush1.msra.mxu0 0.0
        %5216 = vmatprep.subr.mxu0 0.0
        %5217 = vmatpush1.msra.mxu0 0.0
        %5218 = vmatprep.subr.mxu0 0.0
        %5219 = vmatpush1.msra.mxu0 0.0
        %5220 = vmatprep.subr.mxu0 0.0
        %5221 = vmatpush1.msra.mxu0 0.0
        %5222 = vmatprep.subr.mxu0 0.0
        %5223 = vmatpush1.msra.mxu0 0.0
        %5224 = vmatprep.subr.mxu0 0.0
        %5225 = vmatpush1.msra.mxu0 0.0
        %5226 = vmatprep.subr.mxu0 0.0
        %5227 = vmatpush1.msra.mxu0 0.0
        %5228 = vmatprep.subr.mxu0 0.0
        %5229 = vmatpush1.msra.mxu0 0.0
        %5230 = vmatprep.subr.mxu0 0.0
        %5231 = vmatpush1.msra.mxu0 0.0
        %5232 = vmatprep.subr.mxu0 0.0
        %5233 = vmatpush1.msra.mxu0 0.0
        %5234 = vmatprep.subr.mxu0 0.0
        %5235 = vmatpush1.msra.mxu0 0.0
        %5236 = vmatprep.subr.mxu0 0.0
        %5237 = vmatpush1.msra.mxu0 0.0
        %5238 = vmatprep.subr.mxu0 0.0
        %5239 = vmatpush1.msra.mxu0 0.0
        %5240 = vmatprep.subr.mxu0 0.0
        %5241 = vmatpush1.msra.mxu0 0.0
        %5242 = vmatprep.subr.mxu0 0.0
        %5243 = vmatpush1.msra.mxu0 0.0
        %5244 = vmatprep.subr.mxu0 0.0
        %5245 = vmatpush1.msra.mxu0 0.0
        %5246 = vmatprep.mubr.f32.mxu0 0.0
        %5247 = vmatmul.mubr.f32.gmra.mrb[0].mxu0 %v5171
        %v5248 = vpop.f32.mrb[0].mxu0
        %v5249 = vadd.f32 %v5169, %v5248
        %v5250 = vpop.f32.mrb[0].mxu0
        %5251 = vmatprep.mubr.f32.mxu0 0.0
        %5252 = vmatmul.mubr.f32.gmra.mrb[0].mxu0 %v5174
        %v5253 = vpop.f32.mrb[0].mxu0
        %v5254 = vadd.f32 %v5169, %v5253
        %v5255 = vpop.f32.mrb[0].mxu0
        %5256 = vmatprep.mubr.f32.mxu0 0.0
        %5257 = vmatmul.mubr.f32.gmra.mrb[0].mxu0 %v5177
        %v5258 = vpop.f32.mrb[0].mxu0
        %v5259 = vadd.f32 %v5169, %v5258
        %v5260 = vpop.f32.mrb[0].mxu0
        %5261 = vmatprep.mubr.f32.mxu0 0.0
        %5262 = vmatmul.mubr.f32.gmra.mrb[0].mxu0 %v5180
        %v5263 = vpop.f32.mrb[0].mxu0
        %v5264 = vadd.f32 %v5169, %v5263
        %v5265 = vpop.f32.mrb[0].mxu0
        %5266 = vdwg.mxu0
        %v5267 = vld [vmem:[#allocation6 + $0x318] sm:$0xff]
        %v5268 = vld [vmem:[#allocation6 + $0x320] sm:$0xff]
        %v5270 = vsel %vm1770, %v5249, 0
        %v5273 = vsel %vm1770, %v5254, 0
        %v5276 = vsel %vm1770, %v5259, 0
        %v5279 = vsel %vm1770, %v5264, 0
        %5281 = vmatprep.subr.mxu0 0.0
        %5282 = vmatpush1.msra.mxu0 %v5267
        %5283 = vmatprep.subr.mxu0 0.0
        %5284 = vmatpush1.msra.mxu0 %v5268
        %5285 = vmatprep.subr.mxu0 0.0
        %5286 = vmatpush1.msra.mxu0 0.0
        %5287 = vmatprep.subr.mxu0 0.0
        %5288 = vmatpush1.msra.mxu0 0.0
        %5289 = vmatprep.subr.mxu0 0.0
        %5290 = vmatpush1.msra.mxu0 0.0
        %5291 = vmatprep.subr.mxu0 0.0
        %5292 = vmatpush1.msra.mxu0 0.0
        %5293 = vmatprep.subr.mxu0 0.0
        %5294 = vmatpush1.msra.mxu0 0.0
        %5295 = vmatprep.subr.mxu0 0.0
        %5296 = vmatpush1.msra.mxu0 0.0
        %5297 = vmatprep.subr.mxu0 0.0
        %5298 = vmatpush1.msra.mxu0 0.0
        %5299 = vmatprep.subr.mxu0 0.0
        %5300 = vmatpush1.msra.mxu0 0.0
        %5301 = vmatprep.subr.mxu0 0.0
        %5302 = vmatpush1.msra.mxu0 0.0
        %5303 = vmatprep.subr.mxu0 0.0
        %5304 = vmatpush1.msra.mxu0 0.0
        %5305 = vmatprep.subr.mxu0 0.0
        %5306 = vmatpush1.msra.mxu0 0.0
        %5307 = vmatprep.subr.mxu0 0.0
        %5308 = vmatpush1.msra.mxu0 0.0
        %5309 = vmatprep.subr.mxu0 0.0
        %5310 = vmatpush1.msra.mxu0 0.0
        %5311 = vmatprep.subr.mxu0 0.0
        %5312 = vmatpush1.msra.mxu0 0.0
        %5313 = vmatprep.subr.mxu0 0.0
        %5314 = vmatpush1.msra.mxu0 0.0
        %5315 = vmatprep.subr.mxu0 0.0
        %5316 = vmatpush1.msra.mxu0 0.0
        %5317 = vmatprep.subr.mxu0 0.0
        %5318 = vmatpush1.msra.mxu0 0.0
        %5319 = vmatprep.subr.mxu0 0.0
        %5320 = vmatpush1.msra.mxu0 0.0
        %5321 = vmatprep.subr.mxu0 0.0
        %5322 = vmatpush1.msra.mxu0 0.0
        %5323 = vmatprep.subr.mxu0 0.0
        %5324 = vmatpush1.msra.mxu0 0.0
        %5325 = vmatprep.subr.mxu0 0.0
        %5326 = vmatpush1.msra.mxu0 0.0
        %5327 = vmatprep.subr.mxu0 0.0
        %5328 = vmatpush1.msra.mxu0 0.0
        %5329 = vmatprep.subr.mxu0 0.0
        %5330 = vmatpush1.msra.mxu0 0.0
        %5331 = vmatprep.subr.mxu0 0.0
        %5332 = vmatpush1.msra.mxu0 0.0
        %5333 = vmatprep.subr.mxu0 0.0
        %5334 = vmatpush1.msra.mxu0 0.0
        %5335 = vmatprep.subr.mxu0 0.0
        %5336 = vmatpush1.msra.mxu0 0.0
        %5337 = vmatprep.subr.mxu0 0.0
        %5338 = vmatpush1.msra.mxu0 0.0
        %5339 = vmatprep.subr.mxu0 0.0
        %5340 = vmatpush1.msra.mxu0 0.0
        %5341 = vmatprep.subr.mxu0 0.0
        %5342 = vmatpush1.msra.mxu0 0.0
        %5343 = vmatprep.subr.mxu0 0.0
        %5344 = vmatpush1.msra.mxu0 0.0
        %5345 = vmatprep.mubr.f32.mxu0 0.0
        %5346 = vmatmul.mubr.f32.gmra.mrb[0].mxu0 %v5270
        %v5347 = vpop.f32.mrb[0].mxu0
        %v5348 = vadd.f32 0.0, %v5347
        %v5349 = vpop.f32.mrb[0].mxu0
        %5350 = vmatprep.mubr.f32.mxu0 0.0
        %5351 = vmatmul.mubr.f32.gmra.mrb[0].mxu0 %v5273
        %v5352 = vpop.f32.mrb[0].mxu0
        %v5353 = vadd.f32 0.0, %v5352
        %v5354 = vpop.f32.mrb[0].mxu0
        %5355 = vmatprep.mubr.f32.mxu0 0.0
        %5356 = vmatmul.mubr.f32.gmra.mrb[0].mxu0 %v5276
        %v5357 = vpop.f32.mrb[0].mxu0
        %v5358 = vadd.f32 0.0, %v5357
        %v5359 = vpop.f32.mrb[0].mxu0
        %5360 = vmatprep.mubr.f32.mxu0 0.0
        %5361 = vmatmul.mubr.f32.gmra.mrb[0].mxu0 %v5279
        %v5362 = vpop.f32.mrb[0].mxu0
        %v5363 = vadd.f32 0.0, %v5362
        %v5364 = vpop.f32.mrb[0].mxu0
        %5365 = vdwg.mxu0
        %v5366 = vadd.f32 %v5160, %v5348
        %v5367 = vadd.f32 %v5161, %v5353
        %v5368 = vadd.f32 %v5162, %v5358
        %v5369 = vadd.f32 %v5163, %v5363
        %v5370 = vld [vmem:[#allocation6 + $0x328] sm:$0x1]
        %v5371 = vlaneseq
        %v5372 = vshrl.u32 %v5371, 7
        %v5373 = vsub.s32 0, %v5372
        %v5374 = vrot.slane %v5370, %v5373
        %v5375 = vadd.f32 %v5366, %v5374
        %v5376 = vadd.f32 %v5367, %v5374
        %v5377 = vadd.f32 %v5368, %v5374
        %v5378 = vadd.f32 %v5369, %v5374
        %v5379 = vld [vmem:[#allocation6 + $0x398] sm:$0xff]
        %v5380 = vld [vmem:[#allocation6 + $0x3a0] sm:$0x1]
        %v5381 = vlaneseq
        %v5382 = vshrl.u32 %v5381, 7
        %v5383 = vsub.s32 0, %v5382
        %v5384 = vrot.slane %v5380, %v5383
        %v5386 = vsel %vm3500, %v5375, 0
        %v5389 = vsel %vm3500, %v5376, 0
        %v5392 = vsel %vm3500, %v5377, 0
        %v5395 = vsel %vm3500, %v5378, 0
        %5397 = vmatprep.subr.mxu0 0.0
        %5398 = vmatpush1.msra.mxu0 %v5379
        %5399 = vmatprep.subr.mxu0 0.0
        %5400 = vmatpush1.msra.mxu0 0.0
        %5401 = vmatprep.subr.mxu0 0.0
        %5402 = vmatpush1.msra.mxu0 0.0
        %5403 = vmatprep.subr.mxu0 0.0
        %5404 = vmatpush1.msra.mxu0 0.0
        %5405 = vmatprep.subr.mxu0 0.0
        %5406 = vmatpush1.msra.mxu0 0.0
        %5407 = vmatprep.subr.mxu0 0.0
        %5408 = vmatpush1.msra.mxu0 0.0
        %5409 = vmatprep.subr.mxu0 0.0
        %5410 = vmatpush1.msra.mxu0 0.0
        %5411 = vmatprep.subr.mxu0 0.0
        %5412 = vmatpush1.msra.mxu0 0.0
        %5413 = vmatprep.subr.mxu0 0.0
        %5414 = vmatpush1.msra.mxu0 0.0
        %5415 = vmatprep.subr.mxu0 0.0
        %5416 = vmatpush1.msra.mxu0 0.0
        %5417 = vmatprep.subr.mxu0 0.0
        %5418 = vmatpush1.msra.mxu0 0.0
        %5419 = vmatprep.subr.mxu0 0.0
        %5420 = vmatpush1.msra.mxu0 0.0
        %5421 = vmatprep.subr.mxu0 0.0
        %5422 = vmatpush1.msra.mxu0 0.0
        %5423 = vmatprep.subr.mxu0 0.0
        %5424 = vmatpush1.msra.mxu0 0.0
        %5425 = vmatprep.subr.mxu0 0.0
        %5426 = vmatpush1.msra.mxu0 0.0
        %5427 = vmatprep.subr.mxu0 0.0
        %5428 = vmatpush1.msra.mxu0 0.0
        %5429 = vmatprep.subr.mxu0 0.0
        %5430 = vmatpush1.msra.mxu0 0.0
        %5431 = vmatprep.subr.mxu0 0.0
        %5432 = vmatpush1.msra.mxu0 0.0
        %5433 = vmatprep.subr.mxu0 0.0
        %5434 = vmatpush1.msra.mxu0 0.0
        %5435 = vmatprep.subr.mxu0 0.0
        %5436 = vmatpush1.msra.mxu0 0.0
        %5437 = vmatprep.subr.mxu0 0.0
        %5438 = vmatpush1.msra.mxu0 0.0
        %5439 = vmatprep.subr.mxu0 0.0
        %5440 = vmatpush1.msra.mxu0 0.0
        %5441 = vmatprep.subr.mxu0 0.0
        %5442 = vmatpush1.msra.mxu0 0.0
        %5443 = vmatprep.subr.mxu0 0.0
        %5444 = vmatpush1.msra.mxu0 0.0
        %5445 = vmatprep.subr.mxu0 0.0
        %5446 = vmatpush1.msra.mxu0 0.0
        %5447 = vmatprep.subr.mxu0 0.0
        %5448 = vmatpush1.msra.mxu0 0.0
        %5449 = vmatprep.subr.mxu0 0.0
        %5450 = vmatpush1.msra.mxu0 0.0
        %5451 = vmatprep.subr.mxu0 0.0
        %5452 = vmatpush1.msra.mxu0 0.0
        %5453 = vmatprep.subr.mxu0 0.0
        %5454 = vmatpush1.msra.mxu0 0.0
        %5455 = vmatprep.subr.mxu0 0.0
        %5456 = vmatpush1.msra.mxu0 0.0
        %5457 = vmatprep.subr.mxu0 0.0
        %5458 = vmatpush1.msra.mxu0 0.0
        %5459 = vmatprep.subr.mxu0 0.0
        %5460 = vmatpush1.msra.mxu0 0.0
        %5461 = vmatprep.mubr.f32.mxu0 0.0
        %5462 = vmatmul.mubr.f32.gmra.mrb[0].mxu0 %v5386
        %v5463 = vpop.f32.mrb[0].mxu0
        %v5464 = vadd.f32 %v5384, %v5463
        %v5465 = vpop.f32.mrb[0].mxu0
        %5466 = vmatprep.mubr.f32.mxu0 0.0
        %5467 = vmatmul.mubr.f32.gmra.mrb[0].mxu0 %v5389
        %v5468 = vpop.f32.mrb[0].mxu0
        %v5469 = vadd.f32 %v5384, %v5468
        %v5470 = vpop.f32.mrb[0].mxu0
        %5471 = vmatprep.mubr.f32.mxu0 0.0
        %5472 = vmatmul.mubr.f32.gmra.mrb[0].mxu0 %v5392
        %v5473 = vpop.f32.mrb[0].mxu0
        %v5474 = vadd.f32 %v5384, %v5473
        %v5475 = vpop.f32.mrb[0].mxu0
        %5476 = vmatprep.mubr.f32.mxu0 0.0
        %5477 = vmatmul.mubr.f32.gmra.mrb[0].mxu0 %v5395
        %v5478 = vpop.f32.mrb[0].mxu0
        %v5479 = vadd.f32 %v5384, %v5478
        %v5480 = vpop.f32.mrb[0].mxu0
        %5481 = vdwg.mxu0
        %v5482 = vsub.f32 0.0, %v5464
        %v5483 = vsub.f32 0.0, %v5469
        %v5484 = vsub.f32 0.0, %v5474
        %v5485 = vsub.f32 0.0, %v5479
        %v5486 = vmul.f32 %v5482, 1.442695
        %v5487 = vpow.pop %v5486
        %v5488 = vmul.f32 %v5483, 1.442695
        %v5489 = vpow.pop %v5488
        %v5490 = vmul.f32 %v5484, 1.442695
        %v5491 = vpow.pop %v5490
        %v5492 = vmul.f32 %v5485, 1.442695
        %v5493 = vpow.pop %v5492
        %v5494 = vadd.f32 %v5487, 1.0
        %v5495 = vadd.f32 %v5489, 1.0
        %v5496 = vadd.f32 %v5491, 1.0
        %v5497 = vadd.f32 %v5493, 1.0
        %v5498 = vrcp.pop %v5494
        %v5499 = vrcp.pop %v5495
        %v5500 = vrcp.pop %v5496
        %v5501 = vrcp.pop %v5497
        %v5502 = vld [vmem:[#allocation6 + $0x2c0] sm:$0xf]
        %v5504 = vsel %vm4549, %v5498, 0
        %v5507 = vsel %vm4549, %v5499, 0
        %v5510 = vsel %vm4549, %v5500, 0
        %v5513 = vsel %vm4549, %v5501, 0
        %v5516 = vsel %vm4562, %v5502, 0
        %5518 = vmatprep.subr.mxu0 0.0
        %5519 = vmatpush1.msra.mxu0 %v5516
        %5520 = vmatprep.subr.mxu0 0.0
        %5521 = vmatpush1.msra.mxu0 0.0
        %5522 = vmatprep.subr.mxu0 0.0
        %5523 = vmatpush1.msra.mxu0 0.0
        %5524 = vmatprep.subr.mxu0 0.0
        %5525 = vmatpush1.msra.mxu0 0.0
        %5526 = vmatprep.subr.mxu0 0.0
        %5527 = vmatpush1.msra.mxu0 0.0
        %5528 = vmatprep.subr.mxu0 0.0
        %5529 = vmatpush1.msra.mxu0 0.0
        %5530 = vmatprep.subr.mxu0 0.0
        %5531 = vmatpush1.msra.mxu0 0.0
        %5532 = vmatprep.subr.mxu0 0.0
        %5533 = vmatpush1.msra.mxu0 0.0
        %5534 = vmatprep.subr.mxu0 0.0
        %5535 = vmatpush1.msra.mxu0 0.0
        %5536 = vmatprep.subr.mxu0 0.0
        %5537 = vmatpush1.msra.mxu0 0.0
        %5538 = vmatprep.subr.mxu0 0.0
        %5539 = vmatpush1.msra.mxu0 0.0
        %5540 = vmatprep.subr.mxu0 0.0
        %5541 = vmatpush1.msra.mxu0 0.0
        %5542 = vmatprep.subr.mxu0 0.0
        %5543 = vmatpush1.msra.mxu0 0.0
        %5544 = vmatprep.subr.mxu0 0.0
        %5545 = vmatpush1.msra.mxu0 0.0
        %5546 = vmatprep.subr.mxu0 0.0
        %5547 = vmatpush1.msra.mxu0 0.0
        %5548 = vmatprep.subr.mxu0 0.0
        %5549 = vmatpush1.msra.mxu0 0.0
        %5550 = vmatprep.subr.mxu0 0.0
        %5551 = vmatpush1.msra.mxu0 0.0
        %5552 = vmatprep.subr.mxu0 0.0
        %5553 = vmatpush1.msra.mxu0 0.0
        %5554 = vmatprep.subr.mxu0 0.0
        %5555 = vmatpush1.msra.mxu0 0.0
        %5556 = vmatprep.subr.mxu0 0.0
        %5557 = vmatpush1.msra.mxu0 0.0
        %5558 = vmatprep.subr.mxu0 0.0
        %5559 = vmatpush1.msra.mxu0 0.0
        %5560 = vmatprep.subr.mxu0 0.0
        %5561 = vmatpush1.msra.mxu0 0.0
        %5562 = vmatprep.subr.mxu0 0.0
        %5563 = vmatpush1.msra.mxu0 0.0
        %5564 = vmatprep.subr.mxu0 0.0
        %5565 = vmatpush1.msra.mxu0 0.0
        %5566 = vmatprep.subr.mxu0 0.0
        %5567 = vmatpush1.msra.mxu0 0.0
        %5568 = vmatprep.subr.mxu0 0.0
        %5569 = vmatpush1.msra.mxu0 0.0
        %5570 = vmatprep.subr.mxu0 0.0
        %5571 = vmatpush1.msra.mxu0 0.0
        %5572 = vmatprep.subr.mxu0 0.0
        %5573 = vmatpush1.msra.mxu0 0.0
        %5574 = vmatprep.subr.mxu0 0.0
        %5575 = vmatpush1.msra.mxu0 0.0
        %5576 = vmatprep.subr.mxu0 0.0
        %5577 = vmatpush1.msra.mxu0 0.0
        %5578 = vmatprep.subr.mxu0 0.0
        %5579 = vmatpush1.msra.mxu0 0.0
        %5580 = vmatprep.subr.mxu0 0.0
        %5581 = vmatpush1.msra.mxu0 0.0
        %5582 = vmatprep.mubr.f32.mxu0 0.0
        %5583 = vmatmul.mubr.f32.gmra.mrb[0].mxu0 %v5504
        %v5584 = vpop.f32.mrb[0].mxu0
        %v5585 = vadd.f32 0.0, %v5584
        %v5586 = vpop.f32.mrb[0].mxu0
        %5587 = vmatprep.mubr.f32.mxu0 0.0
        %5588 = vmatmul.mubr.f32.gmra.mrb[0].mxu0 %v5507
        %v5589 = vpop.f32.mrb[0].mxu0
        %v5590 = vadd.f32 0.0, %v5589
        %v5591 = vpop.f32.mrb[0].mxu0
        %5592 = vmatprep.mubr.f32.mxu0 0.0
        %5593 = vmatmul.mubr.f32.gmra.mrb[0].mxu0 %v5510
        %v5594 = vpop.f32.mrb[0].mxu0
        %v5595 = vadd.f32 0.0, %v5594
        %v5596 = vpop.f32.mrb[0].mxu0
        %5597 = vmatprep.mubr.f32.mxu0 0.0
        %5598 = vmatmul.mubr.f32.gmra.mrb[0].mxu0 %v5513
        %v5599 = vpop.f32.mrb[0].mxu0
        %v5600 = vadd.f32 0.0, %v5599
        %v5601 = vpop.f32.mrb[0].mxu0
        %5602 = vdwg.mxu0
        %v5603 = vsub.f32 %v5585, %v321
        %v5604 = vsub.f32 %v5590, %v322
        %v5605 = vsub.f32 %v5595, %v323
        %v5606 = vsub.f32 %v5600, %v324
        %v5607 = vmul.f32 %v5603, %v5603
        %v5608 = vmul.f32 %v5604, %v5604
        %v5609 = vmul.f32 %v5605, %v5605
        %v5610 = vmul.f32 %v5606, %v5606
        %v5611 = vld [vmem:[#allocation4 + $0x348] sm:$0xff]
        %v5612 = vld [vmem:[#allocation4 + $0x350] sm:$0xff]
        %v5613 = vld [vmem:[#allocation4 + $0x358] sm:$0xff]
        %v5614 = vld [vmem:[#allocation4 + $0x360] sm:$0xff]
        %v5615 = vld [vmem:[#allocation4 + $0x368] sm:$0xff]
        %v5617 = vsel %vm335, %v5607, 0
        %v5620 = vsel %vm335, %v5608, 0
        %v5623 = vsel %vm335, %v5609, 0
        %v5626 = vsel %vm335, %v5610, 0
        %5628 = vmatprep.subr.mxu0 0.0
        %5629 = vmatpush1.msra.mxu0 %v5611
        %5630 = vmatprep.subr.mxu0 0.0
        %5631 = vmatpush1.msra.mxu0 %v5612
        %5632 = vmatprep.subr.mxu0 0.0
        %5633 = vmatpush1.msra.mxu0 %v5613
        %5634 = vmatprep.subr.mxu0 0.0
        %5635 = vmatpush1.msra.mxu0 %v5614
        %5636 = vmatprep.subr.mxu0 0.0
        %5637 = vmatpush1.msra.mxu0 %v5615
        %5638 = vmatprep.subr.mxu0 0.0
        %5639 = vmatpush1.msra.mxu0 0.0
        %5640 = vmatprep.subr.mxu0 0.0
        %5641 = vmatpush1.msra.mxu0 0.0
        %5642 = vmatprep.subr.mxu0 0.0
        %5643 = vmatpush1.msra.mxu0 0.0
        %5644 = vmatprep.subr.mxu0 0.0
        %5645 = vmatpush1.msra.mxu0 0.0
        %5646 = vmatprep.subr.mxu0 0.0
        %5647 = vmatpush1.msra.mxu0 0.0
        %5648 = vmatprep.subr.mxu0 0.0
        %5649 = vmatpush1.msra.mxu0 0.0
        %5650 = vmatprep.subr.mxu0 0.0
        %5651 = vmatpush1.msra.mxu0 0.0
        %5652 = vmatprep.subr.mxu0 0.0
        %5653 = vmatpush1.msra.mxu0 0.0
        %5654 = vmatprep.subr.mxu0 0.0
        %5655 = vmatpush1.msra.mxu0 0.0
        %5656 = vmatprep.subr.mxu0 0.0
        %5657 = vmatpush1.msra.mxu0 0.0
        %5658 = vmatprep.subr.mxu0 0.0
        %5659 = vmatpush1.msra.mxu0 0.0
        %5660 = vmatprep.subr.mxu0 0.0
        %5661 = vmatpush1.msra.mxu0 0.0
        %5662 = vmatprep.subr.mxu0 0.0
        %5663 = vmatpush1.msra.mxu0 0.0
        %5664 = vmatprep.subr.mxu0 0.0
        %5665 = vmatpush1.msra.mxu0 0.0
        %5666 = vmatprep.subr.mxu0 0.0
        %5667 = vmatpush1.msra.mxu0 0.0
        %5668 = vmatprep.subr.mxu0 0.0
        %5669 = vmatpush1.msra.mxu0 0.0
        %5670 = vmatprep.subr.mxu0 0.0
        %5671 = vmatpush1.msra.mxu0 0.0
        %5672 = vmatprep.subr.mxu0 0.0
        %5673 = vmatpush1.msra.mxu0 0.0
        %5674 = vmatprep.subr.mxu0 0.0
        %5675 = vmatpush1.msra.mxu0 0.0
        %5676 = vmatprep.subr.mxu0 0.0
        %5677 = vmatpush1.msra.mxu0 0.0
        %5678 = vmatprep.subr.mxu0 0.0
        %5679 = vmatpush1.msra.mxu0 0.0
        %5680 = vmatprep.subr.mxu0 0.0
        %5681 = vmatpush1.msra.mxu0 0.0
        %5682 = vmatprep.subr.mxu0 0.0
        %5683 = vmatpush1.msra.mxu0 0.0
        %5684 = vmatprep.subr.mxu0 0.0
        %5685 = vmatpush1.msra.mxu0 0.0
        %5686 = vmatprep.subr.mxu0 0.0
        %5687 = vmatpush1.msra.mxu0 0.0
        %5688 = vmatprep.subr.mxu0 0.0
        %5689 = vmatpush1.msra.mxu0 0.0
        %5690 = vmatprep.subr.mxu0 0.0
        %5691 = vmatpush1.msra.mxu0 0.0
        %5692 = vmatprep.mubr.f32.mxu0 0.0
        %5693 = vmatmul.mubr.f32.gmra.mrb[0].mxu0 %v5617
        %v5694 = vpop.f32.mrb[0].mxu0
        %v5695 = vadd.f32 0.0, %v5694
        %v5696 = vpop.f32.mrb[0].mxu0
        %5697 = vmatprep.mubr.f32.mxu0 0.0
        %5698 = vmatmul.mubr.f32.gmra.mrb[0].mxu0 %v5620
        %v5699 = vpop.f32.mrb[0].mxu0
        %v5700 = vadd.f32 0.0, %v5699
        %v5701 = vpop.f32.mrb[0].mxu0
        %5702 = vmatprep.mubr.f32.mxu0 0.0
        %5703 = vmatmul.mubr.f32.gmra.mrb[0].mxu0 %v5623
        %v5704 = vpop.f32.mrb[0].mxu0
        %v5705 = vadd.f32 0.0, %v5704
        %v5706 = vpop.f32.mrb[0].mxu0
        %5707 = vmatprep.mubr.f32.mxu0 0.0
        %5708 = vmatmul.mubr.f32.gmra.mrb[0].mxu0 %v5626
        %v5709 = vpop.f32.mrb[0].mxu0
        %v5710 = vadd.f32 0.0, %v5709
        %v5711 = vpop.f32.mrb[0].mxu0
        %5712 = vdwg.mxu0
        %v5713 = vadd.f32 %v415, %v5695
        %v5714 = vadd.f32 %v420, %v5700
        %v5715 = vadd.f32 %v425, %v5705
        %v5716 = vadd.f32 %v430, %v5710
        %v5717 = vadd.f32 %v5713, %v436
        %v5718 = vadd.f32 %v5714, %v436
        %v5719 = vadd.f32 %v5715, %v436
        %v5720 = vadd.f32 %v5716, %v436
        %v5722 = vsel %vm456, %v5717, 0
        %v5725 = vsel %vm456, %v5718, 0
        %v5728 = vsel %vm456, %v5719, 0
        %v5731 = vsel %vm456, %v5720, 0
        %5733 = vmatprep.subr.mxu0 0.0
        %5734 = vmatpush1.msra.mxu0 %v441
        %5735 = vmatprep.subr.mxu0 0.0
        %5736 = vmatpush1.msra.mxu0 %v442
        %5737 = vmatprep.subr.mxu0 0.0
        %5738 = vmatpush1.msra.mxu0 %v443
        %5739 = vmatprep.subr.mxu0 0.0
        %5740 = vmatpush1.msra.mxu0 %v444
        %5741 = vmatprep.subr.mxu0 0.0
        %5742 = vmatpush1.msra.mxu0 %v445
        %5743 = vmatprep.subr.mxu0 0.0
        %5744 = vmatpush1.msra.mxu0 %v446
        %5745 = vmatprep.subr.mxu0 0.0
        %5746 = vmatpush1.msra.mxu0 %v447
        %5747 = vmatprep.subr.mxu0 0.0
        %5748 = vmatpush1.msra.mxu0 %v448
        %5749 = vmatprep.subr.mxu0 0.0
        %5750 = vmatpush1.msra.mxu0 %v449
        %5751 = vmatprep.subr.mxu0 0.0
        %5752 = vmatpush1.msra.mxu0 %v450
        %5753 = vmatprep.subr.mxu0 0.0
        %5754 = vmatpush1.msra.mxu0 0.0
        %5755 = vmatprep.subr.mxu0 0.0
        %5756 = vmatpush1.msra.mxu0 0.0
        %5757 = vmatprep.subr.mxu0 0.0
        %5758 = vmatpush1.msra.mxu0 0.0
        %5759 = vmatprep.subr.mxu0 0.0
        %5760 = vmatpush1.msra.mxu0 0.0
        %5761 = vmatprep.subr.mxu0 0.0
        %5762 = vmatpush1.msra.mxu0 0.0
        %5763 = vmatprep.subr.mxu0 0.0
        %5764 = vmatpush1.msra.mxu0 0.0
        %5765 = vmatprep.subr.mxu0 0.0
        %5766 = vmatpush1.msra.mxu0 0.0
        %5767 = vmatprep.subr.mxu0 0.0
        %5768 = vmatpush1.msra.mxu0 0.0
        %5769 = vmatprep.subr.mxu0 0.0
        %5770 = vmatpush1.msra.mxu0 0.0
        %5771 = vmatprep.subr.mxu0 0.0
        %5772 = vmatpush1.msra.mxu0 0.0
        %5773 = vmatprep.subr.mxu0 0.0
        %5774 = vmatpush1.msra.mxu0 0.0
        %5775 = vmatprep.subr.mxu0 0.0
        %5776 = vmatpush1.msra.mxu0 0.0
        %5777 = vmatprep.subr.mxu0 0.0
        %5778 = vmatpush1.msra.mxu0 0.0
        %5779 = vmatprep.subr.mxu0 0.0
        %5780 = vmatpush1.msra.mxu0 0.0
        %5781 = vmatprep.subr.mxu0 0.0
        %5782 = vmatpush1.msra.mxu0 0.0
        %5783 = vmatprep.subr.mxu0 0.0
        %5784 = vmatpush1.msra.mxu0 0.0
        %5785 = vmatprep.subr.mxu0 0.0
        %5786 = vmatpush1.msra.mxu0 0.0
        %5787 = vmatprep.subr.mxu0 0.0
        %5788 = vmatpush1.msra.mxu0 0.0
        %5789 = vmatprep.subr.mxu0 0.0
        %5790 = vmatpush1.msra.mxu0 0.0
        %5791 = vmatprep.subr.mxu0 0.0
        %5792 = vmatpush1.msra.mxu0 0.0
        %5793 = vmatprep.subr.mxu0 0.0
        %5794 = vmatpush1.msra.mxu0 0.0
        %5795 = vmatprep.subr.mxu0 0.0
        %5796 = vmatpush1.msra.mxu0 0.0
        %5797 = vmatprep.mubr.f32.mxu0 0.0
        %5798 = vmatmul.mubr.f32.gmra.mrb[0].mxu0 %v5722
        %v5799 = vpop.f32.mrb[0].mxu0
        %v5800 = vadd.f32 %v455, %v5799
        %v5801 = vpop.f32.mrb[0].mxu0
        %5802 = vmatprep.mubr.f32.mxu0 0.0
        %5803 = vmatmul.mubr.f32.gmra.mrb[0].mxu0 %v5725
        %v5804 = vpop.f32.mrb[0].mxu0
        %v5805 = vadd.f32 %v455, %v5804
        %v5806 = vpop.f32.mrb[0].mxu0
        %5807 = vmatprep.mubr.f32.mxu0 0.0
        %5808 = vmatmul.mubr.f32.gmra.mrb[0].mxu0 %v5728
        %v5809 = vpop.f32.mrb[0].mxu0
        %v5810 = vadd.f32 %v455, %v5809
        %v5811 = vpop.f32.mrb[0].mxu0
        %5812 = vmatprep.mubr.f32.mxu0 0.0
        %5813 = vmatmul.mubr.f32.gmra.mrb[0].mxu0 %v5731
        %v5814 = vpop.f32.mrb[0].mxu0
        %v5815 = vadd.f32 %v455, %v5814
        %v5816 = vpop.f32.mrb[0].mxu0
        %5817 = vdwg.mxu0
        %5818 = vmatprep.subr.mxu0 0.0
        %5819 = vmatpush1.msra.mxu0 %v554
        %5820 = vmatprep.subr.mxu0 0.0
        %5821 = vmatpush1.msra.mxu0 %v555
        %5822 = vmatprep.subr.mxu0 0.0
        %5823 = vmatpush1.msra.mxu0 %v556
        %5824 = vmatprep.subr.mxu0 0.0
        %5825 = vmatpush1.msra.mxu0 %v557
        %5826 = vmatprep.subr.mxu0 0.0
        %5827 = vmatpush1.msra.mxu0 %v558
        %5828 = vmatprep.subr.mxu0 0.0
        %5829 = vmatpush1.msra.mxu0 %v559
        %5830 = vmatprep.subr.mxu0 0.0
        %5831 = vmatpush1.msra.mxu0 %v560
        %5832 = vmatprep.subr.mxu0 0.0
        %5833 = vmatpush1.msra.mxu0 %v561
        %5834 = vmatprep.subr.mxu0 0.0
        %5835 = vmatpush1.msra.mxu0 %v562
        %5836 = vmatprep.subr.mxu0 0.0
        %5837 = vmatpush1.msra.mxu0 %v563
        %5838 = vmatprep.subr.mxu0 0.0
        %5839 = vmatpush1.msra.mxu0 0.0
        %5840 = vmatprep.subr.mxu0 0.0
        %5841 = vmatpush1.msra.mxu0 0.0
        %5842 = vmatprep.subr.mxu0 0.0
        %5843 = vmatpush1.msra.mxu0 0.0
        %5844 = vmatprep.subr.mxu0 0.0
        %5845 = vmatpush1.msra.mxu0 0.0
        %5846 = vmatprep.subr.mxu0 0.0
        %5847 = vmatpush1.msra.mxu0 0.0
        %5848 = vmatprep.subr.mxu0 0.0
        %5849 = vmatpush1.msra.mxu0 0.0
        %5850 = vmatprep.subr.mxu0 0.0
        %5851 = vmatpush1.msra.mxu0 0.0
        %5852 = vmatprep.subr.mxu0 0.0
        %5853 = vmatpush1.msra.mxu0 0.0
        %5854 = vmatprep.subr.mxu0 0.0
        %5855 = vmatpush1.msra.mxu0 0.0
        %5856 = vmatprep.subr.mxu0 0.0
        %5857 = vmatpush1.msra.mxu0 0.0
        %5858 = vmatprep.subr.mxu0 0.0
        %5859 = vmatpush1.msra.mxu0 0.0
        %5860 = vmatprep.subr.mxu0 0.0
        %5861 = vmatpush1.msra.mxu0 0.0
        %5862 = vmatprep.subr.mxu0 0.0
        %5863 = vmatpush1.msra.mxu0 0.0
        %5864 = vmatprep.subr.mxu0 0.0
        %5865 = vmatpush1.msra.mxu0 0.0
        %5866 = vmatprep.subr.mxu0 0.0
        %5867 = vmatpush1.msra.mxu0 0.0
        %5868 = vmatprep.subr.mxu0 0.0
        %5869 = vmatpush1.msra.mxu0 0.0
        %5870 = vmatprep.subr.mxu0 0.0
        %5871 = vmatpush1.msra.mxu0 0.0
        %5872 = vmatprep.subr.mxu0 0.0
        %5873 = vmatpush1.msra.mxu0 0.0
        %5874 = vmatprep.subr.mxu0 0.0
        %5875 = vmatpush1.msra.mxu0 0.0
        %5876 = vmatprep.subr.mxu0 0.0
        %5877 = vmatpush1.msra.mxu0 0.0
        %5878 = vmatprep.subr.mxu0 0.0
        %5879 = vmatpush1.msra.mxu0 0.0
        %5880 = vmatprep.subr.mxu0 0.0
        %5881 = vmatpush1.msra.mxu0 0.0
        %5882 = vmatprep.mubr.f32.mxu0 0.0
        %5883 = vmatmul.mubr.f32.gmra.mrb[0].mxu0 %v5722
        %v5884 = vpop.f32.mrb[0].mxu0
        %v5885 = vadd.f32 %v568, %v5884
        %v5886 = vpop.f32.mrb[0].mxu0
        %5887 = vmatprep.mubr.f32.mxu0 0.0
        %5888 = vmatmul.mubr.f32.gmra.mrb[0].mxu0 %v5725
        %v5889 = vpop.f32.mrb[0].mxu0
        %v5890 = vadd.f32 %v568, %v5889
        %v5891 = vpop.f32.mrb[0].mxu0
        %5892 = vmatprep.mubr.f32.mxu0 0.0
        %5893 = vmatmul.mubr.f32.gmra.mrb[0].mxu0 %v5728
        %v5894 = vpop.f32.mrb[0].mxu0
        %v5895 = vadd.f32 %v568, %v5894
        %v5896 = vpop.f32.mrb[0].mxu0
        %5897 = vmatprep.mubr.f32.mxu0 0.0
        %5898 = vmatmul.mubr.f32.gmra.mrb[0].mxu0 %v5731
        %v5899 = vpop.f32.mrb[0].mxu0
        %v5900 = vadd.f32 %v568, %v5899
        %v5901 = vpop.f32.mrb[0].mxu0
        %5902 = vdwg.mxu0
        %5903 = vmatprep.subr.mxu0 0.0
        %5904 = vmatpush1.msra.mxu0 %v654
        %5905 = vmatprep.subr.mxu0 0.0
        %5906 = vmatpush1.msra.mxu0 %v655
        %5907 = vmatprep.subr.mxu0 0.0
        %5908 = vmatpush1.msra.mxu0 %v656
        %5909 = vmatprep.subr.mxu0 0.0
        %5910 = vmatpush1.msra.mxu0 %v657
        %5911 = vmatprep.subr.mxu0 0.0
        %5912 = vmatpush1.msra.mxu0 %v658
        %5913 = vmatprep.subr.mxu0 0.0
        %5914 = vmatpush1.msra.mxu0 %v659
        %5915 = vmatprep.subr.mxu0 0.0
        %5916 = vmatpush1.msra.mxu0 %v660
        %5917 = vmatprep.subr.mxu0 0.0
        %5918 = vmatpush1.msra.mxu0 %v661
        %5919 = vmatprep.subr.mxu0 0.0
        %5920 = vmatpush1.msra.mxu0 %v662
        %5921 = vmatprep.subr.mxu0 0.0
        %5922 = vmatpush1.msra.mxu0 %v663
        %5923 = vmatprep.subr.mxu0 0.0
        %5924 = vmatpush1.msra.mxu0 0.0
        %5925 = vmatprep.subr.mxu0 0.0
        %5926 = vmatpush1.msra.mxu0 0.0
        %5927 = vmatprep.subr.mxu0 0.0
        %5928 = vmatpush1.msra.mxu0 0.0
        %5929 = vmatprep.subr.mxu0 0.0
        %5930 = vmatpush1.msra.mxu0 0.0
        %5931 = vmatprep.subr.mxu0 0.0
        %5932 = vmatpush1.msra.mxu0 0.0
        %5933 = vmatprep.subr.mxu0 0.0
        %5934 = vmatpush1.msra.mxu0 0.0
        %5935 = vmatprep.subr.mxu0 0.0
        %5936 = vmatpush1.msra.mxu0 0.0
        %5937 = vmatprep.subr.mxu0 0.0
        %5938 = vmatpush1.msra.mxu0 0.0
        %5939 = vmatprep.subr.mxu0 0.0
        %5940 = vmatpush1.msra.mxu0 0.0
        %5941 = vmatprep.subr.mxu0 0.0
        %5942 = vmatpush1.msra.mxu0 0.0
        %5943 = vmatprep.subr.mxu0 0.0
        %5944 = vmatpush1.msra.mxu0 0.0
        %5945 = vmatprep.subr.mxu0 0.0
        %5946 = vmatpush1.msra.mxu0 0.0
        %5947 = vmatprep.subr.mxu0 0.0
        %5948 = vmatpush1.msra.mxu0 0.0
        %5949 = vmatprep.subr.mxu0 0.0
        %5950 = vmatpush1.msra.mxu0 0.0
        %5951 = vmatprep.subr.mxu0 0.0
        %5952 = vmatpush1.msra.mxu0 0.0
        %5953 = vmatprep.subr.mxu0 0.0
        %5954 = vmatpush1.msra.mxu0 0.0
        %5955 = vmatprep.subr.mxu0 0.0
        %5956 = vmatpush1.msra.mxu0 0.0
        %5957 = vmatprep.subr.mxu0 0.0
        %5958 = vmatpush1.msra.mxu0 0.0
        %5959 = vmatprep.subr.mxu0 0.0
        %5960 = vmatpush1.msra.mxu0 0.0
        %5961 = vmatprep.subr.mxu0 0.0
        %5962 = vmatpush1.msra.mxu0 0.0
        %5963 = vmatprep.subr.mxu0 0.0
        %5964 = vmatpush1.msra.mxu0 0.0
        %5965 = vmatprep.subr.mxu0 0.0
        %5966 = vmatpush1.msra.mxu0 0.0
        %5967 = vmatprep.mubr.f32.mxu0 0.0
        %5968 = vmatmul.mubr.f32.gmra.mrb[0].mxu0 %v5722
        %v5969 = vpop.f32.mrb[0].mxu0
        %v5970 = vadd.f32 %v668, %v5969
        %v5971 = vpop.f32.mrb[0].mxu0
        %5972 = vmatprep.mubr.f32.mxu0 0.0
        %5973 = vmatmul.mubr.f32.gmra.mrb[0].mxu0 %v5725
        %v5974 = vpop.f32.mrb[0].mxu0
        %v5975 = vadd.f32 %v668, %v5974
        %v5976 = vpop.f32.mrb[0].mxu0
        %5977 = vmatprep.mubr.f32.mxu0 0.0
        %5978 = vmatmul.mubr.f32.gmra.mrb[0].mxu0 %v5728
        %v5979 = vpop.f32.mrb[0].mxu0
        %v5980 = vadd.f32 %v668, %v5979
        %v5981 = vpop.f32.mrb[0].mxu0
        %5982 = vmatprep.mubr.f32.mxu0 0.0
        %5983 = vmatmul.mubr.f32.gmra.mrb[0].mxu0 %v5731
        %v5984 = vpop.f32.mrb[0].mxu0
        %v5985 = vadd.f32 %v668, %v5984
        %v5986 = vpop.f32.mrb[0].mxu0
        %5987 = vdwg.mxu0
        %v5989 = vsel %vm456, %v5800, 0
        %v5992 = vsel %vm456, %v5805, 0
        %v5995 = vsel %vm456, %v5810, 0
        %v5998 = vsel %vm456, %v5815, 0
        %6000 = vmatprep.subr.mxu0 %v755
        %6001 = vmatpush1.msra.mxu0 %v754
        %6002 = vmatprep.subr.mxu0 %v759
        %6003 = vmatpush1.msra.mxu0 %v758
        %6004 = vmatprep.subr.mxu0 %v763
        %6005 = vmatpush1.msra.mxu0 %v762
        %6006 = vmatprep.subr.mxu0 %v767
        %6007 = vmatpush1.msra.mxu0 %v766
        %6008 = vmatprep.subr.mxu0 %v771
        %6009 = vmatpush1.msra.mxu0 %v770
        %6010 = vmatprep.subr.mxu0 %v775
        %6011 = vmatpush1.msra.mxu0 %v774
        %6012 = vmatprep.subr.mxu0 %v779
        %6013 = vmatpush1.msra.mxu0 %v778
        %6014 = vmatprep.subr.mxu0 %v783
        %6015 = vmatpush1.msra.mxu0 %v782
        %6016 = vmatprep.subr.mxu0 %v787
        %6017 = vmatpush1.msra.mxu0 %v786
        %6018 = vmatprep.subr.mxu0 %v791
        %6019 = vmatpush1.msra.mxu0 %v790
        %6020 = vmatprep.subr.mxu0 0.0
        %6021 = vmatpush1.msra.mxu0 0.0
        %6022 = vmatprep.subr.mxu0 0.0
        %6023 = vmatpush1.msra.mxu0 0.0
        %6024 = vmatprep.subr.mxu0 0.0
        %6025 = vmatpush1.msra.mxu0 0.0
        %6026 = vmatprep.subr.mxu0 0.0
        %6027 = vmatpush1.msra.mxu0 0.0
        %6028 = vmatprep.subr.mxu0 0.0
        %6029 = vmatpush1.msra.mxu0 0.0
        %6030 = vmatprep.subr.mxu0 0.0
        %6031 = vmatpush1.msra.mxu0 0.0
        %6032 = vmatprep.subr.mxu0 0.0
        %6033 = vmatpush1.msra.mxu0 0.0
        %6034 = vmatprep.subr.mxu0 0.0
        %6035 = vmatpush1.msra.mxu0 0.0
        %6036 = vmatprep.subr.mxu0 0.0
        %6037 = vmatpush1.msra.mxu0 0.0
        %6038 = vmatprep.subr.mxu0 0.0
        %6039 = vmatpush1.msra.mxu0 0.0
        %6040 = vmatprep.subr.mxu0 0.0
        %6041 = vmatpush1.msra.mxu0 0.0
        %6042 = vmatprep.subr.mxu0 0.0
        %6043 = vmatpush1.msra.mxu0 0.0
        %6044 = vmatprep.subr.mxu0 0.0
        %6045 = vmatpush1.msra.mxu0 0.0
        %6046 = vmatprep.subr.mxu0 0.0
        %6047 = vmatpush1.msra.mxu0 0.0
        %6048 = vmatprep.subr.mxu0 0.0
        %6049 = vmatpush1.msra.mxu0 0.0
        %6050 = vmatprep.subr.mxu0 0.0
        %6051 = vmatpush1.msra.mxu0 0.0
        %6052 = vmatprep.subr.mxu0 0.0
        %6053 = vmatpush1.msra.mxu0 0.0
        %6054 = vmatprep.subr.mxu0 0.0
        %6055 = vmatpush1.msra.mxu0 0.0
        %6056 = vmatprep.subr.mxu0 0.0
        %6057 = vmatpush1.msra.mxu0 0.0
        %6058 = vmatprep.subr.mxu0 0.0
        %6059 = vmatpush1.msra.mxu0 0.0
        %6060 = vmatprep.subr.mxu0 0.0
        %6061 = vmatpush1.msra.mxu0 0.0
        %6062 = vmatprep.subr.mxu0 0.0
        %6063 = vmatpush1.msra.mxu0 0.0
        %6064 = vmatprep.mubr.f32.mxu0 0.0
        %6065 = vmatmul.mubr.f32.gmra.mrb[0].mxu0 %v5989
        %v6066 = vpop.f32.mrb[0].mxu0
        %v6067 = vadd.f32 0.0, %v6066
        %v6068 = vpop.f32.mrb[0].mxu0
        %v6069 = vadd.f32 0.0, %v6068
        %6070 = vmatprep.mubr.f32.mxu0 0.0
        %6071 = vmatmul.mubr.f32.gmra.mrb[0].mxu0 %v5992
        %v6072 = vpop.f32.mrb[0].mxu0
        %v6073 = vadd.f32 0.0, %v6072
        %v6074 = vpop.f32.mrb[0].mxu0
        %v6075 = vadd.f32 0.0, %v6074
        %6076 = vmatprep.mubr.f32.mxu0 0.0
        %6077 = vmatmul.mubr.f32.gmra.mrb[0].mxu0 %v5995
        %v6078 = vpop.f32.mrb[0].mxu0
        %v6079 = vadd.f32 0.0, %v6078
        %v6080 = vpop.f32.mrb[0].mxu0
        %v6081 = vadd.f32 0.0, %v6080
        %6082 = vmatprep.mubr.f32.mxu0 0.0
        %6083 = vmatmul.mubr.f32.gmra.mrb[0].mxu0 %v5998
        %v6084 = vpop.f32.mrb[0].mxu0
        %v6085 = vadd.f32 0.0, %v6084
        %v6086 = vpop.f32.mrb[0].mxu0
        %v6087 = vadd.f32 0.0, %v6086
        %6088 = vdwg.mxu0
        %6089 = vmatprep.subr.mxu0 %v757
        %6090 = vmatpush1.msra.mxu0 %v756
        %6091 = vmatprep.subr.mxu0 %v761
        %6092 = vmatpush1.msra.mxu0 %v760
        %6093 = vmatprep.subr.mxu0 %v765
        %6094 = vmatpush1.msra.mxu0 %v764
        %6095 = vmatprep.subr.mxu0 %v769
        %6096 = vmatpush1.msra.mxu0 %v768
        %6097 = vmatprep.subr.mxu0 %v773
        %6098 = vmatpush1.msra.mxu0 %v772
        %6099 = vmatprep.subr.mxu0 %v777
        %6100 = vmatpush1.msra.mxu0 %v776
        %6101 = vmatprep.subr.mxu0 %v781
        %6102 = vmatpush1.msra.mxu0 %v780
        %6103 = vmatprep.subr.mxu0 %v785
        %6104 = vmatpush1.msra.mxu0 %v784
        %6105 = vmatprep.subr.mxu0 %v789
        %6106 = vmatpush1.msra.mxu0 %v788
        %6107 = vmatprep.subr.mxu0 %v793
        %6108 = vmatpush1.msra.mxu0 %v792
        %6109 = vmatprep.subr.mxu0 0.0
        %6110 = vmatpush1.msra.mxu0 0.0
        %6111 = vmatprep.subr.mxu0 0.0
        %6112 = vmatpush1.msra.mxu0 0.0
        %6113 = vmatprep.subr.mxu0 0.0
        %6114 = vmatpush1.msra.mxu0 0.0
        %6115 = vmatprep.subr.mxu0 0.0
        %6116 = vmatpush1.msra.mxu0 0.0
        %6117 = vmatprep.subr.mxu0 0.0
        %6118 = vmatpush1.msra.mxu0 0.0
        %6119 = vmatprep.subr.mxu0 0.0
        %6120 = vmatpush1.msra.mxu0 0.0
        %6121 = vmatprep.subr.mxu0 0.0
        %6122 = vmatpush1.msra.mxu0 0.0
        %6123 = vmatprep.subr.mxu0 0.0
        %6124 = vmatpush1.msra.mxu0 0.0
        %6125 = vmatprep.subr.mxu0 0.0
        %6126 = vmatpush1.msra.mxu0 0.0
        %6127 = vmatprep.subr.mxu0 0.0
        %6128 = vmatpush1.msra.mxu0 0.0
        %6129 = vmatprep.subr.mxu0 0.0
        %6130 = vmatpush1.msra.mxu0 0.0
        %6131 = vmatprep.subr.mxu0 0.0
        %6132 = vmatpush1.msra.mxu0 0.0
        %6133 = vmatprep.subr.mxu0 0.0
        %6134 = vmatpush1.msra.mxu0 0.0
        %6135 = vmatprep.subr.mxu0 0.0
        %6136 = vmatpush1.msra.mxu0 0.0
        %6137 = vmatprep.subr.mxu0 0.0
        %6138 = vmatpush1.msra.mxu0 0.0
        %6139 = vmatprep.subr.mxu0 0.0
        %6140 = vmatpush1.msra.mxu0 0.0
        %6141 = vmatprep.subr.mxu0 0.0
        %6142 = vmatpush1.msra.mxu0 0.0
        %6143 = vmatprep.subr.mxu0 0.0
        %6144 = vmatpush1.msra.mxu0 0.0
        %6145 = vmatprep.subr.mxu0 0.0
        %6146 = vmatpush1.msra.mxu0 0.0
        %6147 = vmatprep.subr.mxu0 0.0
        %6148 = vmatpush1.msra.mxu0 0.0
        %6149 = vmatprep.subr.mxu0 0.0
        %6150 = vmatpush1.msra.mxu0 0.0
        %6151 = vmatprep.subr.mxu0 0.0
        %6152 = vmatpush1.msra.mxu0 0.0
        %6153 = vmatprep.mubr.f32.mxu0 0.0
        %6154 = vmatmul.mubr.f32.gmra.mrb[0].mxu0 %v5989
        %v6155 = vpop.f32.mrb[0].mxu0
        %v6156 = vadd.f32 0.0, %v6155
        %v6157 = vpop.f32.mrb[0].mxu0
        %v6158 = vadd.f32 0.0, %v6157
        %6159 = vmatprep.mubr.f32.mxu0 0.0
        %6160 = vmatmul.mubr.f32.gmra.mrb[0].mxu0 %v5992
        %v6161 = vpop.f32.mrb[0].mxu0
        %v6162 = vadd.f32 0.0, %v6161
        %v6163 = vpop.f32.mrb[0].mxu0
        %v6164 = vadd.f32 0.0, %v6163
        %6165 = vmatprep.mubr.f32.mxu0 0.0
        %6166 = vmatmul.mubr.f32.gmra.mrb[0].mxu0 %v5995
        %v6167 = vpop.f32.mrb[0].mxu0
        %v6168 = vadd.f32 0.0, %v6167
        %v6169 = vpop.f32.mrb[0].mxu0
        %v6170 = vadd.f32 0.0, %v6169
        %6171 = vmatprep.mubr.f32.mxu0 0.0
        %6172 = vmatmul.mubr.f32.gmra.mrb[0].mxu0 %v5998
        %v6173 = vpop.f32.mrb[0].mxu0
        %v6174 = vadd.f32 0.0, %v6173
        %v6175 = vpop.f32.mrb[0].mxu0
        %v6176 = vadd.f32 0.0, %v6175
        %6177 = vdwg.mxu0
        %v6179 = vsel %vm456, %v5885, 0
        %v6182 = vsel %vm456, %v5890, 0
        %v6185 = vsel %vm456, %v5895, 0
        %v6188 = vsel %vm456, %v5900, 0
        %6190 = vmatprep.subr.mxu0 %v985
        %6191 = vmatpush1.msra.mxu0 %v984
        %6192 = vmatprep.subr.mxu0 %v989
        %6193 = vmatpush1.msra.mxu0 %v988
        %6194 = vmatprep.subr.mxu0 %v993
        %6195 = vmatpush1.msra.mxu0 %v992
        %6196 = vmatprep.subr.mxu0 %v997
        %6197 = vmatpush1.msra.mxu0 %v996
        %6198 = vmatprep.subr.mxu0 %v1001
        %6199 = vmatpush1.msra.mxu0 %v1000
        %6200 = vmatprep.subr.mxu0 %v1005
        %6201 = vmatpush1.msra.mxu0 %v1004
        %6202 = vmatprep.subr.mxu0 %v1009
        %6203 = vmatpush1.msra.mxu0 %v1008
        %6204 = vmatprep.subr.mxu0 %v1013
        %6205 = vmatpush1.msra.mxu0 %v1012
        %6206 = vmatprep.subr.mxu0 %v1017
        %6207 = vmatpush1.msra.mxu0 %v1016
        %6208 = vmatprep.subr.mxu0 %v1021
        %6209 = vmatpush1.msra.mxu0 %v1020
        %6210 = vmatprep.subr.mxu0 0.0
        %6211 = vmatpush1.msra.mxu0 0.0
        %6212 = vmatprep.subr.mxu0 0.0
        %6213 = vmatpush1.msra.mxu0 0.0
        %6214 = vmatprep.subr.mxu0 0.0
        %6215 = vmatpush1.msra.mxu0 0.0
        %6216 = vmatprep.subr.mxu0 0.0
        %6217 = vmatpush1.msra.mxu0 0.0
        %6218 = vmatprep.subr.mxu0 0.0
        %6219 = vmatpush1.msra.mxu0 0.0
        %6220 = vmatprep.subr.mxu0 0.0
        %6221 = vmatpush1.msra.mxu0 0.0
        %6222 = vmatprep.subr.mxu0 0.0
        %6223 = vmatpush1.msra.mxu0 0.0
        %6224 = vmatprep.subr.mxu0 0.0
        %6225 = vmatpush1.msra.mxu0 0.0
        %6226 = vmatprep.subr.mxu0 0.0
        %6227 = vmatpush1.msra.mxu0 0.0
        %6228 = vmatprep.subr.mxu0 0.0
        %6229 = vmatpush1.msra.mxu0 0.0
        %6230 = vmatprep.subr.mxu0 0.0
        %6231 = vmatpush1.msra.mxu0 0.0
        %6232 = vmatprep.subr.mxu0 0.0
        %6233 = vmatpush1.msra.mxu0 0.0
        %6234 = vmatprep.subr.mxu0 0.0
        %6235 = vmatpush1.msra.mxu0 0.0
        %6236 = vmatprep.subr.mxu0 0.0
        %6237 = vmatpush1.msra.mxu0 0.0
        %6238 = vmatprep.subr.mxu0 0.0
        %6239 = vmatpush1.msra.mxu0 0.0
        %6240 = vmatprep.subr.mxu0 0.0
        %6241 = vmatpush1.msra.mxu0 0.0
        %6242 = vmatprep.subr.mxu0 0.0
        %6243 = vmatpush1.msra.mxu0 0.0
        %6244 = vmatprep.subr.mxu0 0.0
        %6245 = vmatpush1.msra.mxu0 0.0
        %6246 = vmatprep.subr.mxu0 0.0
        %6247 = vmatpush1.msra.mxu0 0.0
        %6248 = vmatprep.subr.mxu0 0.0
        %6249 = vmatpush1.msra.mxu0 0.0
        %6250 = vmatprep.subr.mxu0 0.0
        %6251 = vmatpush1.msra.mxu0 0.0
        %6252 = vmatprep.subr.mxu0 0.0
        %6253 = vmatpush1.msra.mxu0 0.0
        %6254 = vmatprep.mubr.f32.mxu0 0.0
        %6255 = vmatmul.mubr.f32.gmra.mrb[0].mxu0 %v6179
        %v6256 = vpop.f32.mrb[0].mxu0
        %v6257 = vadd.f32 0.0, %v6256
        %v6258 = vpop.f32.mrb[0].mxu0
        %v6259 = vadd.f32 0.0, %v6258
        %6260 = vmatprep.mubr.f32.mxu0 0.0
        %6261 = vmatmul.mubr.f32.gmra.mrb[0].mxu0 %v6182
        %v6262 = vpop.f32.mrb[0].mxu0
        %v6263 = vadd.f32 0.0, %v6262
        %v6264 = vpop.f32.mrb[0].mxu0
        %v6265 = vadd.f32 0.0, %v6264
        %6266 = vmatprep.mubr.f32.mxu0 0.0
        %6267 = vmatmul.mubr.f32.gmra.mrb[0].mxu0 %v6185
        %v6268 = vpop.f32.mrb[0].mxu0
        %v6269 = vadd.f32 0.0, %v6268
        %v6270 = vpop.f32.mrb[0].mxu0
        %v6271 = vadd.f32 0.0, %v6270
        %6272 = vmatprep.mubr.f32.mxu0 0.0
        %6273 = vmatmul.mubr.f32.gmra.mrb[0].mxu0 %v6188
        %v6274 = vpop.f32.mrb[0].mxu0
        %v6275 = vadd.f32 0.0, %v6274
        %v6276 = vpop.f32.mrb[0].mxu0
        %v6277 = vadd.f32 0.0, %v6276
        %6278 = vdwg.mxu0
        %6279 = vmatprep.subr.mxu0 %v987
        %6280 = vmatpush1.msra.mxu0 %v986
        %6281 = vmatprep.subr.mxu0 %v991
        %6282 = vmatpush1.msra.mxu0 %v990
        %6283 = vmatprep.subr.mxu0 %v995
        %6284 = vmatpush1.msra.mxu0 %v994
        %6285 = vmatprep.subr.mxu0 %v999
        %6286 = vmatpush1.msra.mxu0 %v998
        %6287 = vmatprep.subr.mxu0 %v1003
        %6288 = vmatpush1.msra.mxu0 %v1002
        %6289 = vmatprep.subr.mxu0 %v1007
        %6290 = vmatpush1.msra.mxu0 %v1006
        %6291 = vmatprep.subr.mxu0 %v1011
        %6292 = vmatpush1.msra.mxu0 %v1010
        %6293 = vmatprep.subr.mxu0 %v1015
        %6294 = vmatpush1.msra.mxu0 %v1014
        %6295 = vmatprep.subr.mxu0 %v1019
        %6296 = vmatpush1.msra.mxu0 %v1018
        %6297 = vmatprep.subr.mxu0 %v1023
        %6298 = vmatpush1.msra.mxu0 %v1022
        %6299 = vmatprep.subr.mxu0 0.0
        %6300 = vmatpush1.msra.mxu0 0.0
        %6301 = vmatprep.subr.mxu0 0.0
        %6302 = vmatpush1.msra.mxu0 0.0
        %6303 = vmatprep.subr.mxu0 0.0
        %6304 = vmatpush1.msra.mxu0 0.0
        %6305 = vmatprep.subr.mxu0 0.0
        %6306 = vmatpush1.msra.mxu0 0.0
        %6307 = vmatprep.subr.mxu0 0.0
        %6308 = vmatpush1.msra.mxu0 0.0
        %6309 = vmatprep.subr.mxu0 0.0
        %6310 = vmatpush1.msra.mxu0 0.0
        %6311 = vmatprep.subr.mxu0 0.0
        %6312 = vmatpush1.msra.mxu0 0.0
        %6313 = vmatprep.subr.mxu0 0.0
        %6314 = vmatpush1.msra.mxu0 0.0
        %6315 = vmatprep.subr.mxu0 0.0
        %6316 = vmatpush1.msra.mxu0 0.0
        %6317 = vmatprep.subr.mxu0 0.0
        %6318 = vmatpush1.msra.mxu0 0.0
        %6319 = vmatprep.subr.mxu0 0.0
        %6320 = vmatpush1.msra.mxu0 0.0
        %6321 = vmatprep.subr.mxu0 0.0
        %6322 = vmatpush1.msra.mxu0 0.0
        %6323 = vmatprep.subr.mxu0 0.0
        %6324 = vmatpush1.msra.mxu0 0.0
        %6325 = vmatprep.subr.mxu0 0.0
        %6326 = vmatpush1.msra.mxu0 0.0
        %6327 = vmatprep.subr.mxu0 0.0
        %6328 = vmatpush1.msra.mxu0 0.0
        %6329 = vmatprep.subr.mxu0 0.0
        %6330 = vmatpush1.msra.mxu0 0.0
        %6331 = vmatprep.subr.mxu0 0.0
        %6332 = vmatpush1.msra.mxu0 0.0
        %6333 = vmatprep.subr.mxu0 0.0
        %6334 = vmatpush1.msra.mxu0 0.0
        %6335 = vmatprep.subr.mxu0 0.0
        %6336 = vmatpush1.msra.mxu0 0.0
        %6337 = vmatprep.subr.mxu0 0.0
        %6338 = vmatpush1.msra.mxu0 0.0
        %6339 = vmatprep.subr.mxu0 0.0
        %6340 = vmatpush1.msra.mxu0 0.0
        %6341 = vmatprep.subr.mxu0 0.0
        %6342 = vmatpush1.msra.mxu0 0.0
        %6343 = vmatprep.mubr.f32.mxu0 0.0
        %6344 = vmatmul.mubr.f32.gmra.mrb[0].mxu0 %v6179
        %v6345 = vpop.f32.mrb[0].mxu0
        %v6346 = vadd.f32 0.0, %v6345
        %v6347 = vpop.f32.mrb[0].mxu0
        %v6348 = vadd.f32 0.0, %v6347
        %6349 = vmatprep.mubr.f32.mxu0 0.0
        %6350 = vmatmul.mubr.f32.gmra.mrb[0].mxu0 %v6182
        %v6351 = vpop.f32.mrb[0].mxu0
        %v6352 = vadd.f32 0.0, %v6351
        %v6353 = vpop.f32.mrb[0].mxu0
        %v6354 = vadd.f32 0.0, %v6353
        %6355 = vmatprep.mubr.f32.mxu0 0.0
        %6356 = vmatmul.mubr.f32.gmra.mrb[0].mxu0 %v6185
        %v6357 = vpop.f32.mrb[0].mxu0
        %v6358 = vadd.f32 0.0, %v6357
        %v6359 = vpop.f32.mrb[0].mxu0
        %v6360 = vadd.f32 0.0, %v6359
        %6361 = vmatprep.mubr.f32.mxu0 0.0
        %6362 = vmatmul.mubr.f32.gmra.mrb[0].mxu0 %v6188
        %v6363 = vpop.f32.mrb[0].mxu0
        %v6364 = vadd.f32 0.0, %v6363
        %v6365 = vpop.f32.mrb[0].mxu0
        %v6366 = vadd.f32 0.0, %v6365
        %6367 = vdwg.mxu0
        %v6368 = vmul.f32 %v6067, %v6257
        %v6369 = vmul.f32 %v6069, %v6259
        %v6370 = vmul.f32 %v6156, %v6346
        %v6371 = vmul.f32 %v6158, %v6348
        %v6372 = vmul.f32 %v6073, %v6263
        %v6373 = vmul.f32 %v6075, %v6265
        %v6374 = vmul.f32 %v6162, %v6352
        %v6375 = vmul.f32 %v6164, %v6354
        %v6376 = vmul.f32 %v6079, %v6269
        %v6377 = vmul.f32 %v6081, %v6271
        %v6378 = vmul.f32 %v6168, %v6358
        %v6379 = vmul.f32 %v6170, %v6360
        %v6380 = vmul.f32 %v6085, %v6275
        %v6381 = vmul.f32 %v6087, %v6277
        %v6382 = vmul.f32 %v6174, %v6364
        %v6383 = vmul.f32 %v6176, %v6366
        %6384 = vmatprep.subr.mxu0 %v1231
        %6385 = vmatpush1.msra.mxu0 %v1230
        %6386 = vmatprep.subr.mxu0 %v1235
        %6387 = vmatpush1.msra.mxu0 %v1234
        %6388 = vmatprep.subr.mxu0 %v1239
        %6389 = vmatpush1.msra.mxu0 %v1238
        %6390 = vmatprep.subr.mxu0 %v1243
        %6391 = vmatpush1.msra.mxu0 %v1242
        %6392 = vmatprep.subr.mxu0 %v1247
        %6393 = vmatpush1.msra.mxu0 %v1246
        %6394 = vmatprep.subr.mxu0 %v1251
        %6395 = vmatpush1.msra.mxu0 %v1250
        %6396 = vmatprep.subr.mxu0 %v1255
        %6397 = vmatpush1.msra.mxu0 %v1254
        %6398 = vmatprep.subr.mxu0 %v1259
        %6399 = vmatpush1.msra.mxu0 %v1258
        %6400 = vmatprep.subr.mxu0 %v1263
        %6401 = vmatpush1.msra.mxu0 %v1262
        %6402 = vmatprep.subr.mxu0 %v1267
        %6403 = vmatpush1.msra.mxu0 %v1266
        %6404 = vmatprep.subr.mxu0 0.0
        %6405 = vmatpush1.msra.mxu0 0.0
        %6406 = vmatprep.subr.mxu0 0.0
        %6407 = vmatpush1.msra.mxu0 0.0
        %6408 = vmatprep.subr.mxu0 0.0
        %6409 = vmatpush1.msra.mxu0 0.0
        %6410 = vmatprep.subr.mxu0 0.0
        %6411 = vmatpush1.msra.mxu0 0.0
        %6412 = vmatprep.subr.mxu0 0.0
        %6413 = vmatpush1.msra.mxu0 0.0
        %6414 = vmatprep.subr.mxu0 0.0
        %6415 = vmatpush1.msra.mxu0 0.0
        %6416 = vmatprep.subr.mxu0 0.0
        %6417 = vmatpush1.msra.mxu0 0.0
        %6418 = vmatprep.subr.mxu0 0.0
        %6419 = vmatpush1.msra.mxu0 0.0
        %6420 = vmatprep.subr.mxu0 0.0
        %6421 = vmatpush1.msra.mxu0 0.0
        %6422 = vmatprep.subr.mxu0 0.0
        %6423 = vmatpush1.msra.mxu0 0.0
        %6424 = vmatprep.subr.mxu0 0.0
        %6425 = vmatpush1.msra.mxu0 0.0
        %6426 = vmatprep.subr.mxu0 0.0
        %6427 = vmatpush1.msra.mxu0 0.0
        %6428 = vmatprep.subr.mxu0 0.0
        %6429 = vmatpush1.msra.mxu0 0.0
        %6430 = vmatprep.subr.mxu0 0.0
        %6431 = vmatpush1.msra.mxu0 0.0
        %6432 = vmatprep.subr.mxu0 0.0
        %6433 = vmatpush1.msra.mxu0 0.0
        %6434 = vmatprep.subr.mxu0 0.0
        %6435 = vmatpush1.msra.mxu0 0.0
        %6436 = vmatprep.subr.mxu0 0.0
        %6437 = vmatpush1.msra.mxu0 0.0
        %6438 = vmatprep.subr.mxu0 0.0
        %6439 = vmatpush1.msra.mxu0 0.0
        %6440 = vmatprep.subr.mxu0 0.0
        %6441 = vmatpush1.msra.mxu0 0.0
        %6442 = vmatprep.subr.mxu0 0.0
        %6443 = vmatpush1.msra.mxu0 0.0
        %6444 = vmatprep.subr.mxu0 0.0
        %6445 = vmatpush1.msra.mxu0 0.0
        %6446 = vmatprep.subr.mxu0 0.0
        %6447 = vmatpush1.msra.mxu0 0.0
        %6448 = vmatprep.mubr.f32.mxu0 0.0
        %6449 = vmatmul.mubr.f32.gmra.mrb[0].mxu0 %v5989
        %v6450 = vpop.f32.mrb[0].mxu0
        %v6451 = vadd.f32 0.0, %v6450
        %v6452 = vpop.f32.mrb[0].mxu0
        %v6453 = vadd.f32 0.0, %v6452
        %6454 = vmatprep.mubr.f32.mxu0 0.0
        %6455 = vmatmul.mubr.f32.gmra.mrb[0].mxu0 %v5992
        %v6456 = vpop.f32.mrb[0].mxu0
        %v6457 = vadd.f32 0.0, %v6456
        %v6458 = vpop.f32.mrb[0].mxu0
        %v6459 = vadd.f32 0.0, %v6458
        %6460 = vmatprep.mubr.f32.mxu0 0.0
        %6461 = vmatmul.mubr.f32.gmra.mrb[0].mxu0 %v5995
        %v6462 = vpop.f32.mrb[0].mxu0
        %v6463 = vadd.f32 0.0, %v6462
        %v6464 = vpop.f32.mrb[0].mxu0
        %v6465 = vadd.f32 0.0, %v6464
        %6466 = vmatprep.mubr.f32.mxu0 0.0
        %6467 = vmatmul.mubr.f32.gmra.mrb[0].mxu0 %v5998
        %v6468 = vpop.f32.mrb[0].mxu0
        %v6469 = vadd.f32 0.0, %v6468
        %v6470 = vpop.f32.mrb[0].mxu0
        %v6471 = vadd.f32 0.0, %v6470
        %6472 = vdwg.mxu0
        %6473 = vmatprep.subr.mxu0 %v1233
        %6474 = vmatpush1.msra.mxu0 %v1232
        %6475 = vmatprep.subr.mxu0 %v1237
        %6476 = vmatpush1.msra.mxu0 %v1236
        %6477 = vmatprep.subr.mxu0 %v1241
        %6478 = vmatpush1.msra.mxu0 %v1240
        %6479 = vmatprep.subr.mxu0 %v1245
        %6480 = vmatpush1.msra.mxu0 %v1244
        %6481 = vmatprep.subr.mxu0 %v1249
        %6482 = vmatpush1.msra.mxu0 %v1248
        %6483 = vmatprep.subr.mxu0 %v1253
        %6484 = vmatpush1.msra.mxu0 %v1252
        %6485 = vmatprep.subr.mxu0 %v1257
        %6486 = vmatpush1.msra.mxu0 %v1256
        %6487 = vmatprep.subr.mxu0 %v1261
        %6488 = vmatpush1.msra.mxu0 %v1260
        %6489 = vmatprep.subr.mxu0 %v1265
        %6490 = vmatpush1.msra.mxu0 %v1264
        %6491 = vmatprep.subr.mxu0 %v1269
        %6492 = vmatpush1.msra.mxu0 %v1268
        %6493 = vmatprep.subr.mxu0 0.0
        %6494 = vmatpush1.msra.mxu0 0.0
        %6495 = vmatprep.subr.mxu0 0.0
        %6496 = vmatpush1.msra.mxu0 0.0
        %6497 = vmatprep.subr.mxu0 0.0
        %6498 = vmatpush1.msra.mxu0 0.0
        %6499 = vmatprep.subr.mxu0 0.0
        %6500 = vmatpush1.msra.mxu0 0.0
        %6501 = vmatprep.subr.mxu0 0.0
        %6502 = vmatpush1.msra.mxu0 0.0
        %6503 = vmatprep.subr.mxu0 0.0
        %6504 = vmatpush1.msra.mxu0 0.0
        %6505 = vmatprep.subr.mxu0 0.0
        %6506 = vmatpush1.msra.mxu0 0.0
        %6507 = vmatprep.subr.mxu0 0.0
        %6508 = vmatpush1.msra.mxu0 0.0
        %6509 = vmatprep.subr.mxu0 0.0
        %6510 = vmatpush1.msra.mxu0 0.0
        %6511 = vmatprep.subr.mxu0 0.0
        %6512 = vmatpush1.msra.mxu0 0.0
        %6513 = vmatprep.subr.mxu0 0.0
        %6514 = vmatpush1.msra.mxu0 0.0
        %6515 = vmatprep.subr.mxu0 0.0
        %6516 = vmatpush1.msra.mxu0 0.0
        %6517 = vmatprep.subr.mxu0 0.0
        %6518 = vmatpush1.msra.mxu0 0.0
        %6519 = vmatprep.subr.mxu0 0.0
        %6520 = vmatpush1.msra.mxu0 0.0
        %6521 = vmatprep.subr.mxu0 0.0
        %6522 = vmatpush1.msra.mxu0 0.0
        %6523 = vmatprep.subr.mxu0 0.0
        %6524 = vmatpush1.msra.mxu0 0.0
        %6525 = vmatprep.subr.mxu0 0.0
        %6526 = vmatpush1.msra.mxu0 0.0
        %6527 = vmatprep.subr.mxu0 0.0
        %6528 = vmatpush1.msra.mxu0 0.0
        %6529 = vmatprep.subr.mxu0 0.0
        %6530 = vmatpush1.msra.mxu0 0.0
        %6531 = vmatprep.subr.mxu0 0.0
        %6532 = vmatpush1.msra.mxu0 0.0
        %6533 = vmatprep.subr.mxu0 0.0
        %6534 = vmatpush1.msra.mxu0 0.0
        %6535 = vmatprep.subr.mxu0 0.0
        %6536 = vmatpush1.msra.mxu0 0.0
        %6537 = vmatprep.mubr.f32.mxu0 0.0
        %6538 = vmatmul.mubr.f32.gmra.mrb[0].mxu0 %v5989
        %v6539 = vpop.f32.mrb[0].mxu0
        %v6540 = vadd.f32 0.0, %v6539
        %v6541 = vpop.f32.mrb[0].mxu0
        %v6542 = vadd.f32 0.0, %v6541
        %6543 = vmatprep.mubr.f32.mxu0 0.0
        %6544 = vmatmul.mubr.f32.gmra.mrb[0].mxu0 %v5992
        %v6545 = vpop.f32.mrb[0].mxu0
        %v6546 = vadd.f32 0.0, %v6545
        %v6547 = vpop.f32.mrb[0].mxu0
        %v6548 = vadd.f32 0.0, %v6547
        %6549 = vmatprep.mubr.f32.mxu0 0.0
        %6550 = vmatmul.mubr.f32.gmra.mrb[0].mxu0 %v5995
        %v6551 = vpop.f32.mrb[0].mxu0
        %v6552 = vadd.f32 0.0, %v6551
        %v6553 = vpop.f32.mrb[0].mxu0
        %v6554 = vadd.f32 0.0, %v6553
        %6555 = vmatprep.mubr.f32.mxu0 0.0
        %6556 = vmatmul.mubr.f32.gmra.mrb[0].mxu0 %v5998
        %v6557 = vpop.f32.mrb[0].mxu0
        %v6558 = vadd.f32 0.0, %v6557
        %v6559 = vpop.f32.mrb[0].mxu0
        %v6560 = vadd.f32 0.0, %v6559
        %6561 = vdwg.mxu0
        %6562 = vmatprep.subr.mxu0 %v1449
        %6563 = vmatpush1.msra.mxu0 %v1448
        %6564 = vmatprep.subr.mxu0 %v1453
        %6565 = vmatpush1.msra.mxu0 %v1452
        %6566 = vmatprep.subr.mxu0 %v1457
        %6567 = vmatpush1.msra.mxu0 %v1456
        %6568 = vmatprep.subr.mxu0 %v1461
        %6569 = vmatpush1.msra.mxu0 %v1460
        %6570 = vmatprep.subr.mxu0 %v1465
        %6571 = vmatpush1.msra.mxu0 %v1464
        %6572 = vmatprep.subr.mxu0 %v1469
        %6573 = vmatpush1.msra.mxu0 %v1468
        %6574 = vmatprep.subr.mxu0 %v1473
        %6575 = vmatpush1.msra.mxu0 %v1472
        %6576 = vmatprep.subr.mxu0 %v1477
        %6577 = vmatpush1.msra.mxu0 %v1476
        %6578 = vmatprep.subr.mxu0 %v1481
        %6579 = vmatpush1.msra.mxu0 %v1480
        %6580 = vmatprep.subr.mxu0 %v1485
        %6581 = vmatpush1.msra.mxu0 %v1484
        %6582 = vmatprep.subr.mxu0 0.0
        %6583 = vmatpush1.msra.mxu0 0.0
        %6584 = vmatprep.subr.mxu0 0.0
        %6585 = vmatpush1.msra.mxu0 0.0
        %6586 = vmatprep.subr.mxu0 0.0
        %6587 = vmatpush1.msra.mxu0 0.0
        %6588 = vmatprep.subr.mxu0 0.0
        %6589 = vmatpush1.msra.mxu0 0.0
        %6590 = vmatprep.subr.mxu0 0.0
        %6591 = vmatpush1.msra.mxu0 0.0
        %6592 = vmatprep.subr.mxu0 0.0
        %6593 = vmatpush1.msra.mxu0 0.0
        %6594 = vmatprep.subr.mxu0 0.0
        %6595 = vmatpush1.msra.mxu0 0.0
        %6596 = vmatprep.subr.mxu0 0.0
        %6597 = vmatpush1.msra.mxu0 0.0
        %6598 = vmatprep.subr.mxu0 0.0
        %6599 = vmatpush1.msra.mxu0 0.0
        %6600 = vmatprep.subr.mxu0 0.0
        %6601 = vmatpush1.msra.mxu0 0.0
        %6602 = vmatprep.subr.mxu0 0.0
        %6603 = vmatpush1.msra.mxu0 0.0
        %6604 = vmatprep.subr.mxu0 0.0
        %6605 = vmatpush1.msra.mxu0 0.0
        %6606 = vmatprep.subr.mxu0 0.0
        %6607 = vmatpush1.msra.mxu0 0.0
        %6608 = vmatprep.subr.mxu0 0.0
        %6609 = vmatpush1.msra.mxu0 0.0
        %6610 = vmatprep.subr.mxu0 0.0
        %6611 = vmatpush1.msra.mxu0 0.0
        %6612 = vmatprep.subr.mxu0 0.0
        %6613 = vmatpush1.msra.mxu0 0.0
        %6614 = vmatprep.subr.mxu0 0.0
        %6615 = vmatpush1.msra.mxu0 0.0
        %6616 = vmatprep.subr.mxu0 0.0
        %6617 = vmatpush1.msra.mxu0 0.0
        %6618 = vmatprep.subr.mxu0 0.0
        %6619 = vmatpush1.msra.mxu0 0.0
        %6620 = vmatprep.subr.mxu0 0.0
        %6621 = vmatpush1.msra.mxu0 0.0
        %6622 = vmatprep.subr.mxu0 0.0
        %6623 = vmatpush1.msra.mxu0 0.0
        %6624 = vmatprep.subr.mxu0 0.0
        %6625 = vmatpush1.msra.mxu0 0.0
        %6626 = vmatprep.mubr.f32.mxu0 0.0
        %6627 = vmatmul.mubr.f32.gmra.mrb[0].mxu0 %v6179
        %v6628 = vpop.f32.mrb[0].mxu0
        %v6629 = vadd.f32 0.0, %v6628
        %v6630 = vpop.f32.mrb[0].mxu0
        %v6631 = vadd.f32 0.0, %v6630
        %6632 = vmatprep.mubr.f32.mxu0 0.0
        %6633 = vmatmul.mubr.f32.gmra.mrb[0].mxu0 %v6182
        %v6634 = vpop.f32.mrb[0].mxu0
        %v6635 = vadd.f32 0.0, %v6634
        %v6636 = vpop.f32.mrb[0].mxu0
        %v6637 = vadd.f32 0.0, %v6636
        %6638 = vmatprep.mubr.f32.mxu0 0.0
        %6639 = vmatmul.mubr.f32.gmra.mrb[0].mxu0 %v6185
        %v6640 = vpop.f32.mrb[0].mxu0
        %v6641 = vadd.f32 0.0, %v6640
        %v6642 = vpop.f32.mrb[0].mxu0
        %v6643 = vadd.f32 0.0, %v6642
        %6644 = vmatprep.mubr.f32.mxu0 0.0
        %6645 = vmatmul.mubr.f32.gmra.mrb[0].mxu0 %v6188
        %v6646 = vpop.f32.mrb[0].mxu0
        %v6647 = vadd.f32 0.0, %v6646
        %v6648 = vpop.f32.mrb[0].mxu0
        %v6649 = vadd.f32 0.0, %v6648
        %6650 = vdwg.mxu0
        %6651 = vmatprep.subr.mxu0 %v1451
        %6652 = vmatpush1.msra.mxu0 %v1450
        %6653 = vmatprep.subr.mxu0 %v1455
        %6654 = vmatpush1.msra.mxu0 %v1454
        %6655 = vmatprep.subr.mxu0 %v1459
        %6656 = vmatpush1.msra.mxu0 %v1458
        %6657 = vmatprep.subr.mxu0 %v1463
        %6658 = vmatpush1.msra.mxu0 %v1462
        %6659 = vmatprep.subr.mxu0 %v1467
        %6660 = vmatpush1.msra.mxu0 %v1466
        %6661 = vmatprep.subr.mxu0 %v1471
        %6662 = vmatpush1.msra.mxu0 %v1470
        %6663 = vmatprep.subr.mxu0 %v1475
        %6664 = vmatpush1.msra.mxu0 %v1474
        %6665 = vmatprep.subr.mxu0 %v1479
        %6666 = vmatpush1.msra.mxu0 %v1478
        %6667 = vmatprep.subr.mxu0 %v1483
        %6668 = vmatpush1.msra.mxu0 %v1482
        %6669 = vmatprep.subr.mxu0 %v1487
        %6670 = vmatpush1.msra.mxu0 %v1486
        %6671 = vmatprep.subr.mxu0 0.0
        %6672 = vmatpush1.msra.mxu0 0.0
        %6673 = vmatprep.subr.mxu0 0.0
        %6674 = vmatpush1.msra.mxu0 0.0
        %6675 = vmatprep.subr.mxu0 0.0
        %6676 = vmatpush1.msra.mxu0 0.0
        %6677 = vmatprep.subr.mxu0 0.0
        %6678 = vmatpush1.msra.mxu0 0.0
        %6679 = vmatprep.subr.mxu0 0.0
        %6680 = vmatpush1.msra.mxu0 0.0
        %6681 = vmatprep.subr.mxu0 0.0
        %6682 = vmatpush1.msra.mxu0 0.0
        %6683 = vmatprep.subr.mxu0 0.0
        %6684 = vmatpush1.msra.mxu0 0.0
        %6685 = vmatprep.subr.mxu0 0.0
        %6686 = vmatpush1.msra.mxu0 0.0
        %6687 = vmatprep.subr.mxu0 0.0
        %6688 = vmatpush1.msra.mxu0 0.0
        %6689 = vmatprep.subr.mxu0 0.0
        %6690 = vmatpush1.msra.mxu0 0.0
        %6691 = vmatprep.subr.mxu0 0.0
        %6692 = vmatpush1.msra.mxu0 0.0
        %6693 = vmatprep.subr.mxu0 0.0
        %6694 = vmatpush1.msra.mxu0 0.0
        %6695 = vmatprep.subr.mxu0 0.0
        %6696 = vmatpush1.msra.mxu0 0.0
        %6697 = vmatprep.subr.mxu0 0.0
        %6698 = vmatpush1.msra.mxu0 0.0
        %6699 = vmatprep.subr.mxu0 0.0
        %6700 = vmatpush1.msra.mxu0 0.0
        %6701 = vmatprep.subr.mxu0 0.0
        %6702 = vmatpush1.msra.mxu0 0.0
        %6703 = vmatprep.subr.mxu0 0.0
        %6704 = vmatpush1.msra.mxu0 0.0
        %6705 = vmatprep.subr.mxu0 0.0
        %6706 = vmatpush1.msra.mxu0 0.0
        %6707 = vmatprep.subr.mxu0 0.0
        %6708 = vmatpush1.msra.mxu0 0.0
        %6709 = vmatprep.subr.mxu0 0.0
        %6710 = vmatpush1.msra.mxu0 0.0
        %6711 = vmatprep.subr.mxu0 0.0
        %6712 = vmatpush1.msra.mxu0 0.0
        %6713 = vmatprep.subr.mxu0 0.0
        %6714 = vmatpush1.msra.mxu0 0.0
        %6715 = vmatprep.mubr.f32.mxu0 0.0
        %6716 = vmatmul.mubr.f32.gmra.mrb[0].mxu0 %v6179
        %v6717 = vpop.f32.mrb[0].mxu0
        %v6718 = vadd.f32 0.0, %v6717
        %v6719 = vpop.f32.mrb[0].mxu0
        %v6720 = vadd.f32 0.0, %v6719
        %6721 = vmatprep.mubr.f32.mxu0 0.0
        %6722 = vmatmul.mubr.f32.gmra.mrb[0].mxu0 %v6182
        %v6723 = vpop.f32.mrb[0].mxu0
        %v6724 = vadd.f32 0.0, %v6723
        %v6725 = vpop.f32.mrb[0].mxu0
        %v6726 = vadd.f32 0.0, %v6725
        %6727 = vmatprep.mubr.f32.mxu0 0.0
        %6728 = vmatmul.mubr.f32.gmra.mrb[0].mxu0 %v6185
        %v6729 = vpop.f32.mrb[0].mxu0
        %v6730 = vadd.f32 0.0, %v6729
        %v6731 = vpop.f32.mrb[0].mxu0
        %v6732 = vadd.f32 0.0, %v6731
        %6733 = vmatprep.mubr.f32.mxu0 0.0
        %6734 = vmatmul.mubr.f32.gmra.mrb[0].mxu0 %v6188
        %v6735 = vpop.f32.mrb[0].mxu0
        %v6736 = vadd.f32 0.0, %v6735
        %v6737 = vpop.f32.mrb[0].mxu0
        %v6738 = vadd.f32 0.0, %v6737
        %6739 = vdwg.mxu0
        %v6740 = vmul.f32 %v6451, %v6629
        %v6741 = vmul.f32 %v6453, %v6631
        %v6742 = vmul.f32 %v6540, %v6718
        %v6743 = vmul.f32 %v6542, %v6720
        %v6744 = vmul.f32 %v6457, %v6635
        %v6745 = vmul.f32 %v6459, %v6637
        %v6746 = vmul.f32 %v6546, %v6724
        %v6747 = vmul.f32 %v6548, %v6726
        %v6748 = vmul.f32 %v6463, %v6641
        %v6749 = vmul.f32 %v6465, %v6643
        %v6750 = vmul.f32 %v6552, %v6730
        %v6751 = vmul.f32 %v6554, %v6732
        %v6752 = vmul.f32 %v6469, %v6647
        %v6753 = vmul.f32 %v6471, %v6649
        %v6754 = vmul.f32 %v6558, %v6736
        %v6755 = vmul.f32 %v6560, %v6738
        %v6756 = vadd.f32 %v6368, %v6740
        %v6757 = vadd.f32 %v6369, %v6741
        %v6758 = vadd.f32 %v6370, %v6742
        %v6759 = vadd.f32 %v6371, %v6743
        %v6760 = vadd.f32 %v6372, %v6744
        %v6761 = vadd.f32 %v6373, %v6745
        %v6762 = vadd.f32 %v6374, %v6746
        %v6763 = vadd.f32 %v6375, %v6747
        %v6764 = vadd.f32 %v6376, %v6748
        %v6765 = vadd.f32 %v6377, %v6749
        %v6766 = vadd.f32 %v6378, %v6750
        %v6767 = vadd.f32 %v6379, %v6751
        %v6768 = vadd.f32 %v6380, %v6752
        %v6769 = vadd.f32 %v6381, %v6753
        %v6770 = vadd.f32 %v6382, %v6754
        %v6771 = vadd.f32 %v6383, %v6755
        %v6772 = vmax.f32 %v6756, %v6757
        %v6773 = vmax.f32 %v6772, %v6758
        %v6774 = vsel %vm1770, %v6759, -inf
        %v6775 = vmax.f32 %v6773, %v6774
        %6776 = vmax.xlane.f32.xlu0 %v6775
        %v6777 = vpop.xlane.xlu0 %6776
        %v6778 = vmax.f32 %v6760, %v6761
        %v6779 = vmax.f32 %v6778, %v6762
        %v6780 = vsel %vm1770, %v6763, -inf
        %v6781 = vmax.f32 %v6779, %v6780
        %6782 = vmax.xlane.f32.xlu0 %v6781
        %v6783 = vpop.xlane.xlu0 %6782
        %v6784 = vmax.f32 %v6764, %v6765
        %v6785 = vmax.f32 %v6784, %v6766
        %v6786 = vsel %vm1770, %v6767, -inf
        %v6787 = vmax.f32 %v6785, %v6786
        %6788 = vmax.xlane.f32.xlu0 %v6787
        %v6789 = vpop.xlane.xlu0 %6788
        %v6790 = vmax.f32 %v6768, %v6769
        %v6791 = vmax.f32 %v6790, %v6770
        %v6792 = vsel %vm1770, %v6771, -inf
        %v6793 = vmax.f32 %v6791, %v6792
        %6794 = vmax.xlane.f32.xlu0 %v6793
        %v6795 = vpop.xlane.xlu0 %6794
        %v6796 = vsub.f32 %v6756, %v6777
        %v6797 = vsub.f32 %v6757, %v6777
        %v6798 = vsub.f32 %v6758, %v6777
        %v6799 = vsub.f32 %v6759, %v6777
        %v6800 = vsub.f32 %v6760, %v6783
        %v6801 = vsub.f32 %v6761, %v6783
        %v6802 = vsub.f32 %v6762, %v6783
        %v6803 = vsub.f32 %v6763, %v6783
        %v6804 = vsub.f32 %v6764, %v6789
        %v6805 = vsub.f32 %v6765, %v6789
        %v6806 = vsub.f32 %v6766, %v6789
        %v6807 = vsub.f32 %v6767, %v6789
        %v6808 = vsub.f32 %v6768, %v6795
        %v6809 = vsub.f32 %v6769, %v6795
        %v6810 = vsub.f32 %v6770, %v6795
        %v6811 = vsub.f32 %v6771, %v6795
        %v6812 = vmul.f32 %v6796, 1.442695
        %v6813 = vpow.pop %v6812
        %v6814 = vmul.f32 %v6797, 1.442695
        %v6815 = vpow.pop %v6814
        %v6816 = vmul.f32 %v6798, 1.442695
        %v6817 = vpow.pop %v6816
        %v6818 = vmul.f32 %v6799, 1.442695
        %v6819 = vpow.pop %v6818
        %v6820 = vmul.f32 %v6800, 1.442695
        %v6821 = vpow.pop %v6820
        %v6822 = vmul.f32 %v6801, 1.442695
        %v6823 = vpow.pop %v6822
        %v6824 = vmul.f32 %v6802, 1.442695
        %v6825 = vpow.pop %v6824
        %v6826 = vmul.f32 %v6803, 1.442695
        %v6827 = vpow.pop %v6826
        %v6828 = vmul.f32 %v6804, 1.442695
        %v6829 = vpow.pop %v6828
        %v6830 = vmul.f32 %v6805, 1.442695
        %v6831 = vpow.pop %v6830
        %v6832 = vmul.f32 %v6806, 1.442695
        %v6833 = vpow.pop %v6832
        %v6834 = vmul.f32 %v6807, 1.442695
        %v6835 = vpow.pop %v6834
        %v6836 = vmul.f32 %v6808, 1.442695
        %v6837 = vpow.pop %v6836
        %v6838 = vmul.f32 %v6809, 1.442695
        %v6839 = vpow.pop %v6838
        %v6840 = vmul.f32 %v6810, 1.442695
        %v6841 = vpow.pop %v6840
        %v6842 = vmul.f32 %v6811, 1.442695
        %v6843 = vpow.pop %v6842
        %v6845 = vsel %vm1770, %v6819, 0
        %v6848 = vsel %vm1770, %v6827, 0
        %v6851 = vsel %vm1770, %v6835, 0
        %v6854 = vsel %vm1770, %v6843, 0
        %6856 = vmatprep.subr.mxu0 0.0
        %6857 = vmatpush1.msra.mxu0 %v1698
        %6858 = vmatprep.subr.mxu0 0.0
        %6859 = vmatpush1.msra.mxu0 %v1699
        %6860 = vmatprep.subr.mxu0 0.0
        %6861 = vmatpush1.msra.mxu0 %v1700
        %6862 = vmatprep.subr.mxu0 0.0
        %6863 = vmatpush1.msra.mxu0 %v1701
        %6864 = vmatprep.subr.mxu0 0.0
        %6865 = vmatpush1.msra.mxu0 %v1702
        %6866 = vmatprep.subr.mxu0 0.0
        %6867 = vmatpush1.msra.mxu0 %v1703
        %6868 = vmatprep.subr.mxu0 0.0
        %6869 = vmatpush1.msra.mxu0 %v1704
        %6870 = vmatprep.subr.mxu0 0.0
        %6871 = vmatpush1.msra.mxu0 %v1705
        %6872 = vmatprep.subr.mxu0 0.0
        %6873 = vmatpush1.msra.mxu0 %v1706
        %6874 = vmatprep.subr.mxu0 0.0
        %6875 = vmatpush1.msra.mxu0 %v1707
        %6876 = vmatprep.subr.mxu0 0.0
        %6877 = vmatpush1.msra.mxu0 %v1708
        %6878 = vmatprep.subr.mxu0 0.0
        %6879 = vmatpush1.msra.mxu0 %v1709
        %6880 = vmatprep.subr.mxu0 0.0
        %6881 = vmatpush1.msra.mxu0 %v1710
        %6882 = vmatprep.subr.mxu0 0.0
        %6883 = vmatpush1.msra.mxu0 %v1711
        %6884 = vmatprep.subr.mxu0 0.0
        %6885 = vmatpush1.msra.mxu0 %v1712
        %6886 = vmatprep.subr.mxu0 0.0
        %6887 = vmatpush1.msra.mxu0 %v1713
        %6888 = vmatprep.subr.mxu0 0.0
        %6889 = vmatpush1.msra.mxu0 %v1714
        %6890 = vmatprep.subr.mxu0 0.0
        %6891 = vmatpush1.msra.mxu0 %v1715
        %6892 = vmatprep.subr.mxu0 0.0
        %6893 = vmatpush1.msra.mxu0 %v1716
        %6894 = vmatprep.subr.mxu0 0.0
        %6895 = vmatpush1.msra.mxu0 %v1717
        %6896 = vmatprep.subr.mxu0 0.0
        %6897 = vmatpush1.msra.mxu0 %v1718
        %6898 = vmatprep.subr.mxu0 0.0
        %6899 = vmatpush1.msra.mxu0 %v1719
        %6900 = vmatprep.subr.mxu0 0.0
        %6901 = vmatpush1.msra.mxu0 %v1720
        %6902 = vmatprep.subr.mxu0 0.0
        %6903 = vmatpush1.msra.mxu0 %v1721
        %6904 = vmatprep.subr.mxu0 0.0
        %6905 = vmatpush1.msra.mxu0 %v1722
        %6906 = vmatprep.subr.mxu0 0.0
        %6907 = vmatpush1.msra.mxu0 %v1723
        %6908 = vmatprep.subr.mxu0 0.0
        %6909 = vmatpush1.msra.mxu0 %v1724
        %6910 = vmatprep.subr.mxu0 0.0
        %6911 = vmatpush1.msra.mxu0 %v1725
        %6912 = vmatprep.subr.mxu0 0.0
        %6913 = vmatpush1.msra.mxu0 %v1726
        %6914 = vmatprep.subr.mxu0 0.0
        %6915 = vmatpush1.msra.mxu0 %v1727
        %6916 = vmatprep.subr.mxu0 0.0
        %6917 = vmatpush1.msra.mxu0 %v1728
        %6918 = vmatprep.subr.mxu0 0.0
        %6919 = vmatpush1.msra.mxu0 %v1729
        %6920 = vmatprep.mubr.f32.mxu0 %v6815
        %6921 = vmatmul.mubr.f32.gmra.mrb[0].mxu0 %v6813
        %v6922 = vpop.f32.mrb[0].mxu0
        %v6923 = vadd.f32 0.0, %v6922
        %v6924 = vpop.f32.mrb[0].mxu0
        %6925 = vmatprep.mubr.f32.mxu0 %v6823
        %6926 = vmatmul.mubr.f32.gmra.mrb[0].mxu0 %v6821
        %v6927 = vpop.f32.mrb[0].mxu0
        %v6928 = vadd.f32 0.0, %v6927
        %v6929 = vpop.f32.mrb[0].mxu0
        %6930 = vmatprep.mubr.f32.mxu0 %v6831
        %6931 = vmatmul.mubr.f32.gmra.mrb[0].mxu0 %v6829
        %v6932 = vpop.f32.mrb[0].mxu0
        %v6933 = vadd.f32 0.0, %v6932
        %v6934 = vpop.f32.mrb[0].mxu0
        %6935 = vmatprep.mubr.f32.mxu0 %v6839
        %6936 = vmatmul.mubr.f32.gmra.mrb[0].mxu0 %v6837
        %v6937 = vpop.f32.mrb[0].mxu0
        %v6938 = vadd.f32 0.0, %v6937
        %v6939 = vpop.f32.mrb[0].mxu0
        %6940 = vdwg.mxu0
        %6941 = vmatprep.subr.mxu0 0.0
        %6942 = vmatpush1.msra.mxu0 %v1730
        %6943 = vmatprep.subr.mxu0 0.0
        %6944 = vmatpush1.msra.mxu0 %v1731
        %6945 = vmatprep.subr.mxu0 0.0
        %6946 = vmatpush1.msra.mxu0 %v1732
        %6947 = vmatprep.subr.mxu0 0.0
        %6948 = vmatpush1.msra.mxu0 %v1733
        %6949 = vmatprep.subr.mxu0 0.0
        %6950 = vmatpush1.msra.mxu0 %v1734
        %6951 = vmatprep.subr.mxu0 0.0
        %6952 = vmatpush1.msra.mxu0 %v1735
        %6953 = vmatprep.subr.mxu0 0.0
        %6954 = vmatpush1.msra.mxu0 %v1736
        %6955 = vmatprep.subr.mxu0 0.0
        %6956 = vmatpush1.msra.mxu0 %v1737
        %6957 = vmatprep.subr.mxu0 0.0
        %6958 = vmatpush1.msra.mxu0 %v1738
        %6959 = vmatprep.subr.mxu0 0.0
        %6960 = vmatpush1.msra.mxu0 %v1739
        %6961 = vmatprep.subr.mxu0 0.0
        %6962 = vmatpush1.msra.mxu0 %v1740
        %6963 = vmatprep.subr.mxu0 0.0
        %6964 = vmatpush1.msra.mxu0 %v1741
        %6965 = vmatprep.subr.mxu0 0.0
        %6966 = vmatpush1.msra.mxu0 %v1742
        %6967 = vmatprep.subr.mxu0 0.0
        %6968 = vmatpush1.msra.mxu0 %v1743
        %6969 = vmatprep.subr.mxu0 0.0
        %6970 = vmatpush1.msra.mxu0 %v1744
        %6971 = vmatprep.subr.mxu0 0.0
        %6972 = vmatpush1.msra.mxu0 %v1745
        %6973 = vmatprep.subr.mxu0 0.0
        %6974 = vmatpush1.msra.mxu0 %v1746
        %6975 = vmatprep.subr.mxu0 0.0
        %6976 = vmatpush1.msra.mxu0 %v1747
        %6977 = vmatprep.subr.mxu0 0.0
        %6978 = vmatpush1.msra.mxu0 0.0
        %6979 = vmatprep.subr.mxu0 0.0
        %6980 = vmatpush1.msra.mxu0 0.0
        %6981 = vmatprep.subr.mxu0 0.0
        %6982 = vmatpush1.msra.mxu0 0.0
        %6983 = vmatprep.subr.mxu0 0.0
        %6984 = vmatpush1.msra.mxu0 0.0
        %6985 = vmatprep.subr.mxu0 0.0
        %6986 = vmatpush1.msra.mxu0 0.0
        %6987 = vmatprep.subr.mxu0 0.0
        %6988 = vmatpush1.msra.mxu0 0.0
        %6989 = vmatprep.subr.mxu0 0.0
        %6990 = vmatpush1.msra.mxu0 0.0
        %6991 = vmatprep.subr.mxu0 0.0
        %6992 = vmatpush1.msra.mxu0 0.0
        %6993 = vmatprep.subr.mxu0 0.0
        %6994 = vmatpush1.msra.mxu0 0.0
        %6995 = vmatprep.subr.mxu0 0.0
        %6996 = vmatpush1.msra.mxu0 0.0
        %6997 = vmatprep.subr.mxu0 0.0
        %6998 = vmatpush1.msra.mxu0 0.0
        %6999 = vmatprep.subr.mxu0 0.0
        %7000 = vmatpush1.msra.mxu0 0.0
        %7001 = vmatprep.subr.mxu0 0.0
        %7002 = vmatpush1.msra.mxu0 0.0
        %7003 = vmatprep.subr.mxu0 0.0
        %7004 = vmatpush1.msra.mxu0 0.0
        %7005 = vmatprep.mubr.f32.mxu0 %v6845
        %7006 = vmatmul.mubr.f32.gmra.mrb[0].mxu0 %v6817
        %v7007 = vpop.f32.mrb[0].mxu0
        %v7008 = vadd.f32 %v6923, %v7007
        %v7009 = vpop.f32.mrb[0].mxu0
        %7010 = vmatprep.mubr.f32.mxu0 %v6848
        %7011 = vmatmul.mubr.f32.gmra.mrb[0].mxu0 %v6825
        %v7012 = vpop.f32.mrb[0].mxu0
        %v7013 = vadd.f32 %v6928, %v7012
        %v7014 = vpop.f32.mrb[0].mxu0
        %7015 = vmatprep.mubr.f32.mxu0 %v6851
        %7016 = vmatmul.mubr.f32.gmra.mrb[0].mxu0 %v6833
        %v7017 = vpop.f32.mrb[0].mxu0
        %v7018 = vadd.f32 %v6933, %v7017
        %v7019 = vpop.f32.mrb[0].mxu0
        %7020 = vmatprep.mubr.f32.mxu0 %v6854
        %7021 = vmatmul.mubr.f32.gmra.mrb[0].mxu0 %v6841
        %v7022 = vpop.f32.mrb[0].mxu0
        %v7023 = vadd.f32 %v6938, %v7022
        %v7024 = vpop.f32.mrb[0].mxu0
        %7025 = vdwg.mxu0
        %v7027 = vsel %vm335, %v7008, 0
        %v7030 = vsel %vm335, %v7013, 0
        %v7033 = vsel %vm335, %v7018, 0
        %v7036 = vsel %vm335, %v7023, 0
        %7038 = vmatprep.subr.mxu0 %v1749
        %7039 = vmatpush1.msra.mxu0 %v1748
        %7040 = vmatprep.subr.mxu0 %v1753
        %7041 = vmatpush1.msra.mxu0 %v1752
        %7042 = vmatprep.subr.mxu0 %v1757
        %7043 = vmatpush1.msra.mxu0 %v1756
        %7044 = vmatprep.subr.mxu0 %v1761
        %7045 = vmatpush1.msra.mxu0 %v1760
        %7046 = vmatprep.subr.mxu0 %v1765
        %7047 = vmatpush1.msra.mxu0 %v1764
        %7048 = vmatprep.subr.mxu0 0.0
        %7049 = vmatpush1.msra.mxu0 0.0
        %7050 = vmatprep.subr.mxu0 0.0
        %7051 = vmatpush1.msra.mxu0 0.0
        %7052 = vmatprep.subr.mxu0 0.0
        %7053 = vmatpush1.msra.mxu0 0.0
        %7054 = vmatprep.subr.mxu0 0.0
        %7055 = vmatpush1.msra.mxu0 0.0
        %7056 = vmatprep.subr.mxu0 0.0
        %7057 = vmatpush1.msra.mxu0 0.0
        %7058 = vmatprep.subr.mxu0 0.0
        %7059 = vmatpush1.msra.mxu0 0.0
        %7060 = vmatprep.subr.mxu0 0.0
        %7061 = vmatpush1.msra.mxu0 0.0
        %7062 = vmatprep.subr.mxu0 0.0
        %7063 = vmatpush1.msra.mxu0 0.0
        %7064 = vmatprep.subr.mxu0 0.0
        %7065 = vmatpush1.msra.mxu0 0.0
        %7066 = vmatprep.subr.mxu0 0.0
        %7067 = vmatpush1.msra.mxu0 0.0
        %7068 = vmatprep.subr.mxu0 0.0
        %7069 = vmatpush1.msra.mxu0 0.0
        %7070 = vmatprep.subr.mxu0 0.0
        %7071 = vmatpush1.msra.mxu0 0.0
        %7072 = vmatprep.subr.mxu0 0.0
        %7073 = vmatpush1.msra.mxu0 0.0
        %7074 = vmatprep.subr.mxu0 0.0
        %7075 = vmatpush1.msra.mxu0 0.0
        %7076 = vmatprep.subr.mxu0 0.0
        %7077 = vmatpush1.msra.mxu0 0.0
        %7078 = vmatprep.subr.mxu0 0.0
        %7079 = vmatpush1.msra.mxu0 0.0
        %7080 = vmatprep.subr.mxu0 0.0
        %7081 = vmatpush1.msra.mxu0 0.0
        %7082 = vmatprep.subr.mxu0 0.0
        %7083 = vmatpush1.msra.mxu0 0.0
        %7084 = vmatprep.subr.mxu0 0.0
        %7085 = vmatpush1.msra.mxu0 0.0
        %7086 = vmatprep.subr.mxu0 0.0
        %7087 = vmatpush1.msra.mxu0 0.0
        %7088 = vmatprep.subr.mxu0 0.0
        %7089 = vmatpush1.msra.mxu0 0.0
        %7090 = vmatprep.subr.mxu0 0.0
        %7091 = vmatpush1.msra.mxu0 0.0
        %7092 = vmatprep.subr.mxu0 0.0
        %7093 = vmatpush1.msra.mxu0 0.0
        %7094 = vmatprep.subr.mxu0 0.0
        %7095 = vmatpush1.msra.mxu0 0.0
        %7096 = vmatprep.subr.mxu0 0.0
        %7097 = vmatpush1.msra.mxu0 0.0
        %7098 = vmatprep.subr.mxu0 0.0
        %7099 = vmatpush1.msra.mxu0 0.0
        %7100 = vmatprep.subr.mxu0 0.0
        %7101 = vmatpush1.msra.mxu0 0.0
        %7102 = vmatprep.mubr.f32.mxu0 0.0
        %7103 = vmatmul.mubr.f32.gmra.mrb[0].mxu0 %v7027
        %v7104 = vpop.f32.mrb[0].mxu0
        %v7105 = vadd.f32 0.0, %v7104
        %v7106 = vpop.f32.mrb[0].mxu0
        %v7107 = vadd.f32 0.0, %v7106
        %7108 = vmatprep.mubr.f32.mxu0 0.0
        %7109 = vmatmul.mubr.f32.gmra.mrb[0].mxu0 %v7030
        %v7110 = vpop.f32.mrb[0].mxu0
        %v7111 = vadd.f32 0.0, %v7110
        %v7112 = vpop.f32.mrb[0].mxu0
        %v7113 = vadd.f32 0.0, %v7112
        %7114 = vmatprep.mubr.f32.mxu0 0.0
        %7115 = vmatmul.mubr.f32.gmra.mrb[0].mxu0 %v7033
        %v7116 = vpop.f32.mrb[0].mxu0
        %v7117 = vadd.f32 0.0, %v7116
        %v7118 = vpop.f32.mrb[0].mxu0
        %v7119 = vadd.f32 0.0, %v7118
        %7120 = vmatprep.mubr.f32.mxu0 0.0
        %7121 = vmatmul.mubr.f32.gmra.mrb[0].mxu0 %v7036
        %v7122 = vpop.f32.mrb[0].mxu0
        %v7123 = vadd.f32 0.0, %v7122
        %v7124 = vpop.f32.mrb[0].mxu0
        %v7125 = vadd.f32 0.0, %v7124
        %7126 = vdwg.mxu0
        %7127 = vmatprep.subr.mxu0 %v1751
        %7128 = vmatpush1.msra.mxu0 %v1750
        %7129 = vmatprep.subr.mxu0 %v1755
        %7130 = vmatpush1.msra.mxu0 %v1754
        %7131 = vmatprep.subr.mxu0 %v1759
        %7132 = vmatpush1.msra.mxu0 %v1758
        %7133 = vmatprep.subr.mxu0 %v1763
        %7134 = vmatpush1.msra.mxu0 %v1762
        %7135 = vmatprep.subr.mxu0 %v1767
        %7136 = vmatpush1.msra.mxu0 %v1766
        %7137 = vmatprep.subr.mxu0 0.0
        %7138 = vmatpush1.msra.mxu0 0.0
        %7139 = vmatprep.subr.mxu0 0.0
        %7140 = vmatpush1.msra.mxu0 0.0
        %7141 = vmatprep.subr.mxu0 0.0
        %7142 = vmatpush1.msra.mxu0 0.0
        %7143 = vmatprep.subr.mxu0 0.0
        %7144 = vmatpush1.msra.mxu0 0.0
        %7145 = vmatprep.subr.mxu0 0.0
        %7146 = vmatpush1.msra.mxu0 0.0
        %7147 = vmatprep.subr.mxu0 0.0
        %7148 = vmatpush1.msra.mxu0 0.0
        %7149 = vmatprep.subr.mxu0 0.0
        %7150 = vmatpush1.msra.mxu0 0.0
        %7151 = vmatprep.subr.mxu0 0.0
        %7152 = vmatpush1.msra.mxu0 0.0
        %7153 = vmatprep.subr.mxu0 0.0
        %7154 = vmatpush1.msra.mxu0 0.0
        %7155 = vmatprep.subr.mxu0 0.0
        %7156 = vmatpush1.msra.mxu0 0.0
        %7157 = vmatprep.subr.mxu0 0.0
        %7158 = vmatpush1.msra.mxu0 0.0
        %7159 = vmatprep.subr.mxu0 0.0
        %7160 = vmatpush1.msra.mxu0 0.0
        %7161 = vmatprep.subr.mxu0 0.0
        %7162 = vmatpush1.msra.mxu0 0.0
        %7163 = vmatprep.subr.mxu0 0.0
        %7164 = vmatpush1.msra.mxu0 0.0
        %7165 = vmatprep.subr.mxu0 0.0
        %7166 = vmatpush1.msra.mxu0 0.0
        %7167 = vmatprep.subr.mxu0 0.0
        %7168 = vmatpush1.msra.mxu0 0.0
        %7169 = vmatprep.subr.mxu0 0.0
        %7170 = vmatpush1.msra.mxu0 0.0
        %7171 = vmatprep.subr.mxu0 0.0
        %7172 = vmatpush1.msra.mxu0 0.0
        %7173 = vmatprep.subr.mxu0 0.0
        %7174 = vmatpush1.msra.mxu0 0.0
        %7175 = vmatprep.subr.mxu0 0.0
        %7176 = vmatpush1.msra.mxu0 0.0
        %7177 = vmatprep.subr.mxu0 0.0
        %7178 = vmatpush1.msra.mxu0 0.0
        %7179 = vmatprep.subr.mxu0 0.0
        %7180 = vmatpush1.msra.mxu0 0.0
        %7181 = vmatprep.subr.mxu0 0.0
        %7182 = vmatpush1.msra.mxu0 0.0
        %7183 = vmatprep.subr.mxu0 0.0
        %7184 = vmatpush1.msra.mxu0 0.0
        %7185 = vmatprep.subr.mxu0 0.0
        %7186 = vmatpush1.msra.mxu0 0.0
        %7187 = vmatprep.subr.mxu0 0.0
        %7188 = vmatpush1.msra.mxu0 0.0
        %7189 = vmatprep.subr.mxu0 0.0
        %7190 = vmatpush1.msra.mxu0 0.0
        %7191 = vmatprep.mubr.f32.mxu0 0.0
        %7192 = vmatmul.mubr.f32.gmra.mrb[0].mxu0 %v7027
        %v7193 = vpop.f32.mrb[0].mxu0
        %v7194 = vadd.f32 0.0, %v7193
        %v7195 = vpop.f32.mrb[0].mxu0
        %v7196 = vadd.f32 0.0, %v7195
        %7197 = vmatprep.mubr.f32.mxu0 0.0
        %7198 = vmatmul.mubr.f32.gmra.mrb[0].mxu0 %v7030
        %v7199 = vpop.f32.mrb[0].mxu0
        %v7200 = vadd.f32 0.0, %v7199
        %v7201 = vpop.f32.mrb[0].mxu0
        %v7202 = vadd.f32 0.0, %v7201
        %7203 = vmatprep.mubr.f32.mxu0 0.0
        %7204 = vmatmul.mubr.f32.gmra.mrb[0].mxu0 %v7033
        %v7205 = vpop.f32.mrb[0].mxu0
        %v7206 = vadd.f32 0.0, %v7205
        %v7207 = vpop.f32.mrb[0].mxu0
        %v7208 = vadd.f32 0.0, %v7207
        %7209 = vmatprep.mubr.f32.mxu0 0.0
        %7210 = vmatmul.mubr.f32.gmra.mrb[0].mxu0 %v7036
        %v7211 = vpop.f32.mrb[0].mxu0
        %v7212 = vadd.f32 0.0, %v7211
        %v7213 = vpop.f32.mrb[0].mxu0
        %v7214 = vadd.f32 0.0, %v7213
        %7215 = vdwg.mxu0
        %v7216 = vrcp.pop %v7105
        %v7217 = vrcp.pop %v7107
        %v7218 = vrcp.pop %v7194
        %v7219 = vrcp.pop %v7196
        %v7220 = vrcp.pop %v7111
        %v7221 = vrcp.pop %v7113
        %v7222 = vrcp.pop %v7200
        %v7223 = vrcp.pop %v7202
        %v7224 = vrcp.pop %v7117
        %v7225 = vrcp.pop %v7119
        %v7226 = vrcp.pop %v7206
        %v7227 = vrcp.pop %v7208
        %v7228 = vrcp.pop %v7123
        %v7229 = vrcp.pop %v7125
        %v7230 = vrcp.pop %v7212
        %v7231 = vrcp.pop %v7214
        %v7232 = vmul.f32 %v6813, %v7216
        %v7233 = vmul.f32 %v6815, %v7217
        %v7234 = vmul.f32 %v6817, %v7218
        %v7235 = vmul.f32 %v6819, %v7219
        %v7236 = vmul.f32 %v6821, %v7220
        %v7237 = vmul.f32 %v6823, %v7221
        %v7238 = vmul.f32 %v6825, %v7222
        %v7239 = vmul.f32 %v6827, %v7223
        %v7240 = vmul.f32 %v6829, %v7224
        %v7241 = vmul.f32 %v6831, %v7225
        %v7242 = vmul.f32 %v6833, %v7226
        %v7243 = vmul.f32 %v6835, %v7227
        %v7244 = vmul.f32 %v6837, %v7228
        %v7245 = vmul.f32 %v6839, %v7229
        %v7246 = vmul.f32 %v6841, %v7230
        %v7247 = vmul.f32 %v6843, %v7231
        %v7249 = vsel %vm456, %v5970, 0
        %v7252 = vsel %vm456, %v5975, 0
        %v7255 = vsel %vm456, %v5980, 0
        %v7258 = vsel %vm456, %v5985, 0
        %7260 = vmatprep.subr.mxu0 %v985
        %7261 = vmatpush1.msra.mxu0 %v984
        %7262 = vmatprep.subr.mxu0 %v989
        %7263 = vmatpush1.msra.mxu0 %v988
        %7264 = vmatprep.subr.mxu0 %v993
        %7265 = vmatpush1.msra.mxu0 %v992
        %7266 = vmatprep.subr.mxu0 %v997
        %7267 = vmatpush1.msra.mxu0 %v996
        %7268 = vmatprep.subr.mxu0 %v1001
        %7269 = vmatpush1.msra.mxu0 %v1000
        %7270 = vmatprep.subr.mxu0 %v1005
        %7271 = vmatpush1.msra.mxu0 %v1004
        %7272 = vmatprep.subr.mxu0 %v1009
        %7273 = vmatpush1.msra.mxu0 %v1008
        %7274 = vmatprep.subr.mxu0 %v1013
        %7275 = vmatpush1.msra.mxu0 %v1012
        %7276 = vmatprep.subr.mxu0 %v1017
        %7277 = vmatpush1.msra.mxu0 %v1016
        %7278 = vmatprep.subr.mxu0 %v1021
        %7279 = vmatpush1.msra.mxu0 %v1020
        %7280 = vmatprep.subr.mxu0 0.0
        %7281 = vmatpush1.msra.mxu0 0.0
        %7282 = vmatprep.subr.mxu0 0.0
        %7283 = vmatpush1.msra.mxu0 0.0
        %7284 = vmatprep.subr.mxu0 0.0
        %7285 = vmatpush1.msra.mxu0 0.0
        %7286 = vmatprep.subr.mxu0 0.0
        %7287 = vmatpush1.msra.mxu0 0.0
        %7288 = vmatprep.subr.mxu0 0.0
        %7289 = vmatpush1.msra.mxu0 0.0
        %7290 = vmatprep.subr.mxu0 0.0
        %7291 = vmatpush1.msra.mxu0 0.0
        %7292 = vmatprep.subr.mxu0 0.0
        %7293 = vmatpush1.msra.mxu0 0.0
        %7294 = vmatprep.subr.mxu0 0.0
        %7295 = vmatpush1.msra.mxu0 0.0
        %7296 = vmatprep.subr.mxu0 0.0
        %7297 = vmatpush1.msra.mxu0 0.0
        %7298 = vmatprep.subr.mxu0 0.0
        %7299 = vmatpush1.msra.mxu0 0.0
        %7300 = vmatprep.subr.mxu0 0.0
        %7301 = vmatpush1.msra.mxu0 0.0
        %7302 = vmatprep.subr.mxu0 0.0
        %7303 = vmatpush1.msra.mxu0 0.0
        %7304 = vmatprep.subr.mxu0 0.0
        %7305 = vmatpush1.msra.mxu0 0.0
        %7306 = vmatprep.subr.mxu0 0.0
        %7307 = vmatpush1.msra.mxu0 0.0
        %7308 = vmatprep.subr.mxu0 0.0
        %7309 = vmatpush1.msra.mxu0 0.0
        %7310 = vmatprep.subr.mxu0 0.0
        %7311 = vmatpush1.msra.mxu0 0.0
        %7312 = vmatprep.subr.mxu0 0.0
        %7313 = vmatpush1.msra.mxu0 0.0
        %7314 = vmatprep.subr.mxu0 0.0
        %7315 = vmatpush1.msra.mxu0 0.0
        %7316 = vmatprep.subr.mxu0 0.0
        %7317 = vmatpush1.msra.mxu0 0.0
        %7318 = vmatprep.subr.mxu0 0.0
        %7319 = vmatpush1.msra.mxu0 0.0
        %7320 = vmatprep.subr.mxu0 0.0
        %7321 = vmatpush1.msra.mxu0 0.0
        %7322 = vmatprep.subr.mxu0 0.0
        %7323 = vmatpush1.msra.mxu0 0.0
        %7324 = vmatprep.mubr.f32.mxu0 0.0
        %7325 = vmatmul.mubr.f32.gmra.mrb[0].mxu0 %v7249
        %v7326 = vpop.f32.mrb[0].mxu0
        %v7327 = vadd.f32 0.0, %v7326
        %v7328 = vpop.f32.mrb[0].mxu0
        %v7329 = vadd.f32 0.0, %v7328
        %7330 = vmatprep.mubr.f32.mxu0 0.0
        %7331 = vmatmul.mubr.f32.gmra.mrb[0].mxu0 %v7252
        %v7332 = vpop.f32.mrb[0].mxu0
        %v7333 = vadd.f32 0.0, %v7332
        %v7334 = vpop.f32.mrb[0].mxu0
        %v7335 = vadd.f32 0.0, %v7334
        %7336 = vmatprep.mubr.f32.mxu0 0.0
        %7337 = vmatmul.mubr.f32.gmra.mrb[0].mxu0 %v7255
        %v7338 = vpop.f32.mrb[0].mxu0
        %v7339 = vadd.f32 0.0, %v7338
        %v7340 = vpop.f32.mrb[0].mxu0
        %v7341 = vadd.f32 0.0, %v7340
        %7342 = vmatprep.mubr.f32.mxu0 0.0
        %7343 = vmatmul.mubr.f32.gmra.mrb[0].mxu0 %v7258
        %v7344 = vpop.f32.mrb[0].mxu0
        %v7345 = vadd.f32 0.0, %v7344
        %v7346 = vpop.f32.mrb[0].mxu0
        %v7347 = vadd.f32 0.0, %v7346
        %7348 = vdwg.mxu0
        %7349 = vmatprep.subr.mxu0 %v987
        %7350 = vmatpush1.msra.mxu0 %v986
        %7351 = vmatprep.subr.mxu0 %v991
        %7352 = vmatpush1.msra.mxu0 %v990
        %7353 = vmatprep.subr.mxu0 %v995
        %7354 = vmatpush1.msra.mxu0 %v994
        %7355 = vmatprep.subr.mxu0 %v999
        %7356 = vmatpush1.msra.mxu0 %v998
        %7357 = vmatprep.subr.mxu0 %v1003
        %7358 = vmatpush1.msra.mxu0 %v1002
        %7359 = vmatprep.subr.mxu0 %v1007
        %7360 = vmatpush1.msra.mxu0 %v1006
        %7361 = vmatprep.subr.mxu0 %v1011
        %7362 = vmatpush1.msra.mxu0 %v1010
        %7363 = vmatprep.subr.mxu0 %v1015
        %7364 = vmatpush1.msra.mxu0 %v1014
        %7365 = vmatprep.subr.mxu0 %v1019
        %7366 = vmatpush1.msra.mxu0 %v1018
        %7367 = vmatprep.subr.mxu0 %v1023
        %7368 = vmatpush1.msra.mxu0 %v1022
        %7369 = vmatprep.subr.mxu0 0.0
        %7370 = vmatpush1.msra.mxu0 0.0
        %7371 = vmatprep.subr.mxu0 0.0
        %7372 = vmatpush1.msra.mxu0 0.0
        %7373 = vmatprep.subr.mxu0 0.0
        %7374 = vmatpush1.msra.mxu0 0.0
        %7375 = vmatprep.subr.mxu0 0.0
        %7376 = vmatpush1.msra.mxu0 0.0
        %7377 = vmatprep.subr.mxu0 0.0
        %7378 = vmatpush1.msra.mxu0 0.0
        %7379 = vmatprep.subr.mxu0 0.0
        %7380 = vmatpush1.msra.mxu0 0.0
        %7381 = vmatprep.subr.mxu0 0.0
        %7382 = vmatpush1.msra.mxu0 0.0
        %7383 = vmatprep.subr.mxu0 0.0
        %7384 = vmatpush1.msra.mxu0 0.0
        %7385 = vmatprep.subr.mxu0 0.0
        %7386 = vmatpush1.msra.mxu0 0.0
        %7387 = vmatprep.subr.mxu0 0.0
        %7388 = vmatpush1.msra.mxu0 0.0
        %7389 = vmatprep.subr.mxu0 0.0
        %7390 = vmatpush1.msra.mxu0 0.0
        %7391 = vmatprep.subr.mxu0 0.0
        %7392 = vmatpush1.msra.mxu0 0.0
        %7393 = vmatprep.subr.mxu0 0.0
        %7394 = vmatpush1.msra.mxu0 0.0
        %7395 = vmatprep.subr.mxu0 0.0
        %7396 = vmatpush1.msra.mxu0 0.0
        %7397 = vmatprep.subr.mxu0 0.0
        %7398 = vmatpush1.msra.mxu0 0.0
        %7399 = vmatprep.subr.mxu0 0.0
        %7400 = vmatpush1.msra.mxu0 0.0
        %7401 = vmatprep.subr.mxu0 0.0
        %7402 = vmatpush1.msra.mxu0 0.0
        %7403 = vmatprep.subr.mxu0 0.0
        %7404 = vmatpush1.msra.mxu0 0.0
        %7405 = vmatprep.subr.mxu0 0.0
        %7406 = vmatpush1.msra.mxu0 0.0
        %7407 = vmatprep.subr.mxu0 0.0
        %7408 = vmatpush1.msra.mxu0 0.0
        %7409 = vmatprep.subr.mxu0 0.0
        %7410 = vmatpush1.msra.mxu0 0.0
        %7411 = vmatprep.subr.mxu0 0.0
        %7412 = vmatpush1.msra.mxu0 0.0
        %7413 = vmatprep.mubr.f32.mxu0 0.0
        %7414 = vmatmul.mubr.f32.gmra.mrb[0].mxu0 %v7249
        %v7415 = vpop.f32.mrb[0].mxu0
        %v7416 = vadd.f32 0.0, %v7415
        %v7417 = vpop.f32.mrb[0].mxu0
        %v7418 = vadd.f32 0.0, %v7417
        %7419 = vmatprep.mubr.f32.mxu0 0.0
        %7420 = vmatmul.mubr.f32.gmra.mrb[0].mxu0 %v7252
        %v7421 = vpop.f32.mrb[0].mxu0
        %v7422 = vadd.f32 0.0, %v7421
        %v7423 = vpop.f32.mrb[0].mxu0
        %v7424 = vadd.f32 0.0, %v7423
        %7425 = vmatprep.mubr.f32.mxu0 0.0
        %7426 = vmatmul.mubr.f32.gmra.mrb[0].mxu0 %v7255
        %v7427 = vpop.f32.mrb[0].mxu0
        %v7428 = vadd.f32 0.0, %v7427
        %v7429 = vpop.f32.mrb[0].mxu0
        %v7430 = vadd.f32 0.0, %v7429
        %7431 = vmatprep.mubr.f32.mxu0 0.0
        %7432 = vmatmul.mubr.f32.gmra.mrb[0].mxu0 %v7258
        %v7433 = vpop.f32.mrb[0].mxu0
        %v7434 = vadd.f32 0.0, %v7433
        %v7435 = vpop.f32.mrb[0].mxu0
        %v7436 = vadd.f32 0.0, %v7435
        %7437 = vdwg.mxu0
        %v7438 = vmul.f32 %v7232, %v7327
        %v7439 = vmul.f32 %v7233, %v7329
        %v7440 = vmul.f32 %v7234, %v7416
        %v7441 = vmul.f32 %v7235, %v7418
        %v7442 = vmul.f32 %v7236, %v7333
        %v7443 = vmul.f32 %v7237, %v7335
        %v7444 = vmul.f32 %v7238, %v7422
        %v7445 = vmul.f32 %v7239, %v7424
        %v7446 = vmul.f32 %v7240, %v7339
        %v7447 = vmul.f32 %v7241, %v7341
        %v7448 = vmul.f32 %v7242, %v7428
        %v7449 = vmul.f32 %v7243, %v7430
        %v7450 = vmul.f32 %v7244, %v7345
        %v7451 = vmul.f32 %v7245, %v7347
        %v7452 = vmul.f32 %v7246, %v7434
        %v7453 = vmul.f32 %v7247, %v7436
        %7454 = vmatprep.subr.mxu0 %v1449
        %7455 = vmatpush1.msra.mxu0 %v1448
        %7456 = vmatprep.subr.mxu0 %v1453
        %7457 = vmatpush1.msra.mxu0 %v1452
        %7458 = vmatprep.subr.mxu0 %v1457
        %7459 = vmatpush1.msra.mxu0 %v1456
        %7460 = vmatprep.subr.mxu0 %v1461
        %7461 = vmatpush1.msra.mxu0 %v1460
        %7462 = vmatprep.subr.mxu0 %v1465
        %7463 = vmatpush1.msra.mxu0 %v1464
        %7464 = vmatprep.subr.mxu0 %v1469
        %7465 = vmatpush1.msra.mxu0 %v1468
        %7466 = vmatprep.subr.mxu0 %v1473
        %7467 = vmatpush1.msra.mxu0 %v1472
        %7468 = vmatprep.subr.mxu0 %v1477
        %7469 = vmatpush1.msra.mxu0 %v1476
        %7470 = vmatprep.subr.mxu0 %v1481
        %7471 = vmatpush1.msra.mxu0 %v1480
        %7472 = vmatprep.subr.mxu0 %v1485
        %7473 = vmatpush1.msra.mxu0 %v1484
        %7474 = vmatprep.subr.mxu0 0.0
        %7475 = vmatpush1.msra.mxu0 0.0
        %7476 = vmatprep.subr.mxu0 0.0
        %7477 = vmatpush1.msra.mxu0 0.0
        %7478 = vmatprep.subr.mxu0 0.0
        %7479 = vmatpush1.msra.mxu0 0.0
        %7480 = vmatprep.subr.mxu0 0.0
        %7481 = vmatpush1.msra.mxu0 0.0
        %7482 = vmatprep.subr.mxu0 0.0
        %7483 = vmatpush1.msra.mxu0 0.0
        %7484 = vmatprep.subr.mxu0 0.0
        %7485 = vmatpush1.msra.mxu0 0.0
        %7486 = vmatprep.subr.mxu0 0.0
        %7487 = vmatpush1.msra.mxu0 0.0
        %7488 = vmatprep.subr.mxu0 0.0
        %7489 = vmatpush1.msra.mxu0 0.0
        %7490 = vmatprep.subr.mxu0 0.0
        %7491 = vmatpush1.msra.mxu0 0.0
        %7492 = vmatprep.subr.mxu0 0.0
        %7493 = vmatpush1.msra.mxu0 0.0
        %7494 = vmatprep.subr.mxu0 0.0
        %7495 = vmatpush1.msra.mxu0 0.0
        %7496 = vmatprep.subr.mxu0 0.0
        %7497 = vmatpush1.msra.mxu0 0.0
        %7498 = vmatprep.subr.mxu0 0.0
        %7499 = vmatpush1.msra.mxu0 0.0
        %7500 = vmatprep.subr.mxu0 0.0
        %7501 = vmatpush1.msra.mxu0 0.0
        %7502 = vmatprep.subr.mxu0 0.0
        %7503 = vmatpush1.msra.mxu0 0.0
        %7504 = vmatprep.subr.mxu0 0.0
        %7505 = vmatpush1.msra.mxu0 0.0
        %7506 = vmatprep.subr.mxu0 0.0
        %7507 = vmatpush1.msra.mxu0 0.0
        %7508 = vmatprep.subr.mxu0 0.0
        %7509 = vmatpush1.msra.mxu0 0.0
        %7510 = vmatprep.subr.mxu0 0.0
        %7511 = vmatpush1.msra.mxu0 0.0
        %7512 = vmatprep.subr.mxu0 0.0
        %7513 = vmatpush1.msra.mxu0 0.0
        %7514 = vmatprep.subr.mxu0 0.0
        %7515 = vmatpush1.msra.mxu0 0.0
        %7516 = vmatprep.subr.mxu0 0.0
        %7517 = vmatpush1.msra.mxu0 0.0
        %7518 = vmatprep.mubr.f32.mxu0 0.0
        %7519 = vmatmul.mubr.f32.gmra.mrb[0].mxu0 %v7249
        %v7520 = vpop.f32.mrb[0].mxu0
        %v7521 = vadd.f32 0.0, %v7520
        %v7522 = vpop.f32.mrb[0].mxu0
        %v7523 = vadd.f32 0.0, %v7522
        %7524 = vmatprep.mubr.f32.mxu0 0.0
        %7525 = vmatmul.mubr.f32.gmra.mrb[0].mxu0 %v7252
        %v7526 = vpop.f32.mrb[0].mxu0
        %v7527 = vadd.f32 0.0, %v7526
        %v7528 = vpop.f32.mrb[0].mxu0
        %v7529 = vadd.f32 0.0, %v7528
        %7530 = vmatprep.mubr.f32.mxu0 0.0
        %7531 = vmatmul.mubr.f32.gmra.mrb[0].mxu0 %v7255
        %v7532 = vpop.f32.mrb[0].mxu0
        %v7533 = vadd.f32 0.0, %v7532
        %v7534 = vpop.f32.mrb[0].mxu0
        %v7535 = vadd.f32 0.0, %v7534
        %7536 = vmatprep.mubr.f32.mxu0 0.0
        %7537 = vmatmul.mubr.f32.gmra.mrb[0].mxu0 %v7258
        %v7538 = vpop.f32.mrb[0].mxu0
        %v7539 = vadd.f32 0.0, %v7538
        %v7540 = vpop.f32.mrb[0].mxu0
        %v7541 = vadd.f32 0.0, %v7540
        %7542 = vdwg.mxu0
        %7543 = vmatprep.subr.mxu0 %v1451
        %7544 = vmatpush1.msra.mxu0 %v1450
        %7545 = vmatprep.subr.mxu0 %v1455
        %7546 = vmatpush1.msra.mxu0 %v1454
        %7547 = vmatprep.subr.mxu0 %v1459
        %7548 = vmatpush1.msra.mxu0 %v1458
        %7549 = vmatprep.subr.mxu0 %v1463
        %7550 = vmatpush1.msra.mxu0 %v1462
        %7551 = vmatprep.subr.mxu0 %v1467
        %7552 = vmatpush1.msra.mxu0 %v1466
        %7553 = vmatprep.subr.mxu0 %v1471
        %7554 = vmatpush1.msra.mxu0 %v1470
        %7555 = vmatprep.subr.mxu0 %v1475
        %7556 = vmatpush1.msra.mxu0 %v1474
        %7557 = vmatprep.subr.mxu0 %v1479
        %7558 = vmatpush1.msra.mxu0 %v1478
        %7559 = vmatprep.subr.mxu0 %v1483
        %7560 = vmatpush1.msra.mxu0 %v1482
        %7561 = vmatprep.subr.mxu0 %v1487
        %7562 = vmatpush1.msra.mxu0 %v1486
        %7563 = vmatprep.subr.mxu0 0.0
        %7564 = vmatpush1.msra.mxu0 0.0
        %7565 = vmatprep.subr.mxu0 0.0
        %7566 = vmatpush1.msra.mxu0 0.0
        %7567 = vmatprep.subr.mxu0 0.0
        %7568 = vmatpush1.msra.mxu0 0.0
        %7569 = vmatprep.subr.mxu0 0.0
        %7570 = vmatpush1.msra.mxu0 0.0
        %7571 = vmatprep.subr.mxu0 0.0
        %7572 = vmatpush1.msra.mxu0 0.0
        %7573 = vmatprep.subr.mxu0 0.0
        %7574 = vmatpush1.msra.mxu0 0.0
        %7575 = vmatprep.subr.mxu0 0.0
        %7576 = vmatpush1.msra.mxu0 0.0
        %7577 = vmatprep.subr.mxu0 0.0
        %7578 = vmatpush1.msra.mxu0 0.0
        %7579 = vmatprep.subr.mxu0 0.0
        %7580 = vmatpush1.msra.mxu0 0.0
        %7581 = vmatprep.subr.mxu0 0.0
        %7582 = vmatpush1.msra.mxu0 0.0
        %7583 = vmatprep.subr.mxu0 0.0
        %7584 = vmatpush1.msra.mxu0 0.0
        %7585 = vmatprep.subr.mxu0 0.0
        %7586 = vmatpush1.msra.mxu0 0.0
        %7587 = vmatprep.subr.mxu0 0.0
        %7588 = vmatpush1.msra.mxu0 0.0
        %7589 = vmatprep.subr.mxu0 0.0
        %7590 = vmatpush1.msra.mxu0 0.0
        %7591 = vmatprep.subr.mxu0 0.0
        %7592 = vmatpush1.msra.mxu0 0.0
        %7593 = vmatprep.subr.mxu0 0.0
        %7594 = vmatpush1.msra.mxu0 0.0
        %7595 = vmatprep.subr.mxu0 0.0
        %7596 = vmatpush1.msra.mxu0 0.0
        %7597 = vmatprep.subr.mxu0 0.0
        %7598 = vmatpush1.msra.mxu0 0.0
        %7599 = vmatprep.subr.mxu0 0.0
        %7600 = vmatpush1.msra.mxu0 0.0
        %7601 = vmatprep.subr.mxu0 0.0
        %7602 = vmatpush1.msra.mxu0 0.0
        %7603 = vmatprep.subr.mxu0 0.0
        %7604 = vmatpush1.msra.mxu0 0.0
        %7605 = vmatprep.subr.mxu0 0.0
        %7606 = vmatpush1.msra.mxu0 0.0
        %7607 = vmatprep.mubr.f32.mxu0 0.0
        %7608 = vmatmul.mubr.f32.gmra.mrb[0].mxu0 %v7249
        %v7609 = vpop.f32.mrb[0].mxu0
        %v7610 = vadd.f32 0.0, %v7609
        %v7611 = vpop.f32.mrb[0].mxu0
        %v7612 = vadd.f32 0.0, %v7611
        %7613 = vmatprep.mubr.f32.mxu0 0.0
        %7614 = vmatmul.mubr.f32.gmra.mrb[0].mxu0 %v7252
        %v7615 = vpop.f32.mrb[0].mxu0
        %v7616 = vadd.f32 0.0, %v7615
        %v7617 = vpop.f32.mrb[0].mxu0
        %v7618 = vadd.f32 0.0, %v7617
        %7619 = vmatprep.mubr.f32.mxu0 0.0
        %7620 = vmatmul.mubr.f32.gmra.mrb[0].mxu0 %v7255
        %v7621 = vpop.f32.mrb[0].mxu0
        %v7622 = vadd.f32 0.0, %v7621
        %v7623 = vpop.f32.mrb[0].mxu0
        %v7624 = vadd.f32 0.0, %v7623
        %7625 = vmatprep.mubr.f32.mxu0 0.0
        %7626 = vmatmul.mubr.f32.gmra.mrb[0].mxu0 %v7258
        %v7627 = vpop.f32.mrb[0].mxu0
        %v7628 = vadd.f32 0.0, %v7627
        %v7629 = vpop.f32.mrb[0].mxu0
        %v7630 = vadd.f32 0.0, %v7629
        %7631 = vdwg.mxu0
        %v7632 = vmul.f32 %v7232, %v7521
        %v7633 = vmul.f32 %v7233, %v7523
        %v7634 = vmul.f32 %v7234, %v7610
        %v7635 = vmul.f32 %v7235, %v7612
        %v7636 = vmul.f32 %v7236, %v7527
        %v7637 = vmul.f32 %v7237, %v7529
        %v7638 = vmul.f32 %v7238, %v7616
        %v7639 = vmul.f32 %v7239, %v7618
        %v7640 = vmul.f32 %v7240, %v7533
        %v7641 = vmul.f32 %v7241, %v7535
        %v7642 = vmul.f32 %v7242, %v7622
        %v7643 = vmul.f32 %v7243, %v7624
        %v7644 = vmul.f32 %v7244, %v7539
        %v7645 = vmul.f32 %v7245, %v7541
        %v7646 = vmul.f32 %v7246, %v7628
        %v7647 = vmul.f32 %v7247, %v7630
        %v7649 = vsel %vm1770, %v7635, 0
        %v7652 = vsel %vm1770, %v7639, 0
        %v7655 = vsel %vm1770, %v7643, 0
        %v7658 = vsel %vm1770, %v7647, 0
        %7660 = vmatprep.subr.mxu0 0.0
        %7661 = vmatpush1.msra.mxu0 %v2695
        %7662 = vmatprep.subr.mxu0 0.0
        %7663 = vmatpush1.msra.mxu0 %v2696
        %7664 = vmatprep.subr.mxu0 0.0
        %7665 = vmatpush1.msra.mxu0 %v2697
        %7666 = vmatprep.subr.mxu0 0.0
        %7667 = vmatpush1.msra.mxu0 %v2698
        %7668 = vmatprep.subr.mxu0 0.0
        %7669 = vmatpush1.msra.mxu0 %v2699
        %7670 = vmatprep.subr.mxu0 0.0
        %7671 = vmatpush1.msra.mxu0 %v2700
        %7672 = vmatprep.subr.mxu0 0.0
        %7673 = vmatpush1.msra.mxu0 %v2701
        %7674 = vmatprep.subr.mxu0 0.0
        %7675 = vmatpush1.msra.mxu0 %v2702
        %7676 = vmatprep.subr.mxu0 0.0
        %7677 = vmatpush1.msra.mxu0 %v2703
        %7678 = vmatprep.subr.mxu0 0.0
        %7679 = vmatpush1.msra.mxu0 %v2704
        %7680 = vmatprep.subr.mxu0 0.0
        %7681 = vmatpush1.msra.mxu0 %v2705
        %7682 = vmatprep.subr.mxu0 0.0
        %7683 = vmatpush1.msra.mxu0 %v2706
        %7684 = vmatprep.subr.mxu0 0.0
        %7685 = vmatpush1.msra.mxu0 %v2707
        %7686 = vmatprep.subr.mxu0 0.0
        %7687 = vmatpush1.msra.mxu0 %v2708
        %7688 = vmatprep.subr.mxu0 0.0
        %7689 = vmatpush1.msra.mxu0 %v2709
        %7690 = vmatprep.subr.mxu0 0.0
        %7691 = vmatpush1.msra.mxu0 %v2710
        %7692 = vmatprep.subr.mxu0 0.0
        %7693 = vmatpush1.msra.mxu0 %v2711
        %7694 = vmatprep.subr.mxu0 0.0
        %7695 = vmatpush1.msra.mxu0 %v2712
        %7696 = vmatprep.subr.mxu0 0.0
        %7697 = vmatpush1.msra.mxu0 %v2713
        %7698 = vmatprep.subr.mxu0 0.0
        %7699 = vmatpush1.msra.mxu0 %v2714
        %7700 = vmatprep.subr.mxu0 0.0
        %7701 = vmatpush1.msra.mxu0 %v2715
        %7702 = vmatprep.subr.mxu0 0.0
        %7703 = vmatpush1.msra.mxu0 %v2716
        %7704 = vmatprep.subr.mxu0 0.0
        %7705 = vmatpush1.msra.mxu0 %v2717
        %7706 = vmatprep.subr.mxu0 0.0
        %7707 = vmatpush1.msra.mxu0 %v2718
        %7708 = vmatprep.subr.mxu0 0.0
        %7709 = vmatpush1.msra.mxu0 %v2719
        %7710 = vmatprep.subr.mxu0 0.0
        %7711 = vmatpush1.msra.mxu0 %v2720
        %7712 = vmatprep.subr.mxu0 0.0
        %7713 = vmatpush1.msra.mxu0 %v2721
        %7714 = vmatprep.subr.mxu0 0.0
        %7715 = vmatpush1.msra.mxu0 %v2722
        %7716 = vmatprep.subr.mxu0 0.0
        %7717 = vmatpush1.msra.mxu0 %v2723
        %7718 = vmatprep.subr.mxu0 0.0
        %7719 = vmatpush1.msra.mxu0 %v2724
        %7720 = vmatprep.subr.mxu0 0.0
        %7721 = vmatpush1.msra.mxu0 %v2725
        %7722 = vmatprep.subr.mxu0 0.0
        %7723 = vmatpush1.msra.mxu0 %v2726
        %7724 = vmatprep.mubr.f32.mxu0 %v7633
        %7725 = vmatmul.mubr.f32.gmra.mrb[0].mxu0 %v7632
        %v7726 = vpop.f32.mrb[0].mxu0
        %v7727 = vadd.f32 0.0, %v7726
        %v7728 = vpop.f32.mrb[0].mxu0
        %7729 = vmatprep.mubr.f32.mxu0 %v7637
        %7730 = vmatmul.mubr.f32.gmra.mrb[0].mxu0 %v7636
        %v7731 = vpop.f32.mrb[0].mxu0
        %v7732 = vadd.f32 0.0, %v7731
        %v7733 = vpop.f32.mrb[0].mxu0
        %7734 = vmatprep.mubr.f32.mxu0 %v7641
        %7735 = vmatmul.mubr.f32.gmra.mrb[0].mxu0 %v7640
        %v7736 = vpop.f32.mrb[0].mxu0
        %v7737 = vadd.f32 0.0, %v7736
        %v7738 = vpop.f32.mrb[0].mxu0
        %7739 = vmatprep.mubr.f32.mxu0 %v7645
        %7740 = vmatmul.mubr.f32.gmra.mrb[0].mxu0 %v7644
        %v7741 = vpop.f32.mrb[0].mxu0
        %v7742 = vadd.f32 0.0, %v7741
        %v7743 = vpop.f32.mrb[0].mxu0
        %7744 = vdwg.mxu0
        %7745 = vmatprep.subr.mxu0 0.0
        %7746 = vmatpush1.msra.mxu0 %v2727
        %7747 = vmatprep.subr.mxu0 0.0
        %7748 = vmatpush1.msra.mxu0 %v2728
        %7749 = vmatprep.subr.mxu0 0.0
        %7750 = vmatpush1.msra.mxu0 %v2729
        %7751 = vmatprep.subr.mxu0 0.0
        %7752 = vmatpush1.msra.mxu0 %v2730
        %7753 = vmatprep.subr.mxu0 0.0
        %7754 = vmatpush1.msra.mxu0 %v2731
        %7755 = vmatprep.subr.mxu0 0.0
        %7756 = vmatpush1.msra.mxu0 %v2732
        %7757 = vmatprep.subr.mxu0 0.0
        %7758 = vmatpush1.msra.mxu0 %v2733
        %7759 = vmatprep.subr.mxu0 0.0
        %7760 = vmatpush1.msra.mxu0 %v2734
        %7761 = vmatprep.subr.mxu0 0.0
        %7762 = vmatpush1.msra.mxu0 %v2735
        %7763 = vmatprep.subr.mxu0 0.0
        %7764 = vmatpush1.msra.mxu0 %v2736
        %7765 = vmatprep.subr.mxu0 0.0
        %7766 = vmatpush1.msra.mxu0 %v2737
        %7767 = vmatprep.subr.mxu0 0.0
        %7768 = vmatpush1.msra.mxu0 %v2738
        %7769 = vmatprep.subr.mxu0 0.0
        %7770 = vmatpush1.msra.mxu0 %v2739
        %7771 = vmatprep.subr.mxu0 0.0
        %7772 = vmatpush1.msra.mxu0 %v2740
        %7773 = vmatprep.subr.mxu0 0.0
        %7774 = vmatpush1.msra.mxu0 %v2741
        %7775 = vmatprep.subr.mxu0 0.0
        %7776 = vmatpush1.msra.mxu0 %v2742
        %7777 = vmatprep.subr.mxu0 0.0
        %7778 = vmatpush1.msra.mxu0 %v2743
        %7779 = vmatprep.subr.mxu0 0.0
        %7780 = vmatpush1.msra.mxu0 %v2744
        %7781 = vmatprep.subr.mxu0 0.0
        %7782 = vmatpush1.msra.mxu0 0.0
        %7783 = vmatprep.subr.mxu0 0.0
        %7784 = vmatpush1.msra.mxu0 0.0
        %7785 = vmatprep.subr.mxu0 0.0
        %7786 = vmatpush1.msra.mxu0 0.0
        %7787 = vmatprep.subr.mxu0 0.0
        %7788 = vmatpush1.msra.mxu0 0.0
        %7789 = vmatprep.subr.mxu0 0.0
        %7790 = vmatpush1.msra.mxu0 0.0
        %7791 = vmatprep.subr.mxu0 0.0
        %7792 = vmatpush1.msra.mxu0 0.0
        %7793 = vmatprep.subr.mxu0 0.0
        %7794 = vmatpush1.msra.mxu0 0.0
        %7795 = vmatprep.subr.mxu0 0.0
        %7796 = vmatpush1.msra.mxu0 0.0
        %7797 = vmatprep.subr.mxu0 0.0
        %7798 = vmatpush1.msra.mxu0 0.0
        %7799 = vmatprep.subr.mxu0 0.0
        %7800 = vmatpush1.msra.mxu0 0.0
        %7801 = vmatprep.subr.mxu0 0.0
        %7802 = vmatpush1.msra.mxu0 0.0
        %7803 = vmatprep.subr.mxu0 0.0
        %7804 = vmatpush1.msra.mxu0 0.0
        %7805 = vmatprep.subr.mxu0 0.0
        %7806 = vmatpush1.msra.mxu0 0.0
        %7807 = vmatprep.subr.mxu0 0.0
        %7808 = vmatpush1.msra.mxu0 0.0
        %7809 = vmatprep.mubr.f32.mxu0 %v7649
        %7810 = vmatmul.mubr.f32.gmra.mrb[0].mxu0 %v7634
        %v7811 = vpop.f32.mrb[0].mxu0
        %v7812 = vadd.f32 %v7727, %v7811
        %v7813 = vpop.f32.mrb[0].mxu0
        %7814 = vmatprep.mubr.f32.mxu0 %v7652
        %7815 = vmatmul.mubr.f32.gmra.mrb[0].mxu0 %v7638
        %v7816 = vpop.f32.mrb[0].mxu0
        %v7817 = vadd.f32 %v7732, %v7816
        %v7818 = vpop.f32.mrb[0].mxu0
        %7819 = vmatprep.mubr.f32.mxu0 %v7655
        %7820 = vmatmul.mubr.f32.gmra.mrb[0].mxu0 %v7642
        %v7821 = vpop.f32.mrb[0].mxu0
        %v7822 = vadd.f32 %v7737, %v7821
        %v7823 = vpop.f32.mrb[0].mxu0
        %7824 = vmatprep.mubr.f32.mxu0 %v7658
        %7825 = vmatmul.mubr.f32.gmra.mrb[0].mxu0 %v7646
        %v7826 = vpop.f32.mrb[0].mxu0
        %v7827 = vadd.f32 %v7742, %v7826
        %v7828 = vpop.f32.mrb[0].mxu0
        %7829 = vdwg.mxu0
        %v7831 = vsel %vm1770, %v7441, 0
        %v7834 = vsel %vm1770, %v7445, 0
        %v7837 = vsel %vm1770, %v7449, 0
        %v7840 = vsel %vm1770, %v7453, 0
        %7842 = vmatprep.subr.mxu0 0.0
        %7843 = vmatpush1.msra.mxu0 %v2451
        %7844 = vmatprep.subr.mxu0 0.0
        %7845 = vmatpush1.msra.mxu0 %v2452
        %7846 = vmatprep.subr.mxu0 0.0
        %7847 = vmatpush1.msra.mxu0 %v2453
        %7848 = vmatprep.subr.mxu0 0.0
        %7849 = vmatpush1.msra.mxu0 %v2454
        %7850 = vmatprep.subr.mxu0 0.0
        %7851 = vmatpush1.msra.mxu0 %v2455
        %7852 = vmatprep.subr.mxu0 0.0
        %7853 = vmatpush1.msra.mxu0 %v2456
        %7854 = vmatprep.subr.mxu0 0.0
        %7855 = vmatpush1.msra.mxu0 %v2457
        %7856 = vmatprep.subr.mxu0 0.0
        %7857 = vmatpush1.msra.mxu0 %v2458
        %7858 = vmatprep.subr.mxu0 0.0
        %7859 = vmatpush1.msra.mxu0 %v2459
        %7860 = vmatprep.subr.mxu0 0.0
        %7861 = vmatpush1.msra.mxu0 %v2460
        %7862 = vmatprep.subr.mxu0 0.0
        %7863 = vmatpush1.msra.mxu0 %v2461
        %7864 = vmatprep.subr.mxu0 0.0
        %7865 = vmatpush1.msra.mxu0 %v2462
        %7866 = vmatprep.subr.mxu0 0.0
        %7867 = vmatpush1.msra.mxu0 %v2463
        %7868 = vmatprep.subr.mxu0 0.0
        %7869 = vmatpush1.msra.mxu0 %v2464
        %7870 = vmatprep.subr.mxu0 0.0
        %7871 = vmatpush1.msra.mxu0 %v2465
        %7872 = vmatprep.subr.mxu0 0.0
        %7873 = vmatpush1.msra.mxu0 %v2466
        %7874 = vmatprep.subr.mxu0 0.0
        %7875 = vmatpush1.msra.mxu0 %v2467
        %7876 = vmatprep.subr.mxu0 0.0
        %7877 = vmatpush1.msra.mxu0 %v2468
        %7878 = vmatprep.subr.mxu0 0.0
        %7879 = vmatpush1.msra.mxu0 %v2469
        %7880 = vmatprep.subr.mxu0 0.0
        %7881 = vmatpush1.msra.mxu0 %v2470
        %7882 = vmatprep.subr.mxu0 0.0
        %7883 = vmatpush1.msra.mxu0 %v2471
        %7884 = vmatprep.subr.mxu0 0.0
        %7885 = vmatpush1.msra.mxu0 %v2472
        %7886 = vmatprep.subr.mxu0 0.0
        %7887 = vmatpush1.msra.mxu0 %v2473
        %7888 = vmatprep.subr.mxu0 0.0
        %7889 = vmatpush1.msra.mxu0 %v2474
        %7890 = vmatprep.subr.mxu0 0.0
        %7891 = vmatpush1.msra.mxu0 %v2475
        %7892 = vmatprep.subr.mxu0 0.0
        %7893 = vmatpush1.msra.mxu0 %v2476
        %7894 = vmatprep.subr.mxu0 0.0
        %7895 = vmatpush1.msra.mxu0 %v2477
        %7896 = vmatprep.subr.mxu0 0.0
        %7897 = vmatpush1.msra.mxu0 %v2478
        %7898 = vmatprep.subr.mxu0 0.0
        %7899 = vmatpush1.msra.mxu0 %v2479
        %7900 = vmatprep.subr.mxu0 0.0
        %7901 = vmatpush1.msra.mxu0 %v2480
        %7902 = vmatprep.subr.mxu0 0.0
        %7903 = vmatpush1.msra.mxu0 %v2481
        %7904 = vmatprep.subr.mxu0 0.0
        %7905 = vmatpush1.msra.mxu0 %v2482
        %7906 = vmatprep.mubr.f32.mxu0 %v7439
        %7907 = vmatmul.mubr.f32.gmra.mrb[0].mxu0 %v7438
        %v7908 = vpop.f32.mrb[0].mxu0
        %v7909 = vadd.f32 %v7812, %v7908
        %v7910 = vpop.f32.mrb[0].mxu0
        %7911 = vmatprep.mubr.f32.mxu0 %v7443
        %7912 = vmatmul.mubr.f32.gmra.mrb[0].mxu0 %v7442
        %v7913 = vpop.f32.mrb[0].mxu0
        %v7914 = vadd.f32 %v7817, %v7913
        %v7915 = vpop.f32.mrb[0].mxu0
        %7916 = vmatprep.mubr.f32.mxu0 %v7447
        %7917 = vmatmul.mubr.f32.gmra.mrb[0].mxu0 %v7446
        %v7918 = vpop.f32.mrb[0].mxu0
        %v7919 = vadd.f32 %v7822, %v7918
        %v7920 = vpop.f32.mrb[0].mxu0
        %7921 = vmatprep.mubr.f32.mxu0 %v7451
        %7922 = vmatmul.mubr.f32.gmra.mrb[0].mxu0 %v7450
        %v7923 = vpop.f32.mrb[0].mxu0
        %v7924 = vadd.f32 %v7827, %v7923
        %v7925 = vpop.f32.mrb[0].mxu0
        %7926 = vdwg.mxu0
        %7927 = vmatprep.subr.mxu0 0.0
        %7928 = vmatpush1.msra.mxu0 %v2483
        %7929 = vmatprep.subr.mxu0 0.0
        %7930 = vmatpush1.msra.mxu0 %v2484
        %7931 = vmatprep.subr.mxu0 0.0
        %7932 = vmatpush1.msra.mxu0 %v2485
        %7933 = vmatprep.subr.mxu0 0.0
        %7934 = vmatpush1.msra.mxu0 %v2486
        %7935 = vmatprep.subr.mxu0 0.0
        %7936 = vmatpush1.msra.mxu0 %v2487
        %7937 = vmatprep.subr.mxu0 0.0
        %7938 = vmatpush1.msra.mxu0 %v2488
        %7939 = vmatprep.subr.mxu0 0.0
        %7940 = vmatpush1.msra.mxu0 %v2489
        %7941 = vmatprep.subr.mxu0 0.0
        %7942 = vmatpush1.msra.mxu0 %v2490
        %7943 = vmatprep.subr.mxu0 0.0
        %7944 = vmatpush1.msra.mxu0 %v2491
        %7945 = vmatprep.subr.mxu0 0.0
        %7946 = vmatpush1.msra.mxu0 %v2492
        %7947 = vmatprep.subr.mxu0 0.0
        %7948 = vmatpush1.msra.mxu0 %v2493
        %7949 = vmatprep.subr.mxu0 0.0
        %7950 = vmatpush1.msra.mxu0 %v2494
        %7951 = vmatprep.subr.mxu0 0.0
        %7952 = vmatpush1.msra.mxu0 %v2495
        %7953 = vmatprep.subr.mxu0 0.0
        %7954 = vmatpush1.msra.mxu0 %v2496
        %7955 = vmatprep.subr.mxu0 0.0
        %7956 = vmatpush1.msra.mxu0 %v2497
        %7957 = vmatprep.subr.mxu0 0.0
        %7958 = vmatpush1.msra.mxu0 %v2498
        %7959 = vmatprep.subr.mxu0 0.0
        %7960 = vmatpush1.msra.mxu0 %v2499
        %7961 = vmatprep.subr.mxu0 0.0
        %7962 = vmatpush1.msra.mxu0 %v2500
        %7963 = vmatprep.subr.mxu0 0.0
        %7964 = vmatpush1.msra.mxu0 0.0
        %7965 = vmatprep.subr.mxu0 0.0
        %7966 = vmatpush1.msra.mxu0 0.0
        %7967 = vmatprep.subr.mxu0 0.0
        %7968 = vmatpush1.msra.mxu0 0.0
        %7969 = vmatprep.subr.mxu0 0.0
        %7970 = vmatpush1.msra.mxu0 0.0
        %7971 = vmatprep.subr.mxu0 0.0
        %7972 = vmatpush1.msra.mxu0 0.0
        %7973 = vmatprep.subr.mxu0 0.0
        %7974 = vmatpush1.msra.mxu0 0.0
        %7975 = vmatprep.subr.mxu0 0.0
        %7976 = vmatpush1.msra.mxu0 0.0
        %7977 = vmatprep.subr.mxu0 0.0
        %7978 = vmatpush1.msra.mxu0 0.0
        %7979 = vmatprep.subr.mxu0 0.0
        %7980 = vmatpush1.msra.mxu0 0.0
        %7981 = vmatprep.subr.mxu0 0.0
        %7982 = vmatpush1.msra.mxu0 0.0
        %7983 = vmatprep.subr.mxu0 0.0
        %7984 = vmatpush1.msra.mxu0 0.0
        %7985 = vmatprep.subr.mxu0 0.0
        %7986 = vmatpush1.msra.mxu0 0.0
        %7987 = vmatprep.subr.mxu0 0.0
        %7988 = vmatpush1.msra.mxu0 0.0
        %7989 = vmatprep.subr.mxu0 0.0
        %7990 = vmatpush1.msra.mxu0 0.0
        %7991 = vmatprep.mubr.f32.mxu0 %v7831
        %7992 = vmatmul.mubr.f32.gmra.mrb[0].mxu0 %v7440
        %v7993 = vpop.f32.mrb[0].mxu0
        %v7994 = vadd.f32 %v7909, %v7993
        %v7995 = vpop.f32.mrb[0].mxu0
        %7996 = vmatprep.mubr.f32.mxu0 %v7834
        %7997 = vmatmul.mubr.f32.gmra.mrb[0].mxu0 %v7444
        %v7998 = vpop.f32.mrb[0].mxu0
        %v7999 = vadd.f32 %v7914, %v7998
        %v8000 = vpop.f32.mrb[0].mxu0
        %8001 = vmatprep.mubr.f32.mxu0 %v7837
        %8002 = vmatmul.mubr.f32.gmra.mrb[0].mxu0 %v7448
        %v8003 = vpop.f32.mrb[0].mxu0
        %v8004 = vadd.f32 %v7919, %v8003
        %v8005 = vpop.f32.mrb[0].mxu0
        %8006 = vmatprep.mubr.f32.mxu0 %v7840
        %8007 = vmatmul.mubr.f32.gmra.mrb[0].mxu0 %v7452
        %v8008 = vpop.f32.mrb[0].mxu0
        %v8009 = vadd.f32 %v7924, %v8008
        %v8010 = vpop.f32.mrb[0].mxu0
        %8011 = vdwg.mxu0
        %v8013 = vsel %vm456, %v7994, 0
        %v8016 = vsel %vm456, %v7999, 0
        %v8019 = vsel %vm456, %v8004, 0
        %v8022 = vsel %vm456, %v8009, 0
        %8024 = vmatprep.subr.mxu0 0.0
        %8025 = vmatpush1.msra.mxu0 %v3109
        %8026 = vmatprep.subr.mxu0 0.0
        %8027 = vmatpush1.msra.mxu0 %v3110
        %8028 = vmatprep.subr.mxu0 0.0
        %8029 = vmatpush1.msra.mxu0 %v3111
        %8030 = vmatprep.subr.mxu0 0.0
        %8031 = vmatpush1.msra.mxu0 %v3112
        %8032 = vmatprep.subr.mxu0 0.0
        %8033 = vmatpush1.msra.mxu0 %v3113
        %8034 = vmatprep.subr.mxu0 0.0
        %8035 = vmatpush1.msra.mxu0 %v3114
        %8036 = vmatprep.subr.mxu0 0.0
        %8037 = vmatpush1.msra.mxu0 %v3115
        %8038 = vmatprep.subr.mxu0 0.0
        %8039 = vmatpush1.msra.mxu0 %v3116
        %8040 = vmatprep.subr.mxu0 0.0
        %8041 = vmatpush1.msra.mxu0 %v3117
        %8042 = vmatprep.subr.mxu0 0.0
        %8043 = vmatpush1.msra.mxu0 %v3118
        %8044 = vmatprep.subr.mxu0 0.0
        %8045 = vmatpush1.msra.mxu0 0.0
        %8046 = vmatprep.subr.mxu0 0.0
        %8047 = vmatpush1.msra.mxu0 0.0
        %8048 = vmatprep.subr.mxu0 0.0
        %8049 = vmatpush1.msra.mxu0 0.0
        %8050 = vmatprep.subr.mxu0 0.0
        %8051 = vmatpush1.msra.mxu0 0.0
        %8052 = vmatprep.subr.mxu0 0.0
        %8053 = vmatpush1.msra.mxu0 0.0
        %8054 = vmatprep.subr.mxu0 0.0
        %8055 = vmatpush1.msra.mxu0 0.0
        %8056 = vmatprep.subr.mxu0 0.0
        %8057 = vmatpush1.msra.mxu0 0.0
        %8058 = vmatprep.subr.mxu0 0.0
        %8059 = vmatpush1.msra.mxu0 0.0
        %8060 = vmatprep.subr.mxu0 0.0
        %8061 = vmatpush1.msra.mxu0 0.0
        %8062 = vmatprep.subr.mxu0 0.0
        %8063 = vmatpush1.msra.mxu0 0.0
        %8064 = vmatprep.subr.mxu0 0.0
        %8065 = vmatpush1.msra.mxu0 0.0
        %8066 = vmatprep.subr.mxu0 0.0
        %8067 = vmatpush1.msra.mxu0 0.0
        %8068 = vmatprep.subr.mxu0 0.0
        %8069 = vmatpush1.msra.mxu0 0.0
        %8070 = vmatprep.subr.mxu0 0.0
        %8071 = vmatpush1.msra.mxu0 0.0
        %8072 = vmatprep.subr.mxu0 0.0
        %8073 = vmatpush1.msra.mxu0 0.0
        %8074 = vmatprep.subr.mxu0 0.0
        %8075 = vmatpush1.msra.mxu0 0.0
        %8076 = vmatprep.subr.mxu0 0.0
        %8077 = vmatpush1.msra.mxu0 0.0
        %8078 = vmatprep.subr.mxu0 0.0
        %8079 = vmatpush1.msra.mxu0 0.0
        %8080 = vmatprep.subr.mxu0 0.0
        %8081 = vmatpush1.msra.mxu0 0.0
        %8082 = vmatprep.subr.mxu0 0.0
        %8083 = vmatpush1.msra.mxu0 0.0
        %8084 = vmatprep.subr.mxu0 0.0
        %8085 = vmatpush1.msra.mxu0 0.0
        %8086 = vmatprep.subr.mxu0 0.0
        %8087 = vmatpush1.msra.mxu0 0.0
        %8088 = vmatprep.mubr.f32.mxu0 0.0
        %8089 = vmatmul.mubr.f32.gmra.mrb[0].mxu0 %v8013
        %v8090 = vpop.f32.mrb[0].mxu0
        %v8091 = vadd.f32 0.0, %v8090
        %v8092 = vpop.f32.mrb[0].mxu0
        %8093 = vmatprep.mubr.f32.mxu0 0.0
        %8094 = vmatmul.mubr.f32.gmra.mrb[0].mxu0 %v8016
        %v8095 = vpop.f32.mrb[0].mxu0
        %v8096 = vadd.f32 0.0, %v8095
        %v8097 = vpop.f32.mrb[0].mxu0
        %8098 = vmatprep.mubr.f32.mxu0 0.0
        %8099 = vmatmul.mubr.f32.gmra.mrb[0].mxu0 %v8019
        %v8100 = vpop.f32.mrb[0].mxu0
        %v8101 = vadd.f32 0.0, %v8100
        %v8102 = vpop.f32.mrb[0].mxu0
        %8103 = vmatprep.mubr.f32.mxu0 0.0
        %8104 = vmatmul.mubr.f32.gmra.mrb[0].mxu0 %v8022
        %v8105 = vpop.f32.mrb[0].mxu0
        %v8106 = vadd.f32 0.0, %v8105
        %v8107 = vpop.f32.mrb[0].mxu0
        %8108 = vdwg.mxu0
        %v8109 = vadd.f32 %v5717, %v8091
        %v8110 = vadd.f32 %v5718, %v8096
        %v8111 = vadd.f32 %v5719, %v8101
        %v8112 = vadd.f32 %v5720, %v8106
        %v8113 = vadd.f32 %v8109, %v3224
        %v8114 = vadd.f32 %v8110, %v3224
        %v8115 = vadd.f32 %v8111, %v3224
        %v8116 = vadd.f32 %v8112, %v3224
        %v8118 = vsel %vm456, %v8113, 0
        %v8121 = vsel %vm456, %v8114, 0
        %v8124 = vsel %vm456, %v8115, 0
        %v8127 = vsel %vm456, %v8116, 0
        %8129 = vmatprep.subr.mxu0 %v3230
        %8130 = vmatpush1.msra.mxu0 %v3229
        %8131 = vmatprep.subr.mxu0 %v3232
        %8132 = vmatpush1.msra.mxu0 %v3231
        %8133 = vmatprep.subr.mxu0 %v3234
        %8134 = vmatpush1.msra.mxu0 %v3233
        %8135 = vmatprep.subr.mxu0 %v3236
        %8136 = vmatpush1.msra.mxu0 %v3235
        %8137 = vmatprep.subr.mxu0 %v3238
        %8138 = vmatpush1.msra.mxu0 %v3237
        %8139 = vmatprep.subr.mxu0 %v3240
        %8140 = vmatpush1.msra.mxu0 %v3239
        %8141 = vmatprep.subr.mxu0 %v3242
        %8142 = vmatpush1.msra.mxu0 %v3241
        %8143 = vmatprep.subr.mxu0 %v3244
        %8144 = vmatpush1.msra.mxu0 %v3243
        %8145 = vmatprep.subr.mxu0 %v3246
        %8146 = vmatpush1.msra.mxu0 %v3245
        %8147 = vmatprep.subr.mxu0 %v3248
        %8148 = vmatpush1.msra.mxu0 %v3247
        %8149 = vmatprep.subr.mxu0 0.0
        %8150 = vmatpush1.msra.mxu0 0.0
        %8151 = vmatprep.subr.mxu0 0.0
        %8152 = vmatpush1.msra.mxu0 0.0
        %8153 = vmatprep.subr.mxu0 0.0
        %8154 = vmatpush1.msra.mxu0 0.0
        %8155 = vmatprep.subr.mxu0 0.0
        %8156 = vmatpush1.msra.mxu0 0.0
        %8157 = vmatprep.subr.mxu0 0.0
        %8158 = vmatpush1.msra.mxu0 0.0
        %8159 = vmatprep.subr.mxu0 0.0
        %8160 = vmatpush1.msra.mxu0 0.0
        %8161 = vmatprep.subr.mxu0 0.0
        %8162 = vmatpush1.msra.mxu0 0.0
        %8163 = vmatprep.subr.mxu0 0.0
        %8164 = vmatpush1.msra.mxu0 0.0
        %8165 = vmatprep.subr.mxu0 0.0
        %8166 = vmatpush1.msra.mxu0 0.0
        %8167 = vmatprep.subr.mxu0 0.0
        %8168 = vmatpush1.msra.mxu0 0.0
        %8169 = vmatprep.subr.mxu0 0.0
        %8170 = vmatpush1.msra.mxu0 0.0
        %8171 = vmatprep.subr.mxu0 0.0
        %8172 = vmatpush1.msra.mxu0 0.0
        %8173 = vmatprep.subr.mxu0 0.0
        %8174 = vmatpush1.msra.mxu0 0.0
        %8175 = vmatprep.subr.mxu0 0.0
        %8176 = vmatpush1.msra.mxu0 0.0
        %8177 = vmatprep.subr.mxu0 0.0
        %8178 = vmatpush1.msra.mxu0 0.0
        %8179 = vmatprep.subr.mxu0 0.0
        %8180 = vmatpush1.msra.mxu0 0.0
        %8181 = vmatprep.subr.mxu0 0.0
        %8182 = vmatpush1.msra.mxu0 0.0
        %8183 = vmatprep.subr.mxu0 0.0
        %8184 = vmatpush1.msra.mxu0 0.0
        %8185 = vmatprep.subr.mxu0 0.0
        %8186 = vmatpush1.msra.mxu0 0.0
        %8187 = vmatprep.subr.mxu0 0.0
        %8188 = vmatpush1.msra.mxu0 0.0
        %8189 = vmatprep.subr.mxu0 0.0
        %8190 = vmatpush1.msra.mxu0 0.0
        %8191 = vmatprep.subr.mxu0 0.0
        %8192 = vmatpush1.msra.mxu0 0.0
        %8193 = vmatprep.mubr.f32.mxu0 0.0
        %8194 = vmatmul.mubr.f32.gmra.mrb[0].mxu0 %v8118
        %v8195 = vpop.f32.mrb[0].mxu0
        %v8196 = vadd.f32 %v3255, %v8195
        %v8197 = vpop.f32.mrb[0].mxu0
        %v8198 = vadd.f32 %v3259, %v8197
        %8199 = vmatprep.mubr.f32.mxu0 0.0
        %8200 = vmatmul.mubr.f32.gmra.mrb[0].mxu0 %v8121
        %v8201 = vpop.f32.mrb[0].mxu0
        %v8202 = vadd.f32 %v3255, %v8201
        %v8203 = vpop.f32.mrb[0].mxu0
        %v8204 = vadd.f32 %v3259, %v8203
        %8205 = vmatprep.mubr.f32.mxu0 0.0
        %8206 = vmatmul.mubr.f32.gmra.mrb[0].mxu0 %v8124
        %v8207 = vpop.f32.mrb[0].mxu0
        %v8208 = vadd.f32 %v3255, %v8207
        %v8209 = vpop.f32.mrb[0].mxu0
        %v8210 = vadd.f32 %v3259, %v8209
        %8211 = vmatprep.mubr.f32.mxu0 0.0
        %8212 = vmatmul.mubr.f32.gmra.mrb[0].mxu0 %v8127
        %v8213 = vpop.f32.mrb[0].mxu0
        %v8214 = vadd.f32 %v3255, %v8213
        %v8215 = vpop.f32.mrb[0].mxu0
        %v8216 = vadd.f32 %v3259, %v8215
        %8217 = vdwg.mxu0
        %v8219 = vsel %vm3383, %v8198, 0
        %v8222 = vsel %vm3383, %v8204, 0
        %v8225 = vsel %vm3383, %v8210, 0
        %v8228 = vsel %vm3383, %v8216, 0
        %8230 = vmatprep.subr.mxu0 0.0
        %8231 = vmatpush1.msra.mxu0 %v3363
        %8232 = vmatprep.subr.mxu0 0.0
        %8233 = vmatpush1.msra.mxu0 %v3364
        %8234 = vmatprep.subr.mxu0 0.0
        %8235 = vmatpush1.msra.mxu0 %v3365
        %8236 = vmatprep.subr.mxu0 0.0
        %8237 = vmatpush1.msra.mxu0 %v3366
        %8238 = vmatprep.subr.mxu0 0.0
        %8239 = vmatpush1.msra.mxu0 %v3367
        %8240 = vmatprep.subr.mxu0 0.0
        %8241 = vmatpush1.msra.mxu0 %v3368
        %8242 = vmatprep.subr.mxu0 0.0
        %8243 = vmatpush1.msra.mxu0 %v3369
        %8244 = vmatprep.subr.mxu0 0.0
        %8245 = vmatpush1.msra.mxu0 %v3370
        %8246 = vmatprep.subr.mxu0 0.0
        %8247 = vmatpush1.msra.mxu0 %v3371
        %8248 = vmatprep.subr.mxu0 0.0
        %8249 = vmatpush1.msra.mxu0 %v3372
        %8250 = vmatprep.subr.mxu0 0.0
        %8251 = vmatpush1.msra.mxu0 %v3373
        %8252 = vmatprep.subr.mxu0 0.0
        %8253 = vmatpush1.msra.mxu0 %v3374
        %8254 = vmatprep.subr.mxu0 0.0
        %8255 = vmatpush1.msra.mxu0 %v3375
        %8256 = vmatprep.subr.mxu0 0.0
        %8257 = vmatpush1.msra.mxu0 %v3376
        %8258 = vmatprep.subr.mxu0 0.0
        %8259 = vmatpush1.msra.mxu0 %v3377
        %8260 = vmatprep.subr.mxu0 0.0
        %8261 = vmatpush1.msra.mxu0 %v3378
        %8262 = vmatprep.subr.mxu0 0.0
        %8263 = vmatpush1.msra.mxu0 %v3379
        %8264 = vmatprep.subr.mxu0 0.0
        %8265 = vmatpush1.msra.mxu0 %v3380
        %8266 = vmatprep.subr.mxu0 0.0
        %8267 = vmatpush1.msra.mxu0 %v3381
        %8268 = vmatprep.subr.mxu0 0.0
        %8269 = vmatpush1.msra.mxu0 %v3382
        %8270 = vmatprep.subr.mxu0 0.0
        %8271 = vmatpush1.msra.mxu0 0.0
        %8272 = vmatprep.subr.mxu0 0.0
        %8273 = vmatpush1.msra.mxu0 0.0
        %8274 = vmatprep.subr.mxu0 0.0
        %8275 = vmatpush1.msra.mxu0 0.0
        %8276 = vmatprep.subr.mxu0 0.0
        %8277 = vmatpush1.msra.mxu0 0.0
        %8278 = vmatprep.subr.mxu0 0.0
        %8279 = vmatpush1.msra.mxu0 0.0
        %8280 = vmatprep.subr.mxu0 0.0
        %8281 = vmatpush1.msra.mxu0 0.0
        %8282 = vmatprep.subr.mxu0 0.0
        %8283 = vmatpush1.msra.mxu0 0.0
        %8284 = vmatprep.subr.mxu0 0.0
        %8285 = vmatpush1.msra.mxu0 0.0
        %8286 = vmatprep.subr.mxu0 0.0
        %8287 = vmatpush1.msra.mxu0 0.0
        %8288 = vmatprep.subr.mxu0 0.0
        %8289 = vmatpush1.msra.mxu0 0.0
        %8290 = vmatprep.subr.mxu0 0.0
        %8291 = vmatpush1.msra.mxu0 0.0
        %8292 = vmatprep.subr.mxu0 0.0
        %8293 = vmatpush1.msra.mxu0 0.0
        %8294 = vmatprep.mubr.f32.mxu0 %v8219
        %8295 = vmatmul.mubr.f32.gmra.mrb[0].mxu0 %v8196
        %v8296 = vpop.f32.mrb[0].mxu0
        %v8297 = vadd.f32 0.0, %v8296
        %v8298 = vpop.f32.mrb[0].mxu0
        %8299 = vmatprep.mubr.f32.mxu0 %v8222
        %8300 = vmatmul.mubr.f32.gmra.mrb[0].mxu0 %v8202
        %v8301 = vpop.f32.mrb[0].mxu0
        %v8302 = vadd.f32 0.0, %v8301
        %v8303 = vpop.f32.mrb[0].mxu0
        %8304 = vmatprep.mubr.f32.mxu0 %v8225
        %8305 = vmatmul.mubr.f32.gmra.mrb[0].mxu0 %v8208
        %v8306 = vpop.f32.mrb[0].mxu0
        %v8307 = vadd.f32 0.0, %v8306
        %v8308 = vpop.f32.mrb[0].mxu0
        %8309 = vmatprep.mubr.f32.mxu0 %v8228
        %8310 = vmatmul.mubr.f32.gmra.mrb[0].mxu0 %v8214
        %v8311 = vpop.f32.mrb[0].mxu0
        %v8312 = vadd.f32 0.0, %v8311
        %v8313 = vpop.f32.mrb[0].mxu0
        %8314 = vdwg.mxu0
        %v8315 = vadd.f32 %v8113, %v8297
        %v8316 = vadd.f32 %v8114, %v8302
        %v8317 = vadd.f32 %v8115, %v8307
        %v8318 = vadd.f32 %v8116, %v8312
        %v8319 = vadd.f32 %v8315, %v3489
        %v8320 = vadd.f32 %v8316, %v3489
        %v8321 = vadd.f32 %v8317, %v3489
        %v8322 = vadd.f32 %v8318, %v3489
        %v8323 = vld [vmem:[#allocation6 + $0x330] sm:$0xff]
        %v8324 = vld [vmem:[#allocation6 + $0x338] sm:$0x1]
        %v8325 = vlaneseq
        %v8326 = vshrl.u32 %v8325, 7
        %v8327 = vsub.s32 0, %v8326
        %v8328 = vrot.slane %v8324, %v8327
        %8329 = vmatprep.subr.mxu0 0.0
        %8330 = vmatpush1.msra.mxu0 %v8323
        %8331 = vmatprep.subr.mxu0 0.0
        %8332 = vmatpush1.msra.mxu0 0.0
        %8333 = vmatprep.subr.mxu0 0.0
        %8334 = vmatpush1.msra.mxu0 0.0
        %8335 = vmatprep.subr.mxu0 0.0
        %8336 = vmatpush1.msra.mxu0 0.0
        %8337 = vmatprep.subr.mxu0 0.0
        %8338 = vmatpush1.msra.mxu0 0.0
        %8339 = vmatprep.subr.mxu0 0.0
        %8340 = vmatpush1.msra.mxu0 0.0
        %8341 = vmatprep.subr.mxu0 0.0
        %8342 = vmatpush1.msra.mxu0 0.0
        %8343 = vmatprep.subr.mxu0 0.0
        %8344 = vmatpush1.msra.mxu0 0.0
        %8345 = vmatprep.subr.mxu0 0.0
        %8346 = vmatpush1.msra.mxu0 0.0
        %8347 = vmatprep.subr.mxu0 0.0
        %8348 = vmatpush1.msra.mxu0 0.0
        %8349 = vmatprep.subr.mxu0 0.0
        %8350 = vmatpush1.msra.mxu0 0.0
        %8351 = vmatprep.subr.mxu0 0.0
        %8352 = vmatpush1.msra.mxu0 0.0
        %8353 = vmatprep.subr.mxu0 0.0
        %8354 = vmatpush1.msra.mxu0 0.0
        %8355 = vmatprep.subr.mxu0 0.0
        %8356 = vmatpush1.msra.mxu0 0.0
        %8357 = vmatprep.subr.mxu0 0.0
        %8358 = vmatpush1.msra.mxu0 0.0
        %8359 = vmatprep.subr.mxu0 0.0
        %8360 = vmatpush1.msra.mxu0 0.0
        %8361 = vmatprep.subr.mxu0 0.0
        %8362 = vmatpush1.msra.mxu0 0.0
        %8363 = vmatprep.subr.mxu0 0.0
        %8364 = vmatpush1.msra.mxu0 0.0
        %8365 = vmatprep.subr.mxu0 0.0
        %8366 = vmatpush1.msra.mxu0 0.0
        %8367 = vmatprep.subr.mxu0 0.0
        %8368 = vmatpush1.msra.mxu0 0.0
        %8369 = vmatprep.subr.mxu0 0.0
        %8370 = vmatpush1.msra.mxu0 0.0
        %8371 = vmatprep.subr.mxu0 0.0
        %8372 = vmatpush1.msra.mxu0 0.0
        %8373 = vmatprep.subr.mxu0 0.0
        %8374 = vmatpush1.msra.mxu0 0.0
        %8375 = vmatprep.subr.mxu0 0.0
        %8376 = vmatpush1.msra.mxu0 0.0
        %8377 = vmatprep.subr.mxu0 0.0
        %8378 = vmatpush1.msra.mxu0 0.0
        %8379 = vmatprep.subr.mxu0 0.0
        %8380 = vmatpush1.msra.mxu0 0.0
        %8381 = vmatprep.subr.mxu0 0.0
        %8382 = vmatpush1.msra.mxu0 0.0
        %8383 = vmatprep.subr.mxu0 0.0
        %8384 = vmatpush1.msra.mxu0 0.0
        %8385 = vmatprep.subr.mxu0 0.0
        %8386 = vmatpush1.msra.mxu0 0.0
        %8387 = vmatprep.subr.mxu0 0.0
        %8388 = vmatpush1.msra.mxu0 0.0
        %8389 = vmatprep.subr.mxu0 0.0
        %8390 = vmatpush1.msra.mxu0 0.0
        %8391 = vmatprep.subr.mxu0 0.0
        %8392 = vmatpush1.msra.mxu0 0.0
        %8393 = vmatprep.mubr.f32.mxu0 0.0
        %8394 = vmatmul.mubr.f32.gmra.mrb[0].mxu0 %v3502
        %v8395 = vpop.f32.mrb[0].mxu0
        %v8396 = vadd.f32 %v8328, %v8395
        %v8397 = vpop.f32.mrb[0].mxu0
        %8398 = vmatprep.mubr.f32.mxu0 0.0
        %8399 = vmatmul.mubr.f32.gmra.mrb[0].mxu0 %v3505
        %v8400 = vpop.f32.mrb[0].mxu0
        %v8401 = vadd.f32 %v8328, %v8400
        %v8402 = vpop.f32.mrb[0].mxu0
        %8403 = vmatprep.mubr.f32.mxu0 0.0
        %8404 = vmatmul.mubr.f32.gmra.mrb[0].mxu0 %v3508
        %v8405 = vpop.f32.mrb[0].mxu0
        %v8406 = vadd.f32 %v8328, %v8405
        %v8407 = vpop.f32.mrb[0].mxu0
        %8408 = vmatprep.mubr.f32.mxu0 0.0
        %8409 = vmatmul.mubr.f32.gmra.mrb[0].mxu0 %v3511
        %v8410 = vpop.f32.mrb[0].mxu0
        %v8411 = vadd.f32 %v8328, %v8410
        %v8412 = vpop.f32.mrb[0].mxu0
        %8413 = vdwg.mxu0
        %v8414 = vld [vmem:[#allocation6 + $0x340] sm:$0xff]
        %v8416 = vsel %vm3500, %v8396, 0
        %v8419 = vsel %vm3500, %v8401, 0
        %v8422 = vsel %vm3500, %v8406, 0
        %v8425 = vsel %vm3500, %v8411, 0
        %8427 = vmatprep.subr.mxu0 0.0
        %8428 = vmatpush1.msra.mxu0 %v8414
        %8429 = vmatprep.subr.mxu0 0.0
        %8430 = vmatpush1.msra.mxu0 0.0
        %8431 = vmatprep.subr.mxu0 0.0
        %8432 = vmatpush1.msra.mxu0 0.0
        %8433 = vmatprep.subr.mxu0 0.0
        %8434 = vmatpush1.msra.mxu0 0.0
        %8435 = vmatprep.subr.mxu0 0.0
        %8436 = vmatpush1.msra.mxu0 0.0
        %8437 = vmatprep.subr.mxu0 0.0
        %8438 = vmatpush1.msra.mxu0 0.0
        %8439 = vmatprep.subr.mxu0 0.0
        %8440 = vmatpush1.msra.mxu0 0.0
        %8441 = vmatprep.subr.mxu0 0.0
        %8442 = vmatpush1.msra.mxu0 0.0
        %8443 = vmatprep.subr.mxu0 0.0
        %8444 = vmatpush1.msra.mxu0 0.0
        %8445 = vmatprep.subr.mxu0 0.0
        %8446 = vmatpush1.msra.mxu0 0.0
        %8447 = vmatprep.subr.mxu0 0.0
        %8448 = vmatpush1.msra.mxu0 0.0
        %8449 = vmatprep.subr.mxu0 0.0
        %8450 = vmatpush1.msra.mxu0 0.0
        %8451 = vmatprep.subr.mxu0 0.0
        %8452 = vmatpush1.msra.mxu0 0.0
        %8453 = vmatprep.subr.mxu0 0.0
        %8454 = vmatpush1.msra.mxu0 0.0
        %8455 = vmatprep.subr.mxu0 0.0
        %8456 = vmatpush1.msra.mxu0 0.0
        %8457 = vmatprep.subr.mxu0 0.0
        %8458 = vmatpush1.msra.mxu0 0.0
        %8459 = vmatprep.subr.mxu0 0.0
        %8460 = vmatpush1.msra.mxu0 0.0
        %8461 = vmatprep.subr.mxu0 0.0
        %8462 = vmatpush1.msra.mxu0 0.0
        %8463 = vmatprep.subr.mxu0 0.0
        %8464 = vmatpush1.msra.mxu0 0.0
        %8465 = vmatprep.subr.mxu0 0.0
        %8466 = vmatpush1.msra.mxu0 0.0
        %8467 = vmatprep.subr.mxu0 0.0
        %8468 = vmatpush1.msra.mxu0 0.0
        %8469 = vmatprep.subr.mxu0 0.0
        %8470 = vmatpush1.msra.mxu0 0.0
        %8471 = vmatprep.subr.mxu0 0.0
        %8472 = vmatpush1.msra.mxu0 0.0
        %8473 = vmatprep.subr.mxu0 0.0
        %8474 = vmatpush1.msra.mxu0 0.0
        %8475 = vmatprep.subr.mxu0 0.0
        %8476 = vmatpush1.msra.mxu0 0.0
        %8477 = vmatprep.subr.mxu0 0.0
        %8478 = vmatpush1.msra.mxu0 0.0
        %8479 = vmatprep.subr.mxu0 0.0
        %8480 = vmatpush1.msra.mxu0 0.0
        %8481 = vmatprep.subr.mxu0 0.0
        %8482 = vmatpush1.msra.mxu0 0.0
        %8483 = vmatprep.subr.mxu0 0.0
        %8484 = vmatpush1.msra.mxu0 0.0
        %8485 = vmatprep.subr.mxu0 0.0
        %8486 = vmatpush1.msra.mxu0 0.0
        %8487 = vmatprep.subr.mxu0 0.0
        %8488 = vmatpush1.msra.mxu0 0.0
        %8489 = vmatprep.subr.mxu0 0.0
        %8490 = vmatpush1.msra.mxu0 0.0
        %8491 = vmatprep.mubr.f32.mxu0 0.0
        %8492 = vmatmul.mubr.f32.gmra.mrb[0].mxu0 %v8416
        %v8493 = vpop.f32.mrb[0].mxu0
        %v8494 = vadd.f32 0.0, %v8493
        %v8495 = vpop.f32.mrb[0].mxu0
        %8496 = vmatprep.mubr.f32.mxu0 0.0
        %8497 = vmatmul.mubr.f32.gmra.mrb[0].mxu0 %v8419
        %v8498 = vpop.f32.mrb[0].mxu0
        %v8499 = vadd.f32 0.0, %v8498
        %v8500 = vpop.f32.mrb[0].mxu0
        %8501 = vmatprep.mubr.f32.mxu0 0.0
        %8502 = vmatmul.mubr.f32.gmra.mrb[0].mxu0 %v8422
        %v8503 = vpop.f32.mrb[0].mxu0
        %v8504 = vadd.f32 0.0, %v8503
        %v8505 = vpop.f32.mrb[0].mxu0
        %8506 = vmatprep.mubr.f32.mxu0 0.0
        %8507 = vmatmul.mubr.f32.gmra.mrb[0].mxu0 %v8425
        %v8508 = vpop.f32.mrb[0].mxu0
        %v8509 = vadd.f32 0.0, %v8508
        %v8510 = vpop.f32.mrb[0].mxu0
        %8511 = vdwg.mxu0
        %v8512 = vadd.f32 %v325, %v8494
        %v8513 = vadd.f32 %v326, %v8499
        %v8514 = vadd.f32 %v327, %v8504
        %v8515 = vadd.f32 %v328, %v8509
        %v8516 = vld [vmem:[#allocation6 + $0x348] sm:$0x1]
        %v8517 = vlaneseq
        %v8518 = vshrl.u32 %v8517, 7
        %v8519 = vsub.s32 0, %v8518
        %v8520 = vrot.slane %v8516, %v8519
        %v8521 = vadd.f32 %v8512, %v8520
        %v8522 = vadd.f32 %v8513, %v8520
        %v8523 = vadd.f32 %v8514, %v8520
        %v8524 = vadd.f32 %v8515, %v8520
        %v8525 = vld [vmem:[#allocation6 + $0x350] sm:$0xff]
        %v8526 = vld [vmem:[#allocation6 + $0x358] sm:$0x1]
        %v8527 = vlaneseq
        %v8528 = vshrl.u32 %v8527, 7
        %v8529 = vsub.s32 0, %v8528
        %v8530 = vrot.slane %v8526, %v8529
        %v8532 = vsel %vm3500, %v8521, 0
        %v8535 = vsel %vm3500, %v8522, 0
        %v8538 = vsel %vm3500, %v8523, 0
        %v8541 = vsel %vm3500, %v8524, 0
        %8543 = vmatprep.subr.mxu0 0.0
        %8544 = vmatpush1.msra.mxu0 %v8525
        %8545 = vmatprep.subr.mxu0 0.0
        %8546 = vmatpush1.msra.mxu0 0.0
        %8547 = vmatprep.subr.mxu0 0.0
        %8548 = vmatpush1.msra.mxu0 0.0
        %8549 = vmatprep.subr.mxu0 0.0
        %8550 = vmatpush1.msra.mxu0 0.0
        %8551 = vmatprep.subr.mxu0 0.0
        %8552 = vmatpush1.msra.mxu0 0.0
        %8553 = vmatprep.subr.mxu0 0.0
        %8554 = vmatpush1.msra.mxu0 0.0
        %8555 = vmatprep.subr.mxu0 0.0
        %8556 = vmatpush1.msra.mxu0 0.0
        %8557 = vmatprep.subr.mxu0 0.0
        %8558 = vmatpush1.msra.mxu0 0.0
        %8559 = vmatprep.subr.mxu0 0.0
        %8560 = vmatpush1.msra.mxu0 0.0
        %8561 = vmatprep.subr.mxu0 0.0
        %8562 = vmatpush1.msra.mxu0 0.0
        %8563 = vmatprep.subr.mxu0 0.0
        %8564 = vmatpush1.msra.mxu0 0.0
        %8565 = vmatprep.subr.mxu0 0.0
        %8566 = vmatpush1.msra.mxu0 0.0
        %8567 = vmatprep.subr.mxu0 0.0
        %8568 = vmatpush1.msra.mxu0 0.0
        %8569 = vmatprep.subr.mxu0 0.0
        %8570 = vmatpush1.msra.mxu0 0.0
        %8571 = vmatprep.subr.mxu0 0.0
        %8572 = vmatpush1.msra.mxu0 0.0
        %8573 = vmatprep.subr.mxu0 0.0
        %8574 = vmatpush1.msra.mxu0 0.0
        %8575 = vmatprep.subr.mxu0 0.0
        %8576 = vmatpush1.msra.mxu0 0.0
        %8577 = vmatprep.subr.mxu0 0.0
        %8578 = vmatpush1.msra.mxu0 0.0
        %8579 = vmatprep.subr.mxu0 0.0
        %8580 = vmatpush1.msra.mxu0 0.0
        %8581 = vmatprep.subr.mxu0 0.0
        %8582 = vmatpush1.msra.mxu0 0.0
        %8583 = vmatprep.subr.mxu0 0.0
        %8584 = vmatpush1.msra.mxu0 0.0
        %8585 = vmatprep.subr.mxu0 0.0
        %8586 = vmatpush1.msra.mxu0 0.0
        %8587 = vmatprep.subr.mxu0 0.0
        %8588 = vmatpush1.msra.mxu0 0.0
        %8589 = vmatprep.subr.mxu0 0.0
        %8590 = vmatpush1.msra.mxu0 0.0
        %8591 = vmatprep.subr.mxu0 0.0
        %8592 = vmatpush1.msra.mxu0 0.0
        %8593 = vmatprep.subr.mxu0 0.0
        %8594 = vmatpush1.msra.mxu0 0.0
        %8595 = vmatprep.subr.mxu0 0.0
        %8596 = vmatpush1.msra.mxu0 0.0
        %8597 = vmatprep.subr.mxu0 0.0
        %8598 = vmatpush1.msra.mxu0 0.0
        %8599 = vmatprep.subr.mxu0 0.0
        %8600 = vmatpush1.msra.mxu0 0.0
        %8601 = vmatprep.subr.mxu0 0.0
        %8602 = vmatpush1.msra.mxu0 0.0
        %8603 = vmatprep.subr.mxu0 0.0
        %8604 = vmatpush1.msra.mxu0 0.0
        %8605 = vmatprep.subr.mxu0 0.0
        %8606 = vmatpush1.msra.mxu0 0.0
        %8607 = vmatprep.mubr.f32.mxu0 0.0
        %8608 = vmatmul.mubr.f32.gmra.mrb[0].mxu0 %v8532
        %v8609 = vpop.f32.mrb[0].mxu0
        %v8610 = vadd.f32 %v8530, %v8609
        %v8611 = vpop.f32.mrb[0].mxu0
        %8612 = vmatprep.mubr.f32.mxu0 0.0
        %8613 = vmatmul.mubr.f32.gmra.mrb[0].mxu0 %v8535
        %v8614 = vpop.f32.mrb[0].mxu0
        %v8615 = vadd.f32 %v8530, %v8614
        %v8616 = vpop.f32.mrb[0].mxu0
        %8617 = vmatprep.mubr.f32.mxu0 0.0
        %8618 = vmatmul.mubr.f32.gmra.mrb[0].mxu0 %v8538
        %v8619 = vpop.f32.mrb[0].mxu0
        %v8620 = vadd.f32 %v8530, %v8619
        %v8621 = vpop.f32.mrb[0].mxu0
        %8622 = vmatprep.mubr.f32.mxu0 0.0
        %8623 = vmatmul.mubr.f32.gmra.mrb[0].mxu0 %v8541
        %v8624 = vpop.f32.mrb[0].mxu0
        %v8625 = vadd.f32 %v8530, %v8624
        %v8626 = vpop.f32.mrb[0].mxu0
        %8627 = vdwg.mxu0
        %v8628 = vld [vmem:[#allocation4 + $0x630] sm:$0xff]
        %v8629 = vld [vmem:[#allocation4 + $0x638] sm:$0xff]
        %v8630 = vld [vmem:[#allocation4 + $0x640] sm:$0xff]
        %v8631 = vld [vmem:[#allocation4 + $0x648] sm:$0xff]
        %v8632 = vld [vmem:[#allocation4 + $0x650] sm:$0xff]
        %v8633 = vld [vmem:[#allocation4 + $0x658] sm:$0xff]
        %v8634 = vld [vmem:[#allocation4 + $0x660] sm:$0xff]
        %v8635 = vld [vmem:[#allocation4 + $0x668] sm:$0xff]
        %v8636 = vld [vmem:[#allocation4 + $0x670] sm:$0xff]
        %v8637 = vld [vmem:[#allocation4 + $0x678] sm:$0xff]
        %v8638 = vld [vmem:[#allocation4 + $0x680] sm:$0x1]
        %v8639 = vlaneseq
        %v8640 = vshrl.u32 %v8639, 7
        %v8641 = vsub.s32 0, %v8640
        %v8642 = vrot.slane %v8638, %v8641
        %v8644 = vsel %vm456, %v8319, 0
        %v8647 = vsel %vm456, %v8320, 0
        %v8650 = vsel %vm456, %v8321, 0
        %v8653 = vsel %vm456, %v8322, 0
        %8655 = vmatprep.subr.mxu0 0.0
        %8656 = vmatpush1.msra.mxu0 %v8628
        %8657 = vmatprep.subr.mxu0 0.0
        %8658 = vmatpush1.msra.mxu0 %v8629
        %8659 = vmatprep.subr.mxu0 0.0
        %8660 = vmatpush1.msra.mxu0 %v8630
        %8661 = vmatprep.subr.mxu0 0.0
        %8662 = vmatpush1.msra.mxu0 %v8631
        %8663 = vmatprep.subr.mxu0 0.0
        %8664 = vmatpush1.msra.mxu0 %v8632
        %8665 = vmatprep.subr.mxu0 0.0
        %8666 = vmatpush1.msra.mxu0 %v8633
        %8667 = vmatprep.subr.mxu0 0.0
        %8668 = vmatpush1.msra.mxu0 %v8634
        %8669 = vmatprep.subr.mxu0 0.0
        %8670 = vmatpush1.msra.mxu0 %v8635
        %8671 = vmatprep.subr.mxu0 0.0
        %8672 = vmatpush1.msra.mxu0 %v8636
        %8673 = vmatprep.subr.mxu0 0.0
        %8674 = vmatpush1.msra.mxu0 %v8637
        %8675 = vmatprep.subr.mxu0 0.0
        %8676 = vmatpush1.msra.mxu0 0.0
        %8677 = vmatprep.subr.mxu0 0.0
        %8678 = vmatpush1.msra.mxu0 0.0
        %8679 = vmatprep.subr.mxu0 0.0
        %8680 = vmatpush1.msra.mxu0 0.0
        %8681 = vmatprep.subr.mxu0 0.0
        %8682 = vmatpush1.msra.mxu0 0.0
        %8683 = vmatprep.subr.mxu0 0.0
        %8684 = vmatpush1.msra.mxu0 0.0
        %8685 = vmatprep.subr.mxu0 0.0
        %8686 = vmatpush1.msra.mxu0 0.0
        %8687 = vmatprep.subr.mxu0 0.0
        %8688 = vmatpush1.msra.mxu0 0.0
        %8689 = vmatprep.subr.mxu0 0.0
        %8690 = vmatpush1.msra.mxu0 0.0
        %8691 = vmatprep.subr.mxu0 0.0
        %8692 = vmatpush1.msra.mxu0 0.0
        %8693 = vmatprep.subr.mxu0 0.0
        %8694 = vmatpush1.msra.mxu0 0.0
        %8695 = vmatprep.subr.mxu0 0.0
        %8696 = vmatpush1.msra.mxu0 0.0
        %8697 = vmatprep.subr.mxu0 0.0
        %8698 = vmatpush1.msra.mxu0 0.0
        %8699 = vmatprep.subr.mxu0 0.0
        %8700 = vmatpush1.msra.mxu0 0.0
        %8701 = vmatprep.subr.mxu0 0.0
        %8702 = vmatpush1.msra.mxu0 0.0
        %8703 = vmatprep.subr.mxu0 0.0
        %8704 = vmatpush1.msra.mxu0 0.0
        %8705 = vmatprep.subr.mxu0 0.0
        %8706 = vmatpush1.msra.mxu0 0.0
        %8707 = vmatprep.subr.mxu0 0.0
        %8708 = vmatpush1.msra.mxu0 0.0
        %8709 = vmatprep.subr.mxu0 0.0
        %8710 = vmatpush1.msra.mxu0 0.0
        %8711 = vmatprep.subr.mxu0 0.0
        %8712 = vmatpush1.msra.mxu0 0.0
        %8713 = vmatprep.subr.mxu0 0.0
        %8714 = vmatpush1.msra.mxu0 0.0
        %8715 = vmatprep.subr.mxu0 0.0
        %8716 = vmatpush1.msra.mxu0 0.0
        %8717 = vmatprep.subr.mxu0 0.0
        %8718 = vmatpush1.msra.mxu0 0.0
        %8719 = vmatprep.mubr.f32.mxu0 0.0
        %8720 = vmatmul.mubr.f32.gmra.mrb[0].mxu0 %v8644
        %v8721 = vpop.f32.mrb[0].mxu0
        %v8722 = vadd.f32 %v8642, %v8721
        %v8723 = vpop.f32.mrb[0].mxu0
        %8724 = vmatprep.mubr.f32.mxu0 0.0
        %8725 = vmatmul.mubr.f32.gmra.mrb[0].mxu0 %v8647
        %v8726 = vpop.f32.mrb[0].mxu0
        %v8727 = vadd.f32 %v8642, %v8726
        %v8728 = vpop.f32.mrb[0].mxu0
        %8729 = vmatprep.mubr.f32.mxu0 0.0
        %8730 = vmatmul.mubr.f32.gmra.mrb[0].mxu0 %v8650
        %v8731 = vpop.f32.mrb[0].mxu0
        %v8732 = vadd.f32 %v8642, %v8731
        %v8733 = vpop.f32.mrb[0].mxu0
        %8734 = vmatprep.mubr.f32.mxu0 0.0
        %8735 = vmatmul.mubr.f32.gmra.mrb[0].mxu0 %v8653
        %v8736 = vpop.f32.mrb[0].mxu0
        %v8737 = vadd.f32 %v8642, %v8736
        %v8738 = vpop.f32.mrb[0].mxu0
        %8739 = vdwg.mxu0
        %v8740 = vld [vmem:[#allocation4 + $0x688] sm:$0xff]
        %v8741 = vld [vmem:[#allocation4 + $0x690] sm:$0xff]
        %v8742 = vld [vmem:[#allocation4 + $0x698] sm:$0xff]
        %v8743 = vld [vmem:[#allocation4 + $0x6a0] sm:$0xff]
        %v8744 = vld [vmem:[#allocation4 + $0x6a8] sm:$0xff]
        %v8745 = vld [vmem:[#allocation4 + $0x6b0] sm:$0xff]
        %v8746 = vld [vmem:[#allocation4 + $0x6b8] sm:$0xff]
        %v8747 = vld [vmem:[#allocation4 + $0x6c0] sm:$0xff]
        %v8748 = vld [vmem:[#allocation4 + $0x6c8] sm:$0xff]
        %v8749 = vld [vmem:[#allocation4 + $0x6d0] sm:$0xff]
        %v8750 = vld [vmem:[#allocation4 + $0x6d8] sm:$0x1]
        %v8751 = vlaneseq
        %v8752 = vshrl.u32 %v8751, 7
        %v8753 = vsub.s32 0, %v8752
        %v8754 = vrot.slane %v8750, %v8753
        %8755 = vmatprep.subr.mxu0 0.0
        %8756 = vmatpush1.msra.mxu0 %v8740
        %8757 = vmatprep.subr.mxu0 0.0
        %8758 = vmatpush1.msra.mxu0 %v8741
        %8759 = vmatprep.subr.mxu0 0.0
        %8760 = vmatpush1.msra.mxu0 %v8742
        %8761 = vmatprep.subr.mxu0 0.0
        %8762 = vmatpush1.msra.mxu0 %v8743
        %8763 = vmatprep.subr.mxu0 0.0
        %8764 = vmatpush1.msra.mxu0 %v8744
        %8765 = vmatprep.subr.mxu0 0.0
        %8766 = vmatpush1.msra.mxu0 %v8745
        %8767 = vmatprep.subr.mxu0 0.0
        %8768 = vmatpush1.msra.mxu0 %v8746
        %8769 = vmatprep.subr.mxu0 0.0
        %8770 = vmatpush1.msra.mxu0 %v8747
        %8771 = vmatprep.subr.mxu0 0.0
        %8772 = vmatpush1.msra.mxu0 %v8748
        %8773 = vmatprep.subr.mxu0 0.0
        %8774 = vmatpush1.msra.mxu0 %v8749
        %8775 = vmatprep.subr.mxu0 0.0
        %8776 = vmatpush1.msra.mxu0 0.0
        %8777 = vmatprep.subr.mxu0 0.0
        %8778 = vmatpush1.msra.mxu0 0.0
        %8779 = vmatprep.subr.mxu0 0.0
        %8780 = vmatpush1.msra.mxu0 0.0
        %8781 = vmatprep.subr.mxu0 0.0
        %8782 = vmatpush1.msra.mxu0 0.0
        %8783 = vmatprep.subr.mxu0 0.0
        %8784 = vmatpush1.msra.mxu0 0.0
        %8785 = vmatprep.subr.mxu0 0.0
        %8786 = vmatpush1.msra.mxu0 0.0
        %8787 = vmatprep.subr.mxu0 0.0
        %8788 = vmatpush1.msra.mxu0 0.0
        %8789 = vmatprep.subr.mxu0 0.0
        %8790 = vmatpush1.msra.mxu0 0.0
        %8791 = vmatprep.subr.mxu0 0.0
        %8792 = vmatpush1.msra.mxu0 0.0
        %8793 = vmatprep.subr.mxu0 0.0
        %8794 = vmatpush1.msra.mxu0 0.0
        %8795 = vmatprep.subr.mxu0 0.0
        %8796 = vmatpush1.msra.mxu0 0.0
        %8797 = vmatprep.subr.mxu0 0.0
        %8798 = vmatpush1.msra.mxu0 0.0
        %8799 = vmatprep.subr.mxu0 0.0
        %8800 = vmatpush1.msra.mxu0 0.0
        %8801 = vmatprep.subr.mxu0 0.0
        %8802 = vmatpush1.msra.mxu0 0.0
        %8803 = vmatprep.subr.mxu0 0.0
        %8804 = vmatpush1.msra.mxu0 0.0
        %8805 = vmatprep.subr.mxu0 0.0
        %8806 = vmatpush1.msra.mxu0 0.0
        %8807 = vmatprep.subr.mxu0 0.0
        %8808 = vmatpush1.msra.mxu0 0.0
        %8809 = vmatprep.subr.mxu0 0.0
        %8810 = vmatpush1.msra.mxu0 0.0
        %8811 = vmatprep.subr.mxu0 0.0
        %8812 = vmatpush1.msra.mxu0 0.0
        %8813 = vmatprep.subr.mxu0 0.0
        %8814 = vmatpush1.msra.mxu0 0.0
        %8815 = vmatprep.subr.mxu0 0.0
        %8816 = vmatpush1.msra.mxu0 0.0
        %8817 = vmatprep.subr.mxu0 0.0
        %8818 = vmatpush1.msra.mxu0 0.0
        %8819 = vmatprep.mubr.f32.mxu0 0.0
        %8820 = vmatmul.mubr.f32.gmra.mrb[0].mxu0 %v8644
        %v8821 = vpop.f32.mrb[0].mxu0
        %v8822 = vadd.f32 %v8754, %v8821
        %v8823 = vpop.f32.mrb[0].mxu0
        %8824 = vmatprep.mubr.f32.mxu0 0.0
        %8825 = vmatmul.mubr.f32.gmra.mrb[0].mxu0 %v8647
        %v8826 = vpop.f32.mrb[0].mxu0
        %v8827 = vadd.f32 %v8754, %v8826
        %v8828 = vpop.f32.mrb[0].mxu0
        %8829 = vmatprep.mubr.f32.mxu0 0.0
        %8830 = vmatmul.mubr.f32.gmra.mrb[0].mxu0 %v8650
        %v8831 = vpop.f32.mrb[0].mxu0
        %v8832 = vadd.f32 %v8754, %v8831
        %v8833 = vpop.f32.mrb[0].mxu0
        %8834 = vmatprep.mubr.f32.mxu0 0.0
        %8835 = vmatmul.mubr.f32.gmra.mrb[0].mxu0 %v8653
        %v8836 = vpop.f32.mrb[0].mxu0
        %v8837 = vadd.f32 %v8754, %v8836
        %v8838 = vpop.f32.mrb[0].mxu0
        %8839 = vdwg.mxu0
        %v8841 = vsel %vm3500, %v8610, 0
        %v8844 = vsel %vm3500, %v8615, 0
        %v8847 = vsel %vm3500, %v8620, 0
        %v8850 = vsel %vm3500, %v8625, 0
        %8852 = vmatprep.subr.mxu0 0.0
        %8853 = vmatpush1.msra.mxu0 %v4024
        %8854 = vmatprep.subr.mxu0 0.0
        %8855 = vmatpush1.msra.mxu0 0.0
        %8856 = vmatprep.subr.mxu0 0.0
        %8857 = vmatpush1.msra.mxu0 0.0
        %8858 = vmatprep.subr.mxu0 0.0
        %8859 = vmatpush1.msra.mxu0 0.0
        %8860 = vmatprep.subr.mxu0 0.0
        %8861 = vmatpush1.msra.mxu0 0.0
        %8862 = vmatprep.subr.mxu0 0.0
        %8863 = vmatpush1.msra.mxu0 0.0
        %8864 = vmatprep.subr.mxu0 0.0
        %8865 = vmatpush1.msra.mxu0 0.0
        %8866 = vmatprep.subr.mxu0 0.0
        %8867 = vmatpush1.msra.mxu0 0.0
        %8868 = vmatprep.subr.mxu0 0.0
        %8869 = vmatpush1.msra.mxu0 0.0
        %8870 = vmatprep.subr.mxu0 0.0
        %8871 = vmatpush1.msra.mxu0 0.0
        %8872 = vmatprep.subr.mxu0 0.0
        %8873 = vmatpush1.msra.mxu0 0.0
        %8874 = vmatprep.subr.mxu0 0.0
        %8875 = vmatpush1.msra.mxu0 0.0
        %8876 = vmatprep.subr.mxu0 0.0
        %8877 = vmatpush1.msra.mxu0 0.0
        %8878 = vmatprep.subr.mxu0 0.0
        %8879 = vmatpush1.msra.mxu0 0.0
        %8880 = vmatprep.subr.mxu0 0.0
        %8881 = vmatpush1.msra.mxu0 0.0
        %8882 = vmatprep.subr.mxu0 0.0
        %8883 = vmatpush1.msra.mxu0 0.0
        %8884 = vmatprep.subr.mxu0 0.0
        %8885 = vmatpush1.msra.mxu0 0.0
        %8886 = vmatprep.subr.mxu0 0.0
        %8887 = vmatpush1.msra.mxu0 0.0
        %8888 = vmatprep.subr.mxu0 0.0
        %8889 = vmatpush1.msra.mxu0 0.0
        %8890 = vmatprep.subr.mxu0 0.0
        %8891 = vmatpush1.msra.mxu0 0.0
        %8892 = vmatprep.subr.mxu0 0.0
        %8893 = vmatpush1.msra.mxu0 0.0
        %8894 = vmatprep.subr.mxu0 0.0
        %8895 = vmatpush1.msra.mxu0 0.0
        %8896 = vmatprep.subr.mxu0 0.0
        %8897 = vmatpush1.msra.mxu0 0.0
        %8898 = vmatprep.subr.mxu0 0.0
        %8899 = vmatpush1.msra.mxu0 0.0
        %8900 = vmatprep.subr.mxu0 0.0
        %8901 = vmatpush1.msra.mxu0 0.0
        %8902 = vmatprep.subr.mxu0 0.0
        %8903 = vmatpush1.msra.mxu0 0.0
        %8904 = vmatprep.subr.mxu0 0.0
        %8905 = vmatpush1.msra.mxu0 0.0
        %8906 = vmatprep.subr.mxu0 0.0
        %8907 = vmatpush1.msra.mxu0 0.0
        %8908 = vmatprep.subr.mxu0 0.0
        %8909 = vmatpush1.msra.mxu0 0.0
        %8910 = vmatprep.subr.mxu0 0.0
        %8911 = vmatpush1.msra.mxu0 0.0
        %8912 = vmatprep.subr.mxu0 0.0
        %8913 = vmatpush1.msra.mxu0 0.0
        %8914 = vmatprep.subr.mxu0 0.0
        %8915 = vmatpush1.msra.mxu0 0.0
        %8916 = vmatprep.mubr.f32.mxu0 0.0
        %8917 = vmatmul.mubr.f32.gmra.mrb[0].mxu0 %v8841
        %v8918 = vpop.f32.mrb[0].mxu0
        %v8919 = vadd.f32 0.0, %v8918
        %v8920 = vpop.f32.mrb[0].mxu0
        %8921 = vmatprep.mubr.f32.mxu0 0.0
        %8922 = vmatmul.mubr.f32.gmra.mrb[0].mxu0 %v8844
        %v8923 = vpop.f32.mrb[0].mxu0
        %v8924 = vadd.f32 0.0, %v8923
        %v8925 = vpop.f32.mrb[0].mxu0
        %8926 = vmatprep.mubr.f32.mxu0 0.0
        %8927 = vmatmul.mubr.f32.gmra.mrb[0].mxu0 %v8847
        %v8928 = vpop.f32.mrb[0].mxu0
        %v8929 = vadd.f32 0.0, %v8928
        %v8930 = vpop.f32.mrb[0].mxu0
        %8931 = vmatprep.mubr.f32.mxu0 0.0
        %8932 = vmatmul.mubr.f32.gmra.mrb[0].mxu0 %v8850
        %v8933 = vpop.f32.mrb[0].mxu0
        %v8934 = vadd.f32 0.0, %v8933
        %v8935 = vpop.f32.mrb[0].mxu0
        %8936 = vdwg.mxu0
        %v8938 = vsel %vm456, %v8722, 0
        %v8941 = vsel %vm456, %v8727, 0
        %v8944 = vsel %vm456, %v8732, 0
        %v8947 = vsel %vm456, %v8737, 0
        %8949 = vmatprep.subr.mxu0 0.0
        %8950 = vmatpush1.msra.mxu0 %v4122
        %8951 = vmatprep.subr.mxu0 0.0
        %8952 = vmatpush1.msra.mxu0 %v4123
        %8953 = vmatprep.subr.mxu0 0.0
        %8954 = vmatpush1.msra.mxu0 %v4124
        %8955 = vmatprep.subr.mxu0 0.0
        %8956 = vmatpush1.msra.mxu0 %v4125
        %8957 = vmatprep.subr.mxu0 0.0
        %8958 = vmatpush1.msra.mxu0 %v4126
        %8959 = vmatprep.subr.mxu0 0.0
        %8960 = vmatpush1.msra.mxu0 %v4127
        %8961 = vmatprep.subr.mxu0 0.0
        %8962 = vmatpush1.msra.mxu0 %v4128
        %8963 = vmatprep.subr.mxu0 0.0
        %8964 = vmatpush1.msra.mxu0 %v4129
        %8965 = vmatprep.subr.mxu0 0.0
        %8966 = vmatpush1.msra.mxu0 %v4130
        %8967 = vmatprep.subr.mxu0 0.0
        %8968 = vmatpush1.msra.mxu0 %v4131
        %8969 = vmatprep.subr.mxu0 0.0
        %8970 = vmatpush1.msra.mxu0 0.0
        %8971 = vmatprep.subr.mxu0 0.0
        %8972 = vmatpush1.msra.mxu0 0.0
        %8973 = vmatprep.subr.mxu0 0.0
        %8974 = vmatpush1.msra.mxu0 0.0
        %8975 = vmatprep.subr.mxu0 0.0
        %8976 = vmatpush1.msra.mxu0 0.0
        %8977 = vmatprep.subr.mxu0 0.0
        %8978 = vmatpush1.msra.mxu0 0.0
        %8979 = vmatprep.subr.mxu0 0.0
        %8980 = vmatpush1.msra.mxu0 0.0
        %8981 = vmatprep.subr.mxu0 0.0
        %8982 = vmatpush1.msra.mxu0 0.0
        %8983 = vmatprep.subr.mxu0 0.0
        %8984 = vmatpush1.msra.mxu0 0.0
        %8985 = vmatprep.subr.mxu0 0.0
        %8986 = vmatpush1.msra.mxu0 0.0
        %8987 = vmatprep.subr.mxu0 0.0
        %8988 = vmatpush1.msra.mxu0 0.0
        %8989 = vmatprep.subr.mxu0 0.0
        %8990 = vmatpush1.msra.mxu0 0.0
        %8991 = vmatprep.subr.mxu0 0.0
        %8992 = vmatpush1.msra.mxu0 0.0
        %8993 = vmatprep.subr.mxu0 0.0
        %8994 = vmatpush1.msra.mxu0 0.0
        %8995 = vmatprep.subr.mxu0 0.0
        %8996 = vmatpush1.msra.mxu0 0.0
        %8997 = vmatprep.subr.mxu0 0.0
        %8998 = vmatpush1.msra.mxu0 0.0
        %8999 = vmatprep.subr.mxu0 0.0
        %9000 = vmatpush1.msra.mxu0 0.0
        %9001 = vmatprep.subr.mxu0 0.0
        %9002 = vmatpush1.msra.mxu0 0.0
        %9003 = vmatprep.subr.mxu0 0.0
        %9004 = vmatpush1.msra.mxu0 0.0
        %9005 = vmatprep.subr.mxu0 0.0
        %9006 = vmatpush1.msra.mxu0 0.0
        %9007 = vmatprep.subr.mxu0 0.0
        %9008 = vmatpush1.msra.mxu0 0.0
        %9009 = vmatprep.subr.mxu0 0.0
        %9010 = vmatpush1.msra.mxu0 0.0
        %9011 = vmatprep.subr.mxu0 0.0
        %9012 = vmatpush1.msra.mxu0 0.0
        %9013 = vmatprep.mubr.f32.mxu0 0.0
        %9014 = vmatmul.mubr.f32.gmra.mrb[0].mxu0 %v8938
        %v9015 = vpop.f32.mrb[0].mxu0
        %v9016 = vadd.f32 0.0, %v9015
        %v9017 = vpop.f32.mrb[0].mxu0
        %9018 = vmatprep.mubr.f32.mxu0 0.0
        %9019 = vmatmul.mubr.f32.gmra.mrb[0].mxu0 %v8941
        %v9020 = vpop.f32.mrb[0].mxu0
        %v9021 = vadd.f32 0.0, %v9020
        %v9022 = vpop.f32.mrb[0].mxu0
        %9023 = vmatprep.mubr.f32.mxu0 0.0
        %9024 = vmatmul.mubr.f32.gmra.mrb[0].mxu0 %v8944
        %v9025 = vpop.f32.mrb[0].mxu0
        %v9026 = vadd.f32 0.0, %v9025
        %v9027 = vpop.f32.mrb[0].mxu0
        %9028 = vmatprep.mubr.f32.mxu0 0.0
        %9029 = vmatmul.mubr.f32.gmra.mrb[0].mxu0 %v8947
        %v9030 = vpop.f32.mrb[0].mxu0
        %v9031 = vadd.f32 0.0, %v9030
        %v9032 = vpop.f32.mrb[0].mxu0
        %9033 = vdwg.mxu0
        %v9034 = vmul.f32 %v8919, %v9016
        %v9035 = vmul.f32 %v8924, %v9021
        %v9036 = vmul.f32 %v8929, %v9026
        %v9037 = vmul.f32 %v8934, %v9031
        %9038 = vmatprep.subr.mxu0 0.0
        %9039 = vmatpush1.msra.mxu0 %v4233
        %9040 = vmatprep.subr.mxu0 0.0
        %9041 = vmatpush1.msra.mxu0 0.0
        %9042 = vmatprep.subr.mxu0 0.0
        %9043 = vmatpush1.msra.mxu0 0.0
        %9044 = vmatprep.subr.mxu0 0.0
        %9045 = vmatpush1.msra.mxu0 0.0
        %9046 = vmatprep.subr.mxu0 0.0
        %9047 = vmatpush1.msra.mxu0 0.0
        %9048 = vmatprep.subr.mxu0 0.0
        %9049 = vmatpush1.msra.mxu0 0.0
        %9050 = vmatprep.subr.mxu0 0.0
        %9051 = vmatpush1.msra.mxu0 0.0
        %9052 = vmatprep.subr.mxu0 0.0
        %9053 = vmatpush1.msra.mxu0 0.0
        %9054 = vmatprep.subr.mxu0 0.0
        %9055 = vmatpush1.msra.mxu0 0.0
        %9056 = vmatprep.subr.mxu0 0.0
        %9057 = vmatpush1.msra.mxu0 0.0
        %9058 = vmatprep.subr.mxu0 0.0
        %9059 = vmatpush1.msra.mxu0 0.0
        %9060 = vmatprep.subr.mxu0 0.0
        %9061 = vmatpush1.msra.mxu0 0.0
        %9062 = vmatprep.subr.mxu0 0.0
        %9063 = vmatpush1.msra.mxu0 0.0
        %9064 = vmatprep.subr.mxu0 0.0
        %9065 = vmatpush1.msra.mxu0 0.0
        %9066 = vmatprep.subr.mxu0 0.0
        %9067 = vmatpush1.msra.mxu0 0.0
        %9068 = vmatprep.subr.mxu0 0.0
        %9069 = vmatpush1.msra.mxu0 0.0
        %9070 = vmatprep.subr.mxu0 0.0
        %9071 = vmatpush1.msra.mxu0 0.0
        %9072 = vmatprep.subr.mxu0 0.0
        %9073 = vmatpush1.msra.mxu0 0.0
        %9074 = vmatprep.subr.mxu0 0.0
        %9075 = vmatpush1.msra.mxu0 0.0
        %9076 = vmatprep.subr.mxu0 0.0
        %9077 = vmatpush1.msra.mxu0 0.0
        %9078 = vmatprep.subr.mxu0 0.0
        %9079 = vmatpush1.msra.mxu0 0.0
        %9080 = vmatprep.subr.mxu0 0.0
        %9081 = vmatpush1.msra.mxu0 0.0
        %9082 = vmatprep.subr.mxu0 0.0
        %9083 = vmatpush1.msra.mxu0 0.0
        %9084 = vmatprep.subr.mxu0 0.0
        %9085 = vmatpush1.msra.mxu0 0.0
        %9086 = vmatprep.subr.mxu0 0.0
        %9087 = vmatpush1.msra.mxu0 0.0
        %9088 = vmatprep.subr.mxu0 0.0
        %9089 = vmatpush1.msra.mxu0 0.0
        %9090 = vmatprep.subr.mxu0 0.0
        %9091 = vmatpush1.msra.mxu0 0.0
        %9092 = vmatprep.subr.mxu0 0.0
        %9093 = vmatpush1.msra.mxu0 0.0
        %9094 = vmatprep.subr.mxu0 0.0
        %9095 = vmatpush1.msra.mxu0 0.0
        %9096 = vmatprep.subr.mxu0 0.0
        %9097 = vmatpush1.msra.mxu0 0.0
        %9098 = vmatprep.subr.mxu0 0.0
        %9099 = vmatpush1.msra.mxu0 0.0
        %9100 = vmatprep.subr.mxu0 0.0
        %9101 = vmatpush1.msra.mxu0 0.0
        %9102 = vmatprep.mubr.f32.mxu0 0.0
        %9103 = vmatmul.mubr.f32.gmra.mrb[0].mxu0 %v8841
        %v9104 = vpop.f32.mrb[0].mxu0
        %v9105 = vadd.f32 0.0, %v9104
        %v9106 = vpop.f32.mrb[0].mxu0
        %9107 = vmatprep.mubr.f32.mxu0 0.0
        %9108 = vmatmul.mubr.f32.gmra.mrb[0].mxu0 %v8844
        %v9109 = vpop.f32.mrb[0].mxu0
        %v9110 = vadd.f32 0.0, %v9109
        %v9111 = vpop.f32.mrb[0].mxu0
        %9112 = vmatprep.mubr.f32.mxu0 0.0
        %9113 = vmatmul.mubr.f32.gmra.mrb[0].mxu0 %v8847
        %v9114 = vpop.f32.mrb[0].mxu0
        %v9115 = vadd.f32 0.0, %v9114
        %v9116 = vpop.f32.mrb[0].mxu0
        %9117 = vmatprep.mubr.f32.mxu0 0.0
        %9118 = vmatmul.mubr.f32.gmra.mrb[0].mxu0 %v8850
        %v9119 = vpop.f32.mrb[0].mxu0
        %v9120 = vadd.f32 0.0, %v9119
        %v9121 = vpop.f32.mrb[0].mxu0
        %9122 = vdwg.mxu0
        %9123 = vmatprep.subr.mxu0 0.0
        %9124 = vmatpush1.msra.mxu0 %v4319
        %9125 = vmatprep.subr.mxu0 0.0
        %9126 = vmatpush1.msra.mxu0 %v4320
        %9127 = vmatprep.subr.mxu0 0.0
        %9128 = vmatpush1.msra.mxu0 %v4321
        %9129 = vmatprep.subr.mxu0 0.0
        %9130 = vmatpush1.msra.mxu0 %v4322
        %9131 = vmatprep.subr.mxu0 0.0
        %9132 = vmatpush1.msra.mxu0 %v4323
        %9133 = vmatprep.subr.mxu0 0.0
        %9134 = vmatpush1.msra.mxu0 %v4324
        %9135 = vmatprep.subr.mxu0 0.0
        %9136 = vmatpush1.msra.mxu0 %v4325
        %9137 = vmatprep.subr.mxu0 0.0
        %9138 = vmatpush1.msra.mxu0 %v4326
        %9139 = vmatprep.subr.mxu0 0.0
        %9140 = vmatpush1.msra.mxu0 %v4327
        %9141 = vmatprep.subr.mxu0 0.0
        %9142 = vmatpush1.msra.mxu0 %v4328
        %9143 = vmatprep.subr.mxu0 0.0
        %9144 = vmatpush1.msra.mxu0 0.0
        %9145 = vmatprep.subr.mxu0 0.0
        %9146 = vmatpush1.msra.mxu0 0.0
        %9147 = vmatprep.subr.mxu0 0.0
        %9148 = vmatpush1.msra.mxu0 0.0
        %9149 = vmatprep.subr.mxu0 0.0
        %9150 = vmatpush1.msra.mxu0 0.0
        %9151 = vmatprep.subr.mxu0 0.0
        %9152 = vmatpush1.msra.mxu0 0.0
        %9153 = vmatprep.subr.mxu0 0.0
        %9154 = vmatpush1.msra.mxu0 0.0
        %9155 = vmatprep.subr.mxu0 0.0
        %9156 = vmatpush1.msra.mxu0 0.0
        %9157 = vmatprep.subr.mxu0 0.0
        %9158 = vmatpush1.msra.mxu0 0.0
        %9159 = vmatprep.subr.mxu0 0.0
        %9160 = vmatpush1.msra.mxu0 0.0
        %9161 = vmatprep.subr.mxu0 0.0
        %9162 = vmatpush1.msra.mxu0 0.0
        %9163 = vmatprep.subr.mxu0 0.0
        %9164 = vmatpush1.msra.mxu0 0.0
        %9165 = vmatprep.subr.mxu0 0.0
        %9166 = vmatpush1.msra.mxu0 0.0
        %9167 = vmatprep.subr.mxu0 0.0
        %9168 = vmatpush1.msra.mxu0 0.0
        %9169 = vmatprep.subr.mxu0 0.0
        %9170 = vmatpush1.msra.mxu0 0.0
        %9171 = vmatprep.subr.mxu0 0.0
        %9172 = vmatpush1.msra.mxu0 0.0
        %9173 = vmatprep.subr.mxu0 0.0
        %9174 = vmatpush1.msra.mxu0 0.0
        %9175 = vmatprep.subr.mxu0 0.0
        %9176 = vmatpush1.msra.mxu0 0.0
        %9177 = vmatprep.subr.mxu0 0.0
        %9178 = vmatpush1.msra.mxu0 0.0
        %9179 = vmatprep.subr.mxu0 0.0
        %9180 = vmatpush1.msra.mxu0 0.0
        %9181 = vmatprep.subr.mxu0 0.0
        %9182 = vmatpush1.msra.mxu0 0.0
        %9183 = vmatprep.subr.mxu0 0.0
        %9184 = vmatpush1.msra.mxu0 0.0
        %9185 = vmatprep.subr.mxu0 0.0
        %9186 = vmatpush1.msra.mxu0 0.0
        %9187 = vmatprep.mubr.f32.mxu0 0.0
        %9188 = vmatmul.mubr.f32.gmra.mrb[0].mxu0 %v8938
        %v9189 = vpop.f32.mrb[0].mxu0
        %v9190 = vadd.f32 0.0, %v9189
        %v9191 = vpop.f32.mrb[0].mxu0
        %9192 = vmatprep.mubr.f32.mxu0 0.0
        %9193 = vmatmul.mubr.f32.gmra.mrb[0].mxu0 %v8941
        %v9194 = vpop.f32.mrb[0].mxu0
        %v9195 = vadd.f32 0.0, %v9194
        %v9196 = vpop.f32.mrb[0].mxu0
        %9197 = vmatprep.mubr.f32.mxu0 0.0
        %9198 = vmatmul.mubr.f32.gmra.mrb[0].mxu0 %v8944
        %v9199 = vpop.f32.mrb[0].mxu0
        %v9200 = vadd.f32 0.0, %v9199
        %v9201 = vpop.f32.mrb[0].mxu0
        %9202 = vmatprep.mubr.f32.mxu0 0.0
        %9203 = vmatmul.mubr.f32.gmra.mrb[0].mxu0 %v8947
        %v9204 = vpop.f32.mrb[0].mxu0
        %v9205 = vadd.f32 0.0, %v9204
        %v9206 = vpop.f32.mrb[0].mxu0
        %9207 = vdwg.mxu0
        %v9208 = vmul.f32 %v9105, %v9190
        %v9209 = vmul.f32 %v9110, %v9195
        %v9210 = vmul.f32 %v9115, %v9200
        %v9211 = vmul.f32 %v9120, %v9205
        %v9212 = vadd.f32 %v9034, %v9208
        %v9213 = vadd.f32 %v9035, %v9209
        %v9214 = vadd.f32 %v9036, %v9210
        %v9215 = vadd.f32 %v9037, %v9211
        %v9216 = vsel %vm335, %v9212, -inf
        %9217 = vmax.xlane.f32.xlu0 %v9216
        %v9218 = vpop.xlane.xlu0 %9217
        %v9219 = vsel %vm335, %v9213, -inf
        %9220 = vmax.xlane.f32.xlu0 %v9219
        %v9221 = vpop.xlane.xlu0 %9220
        %v9222 = vsel %vm335, %v9214, -inf
        %9223 = vmax.xlane.f32.xlu0 %v9222
        %v9224 = vpop.xlane.xlu0 %9223
        %v9225 = vsel %vm335, %v9215, -inf
        %9226 = vmax.xlane.f32.xlu0 %v9225
        %v9227 = vpop.xlane.xlu0 %9226
        %v9228 = vsub.f32 %v9212, %v9218
        %v9229 = vsub.f32 %v9213, %v9221
        %v9230 = vsub.f32 %v9214, %v9224
        %v9231 = vsub.f32 %v9215, %v9227
        %v9232 = vmul.f32 %v9228, 1.442695
        %v9233 = vpow.pop %v9232
        %v9234 = vmul.f32 %v9229, 1.442695
        %v9235 = vpow.pop %v9234
        %v9236 = vmul.f32 %v9230, 1.442695
        %v9237 = vpow.pop %v9236
        %v9238 = vmul.f32 %v9231, 1.442695
        %v9239 = vpow.pop %v9238
        %v9241 = vsel %vm335, %v9233, 0
        %v9244 = vsel %vm335, %v9235, 0
        %v9247 = vsel %vm335, %v9237, 0
        %v9250 = vsel %vm335, %v9239, 0
        %9252 = vmatprep.subr.mxu0 0.0
        %9253 = vmatpush1.msra.mxu0 %v4422
        %9254 = vmatprep.subr.mxu0 0.0
        %9255 = vmatpush1.msra.mxu0 %v4423
        %9256 = vmatprep.subr.mxu0 0.0
        %9257 = vmatpush1.msra.mxu0 %v4424
        %9258 = vmatprep.subr.mxu0 0.0
        %9259 = vmatpush1.msra.mxu0 %v4425
        %9260 = vmatprep.subr.mxu0 0.0
        %9261 = vmatpush1.msra.mxu0 %v4426
        %9262 = vmatprep.subr.mxu0 0.0
        %9263 = vmatpush1.msra.mxu0 0.0
        %9264 = vmatprep.subr.mxu0 0.0
        %9265 = vmatpush1.msra.mxu0 0.0
        %9266 = vmatprep.subr.mxu0 0.0
        %9267 = vmatpush1.msra.mxu0 0.0
        %9268 = vmatprep.subr.mxu0 0.0
        %9269 = vmatpush1.msra.mxu0 0.0
        %9270 = vmatprep.subr.mxu0 0.0
        %9271 = vmatpush1.msra.mxu0 0.0
        %9272 = vmatprep.subr.mxu0 0.0
        %9273 = vmatpush1.msra.mxu0 0.0
        %9274 = vmatprep.subr.mxu0 0.0
        %9275 = vmatpush1.msra.mxu0 0.0
        %9276 = vmatprep.subr.mxu0 0.0
        %9277 = vmatpush1.msra.mxu0 0.0
        %9278 = vmatprep.subr.mxu0 0.0
        %9279 = vmatpush1.msra.mxu0 0.0
        %9280 = vmatprep.subr.mxu0 0.0
        %9281 = vmatpush1.msra.mxu0 0.0
        %9282 = vmatprep.subr.mxu0 0.0
        %9283 = vmatpush1.msra.mxu0 0.0
        %9284 = vmatprep.subr.mxu0 0.0
        %9285 = vmatpush1.msra.mxu0 0.0
        %9286 = vmatprep.subr.mxu0 0.0
        %9287 = vmatpush1.msra.mxu0 0.0
        %9288 = vmatprep.subr.mxu0 0.0
        %9289 = vmatpush1.msra.mxu0 0.0
        %9290 = vmatprep.subr.mxu0 0.0
        %9291 = vmatpush1.msra.mxu0 0.0
        %9292 = vmatprep.subr.mxu0 0.0
        %9293 = vmatpush1.msra.mxu0 0.0
        %9294 = vmatprep.subr.mxu0 0.0
        %9295 = vmatpush1.msra.mxu0 0.0
        %9296 = vmatprep.subr.mxu0 0.0
        %9297 = vmatpush1.msra.mxu0 0.0
        %9298 = vmatprep.subr.mxu0 0.0
        %9299 = vmatpush1.msra.mxu0 0.0
        %9300 = vmatprep.subr.mxu0 0.0
        %9301 = vmatpush1.msra.mxu0 0.0
        %9302 = vmatprep.subr.mxu0 0.0
        %9303 = vmatpush1.msra.mxu0 0.0
        %9304 = vmatprep.subr.mxu0 0.0
        %9305 = vmatpush1.msra.mxu0 0.0
        %9306 = vmatprep.subr.mxu0 0.0
        %9307 = vmatpush1.msra.mxu0 0.0
        %9308 = vmatprep.subr.mxu0 0.0
        %9309 = vmatpush1.msra.mxu0 0.0
        %9310 = vmatprep.subr.mxu0 0.0
        %9311 = vmatpush1.msra.mxu0 0.0
        %9312 = vmatprep.subr.mxu0 0.0
        %9313 = vmatpush1.msra.mxu0 0.0
        %9314 = vmatprep.subr.mxu0 0.0
        %9315 = vmatpush1.msra.mxu0 0.0
        %9316 = vmatprep.mubr.f32.mxu0 0.0
        %9317 = vmatmul.mubr.f32.gmra.mrb[0].mxu0 %v9241
        %v9318 = vpop.f32.mrb[0].mxu0
        %v9319 = vadd.f32 0.0, %v9318
        %v9320 = vpop.f32.mrb[0].mxu0
        %9321 = vmatprep.mubr.f32.mxu0 0.0
        %9322 = vmatmul.mubr.f32.gmra.mrb[0].mxu0 %v9244
        %v9323 = vpop.f32.mrb[0].mxu0
        %v9324 = vadd.f32 0.0, %v9323
        %v9325 = vpop.f32.mrb[0].mxu0
        %9326 = vmatprep.mubr.f32.mxu0 0.0
        %9327 = vmatmul.mubr.f32.gmra.mrb[0].mxu0 %v9247
        %v9328 = vpop.f32.mrb[0].mxu0
        %v9329 = vadd.f32 0.0, %v9328
        %v9330 = vpop.f32.mrb[0].mxu0
        %9331 = vmatprep.mubr.f32.mxu0 0.0
        %9332 = vmatmul.mubr.f32.gmra.mrb[0].mxu0 %v9250
        %v9333 = vpop.f32.mrb[0].mxu0
        %v9334 = vadd.f32 0.0, %v9333
        %v9335 = vpop.f32.mrb[0].mxu0
        %9336 = vdwg.mxu0
        %v9338 = vsel %vm4549, %v9319, 0
        %v9341 = vsel %vm4549, %v9324, 0
        %v9344 = vsel %vm4549, %v9329, 0
        %v9347 = vsel %vm4549, %v9334, 0
        %9349 = vmatprep.subr.mxu0 0.0
        %9350 = vmatpush1.msra.mxu0 %v4564
        %9351 = vmatprep.subr.mxu0 0.0
        %9352 = vmatpush1.msra.mxu0 0.0
        %9353 = vmatprep.subr.mxu0 0.0
        %9354 = vmatpush1.msra.mxu0 0.0
        %9355 = vmatprep.subr.mxu0 0.0
        %9356 = vmatpush1.msra.mxu0 0.0
        %9357 = vmatprep.subr.mxu0 0.0
        %9358 = vmatpush1.msra.mxu0 0.0
        %9359 = vmatprep.subr.mxu0 0.0
        %9360 = vmatpush1.msra.mxu0 0.0
        %9361 = vmatprep.subr.mxu0 0.0
        %9362 = vmatpush1.msra.mxu0 0.0
        %9363 = vmatprep.subr.mxu0 0.0
        %9364 = vmatpush1.msra.mxu0 0.0
        %9365 = vmatprep.subr.mxu0 0.0
        %9366 = vmatpush1.msra.mxu0 0.0
        %9367 = vmatprep.subr.mxu0 0.0
        %9368 = vmatpush1.msra.mxu0 0.0
        %9369 = vmatprep.subr.mxu0 0.0
        %9370 = vmatpush1.msra.mxu0 0.0
        %9371 = vmatprep.subr.mxu0 0.0
        %9372 = vmatpush1.msra.mxu0 0.0
        %9373 = vmatprep.subr.mxu0 0.0
        %9374 = vmatpush1.msra.mxu0 0.0
        %9375 = vmatprep.subr.mxu0 0.0
        %9376 = vmatpush1.msra.mxu0 0.0
        %9377 = vmatprep.subr.mxu0 0.0
        %9378 = vmatpush1.msra.mxu0 0.0
        %9379 = vmatprep.subr.mxu0 0.0
        %9380 = vmatpush1.msra.mxu0 0.0
        %9381 = vmatprep.subr.mxu0 0.0
        %9382 = vmatpush1.msra.mxu0 0.0
        %9383 = vmatprep.subr.mxu0 0.0
        %9384 = vmatpush1.msra.mxu0 0.0
        %9385 = vmatprep.subr.mxu0 0.0
        %9386 = vmatpush1.msra.mxu0 0.0
        %9387 = vmatprep.subr.mxu0 0.0
        %9388 = vmatpush1.msra.mxu0 0.0
        %9389 = vmatprep.subr.mxu0 0.0
        %9390 = vmatpush1.msra.mxu0 0.0
        %9391 = vmatprep.subr.mxu0 0.0
        %9392 = vmatpush1.msra.mxu0 0.0
        %9393 = vmatprep.subr.mxu0 0.0
        %9394 = vmatpush1.msra.mxu0 0.0
        %9395 = vmatprep.subr.mxu0 0.0
        %9396 = vmatpush1.msra.mxu0 0.0
        %9397 = vmatprep.subr.mxu0 0.0
        %9398 = vmatpush1.msra.mxu0 0.0
        %9399 = vmatprep.subr.mxu0 0.0
        %9400 = vmatpush1.msra.mxu0 0.0
        %9401 = vmatprep.subr.mxu0 0.0
        %9402 = vmatpush1.msra.mxu0 0.0
        %9403 = vmatprep.subr.mxu0 0.0
        %9404 = vmatpush1.msra.mxu0 0.0
        %9405 = vmatprep.subr.mxu0 0.0
        %9406 = vmatpush1.msra.mxu0 0.0
        %9407 = vmatprep.subr.mxu0 0.0
        %9408 = vmatpush1.msra.mxu0 0.0
        %9409 = vmatprep.subr.mxu0 0.0
        %9410 = vmatpush1.msra.mxu0 0.0
        %9411 = vmatprep.subr.mxu0 0.0
        %9412 = vmatpush1.msra.mxu0 0.0
        %9413 = vmatprep.mubr.f32.mxu0 0.0
        %9414 = vmatmul.mubr.f32.gmra.mrb[0].mxu0 %v9338
        %v9415 = vpop.f32.mrb[0].mxu0
        %v9416 = vadd.f32 0.0, %v9415
        %v9417 = vpop.f32.mrb[0].mxu0
        %9418 = vmatprep.mubr.f32.mxu0 0.0
        %9419 = vmatmul.mubr.f32.gmra.mrb[0].mxu0 %v9341
        %v9420 = vpop.f32.mrb[0].mxu0
        %v9421 = vadd.f32 0.0, %v9420
        %v9422 = vpop.f32.mrb[0].mxu0
        %9423 = vmatprep.mubr.f32.mxu0 0.0
        %9424 = vmatmul.mubr.f32.gmra.mrb[0].mxu0 %v9344
        %v9425 = vpop.f32.mrb[0].mxu0
        %v9426 = vadd.f32 0.0, %v9425
        %v9427 = vpop.f32.mrb[0].mxu0
        %9428 = vmatprep.mubr.f32.mxu0 0.0
        %9429 = vmatmul.mubr.f32.gmra.mrb[0].mxu0 %v9347
        %v9430 = vpop.f32.mrb[0].mxu0
        %v9431 = vadd.f32 0.0, %v9430
        %v9432 = vpop.f32.mrb[0].mxu0
        %9433 = vdwg.mxu0
        %v9434 = vrcp.pop %v9416
        %v9435 = vrcp.pop %v9421
        %v9436 = vrcp.pop %v9426
        %v9437 = vrcp.pop %v9431
        %v9438 = vmul.f32 %v9233, %v9434
        %v9439 = vmul.f32 %v9235, %v9435
        %v9440 = vmul.f32 %v9237, %v9436
        %v9441 = vmul.f32 %v9239, %v9437
        %v9443 = vsel %vm456, %v8822, 0
        %v9446 = vsel %vm456, %v8827, 0
        %v9449 = vsel %vm456, %v8832, 0
        %v9452 = vsel %vm456, %v8837, 0
        %9454 = vmatprep.subr.mxu0 0.0
        %9455 = vmatpush1.msra.mxu0 %v4122
        %9456 = vmatprep.subr.mxu0 0.0
        %9457 = vmatpush1.msra.mxu0 %v4123
        %9458 = vmatprep.subr.mxu0 0.0
        %9459 = vmatpush1.msra.mxu0 %v4124
        %9460 = vmatprep.subr.mxu0 0.0
        %9461 = vmatpush1.msra.mxu0 %v4125
        %9462 = vmatprep.subr.mxu0 0.0
        %9463 = vmatpush1.msra.mxu0 %v4126
        %9464 = vmatprep.subr.mxu0 0.0
        %9465 = vmatpush1.msra.mxu0 %v4127
        %9466 = vmatprep.subr.mxu0 0.0
        %9467 = vmatpush1.msra.mxu0 %v4128
        %9468 = vmatprep.subr.mxu0 0.0
        %9469 = vmatpush1.msra.mxu0 %v4129
        %9470 = vmatprep.subr.mxu0 0.0
        %9471 = vmatpush1.msra.mxu0 %v4130
        %9472 = vmatprep.subr.mxu0 0.0
        %9473 = vmatpush1.msra.mxu0 %v4131
        %9474 = vmatprep.subr.mxu0 0.0
        %9475 = vmatpush1.msra.mxu0 0.0
        %9476 = vmatprep.subr.mxu0 0.0
        %9477 = vmatpush1.msra.mxu0 0.0
        %9478 = vmatprep.subr.mxu0 0.0
        %9479 = vmatpush1.msra.mxu0 0.0
        %9480 = vmatprep.subr.mxu0 0.0
        %9481 = vmatpush1.msra.mxu0 0.0
        %9482 = vmatprep.subr.mxu0 0.0
        %9483 = vmatpush1.msra.mxu0 0.0
        %9484 = vmatprep.subr.mxu0 0.0
        %9485 = vmatpush1.msra.mxu0 0.0
        %9486 = vmatprep.subr.mxu0 0.0
        %9487 = vmatpush1.msra.mxu0 0.0
        %9488 = vmatprep.subr.mxu0 0.0
        %9489 = vmatpush1.msra.mxu0 0.0
        %9490 = vmatprep.subr.mxu0 0.0
        %9491 = vmatpush1.msra.mxu0 0.0
        %9492 = vmatprep.subr.mxu0 0.0
        %9493 = vmatpush1.msra.mxu0 0.0
        %9494 = vmatprep.subr.mxu0 0.0
        %9495 = vmatpush1.msra.mxu0 0.0
        %9496 = vmatprep.subr.mxu0 0.0
        %9497 = vmatpush1.msra.mxu0 0.0
        %9498 = vmatprep.subr.mxu0 0.0
        %9499 = vmatpush1.msra.mxu0 0.0
        %9500 = vmatprep.subr.mxu0 0.0
        %9501 = vmatpush1.msra.mxu0 0.0
        %9502 = vmatprep.subr.mxu0 0.0
        %9503 = vmatpush1.msra.mxu0 0.0
        %9504 = vmatprep.subr.mxu0 0.0
        %9505 = vmatpush1.msra.mxu0 0.0
        %9506 = vmatprep.subr.mxu0 0.0
        %9507 = vmatpush1.msra.mxu0 0.0
        %9508 = vmatprep.subr.mxu0 0.0
        %9509 = vmatpush1.msra.mxu0 0.0
        %9510 = vmatprep.subr.mxu0 0.0
        %9511 = vmatpush1.msra.mxu0 0.0
        %9512 = vmatprep.subr.mxu0 0.0
        %9513 = vmatpush1.msra.mxu0 0.0
        %9514 = vmatprep.subr.mxu0 0.0
        %9515 = vmatpush1.msra.mxu0 0.0
        %9516 = vmatprep.subr.mxu0 0.0
        %9517 = vmatpush1.msra.mxu0 0.0
        %9518 = vmatprep.mubr.f32.mxu0 0.0
        %9519 = vmatmul.mubr.f32.gmra.mrb[0].mxu0 %v9443
        %v9520 = vpop.f32.mrb[0].mxu0
        %v9521 = vadd.f32 0.0, %v9520
        %v9522 = vpop.f32.mrb[0].mxu0
        %9523 = vmatprep.mubr.f32.mxu0 0.0
        %9524 = vmatmul.mubr.f32.gmra.mrb[0].mxu0 %v9446
        %v9525 = vpop.f32.mrb[0].mxu0
        %v9526 = vadd.f32 0.0, %v9525
        %v9527 = vpop.f32.mrb[0].mxu0
        %9528 = vmatprep.mubr.f32.mxu0 0.0
        %9529 = vmatmul.mubr.f32.gmra.mrb[0].mxu0 %v9449
        %v9530 = vpop.f32.mrb[0].mxu0
        %v9531 = vadd.f32 0.0, %v9530
        %v9532 = vpop.f32.mrb[0].mxu0
        %9533 = vmatprep.mubr.f32.mxu0 0.0
        %9534 = vmatmul.mubr.f32.gmra.mrb[0].mxu0 %v9452
        %v9535 = vpop.f32.mrb[0].mxu0
        %v9536 = vadd.f32 0.0, %v9535
        %v9537 = vpop.f32.mrb[0].mxu0
        %9538 = vdwg.mxu0
        %v9539 = vmul.f32 %v9438, %v9521
        %v9540 = vmul.f32 %v9439, %v9526
        %v9541 = vmul.f32 %v9440, %v9531
        %v9542 = vmul.f32 %v9441, %v9536
        %9543 = vmatprep.subr.mxu0 0.0
        %9544 = vmatpush1.msra.mxu0 %v4319
        %9545 = vmatprep.subr.mxu0 0.0
        %9546 = vmatpush1.msra.mxu0 %v4320
        %9547 = vmatprep.subr.mxu0 0.0
        %9548 = vmatpush1.msra.mxu0 %v4321
        %9549 = vmatprep.subr.mxu0 0.0
        %9550 = vmatpush1.msra.mxu0 %v4322
        %9551 = vmatprep.subr.mxu0 0.0
        %9552 = vmatpush1.msra.mxu0 %v4323
        %9553 = vmatprep.subr.mxu0 0.0
        %9554 = vmatpush1.msra.mxu0 %v4324
        %9555 = vmatprep.subr.mxu0 0.0
        %9556 = vmatpush1.msra.mxu0 %v4325
        %9557 = vmatprep.subr.mxu0 0.0
        %9558 = vmatpush1.msra.mxu0 %v4326
        %9559 = vmatprep.subr.mxu0 0.0
        %9560 = vmatpush1.msra.mxu0 %v4327
        %9561 = vmatprep.subr.mxu0 0.0
        %9562 = vmatpush1.msra.mxu0 %v4328
        %9563 = vmatprep.subr.mxu0 0.0
        %9564 = vmatpush1.msra.mxu0 0.0
        %9565 = vmatprep.subr.mxu0 0.0
        %9566 = vmatpush1.msra.mxu0 0.0
        %9567 = vmatprep.subr.mxu0 0.0
        %9568 = vmatpush1.msra.mxu0 0.0
        %9569 = vmatprep.subr.mxu0 0.0
        %9570 = vmatpush1.msra.mxu0 0.0
        %9571 = vmatprep.subr.mxu0 0.0
        %9572 = vmatpush1.msra.mxu0 0.0
        %9573 = vmatprep.subr.mxu0 0.0
        %9574 = vmatpush1.msra.mxu0 0.0
        %9575 = vmatprep.subr.mxu0 0.0
        %9576 = vmatpush1.msra.mxu0 0.0
        %9577 = vmatprep.subr.mxu0 0.0
        %9578 = vmatpush1.msra.mxu0 0.0
        %9579 = vmatprep.subr.mxu0 0.0
        %9580 = vmatpush1.msra.mxu0 0.0
        %9581 = vmatprep.subr.mxu0 0.0
        %9582 = vmatpush1.msra.mxu0 0.0
        %9583 = vmatprep.subr.mxu0 0.0
        %9584 = vmatpush1.msra.mxu0 0.0
        %9585 = vmatprep.subr.mxu0 0.0
        %9586 = vmatpush1.msra.mxu0 0.0
        %9587 = vmatprep.subr.mxu0 0.0
        %9588 = vmatpush1.msra.mxu0 0.0
        %9589 = vmatprep.subr.mxu0 0.0
        %9590 = vmatpush1.msra.mxu0 0.0
        %9591 = vmatprep.subr.mxu0 0.0
        %9592 = vmatpush1.msra.mxu0 0.0
        %9593 = vmatprep.subr.mxu0 0.0
        %9594 = vmatpush1.msra.mxu0 0.0
        %9595 = vmatprep.subr.mxu0 0.0
        %9596 = vmatpush1.msra.mxu0 0.0
        %9597 = vmatprep.subr.mxu0 0.0
        %9598 = vmatpush1.msra.mxu0 0.0
        %9599 = vmatprep.subr.mxu0 0.0
        %9600 = vmatpush1.msra.mxu0 0.0
        %9601 = vmatprep.subr.mxu0 0.0
        %9602 = vmatpush1.msra.mxu0 0.0
        %9603 = vmatprep.subr.mxu0 0.0
        %9604 = vmatpush1.msra.mxu0 0.0
        %9605 = vmatprep.subr.mxu0 0.0
        %9606 = vmatpush1.msra.mxu0 0.0
        %9607 = vmatprep.mubr.f32.mxu0 0.0
        %9608 = vmatmul.mubr.f32.gmra.mrb[0].mxu0 %v9443
        %v9609 = vpop.f32.mrb[0].mxu0
        %v9610 = vadd.f32 0.0, %v9609
        %v9611 = vpop.f32.mrb[0].mxu0
        %9612 = vmatprep.mubr.f32.mxu0 0.0
        %9613 = vmatmul.mubr.f32.gmra.mrb[0].mxu0 %v9446
        %v9614 = vpop.f32.mrb[0].mxu0
        %v9615 = vadd.f32 0.0, %v9614
        %v9616 = vpop.f32.mrb[0].mxu0
        %9617 = vmatprep.mubr.f32.mxu0 0.0
        %9618 = vmatmul.mubr.f32.gmra.mrb[0].mxu0 %v9449
        %v9619 = vpop.f32.mrb[0].mxu0
        %v9620 = vadd.f32 0.0, %v9619
        %v9621 = vpop.f32.mrb[0].mxu0
        %9622 = vmatprep.mubr.f32.mxu0 0.0
        %9623 = vmatmul.mubr.f32.gmra.mrb[0].mxu0 %v9452
        %v9624 = vpop.f32.mrb[0].mxu0
        %v9625 = vadd.f32 0.0, %v9624
        %v9626 = vpop.f32.mrb[0].mxu0
        %9627 = vdwg.mxu0
        %v9628 = vmul.f32 %v9438, %v9610
        %v9629 = vmul.f32 %v9439, %v9615
        %v9630 = vmul.f32 %v9440, %v9620
        %v9631 = vmul.f32 %v9441, %v9625
        %v9633 = vsel %vm335, %v9628, 0
        %v9636 = vsel %vm335, %v9629, 0
        %v9639 = vsel %vm335, %v9630, 0
        %v9642 = vsel %vm335, %v9631, 0
        %9644 = vmatprep.subr.mxu0 0.0
        %9645 = vmatpush1.msra.mxu0 %v4854
        %9646 = vmatprep.subr.mxu0 0.0
        %9647 = vmatpush1.msra.mxu0 %v4855
        %9648 = vmatprep.subr.mxu0 0.0
        %9649 = vmatpush1.msra.mxu0 %v4856
        %9650 = vmatprep.subr.mxu0 0.0
        %9651 = vmatpush1.msra.mxu0 %v4857
        %9652 = vmatprep.subr.mxu0 0.0
        %9653 = vmatpush1.msra.mxu0 %v4858
        %9654 = vmatprep.subr.mxu0 0.0
        %9655 = vmatpush1.msra.mxu0 0.0
        %9656 = vmatprep.subr.mxu0 0.0
        %9657 = vmatpush1.msra.mxu0 0.0
        %9658 = vmatprep.subr.mxu0 0.0
        %9659 = vmatpush1.msra.mxu0 0.0
        %9660 = vmatprep.subr.mxu0 0.0
        %9661 = vmatpush1.msra.mxu0 0.0
        %9662 = vmatprep.subr.mxu0 0.0
        %9663 = vmatpush1.msra.mxu0 0.0
        %9664 = vmatprep.subr.mxu0 0.0
        %9665 = vmatpush1.msra.mxu0 0.0
        %9666 = vmatprep.subr.mxu0 0.0
        %9667 = vmatpush1.msra.mxu0 0.0
        %9668 = vmatprep.subr.mxu0 0.0
        %9669 = vmatpush1.msra.mxu0 0.0
        %9670 = vmatprep.subr.mxu0 0.0
        %9671 = vmatpush1.msra.mxu0 0.0
        %9672 = vmatprep.subr.mxu0 0.0
        %9673 = vmatpush1.msra.mxu0 0.0
        %9674 = vmatprep.subr.mxu0 0.0
        %9675 = vmatpush1.msra.mxu0 0.0
        %9676 = vmatprep.subr.mxu0 0.0
        %9677 = vmatpush1.msra.mxu0 0.0
        %9678 = vmatprep.subr.mxu0 0.0
        %9679 = vmatpush1.msra.mxu0 0.0
        %9680 = vmatprep.subr.mxu0 0.0
        %9681 = vmatpush1.msra.mxu0 0.0
        %9682 = vmatprep.subr.mxu0 0.0
        %9683 = vmatpush1.msra.mxu0 0.0
        %9684 = vmatprep.subr.mxu0 0.0
        %9685 = vmatpush1.msra.mxu0 0.0
        %9686 = vmatprep.subr.mxu0 0.0
        %9687 = vmatpush1.msra.mxu0 0.0
        %9688 = vmatprep.subr.mxu0 0.0
        %9689 = vmatpush1.msra.mxu0 0.0
        %9690 = vmatprep.subr.mxu0 0.0
        %9691 = vmatpush1.msra.mxu0 0.0
        %9692 = vmatprep.subr.mxu0 0.0
        %9693 = vmatpush1.msra.mxu0 0.0
        %9694 = vmatprep.subr.mxu0 0.0
        %9695 = vmatpush1.msra.mxu0 0.0
        %9696 = vmatprep.subr.mxu0 0.0
        %9697 = vmatpush1.msra.mxu0 0.0
        %9698 = vmatprep.subr.mxu0 0.0
        %9699 = vmatpush1.msra.mxu0 0.0
        %9700 = vmatprep.subr.mxu0 0.0
        %9701 = vmatpush1.msra.mxu0 0.0
        %9702 = vmatprep.subr.mxu0 0.0
        %9703 = vmatpush1.msra.mxu0 0.0
        %9704 = vmatprep.subr.mxu0 0.0
        %9705 = vmatpush1.msra.mxu0 0.0
        %9706 = vmatprep.subr.mxu0 0.0
        %9707 = vmatpush1.msra.mxu0 0.0
        %9708 = vmatprep.mubr.f32.mxu0 0.0
        %9709 = vmatmul.mubr.f32.gmra.mrb[0].mxu0 %v9633
        %v9710 = vpop.f32.mrb[0].mxu0
        %v9711 = vadd.f32 0.0, %v9710
        %v9712 = vpop.f32.mrb[0].mxu0
        %9713 = vmatprep.mubr.f32.mxu0 0.0
        %9714 = vmatmul.mubr.f32.gmra.mrb[0].mxu0 %v9636
        %v9715 = vpop.f32.mrb[0].mxu0
        %v9716 = vadd.f32 0.0, %v9715
        %v9717 = vpop.f32.mrb[0].mxu0
        %9718 = vmatprep.mubr.f32.mxu0 0.0
        %9719 = vmatmul.mubr.f32.gmra.mrb[0].mxu0 %v9639
        %v9720 = vpop.f32.mrb[0].mxu0
        %v9721 = vadd.f32 0.0, %v9720
        %v9722 = vpop.f32.mrb[0].mxu0
        %9723 = vmatprep.mubr.f32.mxu0 0.0
        %9724 = vmatmul.mubr.f32.gmra.mrb[0].mxu0 %v9642
        %v9725 = vpop.f32.mrb[0].mxu0
        %v9726 = vadd.f32 0.0, %v9725
        %v9727 = vpop.f32.mrb[0].mxu0
        %9728 = vdwg.mxu0
        %v9730 = vsel %vm335, %v9539, 0
        %v9733 = vsel %vm335, %v9540, 0
        %v9736 = vsel %vm335, %v9541, 0
        %v9739 = vsel %vm335, %v9542, 0
        %9741 = vmatprep.subr.mxu0 0.0
        %9742 = vmatpush1.msra.mxu0 %v4760
        %9743 = vmatprep.subr.mxu0 0.0
        %9744 = vmatpush1.msra.mxu0 %v4761
        %9745 = vmatprep.subr.mxu0 0.0
        %9746 = vmatpush1.msra.mxu0 %v4762
        %9747 = vmatprep.subr.mxu0 0.0
        %9748 = vmatpush1.msra.mxu0 %v4763
        %9749 = vmatprep.subr.mxu0 0.0
        %9750 = vmatpush1.msra.mxu0 %v4764
        %9751 = vmatprep.subr.mxu0 0.0
        %9752 = vmatpush1.msra.mxu0 0.0
        %9753 = vmatprep.subr.mxu0 0.0
        %9754 = vmatpush1.msra.mxu0 0.0
        %9755 = vmatprep.subr.mxu0 0.0
        %9756 = vmatpush1.msra.mxu0 0.0
        %9757 = vmatprep.subr.mxu0 0.0
        %9758 = vmatpush1.msra.mxu0 0.0
        %9759 = vmatprep.subr.mxu0 0.0
        %9760 = vmatpush1.msra.mxu0 0.0
        %9761 = vmatprep.subr.mxu0 0.0
        %9762 = vmatpush1.msra.mxu0 0.0
        %9763 = vmatprep.subr.mxu0 0.0
        %9764 = vmatpush1.msra.mxu0 0.0
        %9765 = vmatprep.subr.mxu0 0.0
        %9766 = vmatpush1.msra.mxu0 0.0
        %9767 = vmatprep.subr.mxu0 0.0
        %9768 = vmatpush1.msra.mxu0 0.0
        %9769 = vmatprep.subr.mxu0 0.0
        %9770 = vmatpush1.msra.mxu0 0.0
        %9771 = vmatprep.subr.mxu0 0.0
        %9772 = vmatpush1.msra.mxu0 0.0
        %9773 = vmatprep.subr.mxu0 0.0
        %9774 = vmatpush1.msra.mxu0 0.0
        %9775 = vmatprep.subr.mxu0 0.0
        %9776 = vmatpush1.msra.mxu0 0.0
        %9777 = vmatprep.subr.mxu0 0.0
        %9778 = vmatpush1.msra.mxu0 0.0
        %9779 = vmatprep.subr.mxu0 0.0
        %9780 = vmatpush1.msra.mxu0 0.0
        %9781 = vmatprep.subr.mxu0 0.0
        %9782 = vmatpush1.msra.mxu0 0.0
        %9783 = vmatprep.subr.mxu0 0.0
        %9784 = vmatpush1.msra.mxu0 0.0
        %9785 = vmatprep.subr.mxu0 0.0
        %9786 = vmatpush1.msra.mxu0 0.0
        %9787 = vmatprep.subr.mxu0 0.0
        %9788 = vmatpush1.msra.mxu0 0.0
        %9789 = vmatprep.subr.mxu0 0.0
        %9790 = vmatpush1.msra.mxu0 0.0
        %9791 = vmatprep.subr.mxu0 0.0
        %9792 = vmatpush1.msra.mxu0 0.0
        %9793 = vmatprep.subr.mxu0 0.0
        %9794 = vmatpush1.msra.mxu0 0.0
        %9795 = vmatprep.subr.mxu0 0.0
        %9796 = vmatpush1.msra.mxu0 0.0
        %9797 = vmatprep.subr.mxu0 0.0
        %9798 = vmatpush1.msra.mxu0 0.0
        %9799 = vmatprep.subr.mxu0 0.0
        %9800 = vmatpush1.msra.mxu0 0.0
        %9801 = vmatprep.subr.mxu0 0.0
        %9802 = vmatpush1.msra.mxu0 0.0
        %9803 = vmatprep.subr.mxu0 0.0
        %9804 = vmatpush1.msra.mxu0 0.0
        %9805 = vmatprep.mubr.f32.mxu0 0.0
        %9806 = vmatmul.mubr.f32.gmra.mrb[0].mxu0 %v9730
        %v9807 = vpop.f32.mrb[0].mxu0
        %v9808 = vadd.f32 %v9711, %v9807
        %v9809 = vpop.f32.mrb[0].mxu0
        %9810 = vmatprep.mubr.f32.mxu0 0.0
        %9811 = vmatmul.mubr.f32.gmra.mrb[0].mxu0 %v9733
        %v9812 = vpop.f32.mrb[0].mxu0
        %v9813 = vadd.f32 %v9716, %v9812
        %v9814 = vpop.f32.mrb[0].mxu0
        %9815 = vmatprep.mubr.f32.mxu0 0.0
        %9816 = vmatmul.mubr.f32.gmra.mrb[0].mxu0 %v9736
        %v9817 = vpop.f32.mrb[0].mxu0
        %v9818 = vadd.f32 %v9721, %v9817
        %v9819 = vpop.f32.mrb[0].mxu0
        %9820 = vmatprep.mubr.f32.mxu0 0.0
        %9821 = vmatmul.mubr.f32.gmra.mrb[0].mxu0 %v9739
        %v9822 = vpop.f32.mrb[0].mxu0
        %v9823 = vadd.f32 %v9726, %v9822
        %v9824 = vpop.f32.mrb[0].mxu0
        %9825 = vdwg.mxu0
        %v9826 = vld [vmem:[#allocation6 + $0x360] sm:$0xff]
        %v9828 = vsel %vm3500, %v9808, 0
        %v9831 = vsel %vm3500, %v9813, 0
        %v9834 = vsel %vm3500, %v9818, 0
        %v9837 = vsel %vm3500, %v9823, 0
        %9839 = vmatprep.subr.mxu0 0.0
        %9840 = vmatpush1.msra.mxu0 %v9826
        %9841 = vmatprep.subr.mxu0 0.0
        %9842 = vmatpush1.msra.mxu0 0.0
        %9843 = vmatprep.subr.mxu0 0.0
        %9844 = vmatpush1.msra.mxu0 0.0
        %9845 = vmatprep.subr.mxu0 0.0
        %9846 = vmatpush1.msra.mxu0 0.0
        %9847 = vmatprep.subr.mxu0 0.0
        %9848 = vmatpush1.msra.mxu0 0.0
        %9849 = vmatprep.subr.mxu0 0.0
        %9850 = vmatpush1.msra.mxu0 0.0
        %9851 = vmatprep.subr.mxu0 0.0
        %9852 = vmatpush1.msra.mxu0 0.0
        %9853 = vmatprep.subr.mxu0 0.0
        %9854 = vmatpush1.msra.mxu0 0.0
        %9855 = vmatprep.subr.mxu0 0.0
        %9856 = vmatpush1.msra.mxu0 0.0
        %9857 = vmatprep.subr.mxu0 0.0
        %9858 = vmatpush1.msra.mxu0 0.0
        %9859 = vmatprep.subr.mxu0 0.0
        %9860 = vmatpush1.msra.mxu0 0.0
        %9861 = vmatprep.subr.mxu0 0.0
        %9862 = vmatpush1.msra.mxu0 0.0
        %9863 = vmatprep.subr.mxu0 0.0
        %9864 = vmatpush1.msra.mxu0 0.0
        %9865 = vmatprep.subr.mxu0 0.0
        %9866 = vmatpush1.msra.mxu0 0.0
        %9867 = vmatprep.subr.mxu0 0.0
        %9868 = vmatpush1.msra.mxu0 0.0
        %9869 = vmatprep.subr.mxu0 0.0
        %9870 = vmatpush1.msra.mxu0 0.0
        %9871 = vmatprep.subr.mxu0 0.0
        %9872 = vmatpush1.msra.mxu0 0.0
        %9873 = vmatprep.subr.mxu0 0.0
        %9874 = vmatpush1.msra.mxu0 0.0
        %9875 = vmatprep.subr.mxu0 0.0
        %9876 = vmatpush1.msra.mxu0 0.0
        %9877 = vmatprep.subr.mxu0 0.0
        %9878 = vmatpush1.msra.mxu0 0.0
        %9879 = vmatprep.subr.mxu0 0.0
        %9880 = vmatpush1.msra.mxu0 0.0
        %9881 = vmatprep.subr.mxu0 0.0
        %9882 = vmatpush1.msra.mxu0 0.0
        %9883 = vmatprep.subr.mxu0 0.0
        %9884 = vmatpush1.msra.mxu0 0.0
        %9885 = vmatprep.subr.mxu0 0.0
        %9886 = vmatpush1.msra.mxu0 0.0
        %9887 = vmatprep.subr.mxu0 0.0
        %9888 = vmatpush1.msra.mxu0 0.0
        %9889 = vmatprep.subr.mxu0 0.0
        %9890 = vmatpush1.msra.mxu0 0.0
        %9891 = vmatprep.subr.mxu0 0.0
        %9892 = vmatpush1.msra.mxu0 0.0
        %9893 = vmatprep.subr.mxu0 0.0
        %9894 = vmatpush1.msra.mxu0 0.0
        %9895 = vmatprep.subr.mxu0 0.0
        %9896 = vmatpush1.msra.mxu0 0.0
        %9897 = vmatprep.subr.mxu0 0.0
        %9898 = vmatpush1.msra.mxu0 0.0
        %9899 = vmatprep.subr.mxu0 0.0
        %9900 = vmatpush1.msra.mxu0 0.0
        %9901 = vmatprep.subr.mxu0 0.0
        %9902 = vmatpush1.msra.mxu0 0.0
        %9903 = vmatprep.mubr.f32.mxu0 0.0
        %9904 = vmatmul.mubr.f32.gmra.mrb[0].mxu0 %v9828
        %v9905 = vpop.f32.mrb[0].mxu0
        %v9906 = vadd.f32 0.0, %v9905
        %v9907 = vpop.f32.mrb[0].mxu0
        %9908 = vmatprep.mubr.f32.mxu0 0.0
        %9909 = vmatmul.mubr.f32.gmra.mrb[0].mxu0 %v9831
        %v9910 = vpop.f32.mrb[0].mxu0
        %v9911 = vadd.f32 0.0, %v9910
        %v9912 = vpop.f32.mrb[0].mxu0
        %9913 = vmatprep.mubr.f32.mxu0 0.0
        %9914 = vmatmul.mubr.f32.gmra.mrb[0].mxu0 %v9834
        %v9915 = vpop.f32.mrb[0].mxu0
        %v9916 = vadd.f32 0.0, %v9915
        %v9917 = vpop.f32.mrb[0].mxu0
        %9918 = vmatprep.mubr.f32.mxu0 0.0
        %9919 = vmatmul.mubr.f32.gmra.mrb[0].mxu0 %v9837
        %v9920 = vpop.f32.mrb[0].mxu0
        %v9921 = vadd.f32 0.0, %v9920
        %v9922 = vpop.f32.mrb[0].mxu0
        %9923 = vdwg.mxu0
        %v9924 = vadd.f32 %v8521, %v9906
        %v9925 = vadd.f32 %v8522, %v9911
        %v9926 = vadd.f32 %v8523, %v9916
        %v9927 = vadd.f32 %v8524, %v9921
        %v9928 = vld [vmem:[#allocation6 + $0x368] sm:$0x1]
        %v9929 = vlaneseq
        %v9930 = vshrl.u32 %v9929, 7
        %v9931 = vsub.s32 0, %v9930
        %v9932 = vrot.slane %v9928, %v9931
        %v9933 = vadd.f32 %v9924, %v9932
        %v9934 = vadd.f32 %v9925, %v9932
        %v9935 = vadd.f32 %v9926, %v9932
        %v9936 = vadd.f32 %v9927, %v9932
        %v9937 = vld [vmem:[#allocation6 + $0x370] sm:$0xff]
        %v9938 = vld [vmem:[#allocation6 + $0x378] sm:$0x1]
        %v9939 = vlaneseq
        %v9940 = vshrl.u32 %v9939, 7
        %v9941 = vsub.s32 0, %v9940
        %v9942 = vrot.slane %v9938, %v9941
        %v9944 = vsel %vm3500, %v9933, 0
        %v9947 = vsel %vm3500, %v9934, 0
        %v9950 = vsel %vm3500, %v9935, 0
        %v9953 = vsel %vm3500, %v9936, 0
        %9955 = vmatprep.subr.mxu0 0.0
        %9956 = vmatpush1.msra.mxu0 %v9937
        %9957 = vmatprep.subr.mxu0 0.0
        %9958 = vmatpush1.msra.mxu0 0.0
        %9959 = vmatprep.subr.mxu0 0.0
        %9960 = vmatpush1.msra.mxu0 0.0
        %9961 = vmatprep.subr.mxu0 0.0
        %9962 = vmatpush1.msra.mxu0 0.0
        %9963 = vmatprep.subr.mxu0 0.0
        %9964 = vmatpush1.msra.mxu0 0.0
        %9965 = vmatprep.subr.mxu0 0.0
        %9966 = vmatpush1.msra.mxu0 0.0
        %9967 = vmatprep.subr.mxu0 0.0
        %9968 = vmatpush1.msra.mxu0 0.0
        %9969 = vmatprep.subr.mxu0 0.0
        %9970 = vmatpush1.msra.mxu0 0.0
        %9971 = vmatprep.subr.mxu0 0.0
        %9972 = vmatpush1.msra.mxu0 0.0
        %9973 = vmatprep.subr.mxu0 0.0
        %9974 = vmatpush1.msra.mxu0 0.0
        %9975 = vmatprep.subr.mxu0 0.0
        %9976 = vmatpush1.msra.mxu0 0.0
        %9977 = vmatprep.subr.mxu0 0.0
        %9978 = vmatpush1.msra.mxu0 0.0
        %9979 = vmatprep.subr.mxu0 0.0
        %9980 = vmatpush1.msra.mxu0 0.0
        %9981 = vmatprep.subr.mxu0 0.0
        %9982 = vmatpush1.msra.mxu0 0.0
        %9983 = vmatprep.subr.mxu0 0.0
        %9984 = vmatpush1.msra.mxu0 0.0
        %9985 = vmatprep.subr.mxu0 0.0
        %9986 = vmatpush1.msra.mxu0 0.0
        %9987 = vmatprep.subr.mxu0 0.0
        %9988 = vmatpush1.msra.mxu0 0.0
        %9989 = vmatprep.subr.mxu0 0.0
        %9990 = vmatpush1.msra.mxu0 0.0
        %9991 = vmatprep.subr.mxu0 0.0
        %9992 = vmatpush1.msra.mxu0 0.0
        %9993 = vmatprep.subr.mxu0 0.0
        %9994 = vmatpush1.msra.mxu0 0.0
        %9995 = vmatprep.subr.mxu0 0.0
        %9996 = vmatpush1.msra.mxu0 0.0
        %9997 = vmatprep.subr.mxu0 0.0
        %9998 = vmatpush1.msra.mxu0 0.0
        %9999 = vmatprep.subr.mxu0 0.0
        %10000 = vmatpush1.msra.mxu0 0.0
        %10001 = vmatprep.subr.mxu0 0.0
        %10002 = vmatpush1.msra.mxu0 0.0
        %10003 = vmatprep.subr.mxu0 0.0
        %10004 = vmatpush1.msra.mxu0 0.0
        %10005 = vmatprep.subr.mxu0 0.0
        %10006 = vmatpush1.msra.mxu0 0.0
        %10007 = vmatprep.subr.mxu0 0.0
        %10008 = vmatpush1.msra.mxu0 0.0
        %10009 = vmatprep.subr.mxu0 0.0
        %10010 = vmatpush1.msra.mxu0 0.0
        %10011 = vmatprep.subr.mxu0 0.0
        %10012 = vmatpush1.msra.mxu0 0.0
        %10013 = vmatprep.subr.mxu0 0.0
        %10014 = vmatpush1.msra.mxu0 0.0
        %10015 = vmatprep.subr.mxu0 0.0
        %10016 = vmatpush1.msra.mxu0 0.0
        %10017 = vmatprep.subr.mxu0 0.0
        %10018 = vmatpush1.msra.mxu0 0.0
        %10019 = vmatprep.mubr.f32.mxu0 0.0
        %10020 = vmatmul.mubr.f32.gmra.mrb[0].mxu0 %v9944
        %v10021 = vpop.f32.mrb[0].mxu0
        %v10022 = vadd.f32 %v9942, %v10021
        %v10023 = vpop.f32.mrb[0].mxu0
        %10024 = vmatprep.mubr.f32.mxu0 0.0
        %10025 = vmatmul.mubr.f32.gmra.mrb[0].mxu0 %v9947
        %v10026 = vpop.f32.mrb[0].mxu0
        %v10027 = vadd.f32 %v9942, %v10026
        %v10028 = vpop.f32.mrb[0].mxu0
        %10029 = vmatprep.mubr.f32.mxu0 0.0
        %10030 = vmatmul.mubr.f32.gmra.mrb[0].mxu0 %v9950
        %v10031 = vpop.f32.mrb[0].mxu0
        %v10032 = vadd.f32 %v9942, %v10031
        %v10033 = vpop.f32.mrb[0].mxu0
        %10034 = vmatprep.mubr.f32.mxu0 0.0
        %10035 = vmatmul.mubr.f32.gmra.mrb[0].mxu0 %v9953
        %v10036 = vpop.f32.mrb[0].mxu0
        %v10037 = vadd.f32 %v9942, %v10036
        %v10038 = vpop.f32.mrb[0].mxu0
        %10039 = vdwg.mxu0
        %v10040 = vld [vmem:[#allocation6 + $0x380] sm:$0xff]
        %v10041 = vld [vmem:[#allocation6 + $0x388] sm:$0xff]
        %v10043 = vsel %vm1770, %v10022, 0
        %v10046 = vsel %vm1770, %v10027, 0
        %v10049 = vsel %vm1770, %v10032, 0
        %v10052 = vsel %vm1770, %v10037, 0
        %10054 = vmatprep.subr.mxu0 0.0
        %10055 = vmatpush1.msra.mxu0 %v10040
        %10056 = vmatprep.subr.mxu0 0.0
        %10057 = vmatpush1.msra.mxu0 %v10041
        %10058 = vmatprep.subr.mxu0 0.0
        %10059 = vmatpush1.msra.mxu0 0.0
        %10060 = vmatprep.subr.mxu0 0.0
        %10061 = vmatpush1.msra.mxu0 0.0
        %10062 = vmatprep.subr.mxu0 0.0
        %10063 = vmatpush1.msra.mxu0 0.0
        %10064 = vmatprep.subr.mxu0 0.0
        %10065 = vmatpush1.msra.mxu0 0.0
        %10066 = vmatprep.subr.mxu0 0.0
        %10067 = vmatpush1.msra.mxu0 0.0
        %10068 = vmatprep.subr.mxu0 0.0
        %10069 = vmatpush1.msra.mxu0 0.0
        %10070 = vmatprep.subr.mxu0 0.0
        %10071 = vmatpush1.msra.mxu0 0.0
        %10072 = vmatprep.subr.mxu0 0.0
        %10073 = vmatpush1.msra.mxu0 0.0
        %10074 = vmatprep.subr.mxu0 0.0
        %10075 = vmatpush1.msra.mxu0 0.0
        %10076 = vmatprep.subr.mxu0 0.0
        %10077 = vmatpush1.msra.mxu0 0.0
        %10078 = vmatprep.subr.mxu0 0.0
        %10079 = vmatpush1.msra.mxu0 0.0
        %10080 = vmatprep.subr.mxu0 0.0
        %10081 = vmatpush1.msra.mxu0 0.0
        %10082 = vmatprep.subr.mxu0 0.0
        %10083 = vmatpush1.msra.mxu0 0.0
        %10084 = vmatprep.subr.mxu0 0.0
        %10085 = vmatpush1.msra.mxu0 0.0
        %10086 = vmatprep.subr.mxu0 0.0
        %10087 = vmatpush1.msra.mxu0 0.0
        %10088 = vmatprep.subr.mxu0 0.0
        %10089 = vmatpush1.msra.mxu0 0.0
        %10090 = vmatprep.subr.mxu0 0.0
        %10091 = vmatpush1.msra.mxu0 0.0
        %10092 = vmatprep.subr.mxu0 0.0
        %10093 = vmatpush1.msra.mxu0 0.0
        %10094 = vmatprep.subr.mxu0 0.0
        %10095 = vmatpush1.msra.mxu0 0.0
        %10096 = vmatprep.subr.mxu0 0.0
        %10097 = vmatpush1.msra.mxu0 0.0
        %10098 = vmatprep.subr.mxu0 0.0
        %10099 = vmatpush1.msra.mxu0 0.0
        %10100 = vmatprep.subr.mxu0 0.0
        %10101 = vmatpush1.msra.mxu0 0.0
        %10102 = vmatprep.subr.mxu0 0.0
        %10103 = vmatpush1.msra.mxu0 0.0
        %10104 = vmatprep.subr.mxu0 0.0
        %10105 = vmatpush1.msra.mxu0 0.0
        %10106 = vmatprep.subr.mxu0 0.0
        %10107 = vmatpush1.msra.mxu0 0.0
        %10108 = vmatprep.subr.mxu0 0.0
        %10109 = vmatpush1.msra.mxu0 0.0
        %10110 = vmatprep.subr.mxu0 0.0
        %10111 = vmatpush1.msra.mxu0 0.0
        %10112 = vmatprep.subr.mxu0 0.0
        %10113 = vmatpush1.msra.mxu0 0.0
        %10114 = vmatprep.subr.mxu0 0.0
        %10115 = vmatpush1.msra.mxu0 0.0
        %10116 = vmatprep.subr.mxu0 0.0
        %10117 = vmatpush1.msra.mxu0 0.0
        %10118 = vmatprep.mubr.f32.mxu0 0.0
        %10119 = vmatmul.mubr.f32.gmra.mrb[0].mxu0 %v10043
        %v10120 = vpop.f32.mrb[0].mxu0
        %v10121 = vadd.f32 0.0, %v10120
        %v10122 = vpop.f32.mrb[0].mxu0
        %10123 = vmatprep.mubr.f32.mxu0 0.0
        %10124 = vmatmul.mubr.f32.gmra.mrb[0].mxu0 %v10046
        %v10125 = vpop.f32.mrb[0].mxu0
        %v10126 = vadd.f32 0.0, %v10125
        %v10127 = vpop.f32.mrb[0].mxu0
        %10128 = vmatprep.mubr.f32.mxu0 0.0
        %10129 = vmatmul.mubr.f32.gmra.mrb[0].mxu0 %v10049
        %v10130 = vpop.f32.mrb[0].mxu0
        %v10131 = vadd.f32 0.0, %v10130
        %v10132 = vpop.f32.mrb[0].mxu0
        %10133 = vmatprep.mubr.f32.mxu0 0.0
        %10134 = vmatmul.mubr.f32.gmra.mrb[0].mxu0 %v10052
        %v10135 = vpop.f32.mrb[0].mxu0
        %v10136 = vadd.f32 0.0, %v10135
        %v10137 = vpop.f32.mrb[0].mxu0
        %10138 = vdwg.mxu0
        %v10139 = vadd.f32 %v9933, %v10121
        %v10140 = vadd.f32 %v9934, %v10126
        %v10141 = vadd.f32 %v9935, %v10131
        %v10142 = vadd.f32 %v9936, %v10136
        %v10143 = vld [vmem:[#allocation6 + $0x390] sm:$0x1]
        %v10144 = vlaneseq
        %v10145 = vshrl.u32 %v10144, 7
        %v10146 = vsub.s32 0, %v10145
        %v10147 = vrot.slane %v10143, %v10146
        %v10148 = vadd.f32 %v10139, %v10147
        %v10149 = vadd.f32 %v10140, %v10147
        %v10150 = vadd.f32 %v10141, %v10147
        %v10151 = vadd.f32 %v10142, %v10147
        %v10153 = vsel %vm3500, %v10148, 0
        %v10156 = vsel %vm3500, %v10149, 0
        %v10159 = vsel %vm3500, %v10150, 0
        %v10162 = vsel %vm3500, %v10151, 0
        %10164 = vmatprep.subr.mxu0 0.0
        %10165 = vmatpush1.msra.mxu0 %v5379
        %10166 = vmatprep.subr.mxu0 0.0
        %10167 = vmatpush1.msra.mxu0 0.0
        %10168 = vmatprep.subr.mxu0 0.0
        %10169 = vmatpush1.msra.mxu0 0.0
        %10170 = vmatprep.subr.mxu0 0.0
        %10171 = vmatpush1.msra.mxu0 0.0
        %10172 = vmatprep.subr.mxu0 0.0
        %10173 = vmatpush1.msra.mxu0 0.0
        %10174 = vmatprep.subr.mxu0 0.0
        %10175 = vmatpush1.msra.mxu0 0.0
        %10176 = vmatprep.subr.mxu0 0.0
        %10177 = vmatpush1.msra.mxu0 0.0
        %10178 = vmatprep.subr.mxu0 0.0
        %10179 = vmatpush1.msra.mxu0 0.0
        %10180 = vmatprep.subr.mxu0 0.0
        %10181 = vmatpush1.msra.mxu0 0.0
        %10182 = vmatprep.subr.mxu0 0.0
        %10183 = vmatpush1.msra.mxu0 0.0
        %10184 = vmatprep.subr.mxu0 0.0
        %10185 = vmatpush1.msra.mxu0 0.0
        %10186 = vmatprep.subr.mxu0 0.0
        %10187 = vmatpush1.msra.mxu0 0.0
        %10188 = vmatprep.subr.mxu0 0.0
        %10189 = vmatpush1.msra.mxu0 0.0
        %10190 = vmatprep.subr.mxu0 0.0
        %10191 = vmatpush1.msra.mxu0 0.0
        %10192 = vmatprep.subr.mxu0 0.0
        %10193 = vmatpush1.msra.mxu0 0.0
        %10194 = vmatprep.subr.mxu0 0.0
        %10195 = vmatpush1.msra.mxu0 0.0
        %10196 = vmatprep.subr.mxu0 0.0
        %10197 = vmatpush1.msra.mxu0 0.0
        %10198 = vmatprep.subr.mxu0 0.0
        %10199 = vmatpush1.msra.mxu0 0.0
        %10200 = vmatprep.subr.mxu0 0.0
        %10201 = vmatpush1.msra.mxu0 0.0
        %10202 = vmatprep.subr.mxu0 0.0
        %10203 = vmatpush1.msra.mxu0 0.0
        %10204 = vmatprep.subr.mxu0 0.0
        %10205 = vmatpush1.msra.mxu0 0.0
        %10206 = vmatprep.subr.mxu0 0.0
        %10207 = vmatpush1.msra.mxu0 0.0
        %10208 = vmatprep.subr.mxu0 0.0
        %10209 = vmatpush1.msra.mxu0 0.0
        %10210 = vmatprep.subr.mxu0 0.0
        %10211 = vmatpush1.msra.mxu0 0.0
        %10212 = vmatprep.subr.mxu0 0.0
        %10213 = vmatpush1.msra.mxu0 0.0
        %10214 = vmatprep.subr.mxu0 0.0
        %10215 = vmatpush1.msra.mxu0 0.0
        %10216 = vmatprep.subr.mxu0 0.0
        %10217 = vmatpush1.msra.mxu0 0.0
        %10218 = vmatprep.subr.mxu0 0.0
        %10219 = vmatpush1.msra.mxu0 0.0
        %10220 = vmatprep.subr.mxu0 0.0
        %10221 = vmatpush1.msra.mxu0 0.0
        %10222 = vmatprep.subr.mxu0 0.0
        %10223 = vmatpush1.msra.mxu0 0.0
        %10224 = vmatprep.subr.mxu0 0.0
        %10225 = vmatpush1.msra.mxu0 0.0
        %10226 = vmatprep.subr.mxu0 0.0
        %10227 = vmatpush1.msra.mxu0 0.0
        %10228 = vmatprep.mubr.f32.mxu0 0.0
        %10229 = vmatmul.mubr.f32.gmra.mrb[0].mxu0 %v10153
        %v10230 = vpop.f32.mrb[0].mxu0
        %v10231 = vadd.f32 %v5384, %v10230
        %v10232 = vpop.f32.mrb[0].mxu0
        %10233 = vmatprep.mubr.f32.mxu0 0.0
        %10234 = vmatmul.mubr.f32.gmra.mrb[0].mxu0 %v10156
        %v10235 = vpop.f32.mrb[0].mxu0
        %v10236 = vadd.f32 %v5384, %v10235
        %v10237 = vpop.f32.mrb[0].mxu0
        %10238 = vmatprep.mubr.f32.mxu0 0.0
        %10239 = vmatmul.mubr.f32.gmra.mrb[0].mxu0 %v10159
        %v10240 = vpop.f32.mrb[0].mxu0
        %v10241 = vadd.f32 %v5384, %v10240
        %v10242 = vpop.f32.mrb[0].mxu0
        %10243 = vmatprep.mubr.f32.mxu0 0.0
        %10244 = vmatmul.mubr.f32.gmra.mrb[0].mxu0 %v10162
        %v10245 = vpop.f32.mrb[0].mxu0
        %v10246 = vadd.f32 %v5384, %v10245
        %v10247 = vpop.f32.mrb[0].mxu0
        %10248 = vdwg.mxu0
        %v10249 = vsub.f32 0.0, %v10231
        %v10250 = vsub.f32 0.0, %v10236
        %v10251 = vsub.f32 0.0, %v10241
        %v10252 = vsub.f32 0.0, %v10246
        %v10253 = vmul.f32 %v10249, 1.442695
        %v10254 = vpow.pop %v10253
        %v10255 = vmul.f32 %v10250, 1.442695
        %v10256 = vpow.pop %v10255
        %v10257 = vmul.f32 %v10251, 1.442695
        %v10258 = vpow.pop %v10257
        %v10259 = vmul.f32 %v10252, 1.442695
        %v10260 = vpow.pop %v10259
        %v10261 = vadd.f32 %v10254, 1.0
        %v10262 = vadd.f32 %v10256, 1.0
        %v10263 = vadd.f32 %v10258, 1.0
        %v10264 = vadd.f32 %v10260, 1.0
        %v10265 = vrcp.pop %v10261
        %v10266 = vrcp.pop %v10262
        %v10267 = vrcp.pop %v10263
        %v10268 = vrcp.pop %v10264
        %10269 = vst.msk [vmem:[%s319] sm:$0xff] %vm4549, %v5498
        %10270 = vst.msk [vmem:[%s319 + $0x8] sm:$0xff] %vm4549, %v5499
        %10271 = vst.msk [vmem:[%s319 + $0x10] sm:$0xff] %vm4549, %v5500
        %10272 = vst.msk [vmem:[%s319 + $0x18] sm:$0xff] %vm4549, %v5501
        %10277 = vrot.lane.b32.xlu0 %v10265, 4
        %v10278 = vpop.permute.xlu0 %10277
        %10279 = vrot.lane.b32.xlu0 %v10266, 4
        %v10280 = vpop.permute.xlu0 %10279
        %10281 = vrot.lane.b32.xlu0 %v10267, 4
        %v10282 = vpop.permute.xlu0 %10281
        %10283 = vrot.lane.b32.xlu0 %v10268, 4
        %v10284 = vpop.permute.xlu0 %10283
        %vm10289 = vcmask 64544
        %10290 = vst.msk [vmem:[%s319] sm:$0xff] %vm10289, %v10278
        %10291 = vst.msk [vmem:[%s319 + $0x8] sm:$0xff] %vm10289, %v10280
        %10292 = vst.msk [vmem:[%s319 + $0x10] sm:$0xff] %vm10289, %v10282
        %10293 = vst.msk [vmem:[%s319 + $0x18] sm:$0xff] %vm10289, %v10284
        %s10294 = smul.u32 4, %s19
        %p10295 = scmp.lt.s32.totalorder %s10294, 15
        %s10296 = scalar_select %p10295, %s10294, 15
        %s10297 = smul.addr %s10296, 8
        %s10298 = scalar_lea.vmem %s6, %s10297
        // Predicated region
        $region57: #{forward.1} parent=43 // pred_check
          %p10299 = pneg %p173
        $region58: #{forward.1} parent=43 // pred_check_branch
          %10301 = sbr.rel (%p10299) target = $region60
        $region59: #{forward.1} parent=43 // pred_region
          %s10302 = smul.u32 4, %s19
        $region60: #{forward.1} parent=43 // pred_fallthru
          _
      $region44: #{forward.1} parent=5 // pred_fallthru
        _
      %p10303 = scmp.le.s32.totalorder 2, %s14
      // Predicated region
      $region61: #{forward.1} parent=5 // pred_check
        %p10304 = pneg %p10303
      $region62: #{forward.1} parent=5 // pred_check_branch
        %10306 = sbr.rel (%p10304) target = $region64
      $region63: #{forward.1} parent=5 // pred_region
        %s10307 = ssub.s32 %s14, 2
        // Predicated region
        $region65: #{forward.1} parent=63 // pred_check
          %p10308 = pneg %p179
        $region66: #{forward.1} parent=63 // pred_check_branch
          %10310 = sbr.rel (%p10308) target = $region68
        $region67: #{forward.1} parent=63 // pred_region
          %s10311 = smul.u32 4, %s20
          %p10312 = scmp.lt.s32.totalorder %s10311, 15
          %s10313 = scalar_select %p10312, %s10311, 15
          %s10314 = smul.addr %s10313, 8
          %s10315 = scalar_lea.vmem %s6, %s10314
        $region68: #{forward.1} parent=63 // pred_fallthru
          _
      $region64: #{forward.1} parent=5 // pred_fallthru
        _
    $region6: #{forward.1} parent=1 // loop_footer
      %s18 = sadd.s32 1, %s14
    $region7: #{forward.1} parent=1 // loop_footer_branch
      %13 = sbr.rel target = $region3
    $region8: #{forward.1} parent=1 // loop_exit
      _
    %10316 = vsyncpa [#allocation3], 1
    %s10317 = scalar_lea.sflag [#allocation3], 1
    %10318 = vsyncpa %s10317, 1
    %10319 = vsyncpa [#allocation5], 1

</llo_original>
